<compile_context>
chip_gen: v5e
topology: v5e:2x2
jax: 0.10.0
libtpu: 0.0.40
codegen_flags: <defaults>
</compile_context>

<pallas_src>
import functools
import math

import numpy as np

import jax
import jax.numpy as jnp
from jax import lax
from jax.experimental import pallas as pl
from jax.experimental.pallas import tpu as pltpu


# ----------------------------------------------------------------------------
# Fused kernel: all pyramid paths + batch + transformer layers + regressor.
# grid = (num_paths, num_layers): paths "parallel", layers "arbitrary".
# ----------------------------------------------------------------------------

def _layernorm(x, g, b):
    mean = jnp.mean(x, axis=-1, keepdims=True)
    var = jnp.mean(jnp.square(x - mean), axis=-1, keepdims=True)
    return (x - mean) * lax.rsqrt(var + 1e-5) * g + b


def _pst_kernel(x_ref, pm_ref, ew_ref, add_ref, km_ref,
                wqkv_ref, bqkv_ref, wo_ref, bo_ref,
                ln1g_ref, ln1b_ref, w1_ref, b1_ref,
                w2_ref, b2_ref, ln2g_ref, ln2b_ref,
                rw1_ref, rb1_ref, rw2_ref, rb2_ref, rw3_ref, rb3_ref,
                tok_out_ref, y_out_ref, tok_ref,
                *, batch, num_heads):
    f32, bf16 = jnp.float32, jnp.bfloat16
    l = pl.program_id(1)
    S_pad, E = add_ref.shape
    dh = E // num_heads
    scale = 1.0 / math.sqrt(dh)

    # -- layer 0 only: adaptive-avg-pool (f32 matmul) + 1x1 embed + cls/pos.
    @pl.when(l == 0)
    def _embed():
        pm = pm_ref[...]                  # (S_pad, HW) f32; zero rows = cls/pad
        ew = ew_ref[...]                  # (C, E) bf16
        add = add_ref[...]                # (S_pad, E): cls+pos / bias+pos / 0
        for b in range(batch):            # static, small
            pooled = jnp.dot(pm, x_ref[b], preferred_element_type=f32)
            tok_ref[b * S_pad:(b + 1) * S_pad, :] = (
                jnp.dot(pooled.astype(bf16), ew, preferred_element_type=f32)
                + add)

    tok = tok_ref[...]                    # (B*S_pad, E) f32 carried across l
    kmask = km_ref[...]                   # (1, S_pad): 0 valid / -1e30 pad keys

    # ---- multi-head self attention (one encoder layer) ----
    qkv = jnp.dot(tok.astype(bf16), wqkv_ref[...],
                  preferred_element_type=f32) + bqkv_ref[...]   # (B*S_pad, 3E)

    ctx_rows = []
    for b in range(batch):                # row slices are sublane-aligned
        r0 = b * S_pad
        heads = []
        for h in range(num_heads):
            q = qkv[r0:r0 + S_pad, h * dh:(h + 1) * dh]
            k = qkv[r0:r0 + S_pad, E + h * dh:E + (h + 1) * dh]
            v = qkv[r0:r0 + S_pad, 2 * E + h * dh:2 * E + (h + 1) * dh]
            s = lax.dot_general(q, k, (((1,), (1,)), ((), ())),
                                preferred_element_type=f32) * scale + kmask
            s = s - jnp.max(s, axis=-1, keepdims=True)
            p = jnp.exp(s)
            p = p * pl.reciprocal(jnp.sum(p, axis=-1, keepdims=True),
                                  approx=True)
            heads.append(jnp.dot(p.astype(bf16), v.astype(bf16),
                                 preferred_element_type=f32))   # (S_pad, dh)
        ctx_rows.append(jnp.concatenate(heads, axis=-1))        # (S_pad, E)
    ctx = jnp.concatenate(ctx_rows, axis=0)                     # (B*S_pad, E)
    # single output projection per layer (replaces per-head K=dh matmuls)
    attn = jnp.dot(ctx.astype(bf16), wo_ref[...],
                   preferred_element_type=f32) + bo_ref[...]

    # ---- post-norm residual blocks ----
    h1 = _layernorm(tok + attn, ln1g_ref[...], ln1b_ref[...])
    f = jnp.dot(h1.astype(bf16), w1_ref[...],
                preferred_element_type=f32) + b1_ref[...]
    f = jnp.maximum(f, 0.0)                                     # ReLU FFN
    f = jnp.dot(f.astype(bf16), w2_ref[...],
                preferred_element_type=f32) + b2_ref[...]
    new_tok = _layernorm(h1 + f, ln2g_ref[...], ln2b_ref[...])
    tok_ref[...] = new_tok

    # -- last layer only: emit tokens + run the regressor head on the cls
    #    token.  Every path writes its own y block (keeps the "parallel" path
    #    axis race-free); the wrapper keeps only path 0, matching the module.
    @pl.when(l == pl.num_programs(1) - 1)
    def _finish():
        tok_out_ref[...] = new_tok.reshape(batch, S_pad, E)
        cls_rows = jnp.concatenate(
            [new_tok[b * S_pad:b * S_pad + 1, :] for b in range(batch)],
            axis=0)                                             # (B, E)
        hr = jnp.dot(cls_rows, rw1_ref[...],
                     preferred_element_type=f32) + rb1_ref[...]
        hr = jnp.where(hr >= 0, hr, 0.01 * hr)
        hr = jnp.dot(hr, rw2_ref[...],
                     preferred_element_type=f32) + rb2_ref[...]
        hr = jnp.where(hr >= 0, hr, 0.01 * hr)
        y = jnp.dot(hr, rw3_ref[...],
                    preferred_element_type=f32) + rb3_ref[...]
        y = y + 0.1                                             # eps
        # exact division (not approx reciprocal) for the final normalization
        y_out_ref[...] = y / jnp.sum(y, axis=1, keepdims=True)


def run_pst_paths(x_flat, pp, *, num_heads):
    """x_flat: (B, H*W, C) f32 -> (tokens (P, B, S_pad, E), y (P, B, 256))."""
    B, HW, C = x_flat.shape
    P, S_pad, _ = pp["poolmat"].shape
    E = pp["embed_w"].shape[-1]
    L = pp["wqkv"].shape[1]
    n_bins = pp["rw3"].shape[-1]

    per_path = [pp["poolmat"], pp["embed_w"], pp["tok_add"], pp["kmask"]]
    per_layer = [pp["wqkv"], pp["bqkv"], pp["wo"], pp["bo"],
                 pp["ln1_g"], pp["ln1_b"], pp["w1"], pp["b1"],
                 pp["w2"], pp["b2"], pp["ln2_g"], pp["ln2_b"]]
    const = [pp["rw1"], pp["rb1"], pp["rw2"], pp["rb2"], pp["rw3"], pp["rb3"]]

    def const_spec(a):
        nd = a.ndim
        return pl.BlockSpec(a.shape, lambda p, l, _nd=nd: (0,) * _nd)

    def path_spec(a):           # (P, d1, d2) -> resident only for current path
        return pl.BlockSpec((None,) + a.shape[1:], lambda p, l: (p, 0, 0))

    def layer_spec(a):          # (P, L, d1, d2) -> one layer resident at a time
        return pl.BlockSpec((None, None) + a.shape[2:],
                            lambda p, l: (p, l, 0, 0))

    in_specs = ([const_spec(x_flat)]
                + [path_spec(a) for a in per_path]
                + [layer_spec(a) for a in per_layer]
                + [const_spec(a) for a in const])

    return pl.pallas_call(
        functools.partial(_pst_kernel, batch=B, num_heads=num_heads),
        grid=(P, L),
        out_shape=(jax.ShapeDtypeStruct((P, B, S_pad, E), jnp.float32),
                   jax.ShapeDtypeStruct((P, B, n_bins), jnp.float32)),
        in_specs=in_specs,
        out_specs=(pl.BlockSpec((None, B, S_pad, E), lambda p, l: (p, 0, 0, 0)),
                   pl.BlockSpec((None, B, n_bins), lambda p, l: (p, 0, 0))),
        scratch_shapes=[pltpu.VMEM((B * S_pad, E), jnp.float32)],
        compiler_params=pltpu.CompilerParams(
            dimension_semantics=("parallel", "arbitrary"),
            vmem_limit_bytes=64 * 1024 * 1024),
    )(x_flat, *per_path, *per_layer, *const)


# ----------------------------------------------------------------------------
# Bottleneck: 3x3 conv (im2col matmul, BN folded) + LeakyReLU.
# Computed transposed so the stored tile is (Cout, tile_n) — lane dense.
# ----------------------------------------------------------------------------

def _bottleneck_kernel(w_ref, x_ref, b_ref, o_ref):
    y = jnp.dot(w_ref[...], x_ref[...], preferred_element_type=jnp.float32)
    y = y + b_ref[...]
    o_ref[...] = jnp.where(y >= 0, y, 0.01 * y)        # LeakyReLU(0.01)


def run_bottleneck(x_cat, bp):
    """x_cat: (B, Cc, H, W) -> (B, Cout, H, W)."""
    B, Cc, H, W = x_cat.shape
    Cout = bp["wmat"].shape[0]
    N = B * H * W

    # TODO(synk): at large H, W pull this 9-tap gather (and the upsample+concat
    # feeding it) into the kernel to avoid the HBM read amplification; at these
    # shapes the intermediates are <2 MiB and fused by XLA under jit.
    xp = jnp.pad(x_cat, ((0, 0), (0, 0), (1, 1), (1, 1)))
    taps = [xp[:, :, ky:ky + H, kx:kx + W] for ky in range(3) for kx in range(3)]
    xcol = jnp.stack(taps, 0)                            # (9, B, Cc, H, W)
    xcol = xcol.transpose(0, 2, 1, 3, 4).reshape(9 * Cc, N).astype(jnp.bfloat16)

    # Largest power-of-two multiple of 128 (<=2048) dividing N; else full N.
    tile_n = N
    for cand in (2048, 1024, 512, 256, 128):
        if N % cand == 0:
            tile_n = cand
            break
    grid_n = N // tile_n

    yT = pl.pallas_call(
        _bottleneck_kernel,
        out_shape=jax.ShapeDtypeStruct((Cout, N), jnp.float32),
        grid=(grid_n,),
        in_specs=[
            pl.BlockSpec(bp["wmat"].shape, lambda n: (0, 0)),
            pl.BlockSpec((9 * Cc, tile_n), lambda n: (0, n)),
            pl.BlockSpec(bp["bias"].shape, lambda n: (0, 0)),
        ],
        out_specs=pl.BlockSpec((Cout, tile_n), lambda n: (0, n)),
        compiler_params=pltpu.CompilerParams(
            dimension_semantics=("parallel",),
            vmem_limit_bytes=64 * 1024 * 1024),
    )(bp["wmat"], xcol, bp["bias"])

    return yT.reshape(Cout, B, H, W).transpose(1, 0, 2, 3)


# ----------------------------------------------------------------------------
# JAX glue
# ----------------------------------------------------------------------------

def nearest_interpolate(x, H, W):
    """F.interpolate(mode='nearest'): src = floor(dst * in / out)."""
    B, C, h, w = x.shape
    row_idx = (jnp.arange(H) * h) // H
    col_idx = (jnp.arange(W) * w) // W
    return x[:, :, row_idx][:, :, :, col_idx]


def pyramid_scene_transformer_forward(x, prep, *, sizes, num_heads):
    B, C, H, W = x.shape
    x_flat = x.transpose(0, 2, 3, 1).reshape(B, H * W, C)

    tokens, y_all = run_pst_paths(x_flat, prep["pst"], num_heads=num_heads)
    E = tokens.shape[-1]
    y = y_all[0]                                          # regressor on path 0

    maps = []
    for i, (ph, pw) in enumerate(sizes):
        fmap = tokens[i, :, 1:1 + ph * pw, :].transpose(0, 2, 1)
        maps.append(nearest_interpolate(fmap.reshape(B, E, ph, pw), H, W))

    bottle = run_bottleneck(jnp.concatenate(maps, axis=1), prep["bottleneck"])
    return y, bottle


# ----------------------------------------------------------------------------
# Parameter init (PyTorch-style layout) + one-time kernel-ready preparation
# ----------------------------------------------------------------------------

def init_params(key, in_channels, E, num_heads, num_layers, ff_dim, sizes):
    kit = iter(jax.random.split(key, 4096))

    def w(shape, scale=0.05):
        return jax.random.normal(next(kit), shape, jnp.float32) * scale

    zeros = lambda s: jnp.zeros(s, jnp.float32)
    ones = lambda s: jnp.ones(s, jnp.float32)

    paths = []
    for (ph, pw) in sizes:
        S = ph * pw + 1
        layers = []
        for _ in range(num_layers):
            layers.append(dict(
                wqkv=w((E, 3 * E)), bqkv=zeros((3 * E,)),
                wo=w((E, E)), bo=zeros((E,)),
                ln1_g=ones((E,)), ln1_b=zeros((E,)),
                w1=w((E, ff_dim)), b1=zeros((ff_dim,)),
                w2=w((ff_dim, E)), b2=zeros((E,)),
                ln2_g=ones((E,)), ln2_b=zeros((E,)),
            ))
        paths.append(dict(
            embed_w=w((in_channels, E)), embed_b=zeros((E,)),
            cls_token=w((E,)), pos_emb=w((S, E)),
            layers=layers,
        ))

    bottleneck_p = dict(
        conv_w=w((in_channels, E * len(sizes), 3, 3)),
        bn_gamma=ones((in_channels,)), bn_beta=zeros((in_channels,)),
        bn_mean=zeros((in_channels,)), bn_var=ones((in_channels,)),
    )
    regressor_p = dict(
        w1=w((E, 128)), b1=zeros((128,)),
        w2=w((128, 128)), b2=zeros((128,)),
        w3=w((128, 256)), b3=zeros((256,)),
    )
    return dict(embedding_dim=E, paths=paths,
                bottleneck=bottleneck_p, regressor=regressor_p)


def _adaptive_pool_matrix(in_size, out_size):
    """(out_size, in_size) row-averaging matrix with PyTorch adaptive windows."""
    m = np.zeros((out_size, in_size), np.float32)
    for i in range(out_size):
        s = (i * in_size) // out_size
        e = -((-(i + 1) * in_size) // out_size)      # ceil
        m[i, s:e] = 1.0 / (e - s)
    return m


def prepare_params(params, sizes, H, W):
    """One-time layout / dtype transformation into kernel-ready form."""
    E = params["embedding_dim"]
    bf16, f32 = jnp.bfloat16, jnp.float32

    seq_lens = [ph * pw + 1 for ph, pw in sizes]
    S_pad = ((max(seq_lens) + 7) // 8) * 8          # sublane-aligned padded seq

    pool_l, add_l, mask_l, ew_l = [], [], [], []
    layer_w = ["wqkv", "wo", "w1", "w2"]
    layer_v = ["bqkv", "bo", "ln1_g", "ln1_b", "b1", "b2", "ln2_g", "ln2_b"]
    stacks = {n: [] for n in layer_w + layer_v}

    for pp, (ph, pw) in zip(params["paths"], sizes):
        S_p = ph * pw + 1

        # pooling matrix: row 0 (cls slot) and rows >= S_p (pad) are all-zero.
        pm = np.zeros((S_pad, H * W), np.float32)
        pm[1:S_p] = np.kron(_adaptive_pool_matrix(H, ph),
                            _adaptive_pool_matrix(W, pw))
        pool_l.append(pm)

        # additive term: row0 = cls + pos[0]; rows 1:S_p = embed bias + pos[1:].
        add = jnp.zeros((S_pad, E), f32)
        add = add.at[0:1].set((pp["cls_token"] + pp["pos_emb"][0]).reshape(1, E))
        add = add.at[1:S_p].set(pp["embed_b"].reshape(1, E) + pp["pos_emb"][1:])
        add_l.append(add)

        # additive key mask: 0 for valid tokens, -1e30 for padded ones.
        km = np.full((1, S_pad), -1e30, np.float32)
        km[0, :S_p] = 0.0
        mask_l.append(km)

        ew_l.append(pp["embed_w"])

        layers = pp["layers"]
        for n in layer_w:
            stacks[n].append(jnp.stack([lp[n] for lp in layers], 0))
        for n in layer_v:
            stacks[n].append(jnp.stack([lp[n].reshape(1, -1) for lp in layers], 0))

    rp = params["regressor"]
    pst = dict(
        poolmat=jnp.asarray(np.stack(pool_l, 0), f32),   # f32 (review concern)
        tok_add=jnp.stack(add_l, 0).astype(f32),
        kmask=jnp.asarray(np.stack(mask_l, 0), f32),
        embed_w=jnp.stack(ew_l, 0).astype(bf16),
        # regressor weights (folded into the PST kernel epilogue), kept f32
        rw1=rp["w1"].astype(f32), rb1=rp["b1"].reshape(1, -1).astype(f32),
        rw2=rp["w2"].astype(f32), rb2=rp["b2"].reshape(1, -1).astype(f32),
        rw3=rp["w3"].astype(f32), rb3=rp["b3"].reshape(1, -1).astype(f32),
    )
    for n in layer_w:
        pst[n] = jnp.stack(stacks[n], 0).astype(bf16)    # (P, L, d1, d2)
    for n in layer_v:
        pst[n] = jnp.stack(stacks[n], 0).astype(f32)     # (P, L, 1, d)

    bp = params["bottleneck"]
    Cout, Cc = bp["conv_w"].shape[0], bp["conv_w"].shape[1]
    wmat = bp["conv_w"].transpose(0, 2, 3, 1).reshape(Cout, 9 * Cc)
    scale = bp["bn_gamma"] / jnp.sqrt(bp["bn_var"] + 1e-5)   # eval-mode BN fold
    wmat = (wmat * scale[:, None]).astype(bf16)
    bias = (bp["bn_beta"] - bp["bn_mean"] * scale).reshape(Cout, 1).astype(f32)

    return dict(pst=pst, bottleneck=dict(wmat=wmat, bias=bias))


# ----------------------------------------------------------------------------
# Demo
# ----------------------------------------------------------------------------

if __name__ == "__main__":
    key = jax.random.PRNGKey(0)
    kx, kp = jax.random.split(key)

    # Small shapes consistent with the module.
    B, C, H, W = 2, 8, 16, 16
    E, num_heads, num_layers, ff_dim = 32, 4, 2, 64
    sizes = [[8, 10], [4, 5], [2, 3]]

    x = jax.random.normal(kx, (B, C, H, W), jnp.float32)
    params = init_params(kp, C, E, num_heads, num_layers, ff_dim, sizes)
    prep = prepare_params(params, sizes, H, W)

    fwd = jax.jit(functools.partial(
        pyramid_scene_transformer_forward,
        sizes=tuple(tuple(s) for s in sizes),
        num_heads=num_heads))

    y, bottle = fwd(x, prep)
    jax.block_until_ready((y, bottle))

    assert y.shape == (B, 256), y.shape
    assert bottle.shape == (B, C, H, W), bottle.shape
    assert bool(jnp.all(jnp.isfinite(y))) and bool(jnp.all(jnp.isfinite(bottle)))
    assert bool(jnp.allclose(jnp.sum(y, axis=1), 1.0, atol=1e-3))
    print("KERNEL_OK")
</pallas_src>

<mosaic_0001>
module attributes {stable_mosaic.version = 11 : i64} {
  func.func @_pst_kernel(%arg0: i32, %arg1: i32, %arg2: memref<2x256x8xf32, #tpu.memory_space<vmem>>, %arg3: memref<1x88x256xf32, #tpu.memory_space<vmem>>, %arg4: memref<1x8x32xbf16, #tpu.memory_space<vmem>>, %arg5: memref<1x88x32xf32, #tpu.memory_space<vmem>>, %arg6: memref<1x1x88xf32, #tpu.memory_space<vmem>>, %arg7: memref<1x1x32x96xbf16, #tpu.memory_space<vmem>>, %arg8: memref<1x1x1x96xf32, #tpu.memory_space<vmem>>, %arg9: memref<1x1x32x32xbf16, #tpu.memory_space<vmem>>, %arg10: memref<1x1x1x32xf32, #tpu.memory_space<vmem>>, %arg11: memref<1x1x1x32xf32, #tpu.memory_space<vmem>>, %arg12: memref<1x1x1x32xf32, #tpu.memory_space<vmem>>, %arg13: memref<1x1x32x64xbf16, #tpu.memory_space<vmem>>, %arg14: memref<1x1x1x64xf32, #tpu.memory_space<vmem>>, %arg15: memref<1x1x64x32xbf16, #tpu.memory_space<vmem>>, %arg16: memref<1x1x1x32xf32, #tpu.memory_space<vmem>>, %arg17: memref<1x1x1x32xf32, #tpu.memory_space<vmem>>, %arg18: memref<1x1x1x32xf32, #tpu.memory_space<vmem>>, %arg19: memref<32x128xf32, #tpu.memory_space<vmem>>, %arg20: memref<1x128xf32, #tpu.memory_space<vmem>>, %arg21: memref<128x128xf32, #tpu.memory_space<vmem>>, %arg22: memref<1x128xf32, #tpu.memory_space<vmem>>, %arg23: memref<128x256xf32, #tpu.memory_space<vmem>>, %arg24: memref<1x256xf32, #tpu.memory_space<vmem>>, %arg25: memref<1x2x88x32xf32, #tpu.memory_space<vmem>>, %arg26: memref<1x2x256xf32, #tpu.memory_space<vmem>>, %arg27: memref<176x32xf32, #tpu.memory_space<vmem>>) attributes {dimension_semantics = [#tpu.dimension_semantics<parallel>, #tpu.dimension_semantics<arbitrary>], iteration_bounds = array<i64: 3, 2>, scalar_prefetch = 0 : i64, scratch_operands = 1 : i64, tpu.core_type = #tpu.core_type<tc>, window_params = [{pipeline_mode = #tpu.pipeline_mode<synchronous>, transform_indices = @transform_0, window_bounds = array<i64: 2, 256, 8>}, {transform_indices = @transform_1, window_bounds = array<i64: 1, 88, 256>}, {transform_indices = @transform_2, window_bounds = array<i64: 1, 8, 32>}, {transform_indices = @transform_3, window_bounds = array<i64: 1, 88, 32>}, {transform_indices = @transform_4, window_bounds = array<i64: 1, 1, 88>}, {transform_indices = @transform_5, window_bounds = array<i64: 1, 1, 32, 96>}, {transform_indices = @transform_6, window_bounds = array<i64: 1, 1, 1, 96>}, {transform_indices = @transform_7, window_bounds = array<i64: 1, 1, 32, 32>}, {transform_indices = @transform_8, window_bounds = array<i64: 1, 1, 1, 32>}, {transform_indices = @transform_9, window_bounds = array<i64: 1, 1, 1, 32>}, {transform_indices = @transform_10, window_bounds = array<i64: 1, 1, 1, 32>}, {transform_indices = @transform_11, window_bounds = array<i64: 1, 1, 32, 64>}, {transform_indices = @transform_12, window_bounds = array<i64: 1, 1, 1, 64>}, {transform_indices = @transform_13, window_bounds = array<i64: 1, 1, 64, 32>}, {transform_indices = @transform_14, window_bounds = array<i64: 1, 1, 1, 32>}, {transform_indices = @transform_15, window_bounds = array<i64: 1, 1, 1, 32>}, {transform_indices = @transform_16, window_bounds = array<i64: 1, 1, 1, 32>}, {pipeline_mode = #tpu.pipeline_mode<synchronous>, transform_indices = @transform_17, window_bounds = array<i64: 32, 128>}, {pipeline_mode = #tpu.pipeline_mode<synchronous>, transform_indices = @transform_18, window_bounds = array<i64: 1, 128>}, {pipeline_mode = #tpu.pipeline_mode<synchronous>, transform_indices = @transform_19, window_bounds = array<i64: 128, 128>}, {pipeline_mode = #tpu.pipeline_mode<synchronous>, transform_indices = @transform_20, window_bounds = array<i64: 1, 128>}, {pipeline_mode = #tpu.pipeline_mode<synchronous>, transform_indices = @transform_21, window_bounds = array<i64: 128, 256>}, {pipeline_mode = #tpu.pipeline_mode<synchronous>, transform_indices = @transform_22, window_bounds = array<i64: 1, 256>}, {transform_indices = @transform_23, window_bounds = array<i64: 1, 2, 88, 32>}, {transform_indices = @transform_24, window_bounds = array<i64: 1, 2, 256>}]} {
    %c0_i32 = arith.constant 0 : i32
    %0 = arith.cmpi eq, %arg1, %c0_i32 : i32
    %1 = arith.extui %0 : i1 to i32
    %c0_i32_0 = arith.constant 0 : i32
    %2 = arith.cmpi ne, %1, %c0_i32_0 : i32
    scf.if %2 {
      %c0_110 = arith.constant 0 : index
      %c0_111 = arith.constant 0 : index
      %c0_112 = arith.constant 0 : index
      %269 = vector.load %arg3[%c0_110, %c0_111, %c0_112] : memref<1x88x256xf32, #tpu.memory_space<vmem>>, vector<1x88x256xf32>
      %270 = vector.shape_cast %269 : vector<1x88x256xf32> to vector<88x256xf32>
      %c0_113 = arith.constant 0 : index
      %c0_114 = arith.constant 0 : index
      %c0_115 = arith.constant 0 : index
      %271 = vector.load %arg4[%c0_113, %c0_114, %c0_115] : memref<1x8x32xbf16, #tpu.memory_space<vmem>>, vector<1x8x32xbf16>
      %272 = vector.shape_cast %271 : vector<1x8x32xbf16> to vector<8x32xbf16>
      %c0_116 = arith.constant 0 : index
      %c0_117 = arith.constant 0 : index
      %c0_118 = arith.constant 0 : index
      %273 = vector.load %arg5[%c0_116, %c0_117, %c0_118] : memref<1x88x32xf32, #tpu.memory_space<vmem>>, vector<1x88x32xf32>
      %274 = vector.shape_cast %273 : vector<1x88x32xf32> to vector<88x32xf32>
      %c0_119 = arith.constant 0 : index
      %c0_120 = arith.constant 0 : index
      %c0_121 = arith.constant 0 : index
      %275 = vector.load %arg2[%c0_119, %c0_120, %c0_121] : memref<2x256x8xf32, #tpu.memory_space<vmem>>, vector<1x256x8xf32>
      %276 = vector.shape_cast %275 : vector<1x256x8xf32> to vector<256x8xf32>
      %cst_122 = arith.constant dense<0.000000e+00> : vector<88x8xf32>
      %277 = tpu.matmul %270, %276, %cst_122 {dimension_numbers = #tpu.dot_dimension_numbers<[1], [0], [0], [1], [0, 0, 1, 1], [], []>} : vector<88x256xf32>, vector<256x8xf32>, vector<88x8xf32> -> vector<88x8xf32>
      %278 = arith.truncf %277 : vector<88x8xf32> to vector<88x8xbf16>
      %cst_123 = arith.constant dense<0.000000e+00> : vector<88x32xf32>
      %279 = tpu.matmul %278, %272, %cst_123 {dimension_numbers = #tpu.dot_dimension_numbers<[1], [0], [0], [1], [0, 0, 1, 1], [], []>} : vector<88x8xbf16>, vector<8x32xbf16>, vector<88x32xf32> -> vector<88x32xf32>
      %280 = arith.addf %279, %274 : vector<88x32xf32>
      %c0_124 = arith.constant 0 : index
      %c0_125 = arith.constant 0 : index
      %281 = vector.load %arg27[%c0_124, %c0_125] : memref<176x32xf32, #tpu.memory_space<vmem>>, vector<88x32xf32>
      tpu.vector_store %arg27[%c0_124, %c0_125], %280 {strides = array<i32>} : memref<176x32xf32, #tpu.memory_space<vmem>>, vector<88x32xf32>,
      %c1 = arith.constant 1 : index
      %c0_126 = arith.constant 0 : index
      %c0_127 = arith.constant 0 : index
      %282 = vector.load %arg2[%c1, %c0_126, %c0_127] : memref<2x256x8xf32, #tpu.memory_space<vmem>>, vector<1x256x8xf32>
      %283 = vector.shape_cast %282 : vector<1x256x8xf32> to vector<256x8xf32>
      %cst_128 = arith.constant dense<0.000000e+00> : vector<88x8xf32>
      %284 = tpu.matmul %270, %283, %cst_128 {dimension_numbers = #tpu.dot_dimension_numbers<[1], [0], [0], [1], [0, 0, 1, 1], [], []>} : vector<88x256xf32>, vector<256x8xf32>, vector<88x8xf32> -> vector<88x8xf32>
      %285 = arith.truncf %284 : vector<88x8xf32> to vector<88x8xbf16>
      %cst_129 = arith.constant dense<0.000000e+00> : vector<88x32xf32>
      %286 = tpu.matmul %285, %272, %cst_129 {dimension_numbers = #tpu.dot_dimension_numbers<[1], [0], [0], [1], [0, 0, 1, 1], [], []>} : vector<88x8xbf16>, vector<8x32xbf16>, vector<88x32xf32> -> vector<88x32xf32>
      %287 = arith.addf %286, %274 : vector<88x32xf32>
      %c88 = arith.constant 88 : index
      %c0_130 = arith.constant 0 : index
      %288 = vector.load %arg27[%c88, %c0_130] : memref<176x32xf32, #tpu.memory_space<vmem>>, vector<88x32xf32>
      tpu.vector_store %arg27[%c88, %c0_130], %287 {strides = array<i32>} : memref<176x32xf32, #tpu.memory_space<vmem>>, vector<88x32xf32>,
    } else {
    }
    %c0 = arith.constant 0 : index
    %c0_1 = arith.constant 0 : index
    %3 = vector.load %arg27[%c0, %c0_1] : memref<176x32xf32, #tpu.memory_space<vmem>>, vector<176x32xf32>
    %c0_2 = arith.constant 0 : index
    %c0_3 = arith.constant 0 : index
    %c0_4 = arith.constant 0 : index
    %4 = vector.load %arg6[%c0_2, %c0_3, %c0_4] : memref<1x1x88xf32, #tpu.memory_space<vmem>>, vector<1x1x88xf32>
    %5 = vector.shape_cast %4 : vector<1x1x88xf32> to vector<1x88xf32>
    %6 = arith.truncf %3 : vector<176x32xf32> to vector<176x32xbf16>
    %c0_5 = arith.constant 0 : index
    %c0_6 = arith.constant 0 : index
    %c0_7 = arith.constant 0 : index
    %c0_8 = arith.constant 0 : index
    %7 = vector.load %arg7[%c0_5, %c0_6, %c0_7, %c0_8] : memref<1x1x32x96xbf16, #tpu.memory_space<vmem>>, vector<1x1x32x96xbf16>
    %8 = vector.shape_cast %7 : vector<1x1x32x96xbf16> to vector<32x96xbf16>
    %cst = arith.constant dense<0.000000e+00> : vector<176x96xf32>
    %9 = tpu.matmul %6, %8, %cst {dimension_numbers = #tpu.dot_dimension_numbers<[1], [0], [0], [1], [0, 0, 1, 1], [], []>} : vector<176x32xbf16>, vector<32x96xbf16>, vector<176x96xf32> -> vector<176x96xf32>
    %c0_9 = arith.constant 0 : index
    %c0_10 = arith.constant 0 : index
    %c0_11 = arith.constant 0 : index
    %c0_12 = arith.constant 0 : index
    %10 = vector.load %arg8[%c0_9, %c0_10, %c0_11, %c0_12] : memref<1x1x1x96xf32, #tpu.memory_space<vmem>>, vector<1x1x1x96xf32>
    %11 = vector.shape_cast %10 : vector<1x1x1x96xf32> to vector<1x96xf32>
    %12 = vector.broadcast %11 : vector<1x96xf32> to vector<176x96xf32>
    %13 = arith.addf %9, %12 : vector<176x96xf32>
    %14 = vector.extract_strided_slice %13 {offsets = [0, 0], sizes = [88, 8], strides = [1, 1]} : vector<176x96xf32> to vector<88x8xf32>
    %15 = vector.extract_strided_slice %13 {offsets = [0, 32], sizes = [88, 8], strides = [1, 1]} : vector<176x96xf32> to vector<88x8xf32>
    %16 = vector.extract_strided_slice %13 {offsets = [0, 64], sizes = [88, 8], strides = [1, 1]} : vector<176x96xf32> to vector<88x8xf32>
    %cst_13 = arith.constant dense<0.000000e+00> : vector<88x88xf32>
    %17 = tpu.matmul %14, %15, %cst_13 {dimension_numbers = #tpu.dot_dimension_numbers<[1], [1], [0], [0], [0, 0, 1, 0], [], []>} : vector<88x8xf32>, vector<88x8xf32>, vector<88x88xf32> -> vector<88x88xf32>
    %cst_14 = arith.constant 0.353553385 : f32
    %18 = vector.broadcast %cst_14 : f32 to vector<88x88xf32>
    %19 = arith.mulf %17, %18 : vector<88x88xf32>
    %20 = vector.broadcast %5 : vector<1x88xf32> to vector<88x88xf32>
    %21 = arith.addf %19, %20 : vector<88x88xf32>
    %cst_15 = arith.constant dense<0xFF800000> : vector<88xf32>
    %22 = vector.multi_reduction <maximumf>, %21, %cst_15 [1] : vector<88x88xf32> to vector<88xf32>
    %23 = vector.shape_cast %22 : vector<88xf32> to vector<88x1xf32>
    %24 = vector.broadcast %23 : vector<88x1xf32> to vector<88x88xf32>
    %25 = arith.subf %21, %24 : vector<88x88xf32>
    %26 = math.exp %25 : vector<88x88xf32>
    %cst_16 = arith.constant dense<0.000000e+00> : vector<88xf32>
    %27 = vector.multi_reduction <add>, %26, %cst_16 [1] : vector<88x88xf32> to vector<88xf32>
    %28 = vector.shape_cast %27 : vector<88xf32> to vector<88x1xf32>
    %29 = tpu.reciprocal %28 {approx = true} : vector<88x1xf32> -> vector<88x1xf32>
    %30 = vector.broadcast %29 : vector<88x1xf32> to vector<88x88xf32>
    %31 = arith.mulf %26, %30 : vector<88x88xf32>
    %32 = arith.truncf %31 : vector<88x88xf32> to vector<88x88xbf16>
    %33 = arith.truncf %16 : vector<88x8xf32> to vector<88x8xbf16>
    %cst_17 = arith.constant dense<0.000000e+00> : vector<88x8xf32>
    %34 = tpu.matmul %32, %33, %cst_17 {dimension_numbers = #tpu.dot_dimension_numbers<[1], [0], [0], [1], [0, 0, 1, 1], [], []>} : vector<88x88xbf16>, vector<88x8xbf16>, vector<88x8xf32> -> vector<88x8xf32>
    %35 = vector.extract_strided_slice %13 {offsets = [0, 8], sizes = [88, 8], strides = [1, 1]} : vector<176x96xf32> to vector<88x8xf32>
    %36 = vector.extract_strided_slice %13 {offsets = [0, 40], sizes = [88, 8], strides = [1, 1]} : vector<176x96xf32> to vector<88x8xf32>
    %37 = vector.extract_strided_slice %13 {offsets = [0, 72], sizes = [88, 8], strides = [1, 1]} : vector<176x96xf32> to vector<88x8xf32>
    %cst_18 = arith.constant dense<0.000000e+00> : vector<88x88xf32>
    %38 = tpu.matmul %35, %36, %cst_18 {dimension_numbers = #tpu.dot_dimension_numbers<[1], [1], [0], [0], [0, 0, 1, 0], [], []>} : vector<88x8xf32>, vector<88x8xf32>, vector<88x88xf32> -> vector<88x88xf32>
    %cst_19 = arith.constant 0.353553385 : f32
    %39 = vector.broadcast %cst_19 : f32 to vector<88x88xf32>
    %40 = arith.mulf %38, %39 : vector<88x88xf32>
    %41 = vector.broadcast %5 : vector<1x88xf32> to vector<88x88xf32>
    %42 = arith.addf %40, %41 : vector<88x88xf32>
    %cst_20 = arith.constant dense<0xFF800000> : vector<88xf32>
    %43 = vector.multi_reduction <maximumf>, %42, %cst_20 [1] : vector<88x88xf32> to vector<88xf32>
    %44 = vector.shape_cast %43 : vector<88xf32> to vector<88x1xf32>
    %45 = vector.broadcast %44 : vector<88x1xf32> to vector<88x88xf32>
    %46 = arith.subf %42, %45 : vector<88x88xf32>
    %47 = math.exp %46 : vector<88x88xf32>
    %cst_21 = arith.constant dense<0.000000e+00> : vector<88xf32>
    %48 = vector.multi_reduction <add>, %47, %cst_21 [1] : vector<88x88xf32> to vector<88xf32>
    %49 = vector.shape_cast %48 : vector<88xf32> to vector<88x1xf32>
    %50 = tpu.reciprocal %49 {approx = true} : vector<88x1xf32> -> vector<88x1xf32>
    %51 = vector.broadcast %50 : vector<88x1xf32> to vector<88x88xf32>
    %52 = arith.mulf %47, %51 : vector<88x88xf32>
    %53 = arith.truncf %52 : vector<88x88xf32> to vector<88x88xbf16>
    %54 = arith.truncf %37 : vector<88x8xf32> to vector<88x8xbf16>
    %cst_22 = arith.constant dense<0.000000e+00> : vector<88x8xf32>
    %55 = tpu.matmul %53, %54, %cst_22 {dimension_numbers = #tpu.dot_dimension_numbers<[1], [0], [0], [1], [0, 0, 1, 1], [], []>} : vector<88x88xbf16>, vector<88x8xbf16>, vector<88x8xf32> -> vector<88x8xf32>
    %56 = vector.extract_strided_slice %13 {offsets = [0, 16], sizes = [88, 8], strides = [1, 1]} : vector<176x96xf32> to vector<88x8xf32>
    %57 = vector.extract_strided_slice %13 {offsets = [0, 48], sizes = [88, 8], strides = [1, 1]} : vector<176x96xf32> to vector<88x8xf32>
    %58 = vector.extract_strided_slice %13 {offsets = [0, 80], sizes = [88, 8], strides = [1, 1]} : vector<176x96xf32> to vector<88x8xf32>
    %cst_23 = arith.constant dense<0.000000e+00> : vector<88x88xf32>
    %59 = tpu.matmul %56, %57, %cst_23 {dimension_numbers = #tpu.dot_dimension_numbers<[1], [1], [0], [0], [0, 0, 1, 0], [], []>} : vector<88x8xf32>, vector<88x8xf32>, vector<88x88xf32> -> vector<88x88xf32>
    %cst_24 = arith.constant 0.353553385 : f32
    %60 = vector.broadcast %cst_24 : f32 to vector<88x88xf32>
    %61 = arith.mulf %59, %60 : vector<88x88xf32>
    %62 = vector.broadcast %5 : vector<1x88xf32> to vector<88x88xf32>
    %63 = arith.addf %61, %62 : vector<88x88xf32>
    %cst_25 = arith.constant dense<0xFF800000> : vector<88xf32>
    %64 = vector.multi_reduction <maximumf>, %63, %cst_25 [1] : vector<88x88xf32> to vector<88xf32>
    %65 = vector.shape_cast %64 : vector<88xf32> to vector<88x1xf32>
    %66 = vector.broadcast %65 : vector<88x1xf32> to vector<88x88xf32>
    %67 = arith.subf %63, %66 : vector<88x88xf32>
    %68 = math.exp %67 : vector<88x88xf32>
    %cst_26 = arith.constant dense<0.000000e+00> : vector<88xf32>
    %69 = vector.multi_reduction <add>, %68, %cst_26 [1] : vector<88x88xf32> to vector<88xf32>
    %70 = vector.shape_cast %69 : vector<88xf32> to vector<88x1xf32>
    %71 = tpu.reciprocal %70 {approx = true} : vector<88x1xf32> -> vector<88x1xf32>
    %72 = vector.broadcast %71 : vector<88x1xf32> to vector<88x88xf32>
    %73 = arith.mulf %68, %72 : vector<88x88xf32>
    %74 = arith.truncf %73 : vector<88x88xf32> to vector<88x88xbf16>
    %75 = arith.truncf %58 : vector<88x8xf32> to vector<88x8xbf16>
    %cst_27 = arith.constant dense<0.000000e+00> : vector<88x8xf32>
    %76 = tpu.matmul %74, %75, %cst_27 {dimension_numbers = #tpu.dot_dimension_numbers<[1], [0], [0], [1], [0, 0, 1, 1], [], []>} : vector<88x88xbf16>, vector<88x8xbf16>, vector<88x8xf32> -> vector<88x8xf32>
    %77 = vector.extract_strided_slice %13 {offsets = [0, 24], sizes = [88, 8], strides = [1, 1]} : vector<176x96xf32> to vector<88x8xf32>
    %78 = vector.extract_strided_slice %13 {offsets = [0, 56], sizes = [88, 8], strides = [1, 1]} : vector<176x96xf32> to vector<88x8xf32>
    %79 = vector.extract_strided_slice %13 {offsets = [0, 88], sizes = [88, 8], strides = [1, 1]} : vector<176x96xf32> to vector<88x8xf32>
    %cst_28 = arith.constant dense<0.000000e+00> : vector<88x88xf32>
    %80 = tpu.matmul %77, %78, %cst_28 {dimension_numbers = #tpu.dot_dimension_numbers<[1], [1], [0], [0], [0, 0, 1, 0], [], []>} : vector<88x8xf32>, vector<88x8xf32>, vector<88x88xf32> -> vector<88x88xf32>
    %cst_29 = arith.constant 0.353553385 : f32
    %81 = vector.broadcast %cst_29 : f32 to vector<88x88xf32>
    %82 = arith.mulf %80, %81 : vector<88x88xf32>
    %83 = vector.broadcast %5 : vector<1x88xf32> to vector<88x88xf32>
    %84 = arith.addf %82, %83 : vector<88x88xf32>
    %cst_30 = arith.constant dense<0xFF800000> : vector<88xf32>
    %85 = vector.multi_reduction <maximumf>, %84, %cst_30 [1] : vector<88x88xf32> to vector<88xf32>
    %86 = vector.shape_cast %85 : vector<88xf32> to vector<88x1xf32>
    %87 = vector.broadcast %86 : vector<88x1xf32> to vector<88x88xf32>
    %88 = arith.subf %84, %87 : vector<88x88xf32>
    %89 = math.exp %88 : vector<88x88xf32>
    %cst_31 = arith.constant dense<0.000000e+00> : vector<88xf32>
    %90 = vector.multi_reduction <add>, %89, %cst_31 [1] : vector<88x88xf32> to vector<88xf32>
    %91 = vector.shape_cast %90 : vector<88xf32> to vector<88x1xf32>
    %92 = tpu.reciprocal %91 {approx = true} : vector<88x1xf32> -> vector<88x1xf32>
    %93 = vector.broadcast %92 : vector<88x1xf32> to vector<88x88xf32>
    %94 = arith.mulf %89, %93 : vector<88x88xf32>
    %95 = arith.truncf %94 : vector<88x88xf32> to vector<88x88xbf16>
    %96 = arith.truncf %79 : vector<88x8xf32> to vector<88x8xbf16>
    %cst_32 = arith.constant dense<0.000000e+00> : vector<88x8xf32>
    %97 = tpu.matmul %95, %96, %cst_32 {dimension_numbers = #tpu.dot_dimension_numbers<[1], [0], [0], [1], [0, 0, 1, 1], [], []>} : vector<88x88xbf16>, vector<88x8xbf16>, vector<88x8xf32> -> vector<88x8xf32>
    %98 = tpu.concatenate %34, %55, %76, %97 in 1 : vector<88x8xf32>, vector<88x8xf32>, vector<88x8xf32>, vector<88x8xf32> -> vector<88x32xf32>
    %99 = vector.extract_strided_slice %13 {offsets = [88, 0], sizes = [88, 8], strides = [1, 1]} : vector<176x96xf32> to vector<88x8xf32>
    %100 = vector.extract_strided_slice %13 {offsets = [88, 32], sizes = [88, 8], strides = [1, 1]} : vector<176x96xf32> to vector<88x8xf32>
    %101 = vector.extract_strided_slice %13 {offsets = [88, 64], sizes = [88, 8], strides = [1, 1]} : vector<176x96xf32> to vector<88x8xf32>
    %cst_33 = arith.constant dense<0.000000e+00> : vector<88x88xf32>
    %102 = tpu.matmul %99, %100, %cst_33 {dimension_numbers = #tpu.dot_dimension_numbers<[1], [1], [0], [0], [0, 0, 1, 0], [], []>} : vector<88x8xf32>, vector<88x8xf32>, vector<88x88xf32> -> vector<88x88xf32>
    %cst_34 = arith.constant 0.353553385 : f32
    %103 = vector.broadcast %cst_34 : f32 to vector<88x88xf32>
    %104 = arith.mulf %102, %103 : vector<88x88xf32>
    %105 = vector.broadcast %5 : vector<1x88xf32> to vector<88x88xf32>
    %106 = arith.addf %104, %105 : vector<88x88xf32>
    %cst_35 = arith.constant dense<0xFF800000> : vector<88xf32>
    %107 = vector.multi_reduction <maximumf>, %106, %cst_35 [1] : vector<88x88xf32> to vector<88xf32>
    %108 = vector.shape_cast %107 : vector<88xf32> to vector<88x1xf32>
    %109 = vector.broadcast %108 : vector<88x1xf32> to vector<88x88xf32>
    %110 = arith.subf %106, %109 : vector<88x88xf32>
    %111 = math.exp %110 : vector<88x88xf32>
    %cst_36 = arith.constant dense<0.000000e+00> : vector<88xf32>
    %112 = vector.multi_reduction <add>, %111, %cst_36 [1] : vector<88x88xf32> to vector<88xf32>
    %113 = vector.shape_cast %112 : vector<88xf32> to vector<88x1xf32>
    %114 = tpu.reciprocal %113 {approx = true} : vector<88x1xf32> -> vector<88x1xf32>
    %115 = vector.broadcast %114 : vector<88x1xf32> to vector<88x88xf32>
    %116 = arith.mulf %111, %115 : vector<88x88xf32>
    %117 = arith.truncf %116 : vector<88x88xf32> to vector<88x88xbf16>
    %118 = arith.truncf %101 : vector<88x8xf32> to vector<88x8xbf16>
    %cst_37 = arith.constant dense<0.000000e+00> : vector<88x8xf32>
    %119 = tpu.matmul %117, %118, %cst_37 {dimension_numbers = #tpu.dot_dimension_numbers<[1], [0], [0], [1], [0, 0, 1, 1], [], []>} : vector<88x88xbf16>, vector<88x8xbf16>, vector<88x8xf32> -> vector<88x8xf32>
    %120 = vector.extract_strided_slice %13 {offsets = [88, 8], sizes = [88, 8], strides = [1, 1]} : vector<176x96xf32> to vector<88x8xf32>
    %121 = vector.extract_strided_slice %13 {offsets = [88, 40], sizes = [88, 8], strides = [1, 1]} : vector<176x96xf32> to vector<88x8xf32>
    %122 = vector.extract_strided_slice %13 {offsets = [88, 72], sizes = [88, 8], strides = [1, 1]} : vector<176x96xf32> to vector<88x8xf32>
    %cst_38 = arith.constant dense<0.000000e+00> : vector<88x88xf32>
    %123 = tpu.matmul %120, %121, %cst_38 {dimension_numbers = #tpu.dot_dimension_numbers<[1], [1], [0], [0], [0, 0, 1, 0], [], []>} : vector<88x8xf32>, vector<88x8xf32>, vector<88x88xf32> -> vector<88x88xf32>
    %cst_39 = arith.constant 0.353553385 : f32
    %124 = vector.broadcast %cst_39 : f32 to vector<88x88xf32>
    %125 = arith.mulf %123, %124 : vector<88x88xf32>
    %126 = vector.broadcast %5 : vector<1x88xf32> to vector<88x88xf32>
    %127 = arith.addf %125, %126 : vector<88x88xf32>
    %cst_40 = arith.constant dense<0xFF800000> : vector<88xf32>
    %128 = vector.multi_reduction <maximumf>, %127, %cst_40 [1] : vector<88x88xf32> to vector<88xf32>
    %129 = vector.shape_cast %128 : vector<88xf32> to vector<88x1xf32>
    %130 = vector.broadcast %129 : vector<88x1xf32> to vector<88x88xf32>
    %131 = arith.subf %127, %130 : vector<88x88xf32>
    %132 = math.exp %131 : vector<88x88xf32>
    %cst_41 = arith.constant dense<0.000000e+00> : vector<88xf32>
    %133 = vector.multi_reduction <add>, %132, %cst_41 [1] : vector<88x88xf32> to vector<88xf32>
    %134 = vector.shape_cast %133 : vector<88xf32> to vector<88x1xf32>
    %135 = tpu.reciprocal %134 {approx = true} : vector<88x1xf32> -> vector<88x1xf32>
    %136 = vector.broadcast %135 : vector<88x1xf32> to vector<88x88xf32>
    %137 = arith.mulf %132, %136 : vector<88x88xf32>
    %138 = arith.truncf %137 : vector<88x88xf32> to vector<88x88xbf16>
    %139 = arith.truncf %122 : vector<88x8xf32> to vector<88x8xbf16>
    %cst_42 = arith.constant dense<0.000000e+00> : vector<88x8xf32>
    %140 = tpu.matmul %138, %139, %cst_42 {dimension_numbers = #tpu.dot_dimension_numbers<[1], [0], [0], [1], [0, 0, 1, 1], [], []>} : vector<88x88xbf16>, vector<88x8xbf16>, vector<88x8xf32> -> vector<88x8xf32>
    %141 = vector.extract_strided_slice %13 {offsets = [88, 16], sizes = [88, 8], strides = [1, 1]} : vector<176x96xf32> to vector<88x8xf32>
    %142 = vector.extract_strided_slice %13 {offsets = [88, 48], sizes = [88, 8], strides = [1, 1]} : vector<176x96xf32> to vector<88x8xf32>
    %143 = vector.extract_strided_slice %13 {offsets = [88, 80], sizes = [88, 8], strides = [1, 1]} : vector<176x96xf32> to vector<88x8xf32>
    %cst_43 = arith.constant dense<0.000000e+00> : vector<88x88xf32>
    %144 = tpu.matmul %141, %142, %cst_43 {dimension_numbers = #tpu.dot_dimension_numbers<[1], [1], [0], [0], [0, 0, 1, 0], [], []>} : vector<88x8xf32>, vector<88x8xf32>, vector<88x88xf32> -> vector<88x88xf32>
    %cst_44 = arith.constant 0.353553385 : f32
    %145 = vector.broadcast %cst_44 : f32 to vector<88x88xf32>
    %146 = arith.mulf %144, %145 : vector<88x88xf32>
    %147 = vector.broadcast %5 : vector<1x88xf32> to vector<88x88xf32>
    %148 = arith.addf %146, %147 : vector<88x88xf32>
    %cst_45 = arith.constant dense<0xFF800000> : vector<88xf32>
    %149 = vector.multi_reduction <maximumf>, %148, %cst_45 [1] : vector<88x88xf32> to vector<88xf32>
    %150 = vector.shape_cast %149 : vector<88xf32> to vector<88x1xf32>
    %151 = vector.broadcast %150 : vector<88x1xf32> to vector<88x88xf32>
    %152 = arith.subf %148, %151 : vector<88x88xf32>
    %153 = math.exp %152 : vector<88x88xf32>
    %cst_46 = arith.constant dense<0.000000e+00> : vector<88xf32>
    %154 = vector.multi_reduction <add>, %153, %cst_46 [1] : vector<88x88xf32> to vector<88xf32>
    %155 = vector.shape_cast %154 : vector<88xf32> to vector<88x1xf32>
    %156 = tpu.reciprocal %155 {approx = true} : vector<88x1xf32> -> vector<88x1xf32>
    %157 = vector.broadcast %156 : vector<88x1xf32> to vector<88x88xf32>
    %158 = arith.mulf %153, %157 : vector<88x88xf32>
    %159 = arith.truncf %158 : vector<88x88xf32> to vector<88x88xbf16>
    %160 = arith.truncf %143 : vector<88x8xf32> to vector<88x8xbf16>
    %cst_47 = arith.constant dense<0.000000e+00> : vector<88x8xf32>
    %161 = tpu.matmul %159, %160, %cst_47 {dimension_numbers = #tpu.dot_dimension_numbers<[1], [0], [0], [1], [0, 0, 1, 1], [], []>} : vector<88x88xbf16>, vector<88x8xbf16>, vector<88x8xf32> -> vector<88x8xf32>
    %162 = vector.extract_strided_slice %13 {offsets = [88, 24], sizes = [88, 8], strides = [1, 1]} : vector<176x96xf32> to vector<88x8xf32>
    %163 = vector.extract_strided_slice %13 {offsets = [88, 56], sizes = [88, 8], strides = [1, 1]} : vector<176x96xf32> to vector<88x8xf32>
    %164 = vector.extract_strided_slice %13 {offsets = [88, 88], sizes = [88, 8], strides = [1, 1]} : vector<176x96xf32> to vector<88x8xf32>
    %cst_48 = arith.constant dense<0.000000e+00> : vector<88x88xf32>
    %165 = tpu.matmul %162, %163, %cst_48 {dimension_numbers = #tpu.dot_dimension_numbers<[1], [1], [0], [0], [0, 0, 1, 0], [], []>} : vector<88x8xf32>, vector<88x8xf32>, vector<88x88xf32> -> vector<88x88xf32>
    %cst_49 = arith.constant 0.353553385 : f32
    %166 = vector.broadcast %cst_49 : f32 to vector<88x88xf32>
    %167 = arith.mulf %165, %166 : vector<88x88xf32>
    %168 = vector.broadcast %5 : vector<1x88xf32> to vector<88x88xf32>
    %169 = arith.addf %167, %168 : vector<88x88xf32>
    %cst_50 = arith.constant dense<0xFF800000> : vector<88xf32>
    %170 = vector.multi_reduction <maximumf>, %169, %cst_50 [1] : vector<88x88xf32> to vector<88xf32>
    %171 = vector.shape_cast %170 : vector<88xf32> to vector<88x1xf32>
    %172 = vector.broadcast %171 : vector<88x1xf32> to vector<88x88xf32>
    %173 = arith.subf %169, %172 : vector<88x88xf32>
    %174 = math.exp %173 : vector<88x88xf32>
    %cst_51 = arith.constant dense<0.000000e+00> : vector<88xf32>
    %175 = vector.multi_reduction <add>, %174, %cst_51 [1] : vector<88x88xf32> to vector<88xf32>
    %176 = vector.shape_cast %175 : vector<88xf32> to vector<88x1xf32>
    %177 = tpu.reciprocal %176 {approx = true} : vector<88x1xf32> -> vector<88x1xf32>
    %178 = vector.broadcast %177 : vector<88x1xf32> to vector<88x88xf32>
    %179 = arith.mulf %174, %178 : vector<88x88xf32>
    %180 = arith.truncf %179 : vector<88x88xf32> to vector<88x88xbf16>
    %181 = arith.truncf %164 : vector<88x8xf32> to vector<88x8xbf16>
    %cst_52 = arith.constant dense<0.000000e+00> : vector<88x8xf32>
    %182 = tpu.matmul %180, %181, %cst_52 {dimension_numbers = #tpu.dot_dimension_numbers<[1], [0], [0], [1], [0, 0, 1, 1], [], []>} : vector<88x88xbf16>, vector<88x8xbf16>, vector<88x8xf32> -> vector<88x8xf32>
    %183 = tpu.concatenate %119, %140, %161, %182 in 1 : vector<88x8xf32>, vector<88x8xf32>, vector<88x8xf32>, vector<88x8xf32> -> vector<88x32xf32>
    %184 = tpu.concatenate %98, %183 in 0 : vector<88x32xf32>, vector<88x32xf32> -> vector<176x32xf32>
    %185 = arith.truncf %184 : vector<176x32xf32> to vector<176x32xbf16>
    %c0_53 = arith.constant 0 : index
    %c0_54 = arith.constant 0 : index
    %c0_55 = arith.constant 0 : index
    %c0_56 = arith.constant 0 : index
    %186 = vector.load %arg9[%c0_53, %c0_54, %c0_55, %c0_56] : memref<1x1x32x32xbf16, #tpu.memory_space<vmem>>, vector<1x1x32x32xbf16>
    %187 = vector.shape_cast %186 : vector<1x1x32x32xbf16> to vector<32x32xbf16>
    %cst_57 = arith.constant dense<0.000000e+00> : vector<176x32xf32>
    %188 = tpu.matmul %185, %187, %cst_57 {dimension_numbers = #tpu.dot_dimension_numbers<[1], [0], [0], [1], [0, 0, 1, 1], [], []>} : vector<176x32xbf16>, vector<32x32xbf16>, vector<176x32xf32> -> vector<176x32xf32>
    %c0_58 = arith.constant 0 : index
    %c0_59 = arith.constant 0 : index
    %c0_60 = arith.constant 0 : index
    %c0_61 = arith.constant 0 : index
    %189 = vector.load %arg10[%c0_58, %c0_59, %c0_60, %c0_61] : memref<1x1x1x32xf32, #tpu.memory_space<vmem>>, vector<1x1x1x32xf32>
    %190 = vector.shape_cast %189 : vector<1x1x1x32xf32> to vector<1x32xf32>
    %191 = vector.broadcast %190 : vector<1x32xf32> to vector<176x32xf32>
    %192 = arith.addf %188, %191 : vector<176x32xf32>
    %193 = arith.addf %3, %192 : vector<176x32xf32>
    %c0_62 = arith.constant 0 : index
    %c0_63 = arith.constant 0 : index
    %c0_64 = arith.constant 0 : index
    %c0_65 = arith.constant 0 : index
    %194 = vector.load %arg11[%c0_62, %c0_63, %c0_64, %c0_65] : memref<1x1x1x32xf32, #tpu.memory_space<vmem>>, vector<1x1x1x32xf32>
    %195 = vector.shape_cast %194 : vector<1x1x1x32xf32> to vector<1x32xf32>
    %c0_66 = arith.constant 0 : index
    %c0_67 = arith.constant 0 : index
    %c0_68 = arith.constant 0 : index
    %c0_69 = arith.constant 0 : index
    %196 = vector.load %arg12[%c0_66, %c0_67, %c0_68, %c0_69] : memref<1x1x1x32xf32, #tpu.memory_space<vmem>>, vector<1x1x1x32xf32>
    %197 = vector.shape_cast %196 : vector<1x1x1x32xf32> to vector<1x32xf32>
    %cst_70 = arith.constant dense<0.000000e+00> : vector<176xf32>
    %198 = vector.multi_reduction <add>, %193, %cst_70 [1] : vector<176x32xf32> to vector<176xf32>
    %199 = vector.shape_cast %198 : vector<176xf32> to vector<176x1xf32>
    %cst_71 = arith.constant 3.200000e+01 : f32
    %200 = vector.broadcast %cst_71 : f32 to vector<176x1xf32>
    %201 = arith.divf %199, %200 : vector<176x1xf32>
    %202 = vector.broadcast %201 : vector<176x1xf32> to vector<176x32xf32>
    %203 = arith.subf %193, %202 : vector<176x32xf32>
    %204 = arith.mulf %203, %203 : vector<176x32xf32>
    %cst_72 = arith.constant dense<0.000000e+00> : vector<176xf32>
    %205 = vector.multi_reduction <add>, %204, %cst_72 [1] : vector<176x32xf32> to vector<176xf32>
    %206 = vector.shape_cast %205 : vector<176xf32> to vector<176x1xf32>
    %cst_73 = arith.constant 3.200000e+01 : f32
    %207 = vector.broadcast %cst_73 : f32 to vector<176x1xf32>
    %208 = arith.divf %206, %207 : vector<176x1xf32>
    %209 = vector.broadcast %201 : vector<176x1xf32> to vector<176x32xf32>
    %210 = arith.subf %193, %209 : vector<176x32xf32>
    %cst_74 = arith.constant 9.99999974E-6 : f32
    %211 = vector.broadcast %cst_74 : f32 to vector<176x1xf32>
    %212 = arith.addf %208, %211 : vector<176x1xf32>
    %213 = math.rsqrt %212 : vector<176x1xf32>
    %214 = vector.broadcast %213 : vector<176x1xf32> to vector<176x32xf32>
    %215 = arith.mulf %210, %214 : vector<176x32xf32>
    %216 = vector.broadcast %195 : vector<1x32xf32> to vector<176x32xf32>
    %217 = arith.mulf %215, %216 : vector<176x32xf32>
    %218 = vector.broadcast %197 : vector<1x32xf32> to vector<176x32xf32>
    %219 = arith.addf %217, %218 : vector<176x32xf32>
    %220 = arith.truncf %219 : vector<176x32xf32> to vector<176x32xbf16>
    %c0_75 = arith.constant 0 : index
    %c0_76 = arith.constant 0 : index
    %c0_77 = arith.constant 0 : index
    %c0_78 = arith.constant 0 : index
    %221 = vector.load %arg13[%c0_75, %c0_76, %c0_77, %c0_78] : memref<1x1x32x64xbf16, #tpu.memory_space<vmem>>, vector<1x1x32x64xbf16>
    %222 = vector.shape_cast %221 : vector<1x1x32x64xbf16> to vector<32x64xbf16>
    %cst_79 = arith.constant dense<0.000000e+00> : vector<176x64xf32>
    %223 = tpu.matmul %220, %222, %cst_79 {dimension_numbers = #tpu.dot_dimension_numbers<[1], [0], [0], [1], [0, 0, 1, 1], [], []>} : vector<176x32xbf16>, vector<32x64xbf16>, vector<176x64xf32> -> vector<176x64xf32>
    %c0_80 = arith.constant 0 : index
    %c0_81 = arith.constant 0 : index
    %c0_82 = arith.constant 0 : index
    %c0_83 = arith.constant 0 : index
    %224 = vector.load %arg14[%c0_80, %c0_81, %c0_82, %c0_83] : memref<1x1x1x64xf32, #tpu.memory_space<vmem>>, vector<1x1x1x64xf32>
    %225 = vector.shape_cast %224 : vector<1x1x1x64xf32> to vector<1x64xf32>
    %226 = vector.broadcast %225 : vector<1x64xf32> to vector<176x64xf32>
    %227 = arith.addf %223, %226 : vector<176x64xf32>
    %cst_84 = arith.constant 0.000000e+00 : f32
    %228 = vector.broadcast %cst_84 : f32 to vector<176x64xf32>
    %229 = arith.maximumf %227, %228 : vector<176x64xf32>
    %230 = arith.truncf %229 : vector<176x64xf32> to vector<176x64xbf16>
    %c0_85 = arith.constant 0 : index
    %c0_86 = arith.constant 0 : index
    %c0_87 = arith.constant 0 : index
    %c0_88 = arith.constant 0 : index
    %231 = vector.load %arg15[%c0_85, %c0_86, %c0_87, %c0_88] : memref<1x1x64x32xbf16, #tpu.memory_space<vmem>>, vector<1x1x64x32xbf16>
    %232 = vector.shape_cast %231 : vector<1x1x64x32xbf16> to vector<64x32xbf16>
    %cst_89 = arith.constant dense<0.000000e+00> : vector<176x32xf32>
    %233 = tpu.matmul %230, %232, %cst_89 {dimension_numbers = #tpu.dot_dimension_numbers<[1], [0], [0], [1], [0, 0, 1, 1], [], []>} : vector<176x64xbf16>, vector<64x32xbf16>, vector<176x32xf32> -> vector<176x32xf32>
    %c0_90 = arith.constant 0 : index
    %c0_91 = arith.constant 0 : index
    %c0_92 = arith.constant 0 : index
    %c0_93 = arith.constant 0 : index
    %234 = vector.load %arg16[%c0_90, %c0_91, %c0_92, %c0_93] : memref<1x1x1x32xf32, #tpu.memory_space<vmem>>, vector<1x1x1x32xf32>
    %235 = vector.shape_cast %234 : vector<1x1x1x32xf32> to vector<1x32xf32>
    %236 = vector.broadcast %235 : vector<1x32xf32> to vector<176x32xf32>
    %237 = arith.addf %233, %236 : vector<176x32xf32>
    %238 = arith.addf %219, %237 : vector<176x32xf32>
    %c0_94 = arith.constant 0 : index
    %c0_95 = arith.constant 0 : index
    %c0_96 = arith.constant 0 : index
    %c0_97 = arith.constant 0 : index
    %239 = vector.load %arg17[%c0_94, %c0_95, %c0_96, %c0_97] : memref<1x1x1x32xf32, #tpu.memory_space<vmem>>, vector<1x1x1x32xf32>
    %240 = vector.shape_cast %239 : vector<1x1x1x32xf32> to vector<1x32xf32>
    %c0_98 = arith.constant 0 : index
    %c0_99 = arith.constant 0 : index
    %c0_100 = arith.constant 0 : index
    %c0_101 = arith.constant 0 : index
    %241 = vector.load %arg18[%c0_98, %c0_99, %c0_100, %c0_101] : memref<1x1x1x32xf32, #tpu.memory_space<vmem>>, vector<1x1x1x32xf32>
    %242 = vector.shape_cast %241 : vector<1x1x1x32xf32> to vector<1x32xf32>
    %cst_102 = arith.constant dense<0.000000e+00> : vector<176xf32>
    %243 = vector.multi_reduction <add>, %238, %cst_102 [1] : vector<176x32xf32> to vector<176xf32>
    %244 = vector.shape_cast %243 : vector<176xf32> to vector<176x1xf32>
    %cst_103 = arith.constant 3.200000e+01 : f32
    %245 = vector.broadcast %cst_103 : f32 to vector<176x1xf32>
    %246 = arith.divf %244, %245 : vector<176x1xf32>
    %247 = vector.broadcast %246 : vector<176x1xf32> to vector<176x32xf32>
    %248 = arith.subf %238, %247 : vector<176x32xf32>
    %249 = arith.mulf %248, %248 : vector<176x32xf32>
    %cst_104 = arith.constant dense<0.000000e+00> : vector<176xf32>
    %250 = vector.multi_reduction <add>, %249, %cst_104 [1] : vector<176x32xf32> to vector<176xf32>
    %251 = vector.shape_cast %250 : vector<176xf32> to vector<176x1xf32>
    %cst_105 = arith.constant 3.200000e+01 : f32
    %252 = vector.broadcast %cst_105 : f32 to vector<176x1xf32>
    %253 = arith.divf %251, %252 : vector<176x1xf32>
    %254 = vector.broadcast %246 : vector<176x1xf32> to vector<176x32xf32>
    %255 = arith.subf %238, %254 : vector<176x32xf32>
    %cst_106 = arith.constant 9.99999974E-6 : f32
    %256 = vector.broadcast %cst_106 : f32 to vector<176x1xf32>
    %257 = arith.addf %253, %256 : vector<176x1xf32>
    %258 = math.rsqrt %257 : vector<176x1xf32>
    %259 = vector.broadcast %258 : vector<176x1xf32> to vector<176x32xf32>
    %260 = arith.mulf %255, %259 : vector<176x32xf32>
    %261 = vector.broadcast %240 : vector<1x32xf32> to vector<176x32xf32>
    %262 = arith.mulf %260, %261 : vector<176x32xf32>
    %263 = vector.broadcast %242 : vector<1x32xf32> to vector<176x32xf32>
    %264 = arith.addf %262, %263 : vector<176x32xf32>
    %c0_107 = arith.constant 0 : index
    %c0_108 = arith.constant 0 : index
    %265 = vector.load %arg27[%c0_107, %c0_108] : memref<176x32xf32, #tpu.memory_space<vmem>>, vector<176x32xf32>
    tpu.vector_store %arg27[%c0_107, %c0_108], %264 {strides = array<i32>} : memref<176x32xf32, #tpu.memory_space<vmem>>, vector<176x32xf32>,
    %c1_i32 = arith.constant 1 : i32
    %266 = arith.cmpi eq, %arg1, %c1_i32 : i32
    %267 = arith.extui %266 : i1 to i32
    %c0_i32_109 = arith.constant 0 : i32
    %268 = arith.cmpi ne, %267, %c0_i32_109 : i32
    scf.if %268 {
      %269 = vector.shape_cast %264 : vector<176x32xf32> to vector<2x88x32xf32>
      %c0_110 = arith.constant 0 : index
      %c0_111 = arith.constant 0 : index
      %c0_112 = arith.constant 0 : index
      %c0_113 = arith.constant 0 : index
      %270 = vector.load %arg25[%c0_110, %c0_111, %c0_112, %c0_113] : memref<1x2x88x32xf32, #tpu.memory_space<vmem>>, vector<1x2x88x32xf32>
      %271 = vector.shape_cast %270 : vector<1x2x88x32xf32> to vector<2x88x32xf32>
      %272 = vector.shape_cast %269 : vector<2x88x32xf32> to vector<1x2x88x32xf32>
      tpu.vector_store %arg25[%c0_110, %c0_111, %c0_112, %c0_113], %272 {strides = array<i32>} : memref<1x2x88x32xf32, #tpu.memory_space<vmem>>, vector<1x2x88x32xf32>,
      %273 = vector.extract_strided_slice %264 {offsets = [0, 0], sizes = [1, 32], strides = [1, 1]} : vector<176x32xf32> to vector<1x32xf32>
      %274 = vector.extract_strided_slice %264 {offsets = [88, 0], sizes = [1, 32], strides = [1, 1]} : vector<176x32xf32> to vector<1x32xf32>
      %275 = tpu.concatenate %273, %274 in 0 : vector<1x32xf32>, vector<1x32xf32> -> vector<2x32xf32>
      %c0_114 = arith.constant 0 : index
      %c0_115 = arith.constant 0 : index
      %276 = vector.load %arg19[%c0_114, %c0_115] : memref<32x128xf32, #tpu.memory_space<vmem>>, vector<32x128xf32>
      %cst_116 = arith.constant dense<0.000000e+00> : vector<2x128xf32>
      %277 = tpu.matmul %275, %276, %cst_116 {dimension_numbers = #tpu.dot_dimension_numbers<[1], [0], [0], [1], [0, 0, 1, 1], [], []>} : vector<2x32xf32>, vector<32x128xf32>, vector<2x128xf32> -> vector<2x128xf32>
      %c0_117 = arith.constant 0 : index
      %c0_118 = arith.constant 0 : index
      %278 = vector.load %arg20[%c0_117, %c0_118] : memref<1x128xf32, #tpu.memory_space<vmem>>, vector<1x128xf32>
      %279 = vector.broadcast %278 : vector<1x128xf32> to vector<2x128xf32>
      %280 = arith.addf %277, %279 : vector<2x128xf32>
      %cst_119 = arith.constant 0.000000e+00 : f32
      %281 = vector.broadcast %cst_119 : f32 to vector<2x128xf32>
      %282 = arith.cmpf oge, %280, %281 : vector<2x128xf32>
      %cst_120 = arith.constant 0.00999999977 : f32
      %283 = vector.broadcast %cst_120 : f32 to vector<2x128xf32>
      %284 = arith.mulf %283, %280 : vector<2x128xf32>
      %285 = arith.select %282, %280, %284 : vector<2x128xi1>, vector<2x128xf32>
      %c0_121 = arith.constant 0 : index
      %c0_122 = arith.constant 0 : index
      %286 = vector.load %arg21[%c0_121, %c0_122] : memref<128x128xf32, #tpu.memory_space<vmem>>, vector<128x128xf32>
      %cst_123 = arith.constant dense<0.000000e+00> : vector<2x128xf32>
      %287 = tpu.matmul %285, %286, %cst_123 {dimension_numbers = #tpu.dot_dimension_numbers<[1], [0], [0], [1], [0, 0, 1, 1], [], []>} : vector<2x128xf32>, vector<128x128xf32>, vector<2x128xf32> -> vector<2x128xf32>
      %c0_124 = arith.constant 0 : index
      %c0_125 = arith.constant 0 : index
      %288 = vector.load %arg22[%c0_124, %c0_125] : memref<1x128xf32, #tpu.memory_space<vmem>>, vector<1x128xf32>
      %289 = vector.broadcast %288 : vector<1x128xf32> to vector<2x128xf32>
      %290 = arith.addf %287, %289 : vector<2x128xf32>
      %cst_126 = arith.constant 0.000000e+00 : f32
      %291 = vector.broadcast %cst_126 : f32 to vector<2x128xf32>
      %292 = arith.cmpf oge, %290, %291 : vector<2x128xf32>
      %cst_127 = arith.constant 0.00999999977 : f32
      %293 = vector.broadcast %cst_127 : f32 to vector<2x128xf32>
      %294 = arith.mulf %293, %290 : vector<2x128xf32>
      %295 = arith.select %292, %290, %294 : vector<2x128xi1>, vector<2x128xf32>
      %c0_128 = arith.constant 0 : index
      %c0_129 = arith.constant 0 : index
      %296 = vector.load %arg23[%c0_128, %c0_129] : memref<128x256xf32, #tpu.memory_space<vmem>>, vector<128x256xf32>
      %cst_130 = arith.constant dense<0.000000e+00> : vector<2x256xf32>
      %297 = tpu.matmul %295, %296, %cst_130 {dimension_numbers = #tpu.dot_dimension_numbers<[1], [0], [0], [1], [0, 0, 1, 1], [], []>} : vector<2x128xf32>, vector<128x256xf32>, vector<2x256xf32> -> vector<2x256xf32>
      %c0_131 = arith.constant 0 : index
      %c0_132 = arith.constant 0 : index
      %298 = vector.load %arg24[%c0_131, %c0_132] : memref<1x256xf32, #tpu.memory_space<vmem>>, vector<1x256xf32>
      %299 = vector.broadcast %298 : vector<1x256xf32> to vector<2x256xf32>
      %300 = arith.addf %297, %299 : vector<2x256xf32>
      %cst_133 = arith.constant 1.000000e-01 : f32
      %301 = vector.broadcast %cst_133 : f32 to vector<2x256xf32>
      %302 = arith.addf %300, %301 : vector<2x256xf32>
      %cst_134 = arith.constant dense<0.000000e+00> : vector<2xf32>
      %303 = vector.multi_reduction <add>, %302, %cst_134 [1] : vector<2x256xf32> to vector<2xf32>
      %304 = vector.shape_cast %303 : vector<2xf32> to vector<2x1xf32>
      %305 = vector.broadcast %304 : vector<2x1xf32> to vector<2x256xf32>
      %306 = arith.divf %302, %305 : vector<2x256xf32>
      %c0_135 = arith.constant 0 : index
      %c0_136 = arith.constant 0 : index
      %c0_137 = arith.constant 0 : index
      %307 = vector.load %arg26[%c0_135, %c0_136, %c0_137] : memref<1x2x256xf32, #tpu.memory_space<vmem>>, vector<1x2x256xf32>
      %308 = vector.shape_cast %307 : vector<1x2x256xf32> to vector<2x256xf32>
      %309 = vector.shape_cast %306 : vector<2x256xf32> to vector<1x2x256xf32>
      tpu.vector_store %arg26[%c0_135, %c0_136, %c0_137], %309 {strides = array<i32>} : memref<1x2x256xf32, #tpu.memory_space<vmem>>, vector<1x2x256xf32>,
    } else {
    }
    return
  }
  func.func @transform_0(%arg0: i32, %arg1: i32) -> (i32, i32, i32) {
    %c0_i32 = arith.constant 0 : i32
    %c0_i32_0 = arith.constant 0 : i32
    %c0_i32_1 = arith.constant 0 : i32
    %c0_i32_2 = arith.constant 0 : i32
    return %c0_i32, %c0_i32_0, %c0_i32_1 : i32, i32, i32
  }
  func.func @transform_1(%arg0: i32, %arg1: i32) -> (i32, i32, i32) {
    %c0_i32 = arith.constant 0 : i32
    %c0_i32_0 = arith.constant 0 : i32
    %c0_i32_1 = arith.constant 0 : i32
    return %arg0, %c0_i32, %c0_i32_0 : i32, i32, i32
  }
  func.func @transform_2(%arg0: i32, %arg1: i32) -> (i32, i32, i32) {
    %c0_i32 = arith.constant 0 : i32
    %c0_i32_0 = arith.constant 0 : i32
    %c0_i32_1 = arith.constant 0 : i32
    return %arg0, %c0_i32, %c0_i32_0 : i32, i32, i32
  }
  func.func @transform_3(%arg0: i32, %arg1: i32) -> (i32, i32, i32) {
    %c0_i32 = arith.constant 0 : i32
    %c0_i32_0 = arith.constant 0 : i32
    %c0_i32_1 = arith.constant 0 : i32
    return %arg0, %c0_i32, %c0_i32_0 : i32, i32, i32
  }
  func.func @transform_4(%arg0: i32, %arg1: i32) -> (i32, i32, i32) {
    %c0_i32 = arith.constant 0 : i32
    %c0_i32_0 = arith.constant 0 : i32
    %c0_i32_1 = arith.constant 0 : i32
    return %arg0, %c0_i32, %c0_i32_0 : i32, i32, i32
  }
  func.func @transform_5(%arg0: i32, %arg1: i32) -> (i32, i32, i32, i32) {
    %c0_i32 = arith.constant 0 : i32
    %c0_i32_0 = arith.constant 0 : i32
    %c0_i32_1 = arith.constant 0 : i32
    return %arg0, %arg1, %c0_i32, %c0_i32_0 : i32, i32, i32, i32
  }
  func.func @transform_6(%arg0: i32, %arg1: i32) -> (i32, i32, i32, i32) {
    %c0_i32 = arith.constant 0 : i32
    %c0_i32_0 = arith.constant 0 : i32
    %c0_i32_1 = arith.constant 0 : i32
    return %arg0, %arg1, %c0_i32, %c0_i32_0 : i32, i32, i32, i32
  }
  func.func @transform_7(%arg0: i32, %arg1: i32) -> (i32, i32, i32, i32) {
    %c0_i32 = arith.constant 0 : i32
    %c0_i32_0 = arith.constant 0 : i32
    %c0_i32_1 = arith.constant 0 : i32
    return %arg0, %arg1, %c0_i32, %c0_i32_0 : i32, i32, i32, i32
  }
  func.func @transform_8(%arg0: i32, %arg1: i32) -> (i32, i32, i32, i32) {
    %c0_i32 = arith.constant 0 : i32
    %c0_i32_0 = arith.constant 0 : i32
    %c0_i32_1 = arith.constant 0 : i32
    return %arg0, %arg1, %c0_i32, %c0_i32_0 : i32, i32, i32, i32
  }
  func.func @transform_9(%arg0: i32, %arg1: i32) -> (i32, i32, i32, i32) {
    %c0_i32 = arith.constant 0 : i32
    %c0_i32_0 = arith.constant 0 : i32
    %c0_i32_1 = arith.constant 0 : i32
    return %arg0, %arg1, %c0_i32, %c0_i32_0 : i32, i32, i32, i32
  }
  func.func @transform_10(%arg0: i32, %arg1: i32) -> (i32, i32, i32, i32) {
    %c0_i32 = arith.constant 0 : i32
    %c0_i32_0 = arith.constant 0 : i32
    %c0_i32_1 = arith.constant 0 : i32
    return %arg0, %arg1, %c0_i32, %c0_i32_0 : i32, i32, i32, i32
  }
  func.func @transform_11(%arg0: i32, %arg1: i32) -> (i32, i32, i32, i32) {
    %c0_i32 = arith.constant 0 : i32
    %c0_i32_0 = arith.constant 0 : i32
    %c0_i32_1 = arith.constant 0 : i32
    return %arg0, %arg1, %c0_i32, %c0_i32_0 : i32, i32, i32, i32
  }
  func.func @transform_12(%arg0: i32, %arg1: i32) -> (i32, i32, i32, i32) {
    %c0_i32 = arith.constant 0 : i32
    %c0_i32_0 = arith.constant 0 : i32
    %c0_i32_1 = arith.constant 0 : i32
    return %arg0, %arg1, %c0_i32, %c0_i32_0 : i32, i32, i32, i32
  }
  func.func @transform_13(%arg0: i32, %arg1: i32) -> (i32, i32, i32, i32) {
    %c0_i32 = arith.constant 0 : i32
    %c0_i32_0 = arith.constant 0 : i32
    %c0_i32_1 = arith.constant 0 : i32
    return %arg0, %arg1, %c0_i32, %c0_i32_0 : i32, i32, i32, i32
  }
  func.func @transform_14(%arg0: i32, %arg1: i32) -> (i32, i32, i32, i32) {
    %c0_i32 = arith.constant 0 : i32
    %c0_i32_0 = arith.constant 0 : i32
    %c0_i32_1 = arith.constant 0 : i32
    return %arg0, %arg1, %c0_i32, %c0_i32_0 : i32, i32, i32, i32
  }
  func.func @transform_15(%arg0: i32, %arg1: i32) -> (i32, i32, i32, i32) {
    %c0_i32 = arith.constant 0 : i32
    %c0_i32_0 = arith.constant 0 : i32
    %c0_i32_1 = arith.constant 0 : i32
    return %arg0, %arg1, %c0_i32, %c0_i32_0 : i32, i32, i32, i32
  }
  func.func @transform_16(%arg0: i32, %arg1: i32) -> (i32, i32, i32, i32) {
    %c0_i32 = arith.constant 0 : i32
    %c0_i32_0 = arith.constant 0 : i32
    %c0_i32_1 = arith.constant 0 : i32
    return %arg0, %arg1, %c0_i32, %c0_i32_0 : i32, i32, i32, i32
  }
  func.func @transform_17(%arg0: i32, %arg1: i32) -> (i32, i32) {
    %c0_i32 = arith.constant 0 : i32
    %c0_i32_0 = arith.constant 0 : i32
    %c0_i32_1 = arith.constant 0 : i32
    return %c0_i32, %c0_i32_0 : i32, i32
  }
  func.func @transform_18(%arg0: i32, %arg1: i32) -> (i32, i32) {
    %c0_i32 = arith.constant 0 : i32
    %c0_i32_0 = arith.constant 0 : i32
    %c0_i32_1 = arith.constant 0 : i32
    return %c0_i32, %c0_i32_0 : i32, i32
  }
  func.func @transform_19(%arg0: i32, %arg1: i32) -> (i32, i32) {
    %c0_i32 = arith.constant 0 : i32
    %c0_i32_0 = arith.constant 0 : i32
    %c0_i32_1 = arith.constant 0 : i32
    return %c0_i32, %c0_i32_0 : i32, i32
  }
  func.func @transform_20(%arg0: i32, %arg1: i32) -> (i32, i32) {
    %c0_i32 = arith.constant 0 : i32
    %c0_i32_0 = arith.constant 0 : i32
    %c0_i32_1 = arith.constant 0 : i32
    return %c0_i32, %c0_i32_0 : i32, i32
  }
  func.func @transform_21(%arg0: i32, %arg1: i32) -> (i32, i32) {
    %c0_i32 = arith.constant 0 : i32
    %c0_i32_0 = arith.constant 0 : i32
    %c0_i32_1 = arith.constant 0 : i32
    return %c0_i32, %c0_i32_0 : i32, i32
  }
  func.func @transform_22(%arg0: i32, %arg1: i32) -> (i32, i32) {
    %c0_i32 = arith.constant 0 : i32
    %c0_i32_0 = arith.constant 0 : i32
    %c0_i32_1 = arith.constant 0 : i32
    return %c0_i32, %c0_i32_0 : i32, i32
  }
  func.func @transform_23(%arg0: i32, %arg1: i32) -> (i32, i32, i32, i32) {
    %c0_i32 = arith.constant 0 : i32
    %c0_i32_0 = arith.constant 0 : i32
    %c0_i32_1 = arith.constant 0 : i32
    %c0_i32_2 = arith.constant 0 : i32
    return %arg0, %c0_i32, %c0_i32_0, %c0_i32_1 : i32, i32, i32, i32
  }
  func.func @transform_24(%arg0: i32, %arg1: i32) -> (i32, i32, i32) {
    %c0_i32 = arith.constant 0 : i32
    %c0_i32_0 = arith.constant 0 : i32
    %c0_i32_1 = arith.constant 0 : i32
    return %arg0, %c0_i32, %c0_i32_0 : i32, i32, i32
  }
}

module attributes {stable_mosaic.version = 11 : i64} {
  func.func @_bottleneck_kernel(%arg0: i32, %arg1: memref<8x864xbf16, #tpu.memory_space<vmem>>, %arg2: memref<864x512xbf16, #tpu.memory_space<vmem>>, %arg3: memref<8x1xf32, #tpu.memory_space<vmem>>, %arg4: memref<8x512xf32, #tpu.memory_space<vmem>>) attributes {dimension_semantics = [#tpu.dimension_semantics<parallel>], iteration_bounds = array<i64: 1>, scalar_prefetch = 0 : i64, scratch_operands = 0 : i64, tpu.core_type = #tpu.core_type<tc>, window_params = [{pipeline_mode = #tpu.pipeline_mode<synchronous>, transform_indices = @transform_0, window_bounds = array<i64: 8, 864>}, {transform_indices = @transform_1, window_bounds = array<i64: 864, 512>}, {pipeline_mode = #tpu.pipeline_mode<synchronous>, transform_indices = @transform_2, window_bounds = array<i64: 8, 1>}, {transform_indices = @transform_3, window_bounds = array<i64: 8, 512>}]} {
    %c0 = arith.constant 0 : index
    %c0_0 = arith.constant 0 : index
    %0 = vector.load %arg1[%c0, %c0_0] : memref<8x864xbf16, #tpu.memory_space<vmem>>, vector<8x864xbf16>
    %c0_1 = arith.constant 0 : index
    %c0_2 = arith.constant 0 : index
    %1 = vector.load %arg2[%c0_1, %c0_2] : memref<864x512xbf16, #tpu.memory_space<vmem>>, vector<864x512xbf16>
    %cst = arith.constant dense<0.000000e+00> : vector<8x512xf32>
    %2 = tpu.matmul %0, %1, %cst {dimension_numbers = #tpu.dot_dimension_numbers<[1], [0], [0], [1], [0, 0, 1, 1], [], []>} : vector<8x864xbf16>, vector<864x512xbf16>, vector<8x512xf32> -> vector<8x512xf32>
    %c0_3 = arith.constant 0 : index
    %c0_4 = arith.constant 0 : index
    %3 = vector.load %arg3[%c0_3, %c0_4] : memref<8x1xf32, #tpu.memory_space<vmem>>, vector<8x1xf32>
    %4 = vector.broadcast %3 : vector<8x1xf32> to vector<8x512xf32>
    %5 = arith.addf %2, %4 : vector<8x512xf32>
    %cst_5 = arith.constant 0.000000e+00 : f32
    %6 = vector.broadcast %cst_5 : f32 to vector<8x512xf32>
    %7 = arith.cmpf oge, %5, %6 : vector<8x512xf32>
    %cst_6 = arith.constant 0.00999999977 : f32
    %8 = vector.broadcast %cst_6 : f32 to vector<8x512xf32>
    %9 = arith.mulf %8, %5 : vector<8x512xf32>
    %10 = arith.select %7, %5, %9 : vector<8x512xi1>, vector<8x512xf32>
    %c0_7 = arith.constant 0 : index
    %c0_8 = arith.constant 0 : index
    %11 = vector.load %arg4[%c0_7, %c0_8] : memref<8x512xf32, #tpu.memory_space<vmem>>, vector<8x512xf32>
    tpu.vector_store %arg4[%c0_7, %c0_8], %10 {strides = array<i32>} : memref<8x512xf32, #tpu.memory_space<vmem>>, vector<8x512xf32>,
    return
  }
  func.func @transform_0(%arg0: i32) -> (i32, i32) {
    %c0_i32 = arith.constant 0 : i32
    %c0_i32_0 = arith.constant 0 : i32
    %c0_i32_1 = arith.constant 0 : i32
    return %c0_i32, %c0_i32_0 : i32, i32
  }
  func.func @transform_1(%arg0: i32) -> (i32, i32) {
    %c0_i32 = arith.constant 0 : i32
    %c0_i32_0 = arith.constant 0 : i32
    return %c0_i32, %arg0 : i32, i32
  }
  func.func @transform_2(%arg0: i32) -> (i32, i32) {
    %c0_i32 = arith.constant 0 : i32
    %c0_i32_0 = arith.constant 0 : i32
    %c0_i32_1 = arith.constant 0 : i32
    return %c0_i32, %c0_i32_0 : i32, i32
  }
  func.func @transform_3(%arg0: i32) -> (i32, i32) {
    %c0_i32 = arith.constant 0 : i32
    %c0_i32_0 = arith.constant 0 : i32
    return %c0_i32, %arg0 : i32, i32
  }
}

</mosaic_0001>

<llo_original>
// kernel: pyramid_scene_transformer_forward.2
$region0: #{pyramid_scene_transformer_forward.2}
  #allocation0 [shape = 'u32[]', space=smem, size = 0x4, offset = 0x4, fixed_abs, tag = 'smem constant byte address 0x4 - core index']
  #allocation1 [shape = 'u32[72,128]{1,0:T(1,128)}', space=vmem, size = 0x9000, scoped, tag = 'internal scratch']
  #allocation2 [shape = 'f32[176,32]{1,0:T(8,128)}', space=vmem, size = 0x16000, scoped, tag = 'scratch operand']
  %s0 = inlined_call_operand.vmem [shape: f32[2,256,8], index: 0, kind: input, shape index: {}]
  %s1 = inlined_call_operand.hbm [shape: f32[3,88,256], index: 1, kind: input, shape index: {}]
  %s2 = inlined_call_operand.hbm [shape: bf16[3,8,32], index: 2, kind: input, shape index: {}]
  %s3 = inlined_call_operand.vmem [shape: f32[3,88,32], index: 3, kind: input, shape index: {}]
  %s4 = inlined_call_operand.hbm [shape: f32[3,1,88], index: 4, kind: input, shape index: {}]
  %s5 = inlined_call_operand.hbm [shape: bf16[3,2,32,96], index: 5, kind: input, shape index: {}]
  %s6 = inlined_call_operand.hbm [shape: f32[3,2,1,96], index: 6, kind: input, shape index: {}]
  %s7 = inlined_call_operand.hbm [shape: bf16[3,2,32,32], index: 7, kind: input, shape index: {}]
  %s8 = inlined_call_operand.hbm [shape: f32[3,2,1,32], index: 8, kind: input, shape index: {}]
  %s9 = inlined_call_operand.hbm [shape: f32[3,2,1,32], index: 9, kind: input, shape index: {}]
  %s10 = inlined_call_operand.hbm [shape: f32[3,2,1,32], index: 10, kind: input, shape index: {}]
  %s11 = inlined_call_operand.hbm [shape: bf16[3,2,32,64], index: 11, kind: input, shape index: {}]
  %s12 = inlined_call_operand.hbm [shape: f32[3,2,1,64], index: 12, kind: input, shape index: {}]
  %s13 = inlined_call_operand.vmem [shape: bf16[3,2,64,32], index: 13, kind: input, shape index: {}]
  %s14 = inlined_call_operand.hbm [shape: f32[3,2,1,32], index: 14, kind: input, shape index: {}]
  %s15 = inlined_call_operand.hbm [shape: f32[3,2,1,32], index: 15, kind: input, shape index: {}]
  %s16 = inlined_call_operand.hbm [shape: f32[3,2,1,32], index: 16, kind: input, shape index: {}]
  %s17 = inlined_call_operand.hbm [shape: f32[32,128], index: 17, kind: input, shape index: {}]
  %s18 = inlined_call_operand.hbm [shape: f32[1,128], index: 18, kind: input, shape index: {}]
  %s19 = inlined_call_operand.hbm [shape: f32[128,128], index: 19, kind: input, shape index: {}]
  %s20 = inlined_call_operand.hbm [shape: f32[1,128], index: 20, kind: input, shape index: {}]
  %s21 = inlined_call_operand.hbm [shape: f32[128,256], index: 21, kind: input, shape index: {}]
  %s22 = inlined_call_operand.hbm [shape: f32[1,256], index: 22, kind: input, shape index: {}]
  %s23 = inlined_call_operand.vmem [shape: f32[3,2,88,32], index: 23, kind: output, shape index: {0}]
  %s24 = inlined_call_operand.vmem [shape: f32[3,2,256], index: 24, kind: output, shape index: {1}]
  %25 = xla_tuple %s23, %s24
  %s26 = sld [smem:[#allocation0]]
  $region221: #{pyramid_scene_transformer_forward.2} parent=0
    _
  %s28 = ssub.s32 1, %s26
  %s29 = scalar_select 0, %s28, %s26
  $region1: #{pyramid_scene_transformer_forward.2} parent=0
    #allocation3 [shape = 'u8[180224]{0}', space=vmem, size = 0x2c000, scoped, tag = 'input window, operand 1']
    #allocation4 [shape = 's32[2]{0}', space=sflag, size = 0x8, scoped, tag = 'scoped memory for pyramid_scene_transformer_forward.2']
    #allocation5 [shape = 'u8[4096]{0}', space=vmem, size = 0x1000, scoped, tag = 'input window, operand 2']
    #allocation6 [shape = 's32[2]{0}', space=sflag, size = 0x8, scoped, tag = 'scoped memory for pyramid_scene_transformer_forward.2']
    #allocation7 [shape = 'u8[1024]{0}', space=vmem, size = 0x400, scoped, tag = 'input window, operand 4']
    #allocation8 [shape = 'u8[16384]{0}', space=vmem, size = 0x4000, scoped, tag = 'input window, operand 5']
    #allocation9 [shape = 's32[2]{0}', space=sflag, size = 0x8, scoped, tag = 'scoped memory for pyramid_scene_transformer_forward.2']
    #allocation10 [shape = 'u8[1024]{0}', space=vmem, size = 0x400, scoped, tag = 'input window, operand 6']
    #allocation11 [shape = 'u8[16384]{0}', space=vmem, size = 0x4000, scoped, tag = 'input window, operand 7']
    #allocation12 [shape = 's32[2]{0}', space=sflag, size = 0x8, scoped, tag = 'scoped memory for pyramid_scene_transformer_forward.2']
    #allocation13 [shape = 'u8[1024]{0}', space=vmem, size = 0x400, scoped, tag = 'input window, operand 8']
    #allocation14 [shape = 'u8[1024]{0}', space=vmem, size = 0x400, scoped, tag = 'input window, operand 9']
    #allocation15 [shape = 's32[2]{0}', space=sflag, size = 0x8, scoped, tag = 'scoped memory for pyramid_scene_transformer_forward.2']
    #allocation16 [shape = 'u8[1024]{0}', space=vmem, size = 0x400, scoped, tag = 'input window, operand 10']
    #allocation17 [shape = 'u8[16384]{0}', space=vmem, size = 0x4000, scoped, tag = 'input window, operand 11']
    #allocation18 [shape = 's32[2]{0}', space=sflag, size = 0x8, scoped, tag = 'scoped memory for pyramid_scene_transformer_forward.2']
    #allocation19 [shape = 'u8[1024]{0}', space=vmem, size = 0x400, scoped, tag = 'input window, operand 12']
    #allocation20 [shape = 'u8[1024]{0}', space=vmem, size = 0x400, scoped, tag = 'input window, operand 14']
    #allocation21 [shape = 's32[2]{0}', space=sflag, size = 0x8, scoped, tag = 'scoped memory for pyramid_scene_transformer_forward.2']
    #allocation22 [shape = 'u8[1024]{0}', space=vmem, size = 0x400, scoped, tag = 'input window, operand 15']
    #allocation23 [shape = 'u8[1024]{0}', space=vmem, size = 0x400, scoped, tag = 'input window, operand 16']
    #allocation24 [shape = 's32[2]{0}', space=sflag, size = 0x8, scoped, tag = 'scoped memory for pyramid_scene_transformer_forward.2']
    #allocation25 [shape = 'u8[16384]{0}', space=vmem, size = 0x4000, scoped, tag = 'input window, operand 17, single buffered']
    #allocation26 [shape = 'u8[512]{0}', space=vmem, size = 0x400, scoped, tag = 'input window, operand 18, single buffered']
    #allocation27 [shape = 's32[1]{0}', space=sflag, size = 0x4, scoped, tag = 'scoped memory for pyramid_scene_transformer_forward.2']
    #allocation28 [shape = 'u8[65536]{0}', space=vmem, size = 0x10000, scoped, tag = 'input window, operand 19, single buffered']
    #allocation29 [shape = 'u8[512]{0}', space=vmem, size = 0x400, scoped, tag = 'input window, operand 20, single buffered']
    #allocation30 [shape = 's32[1]{0}', space=sflag, size = 0x4, scoped, tag = 'scoped memory for pyramid_scene_transformer_forward.2']
    #allocation31 [shape = 'u8[131072]{0}', space=vmem, size = 0x20000, scoped, tag = 'input window, operand 21, single buffered']
    #allocation32 [shape = 'u8[1024]{0}', space=vmem, size = 0x400, scoped, tag = 'input window, operand 22, single buffered']
    #allocation33 [shape = 's32[1]{0}', space=sflag, size = 0x4, scoped, tag = 'scoped memory for pyramid_scene_transformer_forward.2']
    %30 = vsyncpa [#allocation4], 0
    %s31 = scalar_lea.sflag [#allocation4], 1
    %32 = vsyncpa %s31, 0
    %33 = vsyncpa [#allocation6], 0
    %s34 = scalar_lea.sflag [#allocation6], 1
    %35 = vsyncpa %s34, 0
    %36 = vsyncpa [#allocation9], 0
    %s37 = scalar_lea.sflag [#allocation9], 1
    %38 = vsyncpa %s37, 0
    %39 = vsyncpa [#allocation12], 0
    %s40 = scalar_lea.sflag [#allocation12], 1
    %41 = vsyncpa %s40, 0
    %42 = vsyncpa [#allocation15], 0
    %s43 = scalar_lea.sflag [#allocation15], 1
    %44 = vsyncpa %s43, 0
    %45 = vsyncpa [#allocation18], 0
    %s46 = scalar_lea.sflag [#allocation18], 1
    %47 = vsyncpa %s46, 0
    %48 = vsyncpa [#allocation21], 0
    %s49 = scalar_lea.sflag [#allocation21], 1
    %50 = vsyncpa %s49, 0
    %51 = vsyncpa [#allocation24], 0
    %s52 = scalar_lea.sflag [#allocation24], 1
    %53 = vsyncpa %s52, 0
    %54 = vsyncpa [#allocation27], 0
    %55 = vsyncpa [#allocation30], 0
    %56 = vsyncpa [#allocation33], 0
    loop: start=0, step=1, limit=8
    $region2: #{pyramid_scene_transformer_forward.2} parent=1 // loop_pre_header
      _
    $region3: #{pyramid_scene_transformer_forward.2} parent=1 // loop_header
      %s58 = sphi 0, %s62
      %p59 = scmp.ge.s32.totalorder %s58, 8
      %s65 = sphi 0, %s77
      %s66 = sphi 0, %s73
      %s67 = sphi 0, %s65
      %s68 = sphi 0, %s66
      %s69 = sphi 0, %s67
      %s70 = sphi 0, %s68
      %s78 = sphi 0, %s78
      %s80 = sphi 0, %s78
      %s81 = sphi 0, %s80
      %s95 = sphi 0, %s81
      %s101 = sphi 0, %s103
      %s104 = sphi 0, %s101
      %s105 = sphi 0, %s104
      %s121 = sphi 0, %s105
      %s127 = sphi 0, %s129
      %s130 = sphi 0, %s127
      %s131 = sphi 0, %s130
      %s147 = sphi 0, %s131
      %s153 = sphi 0, %s155
      %s156 = sphi 0, %s153
      %s157 = sphi 0, %s156
      %s173 = sphi 0, %s157
      %s179 = sphi 0, %s181
      %s182 = sphi 0, %s179
      %s183 = sphi 0, %s182
      %s199 = sphi 0, %s183
      %s207 = sphi 0, %s209
      %s210 = sphi 0, %s207
      %s211 = sphi 0, %s210
      %s227 = sphi 0, %s211
      %s235 = sphi 0, %s237
      %s238 = sphi 0, %s235
      %s239 = sphi 0, %s238
      %s255 = sphi 0, %s239
      %s263 = sphi 0, %s265
      %s266 = sphi 0, %s263
      %s267 = sphi 0, %s266
      %s283 = sphi 0, %s267
      %s291 = sphi 0, %s293
      %s294 = sphi 0, %s291
      %s295 = sphi 0, %s294
      %s311 = sphi 0, %s295
      %s319 = sphi 0, %s321
      %s322 = sphi 0, %s319
      %s323 = sphi 0, %s322
      %s339 = sphi 0, %s323
      %s347 = sphi 0, %s349
      %s350 = sphi 0, %s347
      %s351 = sphi 0, %s350
      %s367 = sphi 0, %s351
      %s375 = sphi 0, %s377
      %s378 = sphi 0, %s375
      %s379 = sphi 0, %s378
      %s395 = sphi 0, %s379
      %s403 = sphi 0, %s405
      %s406 = sphi 0, %s403
      %s407 = sphi 0, %s406
      %s423 = sphi 0, %s407
      %s431 = sphi 0, %s433
      %s434 = sphi 0, %s431
      %s435 = sphi 0, %s434
      %s451 = sphi 0, %s435
      %s459 = sphi 0, %s461
      %s462 = sphi 0, %s459
      %s463 = sphi 0, %s462
      %s479 = sphi 0, %s463
      %s487 = sphi 0, %s489
      %s490 = sphi 0, %s487
      %s491 = sphi 0, %s490
      %s507 = sphi 0, %s491
      %s515 = sphi 0, %s517
      %s518 = sphi 0, %s515
      %s519 = sphi 0, %s518
      %s535 = sphi 0, %s519
      %s539 = sphi 0, %s539
      %s541 = sphi 0, %s539
      %s542 = sphi 0, %s541
      %s556 = sphi 0, %s542
      %s560 = sphi 0, %s560
      %s562 = sphi 0, %s560
      %s563 = sphi 0, %s562
      %s577 = sphi 0, %s563
      %s581 = sphi 0, %s581
      %s583 = sphi 0, %s581
      %s584 = sphi 0, %s583
      %s598 = sphi 0, %s584
      %s602 = sphi 0, %s602
      %s604 = sphi 0, %s602
      %s605 = sphi 0, %s604
      %s619 = sphi 0, %s605
      %s623 = sphi 0, %s623
      %s625 = sphi 0, %s623
      %s626 = sphi 0, %s625
      %s640 = sphi 0, %s626
      %s644 = sphi 0, %s644
      %s646 = sphi 0, %s644
      %s647 = sphi 0, %s646
      %s661 = sphi 0, %s647
      %s667 = sphi 0, %s669
      %s670 = sphi 0, %s667
      %s671 = sphi 0, %s670
      %s687 = sphi 0, %s671
      %s693 = sphi 0, %s695
      %s696 = sphi 0, %s693
      %s697 = sphi 0, %s696
      %s713 = sphi 0, %s697
    $region4: #{pyramid_scene_transformer_forward.2} parent=1 // loop_header_branch
      %61 = sbr.rel (%p59) target = $region8
    $region5: #{pyramid_scene_transformer_forward.2} parent=1 // loop_body
      %s63 = ssub.s32 %s58, 1
      %s64 = ssub.s32 %s58, 2
      %s71 = sadd.s32 1, %s66
      %p72 = scmp.ge.s32.totalorder %s71, 2
      %s73 = scalar_select %p72, 0, %s71
      %s74 = sadd.s32 1, %s65
      %s75 = scalar_select %p72, %s74, %s65
      %p76 = scmp.ge.s32.totalorder %s75, 3
      %s77 = scalar_select %p76, 0, %s75
      %s79 = sadd.s32 %s78, 1
      %p82 = scmp.eq.s32.totalorder %s58, 5
      %p83 = scmp.ne.s32.totalorder %s78, %s80
      %p84 = scmp.eq.s32.totalorder %s58, 0
      %p85 = por %p83, %p84
      %p86 = scmp.ne.s32.totalorder %s78, %s80
      %p87 = scmp.eq.s32.totalorder %s63, 5
      %p88 = por %p86, %p87
      %p89 = scmp.ne.s32.totalorder %s80, %s81
      %p90 = scmp.eq.s32.totalorder %s63, 0
      %p91 = por %p89, %p90
      %p92 = scmp.ne.s32.totalorder %s80, %s81
      %p93 = scmp.eq.s32.totalorder %s64, 5
      %p94 = por %p92, %p93
      %p96 = scmp.ne.s32.totalorder %s81, %s95
      %p97 = scmp.eq.s32.totalorder %s64, 0
      %p98 = por %p96, %p97
      %s99 = ssub.s32 %s65, %s77
      %p100 = scmp.eq.s32.totalorder %s99, 0
      %s102 = sadd.s32 %s101, 1
      %s103 = scalar_select %p100, %s101, %s102
      %p106 = pneg %p100
      %p107 = scmp.eq.s32.totalorder %s58, 5
      %p108 = por %p106, %p107
      %p109 = scmp.ne.s32.totalorder %s101, %s104
      %p110 = scmp.eq.s32.totalorder %s58, 0
      %p111 = por %p109, %p110
      %p112 = scmp.ne.s32.totalorder %s101, %s104
      %p113 = scmp.eq.s32.totalorder %s63, 5
      %p114 = por %p112, %p113
      %p115 = scmp.ne.s32.totalorder %s104, %s105
      %p116 = scmp.eq.s32.totalorder %s63, 0
      %p117 = por %p115, %p116
      %p118 = scmp.ne.s32.totalorder %s104, %s105
      %p119 = scmp.eq.s32.totalorder %s64, 5
      %p120 = por %p118, %p119
      %p122 = scmp.ne.s32.totalorder %s105, %s121
      %p123 = scmp.eq.s32.totalorder %s64, 0
      %p124 = por %p122, %p123
      %s125 = ssub.s32 %s65, %s77
      %p126 = scmp.eq.s32.totalorder %s125, 0
      %s128 = sadd.s32 %s127, 1
      %s129 = scalar_select %p126, %s127, %s128
      %p132 = pneg %p126
      %p133 = scmp.eq.s32.totalorder %s58, 5
      %p134 = por %p132, %p133
      %p135 = scmp.ne.s32.totalorder %s127, %s130
      %p136 = scmp.eq.s32.totalorder %s58, 0
      %p137 = por %p135, %p136
      %p138 = scmp.ne.s32.totalorder %s127, %s130
      %p139 = scmp.eq.s32.totalorder %s63, 5
      %p140 = por %p138, %p139
      %p141 = scmp.ne.s32.totalorder %s130, %s131
      %p142 = scmp.eq.s32.totalorder %s63, 0
      %p143 = por %p141, %p142
      %p144 = scmp.ne.s32.totalorder %s130, %s131
      %p145 = scmp.eq.s32.totalorder %s64, 5
      %p146 = por %p144, %p145
      %p148 = scmp.ne.s32.totalorder %s131, %s147
      %p149 = scmp.eq.s32.totalorder %s64, 0
      %p150 = por %p148, %p149
      %s151 = ssub.s32 %s65, %s77
      %p152 = scmp.eq.s32.totalorder %s151, 0
      %s154 = sadd.s32 %s153, 1
      %s155 = scalar_select %p152, %s153, %s154
      %p158 = pneg %p152
      %p159 = scmp.eq.s32.totalorder %s58, 5
      %p160 = por %p158, %p159
      %p161 = scmp.ne.s32.totalorder %s153, %s156
      %p162 = scmp.eq.s32.totalorder %s58, 0
      %p163 = por %p161, %p162
      %p164 = scmp.ne.s32.totalorder %s153, %s156
      %p165 = scmp.eq.s32.totalorder %s63, 5
      %p166 = por %p164, %p165
      %p167 = scmp.ne.s32.totalorder %s156, %s157
      %p168 = scmp.eq.s32.totalorder %s63, 0
      %p169 = por %p167, %p168
      %p170 = scmp.ne.s32.totalorder %s156, %s157
      %p171 = scmp.eq.s32.totalorder %s64, 5
      %p172 = por %p170, %p171
      %p174 = scmp.ne.s32.totalorder %s157, %s173
      %p175 = scmp.eq.s32.totalorder %s64, 0
      %p176 = por %p174, %p175
      %s177 = ssub.s32 %s65, %s77
      %p178 = scmp.eq.s32.totalorder %s177, 0
      %s180 = sadd.s32 %s179, 1
      %s181 = scalar_select %p178, %s179, %s180
      %p184 = pneg %p178
      %p185 = scmp.eq.s32.totalorder %s58, 5
      %p186 = por %p184, %p185
      %p187 = scmp.ne.s32.totalorder %s179, %s182
      %p188 = scmp.eq.s32.totalorder %s58, 0
      %p189 = por %p187, %p188
      %p190 = scmp.ne.s32.totalorder %s179, %s182
      %p191 = scmp.eq.s32.totalorder %s63, 5
      %p192 = por %p190, %p191
      %p193 = scmp.ne.s32.totalorder %s182, %s183
      %p194 = scmp.eq.s32.totalorder %s63, 0
      %p195 = por %p193, %p194
      %p196 = scmp.ne.s32.totalorder %s182, %s183
      %p197 = scmp.eq.s32.totalorder %s64, 5
      %p198 = por %p196, %p197
      %p200 = scmp.ne.s32.totalorder %s183, %s199
      %p201 = scmp.eq.s32.totalorder %s64, 0
      %p202 = por %p200, %p201
      %s203 = ssub.s32 %s65, %s77
      %s204 = ssub.s32 %s66, %s73
      %s205 = sor.u32 %s203, %s204
      %p206 = scmp.eq.s32.totalorder %s205, 0
      %s208 = sadd.s32 %s207, 1
      %s209 = scalar_select %p206, %s207, %s208
      %p212 = pneg %p206
      %p213 = scmp.eq.s32.totalorder %s58, 5
      %p214 = por %p212, %p213
      %p215 = scmp.ne.s32.totalorder %s207, %s210
      %p216 = scmp.eq.s32.totalorder %s58, 0
      %p217 = por %p215, %p216
      %p218 = scmp.ne.s32.totalorder %s207, %s210
      %p219 = scmp.eq.s32.totalorder %s63, 5
      %p220 = por %p218, %p219
      %p221 = scmp.ne.s32.totalorder %s210, %s211
      %p222 = scmp.eq.s32.totalorder %s63, 0
      %p223 = por %p221, %p222
      %p224 = scmp.ne.s32.totalorder %s210, %s211
      %p225 = scmp.eq.s32.totalorder %s64, 5
      %p226 = por %p224, %p225
      %p228 = scmp.ne.s32.totalorder %s211, %s227
      %p229 = scmp.eq.s32.totalorder %s64, 0
      %p230 = por %p228, %p229
      %s231 = ssub.s32 %s65, %s77
      %s232 = ssub.s32 %s66, %s73
      %s233 = sor.u32 %s231, %s232
      %p234 = scmp.eq.s32.totalorder %s233, 0
      %s236 = sadd.s32 %s235, 1
      %s237 = scalar_select %p234, %s235, %s236
      %p240 = pneg %p234
      %p241 = scmp.eq.s32.totalorder %s58, 5
      %p242 = por %p240, %p241
      %p243 = scmp.ne.s32.totalorder %s235, %s238
      %p244 = scmp.eq.s32.totalorder %s58, 0
      %p245 = por %p243, %p244
      %p246 = scmp.ne.s32.totalorder %s235, %s238
      %p247 = scmp.eq.s32.totalorder %s63, 5
      %p248 = por %p246, %p247
      %p249 = scmp.ne.s32.totalorder %s238, %s239
      %p250 = scmp.eq.s32.totalorder %s63, 0
      %p251 = por %p249, %p250
      %p252 = scmp.ne.s32.totalorder %s238, %s239
      %p253 = scmp.eq.s32.totalorder %s64, 5
      %p254 = por %p252, %p253
      %p256 = scmp.ne.s32.totalorder %s239, %s255
      %p257 = scmp.eq.s32.totalorder %s64, 0
      %p258 = por %p256, %p257
      %s259 = ssub.s32 %s65, %s77
      %s260 = ssub.s32 %s66, %s73
      %s261 = sor.u32 %s259, %s260
      %p262 = scmp.eq.s32.totalorder %s261, 0
      %s264 = sadd.s32 %s263, 1
      %s265 = scalar_select %p262, %s263, %s264
      %p268 = pneg %p262
      %p269 = scmp.eq.s32.totalorder %s58, 5
      %p270 = por %p268, %p269
      %p271 = scmp.ne.s32.totalorder %s263, %s266
      %p272 = scmp.eq.s32.totalorder %s58, 0
      %p273 = por %p271, %p272
      %p274 = scmp.ne.s32.totalorder %s263, %s266
      %p275 = scmp.eq.s32.totalorder %s63, 5
      %p276 = por %p274, %p275
      %p277 = scmp.ne.s32.totalorder %s266, %s267
      %p278 = scmp.eq.s32.totalorder %s63, 0
      %p279 = por %p277, %p278
      %p280 = scmp.ne.s32.totalorder %s266, %s267
      %p281 = scmp.eq.s32.totalorder %s64, 5
      %p282 = por %p280, %p281
      %p284 = scmp.ne.s32.totalorder %s267, %s283
      %p285 = scmp.eq.s32.totalorder %s64, 0
      %p286 = por %p284, %p285
      %s287 = ssub.s32 %s65, %s77
      %s288 = ssub.s32 %s66, %s73
      %s289 = sor.u32 %s287, %s288
      %p290 = scmp.eq.s32.totalorder %s289, 0
      %s292 = sadd.s32 %s291, 1
      %s293 = scalar_select %p290, %s291, %s292
      %p296 = pneg %p290
      %p297 = scmp.eq.s32.totalorder %s58, 5
      %p298 = por %p296, %p297
      %p299 = scmp.ne.s32.totalorder %s291, %s294
      %p300 = scmp.eq.s32.totalorder %s58, 0
      %p301 = por %p299, %p300
      %p302 = scmp.ne.s32.totalorder %s291, %s294
      %p303 = scmp.eq.s32.totalorder %s63, 5
      %p304 = por %p302, %p303
      %p305 = scmp.ne.s32.totalorder %s294, %s295
      %p306 = scmp.eq.s32.totalorder %s63, 0
      %p307 = por %p305, %p306
      %p308 = scmp.ne.s32.totalorder %s294, %s295
      %p309 = scmp.eq.s32.totalorder %s64, 5
      %p310 = por %p308, %p309
      %p312 = scmp.ne.s32.totalorder %s295, %s311
      %p313 = scmp.eq.s32.totalorder %s64, 0
      %p314 = por %p312, %p313
      %s315 = ssub.s32 %s65, %s77
      %s316 = ssub.s32 %s66, %s73
      %s317 = sor.u32 %s315, %s316
      %p318 = scmp.eq.s32.totalorder %s317, 0
      %s320 = sadd.s32 %s319, 1
      %s321 = scalar_select %p318, %s319, %s320
      %p324 = pneg %p318
      %p325 = scmp.eq.s32.totalorder %s58, 5
      %p326 = por %p324, %p325
      %p327 = scmp.ne.s32.totalorder %s319, %s322
      %p328 = scmp.eq.s32.totalorder %s58, 0
      %p329 = por %p327, %p328
      %p330 = scmp.ne.s32.totalorder %s319, %s322
      %p331 = scmp.eq.s32.totalorder %s63, 5
      %p332 = por %p330, %p331
      %p333 = scmp.ne.s32.totalorder %s322, %s323
      %p334 = scmp.eq.s32.totalorder %s63, 0
      %p335 = por %p333, %p334
      %p336 = scmp.ne.s32.totalorder %s322, %s323
      %p337 = scmp.eq.s32.totalorder %s64, 5
      %p338 = por %p336, %p337
      %p340 = scmp.ne.s32.totalorder %s323, %s339
      %p341 = scmp.eq.s32.totalorder %s64, 0
      %p342 = por %p340, %p341
      %s343 = ssub.s32 %s65, %s77
      %s344 = ssub.s32 %s66, %s73
      %s345 = sor.u32 %s343, %s344
      %p346 = scmp.eq.s32.totalorder %s345, 0
      %s348 = sadd.s32 %s347, 1
      %s349 = scalar_select %p346, %s347, %s348
      %p352 = pneg %p346
      %p353 = scmp.eq.s32.totalorder %s58, 5
      %p354 = por %p352, %p353
      %p355 = scmp.ne.s32.totalorder %s347, %s350
      %p356 = scmp.eq.s32.totalorder %s58, 0
      %p357 = por %p355, %p356
      %p358 = scmp.ne.s32.totalorder %s347, %s350
      %p359 = scmp.eq.s32.totalorder %s63, 5
      %p360 = por %p358, %p359
      %p361 = scmp.ne.s32.totalorder %s350, %s351
      %p362 = scmp.eq.s32.totalorder %s63, 0
      %p363 = por %p361, %p362
      %p364 = scmp.ne.s32.totalorder %s350, %s351
      %p365 = scmp.eq.s32.totalorder %s64, 5
      %p366 = por %p364, %p365
      %p368 = scmp.ne.s32.totalorder %s351, %s367
      %p369 = scmp.eq.s32.totalorder %s64, 0
      %p370 = por %p368, %p369
      %s371 = ssub.s32 %s65, %s77
      %s372 = ssub.s32 %s66, %s73
      %s373 = sor.u32 %s371, %s372
      %p374 = scmp.eq.s32.totalorder %s373, 0
      %s376 = sadd.s32 %s375, 1
      %s377 = scalar_select %p374, %s375, %s376
      %p380 = pneg %p374
      %p381 = scmp.eq.s32.totalorder %s58, 5
      %p382 = por %p380, %p381
      %p383 = scmp.ne.s32.totalorder %s375, %s378
      %p384 = scmp.eq.s32.totalorder %s58, 0
      %p385 = por %p383, %p384
      %p386 = scmp.ne.s32.totalorder %s375, %s378
      %p387 = scmp.eq.s32.totalorder %s63, 5
      %p388 = por %p386, %p387
      %p389 = scmp.ne.s32.totalorder %s378, %s379
      %p390 = scmp.eq.s32.totalorder %s63, 0
      %p391 = por %p389, %p390
      %p392 = scmp.ne.s32.totalorder %s378, %s379
      %p393 = scmp.eq.s32.totalorder %s64, 5
      %p394 = por %p392, %p393
      %p396 = scmp.ne.s32.totalorder %s379, %s395
      %p397 = scmp.eq.s32.totalorder %s64, 0
      %p398 = por %p396, %p397
      %s399 = ssub.s32 %s65, %s77
      %s400 = ssub.s32 %s66, %s73
      %s401 = sor.u32 %s399, %s400
      %p402 = scmp.eq.s32.totalorder %s401, 0
      %s404 = sadd.s32 %s403, 1
      %s405 = scalar_select %p402, %s403, %s404
      %p408 = pneg %p402
      %p409 = scmp.eq.s32.totalorder %s58, 5
      %p410 = por %p408, %p409
      %p411 = scmp.ne.s32.totalorder %s403, %s406
      %p412 = scmp.eq.s32.totalorder %s58, 0
      %p413 = por %p411, %p412
      %p414 = scmp.ne.s32.totalorder %s403, %s406
      %p415 = scmp.eq.s32.totalorder %s63, 5
      %p416 = por %p414, %p415
      %p417 = scmp.ne.s32.totalorder %s406, %s407
      %p418 = scmp.eq.s32.totalorder %s63, 0
      %p419 = por %p417, %p418
      %p420 = scmp.ne.s32.totalorder %s406, %s407
      %p421 = scmp.eq.s32.totalorder %s64, 5
      %p422 = por %p420, %p421
      %p424 = scmp.ne.s32.totalorder %s407, %s423
      %p425 = scmp.eq.s32.totalorder %s64, 0
      %p426 = por %p424, %p425
      %s427 = ssub.s32 %s65, %s77
      %s428 = ssub.s32 %s66, %s73
      %s429 = sor.u32 %s427, %s428
      %p430 = scmp.eq.s32.totalorder %s429, 0
      %s432 = sadd.s32 %s431, 1
      %s433 = scalar_select %p430, %s431, %s432
      %p436 = pneg %p430
      %p437 = scmp.eq.s32.totalorder %s58, 5
      %p438 = por %p436, %p437
      %p439 = scmp.ne.s32.totalorder %s431, %s434
      %p440 = scmp.eq.s32.totalorder %s58, 0
      %p441 = por %p439, %p440
      %p442 = scmp.ne.s32.totalorder %s431, %s434
      %p443 = scmp.eq.s32.totalorder %s63, 5
      %p444 = por %p442, %p443
      %p445 = scmp.ne.s32.totalorder %s434, %s435
      %p446 = scmp.eq.s32.totalorder %s63, 0
      %p447 = por %p445, %p446
      %p448 = scmp.ne.s32.totalorder %s434, %s435
      %p449 = scmp.eq.s32.totalorder %s64, 5
      %p450 = por %p448, %p449
      %p452 = scmp.ne.s32.totalorder %s435, %s451
      %p453 = scmp.eq.s32.totalorder %s64, 0
      %p454 = por %p452, %p453
      %s455 = ssub.s32 %s65, %s77
      %s456 = ssub.s32 %s66, %s73
      %s457 = sor.u32 %s455, %s456
      %p458 = scmp.eq.s32.totalorder %s457, 0
      %s460 = sadd.s32 %s459, 1
      %s461 = scalar_select %p458, %s459, %s460
      %p464 = pneg %p458
      %p465 = scmp.eq.s32.totalorder %s58, 5
      %p466 = por %p464, %p465
      %p467 = scmp.ne.s32.totalorder %s459, %s462
      %p468 = scmp.eq.s32.totalorder %s58, 0
      %p469 = por %p467, %p468
      %p470 = scmp.ne.s32.totalorder %s459, %s462
      %p471 = scmp.eq.s32.totalorder %s63, 5
      %p472 = por %p470, %p471
      %p473 = scmp.ne.s32.totalorder %s462, %s463
      %p474 = scmp.eq.s32.totalorder %s63, 0
      %p475 = por %p473, %p474
      %p476 = scmp.ne.s32.totalorder %s462, %s463
      %p477 = scmp.eq.s32.totalorder %s64, 5
      %p478 = por %p476, %p477
      %p480 = scmp.ne.s32.totalorder %s463, %s479
      %p481 = scmp.eq.s32.totalorder %s64, 0
      %p482 = por %p480, %p481
      %s483 = ssub.s32 %s65, %s77
      %s484 = ssub.s32 %s66, %s73
      %s485 = sor.u32 %s483, %s484
      %p486 = scmp.eq.s32.totalorder %s485, 0
      %s488 = sadd.s32 %s487, 1
      %s489 = scalar_select %p486, %s487, %s488
      %p492 = pneg %p486
      %p493 = scmp.eq.s32.totalorder %s58, 5
      %p494 = por %p492, %p493
      %p495 = scmp.ne.s32.totalorder %s487, %s490
      %p496 = scmp.eq.s32.totalorder %s58, 0
      %p497 = por %p495, %p496
      %p498 = scmp.ne.s32.totalorder %s487, %s490
      %p499 = scmp.eq.s32.totalorder %s63, 5
      %p500 = por %p498, %p499
      %p501 = scmp.ne.s32.totalorder %s490, %s491
      %p502 = scmp.eq.s32.totalorder %s63, 0
      %p503 = por %p501, %p502
      %p504 = scmp.ne.s32.totalorder %s490, %s491
      %p505 = scmp.eq.s32.totalorder %s64, 5
      %p506 = por %p504, %p505
      %p508 = scmp.ne.s32.totalorder %s491, %s507
      %p509 = scmp.eq.s32.totalorder %s64, 0
      %p510 = por %p508, %p509
      %s511 = ssub.s32 %s65, %s77
      %s512 = ssub.s32 %s66, %s73
      %s513 = sor.u32 %s511, %s512
      %p514 = scmp.eq.s32.totalorder %s513, 0
      %s516 = sadd.s32 %s515, 1
      %s517 = scalar_select %p514, %s515, %s516
      %p520 = pneg %p514
      %p521 = scmp.eq.s32.totalorder %s58, 5
      %p522 = por %p520, %p521
      %p523 = scmp.ne.s32.totalorder %s515, %s518
      %p524 = scmp.eq.s32.totalorder %s58, 0
      %p525 = por %p523, %p524
      %p526 = scmp.ne.s32.totalorder %s515, %s518
      %p527 = scmp.eq.s32.totalorder %s63, 5
      %p528 = por %p526, %p527
      %p529 = scmp.ne.s32.totalorder %s518, %s519
      %p530 = scmp.eq.s32.totalorder %s63, 0
      %p531 = por %p529, %p530
      %p532 = scmp.ne.s32.totalorder %s518, %s519
      %p533 = scmp.eq.s32.totalorder %s64, 5
      %p534 = por %p532, %p533
      %p536 = scmp.ne.s32.totalorder %s519, %s535
      %p537 = scmp.eq.s32.totalorder %s64, 0
      %p538 = por %p536, %p537
      %s540 = sadd.s32 %s539, 1
      %p543 = scmp.eq.s32.totalorder %s58, 5
      %p544 = scmp.ne.s32.totalorder %s539, %s541
      %p545 = scmp.eq.s32.totalorder %s58, 0
      %p546 = por %p544, %p545
      %p547 = scmp.ne.s32.totalorder %s539, %s541
      %p548 = scmp.eq.s32.totalorder %s63, 5
      %p549 = por %p547, %p548
      %p550 = scmp.ne.s32.totalorder %s541, %s542
      %p551 = scmp.eq.s32.totalorder %s63, 0
      %p552 = por %p550, %p551
      %p553 = scmp.ne.s32.totalorder %s541, %s542
      %p554 = scmp.eq.s32.totalorder %s64, 5
      %p555 = por %p553, %p554
      %p557 = scmp.ne.s32.totalorder %s542, %s556
      %p558 = scmp.eq.s32.totalorder %s64, 0
      %p559 = por %p557, %p558
      %s561 = sadd.s32 %s560, 1
      %p564 = scmp.eq.s32.totalorder %s58, 5
      %p565 = scmp.ne.s32.totalorder %s560, %s562
      %p566 = scmp.eq.s32.totalorder %s58, 0
      %p567 = por %p565, %p566
      %p568 = scmp.ne.s32.totalorder %s560, %s562
      %p569 = scmp.eq.s32.totalorder %s63, 5
      %p570 = por %p568, %p569
      %p571 = scmp.ne.s32.totalorder %s562, %s563
      %p572 = scmp.eq.s32.totalorder %s63, 0
      %p573 = por %p571, %p572
      %p574 = scmp.ne.s32.totalorder %s562, %s563
      %p575 = scmp.eq.s32.totalorder %s64, 5
      %p576 = por %p574, %p575
      %p578 = scmp.ne.s32.totalorder %s563, %s577
      %p579 = scmp.eq.s32.totalorder %s64, 0
      %p580 = por %p578, %p579
      %s582 = sadd.s32 %s581, 1
      %p585 = scmp.eq.s32.totalorder %s58, 5
      %p586 = scmp.ne.s32.totalorder %s581, %s583
      %p587 = scmp.eq.s32.totalorder %s58, 0
      %p588 = por %p586, %p587
      %p589 = scmp.ne.s32.totalorder %s581, %s583
      %p590 = scmp.eq.s32.totalorder %s63, 5
      %p591 = por %p589, %p590
      %p592 = scmp.ne.s32.totalorder %s583, %s584
      %p593 = scmp.eq.s32.totalorder %s63, 0
      %p594 = por %p592, %p593
      %p595 = scmp.ne.s32.totalorder %s583, %s584
      %p596 = scmp.eq.s32.totalorder %s64, 5
      %p597 = por %p595, %p596
      %p599 = scmp.ne.s32.totalorder %s584, %s598
      %p600 = scmp.eq.s32.totalorder %s64, 0
      %p601 = por %p599, %p600
      %s603 = sadd.s32 %s602, 1
      %p606 = scmp.eq.s32.totalorder %s58, 5
      %p607 = scmp.ne.s32.totalorder %s602, %s604
      %p608 = scmp.eq.s32.totalorder %s58, 0
      %p609 = por %p607, %p608
      %p610 = scmp.ne.s32.totalorder %s602, %s604
      %p611 = scmp.eq.s32.totalorder %s63, 5
      %p612 = por %p610, %p611
      %p613 = scmp.ne.s32.totalorder %s604, %s605
      %p614 = scmp.eq.s32.totalorder %s63, 0
      %p615 = por %p613, %p614
      %p616 = scmp.ne.s32.totalorder %s604, %s605
      %p617 = scmp.eq.s32.totalorder %s64, 5
      %p618 = por %p616, %p617
      %p620 = scmp.ne.s32.totalorder %s605, %s619
      %p621 = scmp.eq.s32.totalorder %s64, 0
      %p622 = por %p620, %p621
      %s624 = sadd.s32 %s623, 1
      %p627 = scmp.eq.s32.totalorder %s58, 5
      %p628 = scmp.ne.s32.totalorder %s623, %s625
      %p629 = scmp.eq.s32.totalorder %s58, 0
      %p630 = por %p628, %p629
      %p631 = scmp.ne.s32.totalorder %s623, %s625
      %p632 = scmp.eq.s32.totalorder %s63, 5
      %p633 = por %p631, %p632
      %p634 = scmp.ne.s32.totalorder %s625, %s626
      %p635 = scmp.eq.s32.totalorder %s63, 0
      %p636 = por %p634, %p635
      %p637 = scmp.ne.s32.totalorder %s625, %s626
      %p638 = scmp.eq.s32.totalorder %s64, 5
      %p639 = por %p637, %p638
      %p641 = scmp.ne.s32.totalorder %s626, %s640
      %p642 = scmp.eq.s32.totalorder %s64, 0
      %p643 = por %p641, %p642
      %s645 = sadd.s32 %s644, 1
      %p648 = scmp.eq.s32.totalorder %s58, 5
      %p649 = scmp.ne.s32.totalorder %s644, %s646
      %p650 = scmp.eq.s32.totalorder %s58, 0
      %p651 = por %p649, %p650
      %p652 = scmp.ne.s32.totalorder %s644, %s646
      %p653 = scmp.eq.s32.totalorder %s63, 5
      %p654 = por %p652, %p653
      %p655 = scmp.ne.s32.totalorder %s646, %s647
      %p656 = scmp.eq.s32.totalorder %s63, 0
      %p657 = por %p655, %p656
      %p658 = scmp.ne.s32.totalorder %s646, %s647
      %p659 = scmp.eq.s32.totalorder %s64, 5
      %p660 = por %p658, %p659
      %p662 = scmp.ne.s32.totalorder %s647, %s661
      %p663 = scmp.eq.s32.totalorder %s64, 0
      %p664 = por %p662, %p663
      %s665 = ssub.s32 %s65, %s77
      %p666 = scmp.eq.s32.totalorder %s665, 0
      %s668 = sadd.s32 %s667, 1
      %s669 = scalar_select %p666, %s667, %s668
      %p672 = pneg %p666
      %p673 = scmp.eq.s32.totalorder %s58, 5
      %p674 = por %p672, %p673
      %p675 = scmp.ne.s32.totalorder %s667, %s670
      %p676 = scmp.eq.s32.totalorder %s58, 0
      %p677 = por %p675, %p676
      %p678 = scmp.ne.s32.totalorder %s667, %s670
      %p679 = scmp.eq.s32.totalorder %s63, 5
      %p680 = por %p678, %p679
      %p681 = scmp.ne.s32.totalorder %s670, %s671
      %p682 = scmp.eq.s32.totalorder %s63, 0
      %p683 = por %p681, %p682
      %p684 = scmp.ne.s32.totalorder %s670, %s671
      %p685 = scmp.eq.s32.totalorder %s64, 5
      %p686 = por %p684, %p685
      %p688 = scmp.ne.s32.totalorder %s671, %s687
      %p689 = scmp.eq.s32.totalorder %s64, 0
      %p690 = por %p688, %p689
      %s691 = ssub.s32 %s65, %s77
      %p692 = scmp.eq.s32.totalorder %s691, 0
      %s694 = sadd.s32 %s693, 1
      %s695 = scalar_select %p692, %s693, %s694
      %p698 = pneg %p692
      %p699 = scmp.eq.s32.totalorder %s58, 5
      %p700 = por %p698, %p699
      %p701 = scmp.ne.s32.totalorder %s693, %s696
      %p702 = scmp.eq.s32.totalorder %s58, 0
      %p703 = por %p701, %p702
      %p704 = scmp.ne.s32.totalorder %s693, %s696
      %p705 = scmp.eq.s32.totalorder %s63, 5
      %p706 = por %p704, %p705
      %p707 = scmp.ne.s32.totalorder %s696, %s697
      %p708 = scmp.eq.s32.totalorder %s63, 0
      %p709 = por %p707, %p708
      %p710 = scmp.ne.s32.totalorder %s696, %s697
      %p711 = scmp.eq.s32.totalorder %s64, 5
      %p712 = por %p710, %p711
      %p714 = scmp.ne.s32.totalorder %s697, %s713
      %p715 = scmp.eq.s32.totalorder %s64, 0
      %p716 = por %p714, %p715
      %p717 = scmp.le.s32.totalorder 1, %s58
      %p718 = scmp.lt.s32.totalorder %s58, 7
      %p719 = pnand %p717, %p718
      %p720 = pneg %p719
      // Predicated region
      $region9: #{pyramid_scene_transformer_forward.2} parent=5 // pred_check
        _
      $region10: #{pyramid_scene_transformer_forward.2} parent=5 // pred_check_branch
        %722 = sbr.rel (%p719) target = $region12
      $region11: #{pyramid_scene_transformer_forward.2} parent=5 // pred_region
        %s723 = ssub.s32 %s58, 1
        // Predicated region
        $region13: #{pyramid_scene_transformer_forward.2} parent=11 // pred_check
          %p724 = pneg %p91
        $region14: #{pyramid_scene_transformer_forward.2} parent=11 // pred_check_branch
          %726 = sbr.rel (%p724) target = $region16
        $region15: #{pyramid_scene_transformer_forward.2} parent=11 // pred_region
          _
        $region16: #{pyramid_scene_transformer_forward.2} parent=11 // pred_fallthru
          _
        // Predicated region
        $region17: #{pyramid_scene_transformer_forward.2} parent=11 // pred_check
          %p727 = pneg %p552
        $region18: #{pyramid_scene_transformer_forward.2} parent=11 // pred_check_branch
          %729 = sbr.rel (%p727) target = $region20
        $region19: #{pyramid_scene_transformer_forward.2} parent=11 // pred_region
          %731 = vsyncadd [#allocation24], 0
          %s732 = sshll.u32 %s17, 4
          %s733 = int_to_ptr.hbm [resolvable:$true] %s732
          %s734 = sshll.u32 [#allocation25], 4
          %s735 = int_to_ptr.vmem [resolvable:$true] %s734
          %740 = dma.hbm_to_vmem [thread:$0]  %s733, 512, %s735, [#allocation24], 128, 128, 8
        $region20: #{pyramid_scene_transformer_forward.2} parent=11 // pred_fallthru
          _
        // Predicated region
        $region21: #{pyramid_scene_transformer_forward.2} parent=11 // pred_check
          %p741 = pneg %p573
        $region22: #{pyramid_scene_transformer_forward.2} parent=11 // pred_check_branch
          %743 = sbr.rel (%p741) target = $region24
        $region23: #{pyramid_scene_transformer_forward.2} parent=11 // pred_region
          %745 = vsyncadd [#allocation27], 0
          %s747 = sshll.u32 %s18, 4
          %s748 = int_to_ptr.hbm [resolvable:$true] %s747
          %s749 = sshll.u32 [#allocation26], 4
          %s750 = int_to_ptr.vmem [resolvable:$true] %s749
          %752 = dma.hbm_to_vmem [thread:$0]  %s748, 16, %s750, [#allocation27]
        $region24: #{pyramid_scene_transformer_forward.2} parent=11 // pred_fallthru
          _
        // Predicated region
        $region25: #{pyramid_scene_transformer_forward.2} parent=11 // pred_check
          %p753 = pneg %p594
        $region26: #{pyramid_scene_transformer_forward.2} parent=11 // pred_check_branch
          %755 = sbr.rel (%p753) target = $region28
        $region27: #{pyramid_scene_transformer_forward.2} parent=11 // pred_region
          %757 = vsyncadd [#allocation27], 0
          %s758 = sshll.u32 %s19, 4
          %s759 = int_to_ptr.hbm [resolvable:$true] %s758
          %s760 = sshll.u32 [#allocation28], 4
          %s761 = int_to_ptr.vmem [resolvable:$true] %s760
          %766 = dma.hbm_to_vmem [thread:$0]  %s759, 2048, %s761, [#allocation27], 128, 128, 8
        $region28: #{pyramid_scene_transformer_forward.2} parent=11 // pred_fallthru
          _
        // Predicated region
        $region29: #{pyramid_scene_transformer_forward.2} parent=11 // pred_check
          %p767 = pneg %p615
        $region30: #{pyramid_scene_transformer_forward.2} parent=11 // pred_check_branch
          %769 = sbr.rel (%p767) target = $region32
        $region31: #{pyramid_scene_transformer_forward.2} parent=11 // pred_region
          %771 = vsyncadd [#allocation30], 0
          %s773 = sshll.u32 %s20, 4
          %s774 = int_to_ptr.hbm [resolvable:$true] %s773
          %s775 = sshll.u32 [#allocation29], 4
          %s776 = int_to_ptr.vmem [resolvable:$true] %s775
          %778 = dma.hbm_to_vmem [thread:$0]  %s774, 16, %s776, [#allocation30]
        $region32: #{pyramid_scene_transformer_forward.2} parent=11 // pred_fallthru
          _
        // Predicated region
        $region33: #{pyramid_scene_transformer_forward.2} parent=11 // pred_check
          %p779 = pneg %p636
        $region34: #{pyramid_scene_transformer_forward.2} parent=11 // pred_check_branch
          %781 = sbr.rel (%p779) target = $region36
        $region35: #{pyramid_scene_transformer_forward.2} parent=11 // pred_region
          %783 = vsyncadd [#allocation30], 0
          %s784 = sshll.u32 %s21, 4
          %s785 = int_to_ptr.hbm [resolvable:$true] %s784
          %s786 = sshll.u32 [#allocation31], 4
          %s787 = int_to_ptr.vmem [resolvable:$true] %s786
          %792 = dma.hbm_to_vmem [thread:$0]  %s785, 4096, %s787, [#allocation30], 256, 256, 16
        $region36: #{pyramid_scene_transformer_forward.2} parent=11 // pred_fallthru
          _
        // Predicated region
        $region37: #{pyramid_scene_transformer_forward.2} parent=11 // pred_check
          %p793 = pneg %p657
        $region38: #{pyramid_scene_transformer_forward.2} parent=11 // pred_check_branch
          %795 = sbr.rel (%p793) target = $region40
        $region39: #{pyramid_scene_transformer_forward.2} parent=11 // pred_region
          %797 = vsyncadd [#allocation33], 0
          %s799 = sshll.u32 %s22, 4
          %s800 = int_to_ptr.hbm [resolvable:$true] %s799
          %s801 = sshll.u32 [#allocation32], 4
          %s802 = int_to_ptr.vmem [resolvable:$true] %s801
          %804 = dma.hbm_to_vmem [thread:$0]  %s800, 32, %s802, [#allocation33]
        $region40: #{pyramid_scene_transformer_forward.2} parent=11 // pred_fallthru
          _
      $region12: #{pyramid_scene_transformer_forward.2} parent=5 // pred_fallthru
        _
      %p805 = scmp.lt.s32.totalorder %s58, 6
      // Predicated region
      $region41: #{pyramid_scene_transformer_forward.2} parent=5 // pred_check
        %p806 = pneg %p805
      $region42: #{pyramid_scene_transformer_forward.2} parent=5 // pred_check_branch
        %808 = sbr.rel (%p806) target = $region44
      $region43: #{pyramid_scene_transformer_forward.2} parent=5 // pred_region
        // Predicated region
        $region45: #{pyramid_scene_transformer_forward.2} parent=43 // pred_check
          %p809 = pneg %p111
        $region46: #{pyramid_scene_transformer_forward.2} parent=43 // pred_check_branch
          %811 = sbr.rel (%p809) target = $region48
        $region47: #{pyramid_scene_transformer_forward.2} parent=43 // pred_region
          %s812 = sand.u32 %s101, 1
          %s813 = scalar_lea.sflag [#allocation4], %s812
          %s814 = sand.u32 %s101, 1
          %s815 = smul.addr %s814, 176
          %s816 = scalar_lea.vmem [#allocation3], %s815
          %818 = vsyncadd %s813, 0
          %s819 = smul.addr %s65, 22
          %s820 = smul.addr %s819, 8
          %s821 = scalar_lea.hbm %s1, %s820
          %s822 = sshll.u32 %s821, 4
          %s823 = int_to_ptr.hbm [resolvable:$true] %s822
          %s824 = sshll.u32 %s816, 4
          %s825 = int_to_ptr.vmem [resolvable:$true] %s824
          %830 = dma.hbm_to_vmem [thread:$0]  %s823, 2816, %s825, %s813, 256, 256, 16
        $region48: #{pyramid_scene_transformer_forward.2} parent=43 // pred_fallthru
          _
        // Predicated region
        $region49: #{pyramid_scene_transformer_forward.2} parent=43 // pred_check
          %p831 = pneg %p137
        $region50: #{pyramid_scene_transformer_forward.2} parent=43 // pred_check_branch
          %833 = sbr.rel (%p831) target = $region52
        $region51: #{pyramid_scene_transformer_forward.2} parent=43 // pred_region
          %s834 = sand.u32 %s58, 1
          %s835 = scalar_lea.sflag [#allocation6], %s834
          %s836 = sand.u32 %s127, 1
          %s837 = smul.addr %s836, 4
          %s838 = scalar_lea.vmem [#allocation5], %s837
          %840 = vsyncadd %s835, 0
          %s841 = smul.addr %s65, 4
          %s842 = scalar_lea.hbm %s2, %s841
          %s844 = sshll.u32 %s842, 4
          %s845 = int_to_ptr.hbm [resolvable:$true] %s844
          %s846 = sshll.u32 %s838, 4
          %s847 = int_to_ptr.vmem [resolvable:$true] %s846
          %849 = dma.hbm_to_vmem [thread:$0]  %s845, 64, %s847, %s835
        $region52: #{pyramid_scene_transformer_forward.2} parent=43 // pred_fallthru
          _
        // Predicated region
        $region53: #{pyramid_scene_transformer_forward.2} parent=43 // pred_check
          %p850 = pneg %p163
        $region54: #{pyramid_scene_transformer_forward.2} parent=43 // pred_check_branch
          %852 = sbr.rel (%p850) target = $region56
        $region55: #{pyramid_scene_transformer_forward.2} parent=43 // pred_region
          %p853 = scmp.lt.s32.totalorder %s65, 2
          %s854 = scalar_select %p853, %s65, 2
          %s855 = smul.addr %s854, 11
          %s856 = smul.addr %s855, 8
          %s857 = scalar_lea.vmem %s3, %s856
        $region56: #{pyramid_scene_transformer_forward.2} parent=43 // pred_fallthru
          _
        // Predicated region
        $region57: #{pyramid_scene_transformer_forward.2} parent=43 // pred_check
          %p858 = pneg %p189
        $region58: #{pyramid_scene_transformer_forward.2} parent=43 // pred_check_branch
          %860 = sbr.rel (%p858) target = $region60
        $region59: #{pyramid_scene_transformer_forward.2} parent=43 // pred_region
          %s861 = sand.u32 %s58, 1
          %s862 = scalar_lea.sflag [#allocation6], %s861
          %s863 = sand.u32 %s179, 1
          %s864 = scalar_lea.vmem [#allocation7], %s863
          %866 = vsyncadd %s862, 0
          %s867 = scalar_lea.hbm %s4, %s65
          %s869 = sshll.u32 %s867, 4
          %s870 = int_to_ptr.hbm [resolvable:$true] %s869
          %s871 = sshll.u32 %s864, 4
          %s872 = int_to_ptr.vmem [resolvable:$true] %s871
          %874 = dma.hbm_to_vmem [thread:$0]  %s870, 16, %s872, %s862
        $region60: #{pyramid_scene_transformer_forward.2} parent=43 // pred_fallthru
          _
        // Predicated region
        $region61: #{pyramid_scene_transformer_forward.2} parent=43 // pred_check
          %p875 = pneg %p217
        $region62: #{pyramid_scene_transformer_forward.2} parent=43 // pred_check_branch
          %877 = sbr.rel (%p875) target = $region64
        $region63: #{pyramid_scene_transformer_forward.2} parent=43 // pred_region
          %s878 = sand.u32 %s58, 1
          %s879 = scalar_lea.sflag [#allocation9], %s878
          %s880 = sand.u32 %s207, 1
          %s881 = smul.addr %s880, 16
          %s882 = scalar_lea.vmem [#allocation8], %s881
          %884 = vsyncadd %s879, 0
          %s885 = smul.addr %s66, 4
          %s886 = smul.addr %s65, 8
          %s887 = sadd.s32 %s885, %s886
          %s888 = smul.addr %s887, 4
          %s889 = scalar_lea.hbm %s5, %s888
          %s890 = sshll.u32 %s889, 4
          %s891 = int_to_ptr.hbm [resolvable:$true] %s890
          %s892 = sshll.u32 %s882, 4
          %s893 = int_to_ptr.vmem [resolvable:$true] %s892
          %898 = dma.hbm_to_vmem [thread:$0]  %s891, 256, %s893, %s879, 64, 64, 4
        $region64: #{pyramid_scene_transformer_forward.2} parent=43 // pred_fallthru
          _
        // Predicated region
        $region65: #{pyramid_scene_transformer_forward.2} parent=43 // pred_check
          %p899 = pneg %p245
        $region66: #{pyramid_scene_transformer_forward.2} parent=43 // pred_check_branch
          %901 = sbr.rel (%p899) target = $region68
        $region67: #{pyramid_scene_transformer_forward.2} parent=43 // pred_region
          %s902 = sand.u32 %s58, 1
          %s903 = scalar_lea.sflag [#allocation9], %s902
          %s904 = sand.u32 %s235, 1
          %s905 = scalar_lea.vmem [#allocation10], %s904
          %907 = vsyncadd %s903, 0
          %s908 = smul.addr %s65, 2
          %s909 = sadd.s32 %s66, %s908
          %s910 = scalar_lea.hbm %s6, %s909
          %s912 = sshll.u32 %s910, 4
          %s913 = int_to_ptr.hbm [resolvable:$true] %s912
          %s914 = sshll.u32 %s905, 4
          %s915 = int_to_ptr.vmem [resolvable:$true] %s914
          %917 = dma.hbm_to_vmem [thread:$0]  %s913, 16, %s915, %s903
        $region68: #{pyramid_scene_transformer_forward.2} parent=43 // pred_fallthru
          _
        // Predicated region
        $region69: #{pyramid_scene_transformer_forward.2} parent=43 // pred_check
          %p918 = pneg %p273
        $region70: #{pyramid_scene_transformer_forward.2} parent=43 // pred_check_branch
          %920 = sbr.rel (%p918) target = $region72
        $region71: #{pyramid_scene_transformer_forward.2} parent=43 // pred_region
          %s921 = sand.u32 %s58, 1
          %s922 = scalar_lea.sflag [#allocation12], %s921
          %s923 = sand.u32 %s263, 1
          %s924 = smul.addr %s923, 16
          %s925 = scalar_lea.vmem [#allocation11], %s924
          %927 = vsyncadd %s922, 0
          %s928 = smul.addr %s66, 4
          %s929 = smul.addr %s65, 8
          %s930 = sadd.s32 %s928, %s929
          %s931 = smul.addr %s930, 4
          %s932 = scalar_lea.hbm %s7, %s931
          %s933 = sshll.u32 %s932, 4
          %s934 = int_to_ptr.hbm [resolvable:$true] %s933
          %s935 = sshll.u32 %s925, 4
          %s936 = int_to_ptr.vmem [resolvable:$true] %s935
          %941 = dma.hbm_to_vmem [thread:$0]  %s934, 256, %s936, %s922, 64, 64, 4
        $region72: #{pyramid_scene_transformer_forward.2} parent=43 // pred_fallthru
          _
        // Predicated region
        $region73: #{pyramid_scene_transformer_forward.2} parent=43 // pred_check
          %p942 = pneg %p301
        $region74: #{pyramid_scene_transformer_forward.2} parent=43 // pred_check_branch
          %944 = sbr.rel (%p942) target = $region76
        $region75: #{pyramid_scene_transformer_forward.2} parent=43 // pred_region
          %s945 = sand.u32 %s58, 1
          %s946 = scalar_lea.sflag [#allocation12], %s945
          %s947 = sand.u32 %s291, 1
          %s948 = scalar_lea.vmem [#allocation13], %s947
          %950 = vsyncadd %s946, 0
          %s951 = smul.addr %s65, 2
          %s952 = sadd.s32 %s66, %s951
          %s953 = scalar_lea.hbm %s8, %s952
          %s955 = sshll.u32 %s953, 4
          %s956 = int_to_ptr.hbm [resolvable:$true] %s955
          %s957 = sshll.u32 %s948, 4
          %s958 = int_to_ptr.vmem [resolvable:$true] %s957
          %960 = dma.hbm_to_vmem [thread:$0]  %s956, 16, %s958, %s946
        $region76: #{pyramid_scene_transformer_forward.2} parent=43 // pred_fallthru
          _
        // Predicated region
        $region77: #{pyramid_scene_transformer_forward.2} parent=43 // pred_check
          %p961 = pneg %p329
        $region78: #{pyramid_scene_transformer_forward.2} parent=43 // pred_check_branch
          %963 = sbr.rel (%p961) target = $region80
        $region79: #{pyramid_scene_transformer_forward.2} parent=43 // pred_region
          %s964 = sand.u32 %s58, 1
          %s965 = scalar_lea.sflag [#allocation15], %s964
          %s966 = sand.u32 %s319, 1
          %s967 = scalar_lea.vmem [#allocation14], %s966
          %969 = vsyncadd %s965, 0
          %s970 = smul.addr %s65, 2
          %s971 = sadd.s32 %s66, %s970
          %s972 = scalar_lea.hbm %s9, %s971
          %s974 = sshll.u32 %s972, 4
          %s975 = int_to_ptr.hbm [resolvable:$true] %s974
          %s976 = sshll.u32 %s967, 4
          %s977 = int_to_ptr.vmem [resolvable:$true] %s976
          %979 = dma.hbm_to_vmem [thread:$0]  %s975, 16, %s977, %s965
        $region80: #{pyramid_scene_transformer_forward.2} parent=43 // pred_fallthru
          _
        // Predicated region
        $region81: #{pyramid_scene_transformer_forward.2} parent=43 // pred_check
          %p980 = pneg %p357
        $region82: #{pyramid_scene_transformer_forward.2} parent=43 // pred_check_branch
          %982 = sbr.rel (%p980) target = $region84
        $region83: #{pyramid_scene_transformer_forward.2} parent=43 // pred_region
          %s983 = sand.u32 %s58, 1
          %s984 = scalar_lea.sflag [#allocation15], %s983
          %s985 = sand.u32 %s347, 1
          %s986 = scalar_lea.vmem [#allocation16], %s985
          %988 = vsyncadd %s984, 0
          %s989 = smul.addr %s65, 2
          %s990 = sadd.s32 %s66, %s989
          %s991 = scalar_lea.hbm %s10, %s990
          %s993 = sshll.u32 %s991, 4
          %s994 = int_to_ptr.hbm [resolvable:$true] %s993
          %s995 = sshll.u32 %s986, 4
          %s996 = int_to_ptr.vmem [resolvable:$true] %s995
          %998 = dma.hbm_to_vmem [thread:$0]  %s994, 16, %s996, %s984
        $region84: #{pyramid_scene_transformer_forward.2} parent=43 // pred_fallthru
          _
        // Predicated region
        $region85: #{pyramid_scene_transformer_forward.2} parent=43 // pred_check
          %p999 = pneg %p385
        $region86: #{pyramid_scene_transformer_forward.2} parent=43 // pred_check_branch
          %1001 = sbr.rel (%p999) target = $region88
        $region87: #{pyramid_scene_transformer_forward.2} parent=43 // pred_region
          %s1002 = sand.u32 %s58, 1
          %s1003 = scalar_lea.sflag [#allocation18], %s1002
          %s1004 = sand.u32 %s375, 1
          %s1005 = smul.addr %s1004, 16
          %s1006 = scalar_lea.vmem [#allocation17], %s1005
          %1008 = vsyncadd %s1003, 0
          %s1009 = smul.addr %s66, 4
          %s1010 = smul.addr %s65, 8
          %s1011 = sadd.s32 %s1009, %s1010
          %s1012 = smul.addr %s1011, 4
          %s1013 = scalar_lea.hbm %s11, %s1012
          %s1014 = sshll.u32 %s1013, 4
          %s1015 = int_to_ptr.hbm [resolvable:$true] %s1014
          %s1016 = sshll.u32 %s1006, 4
          %s1017 = int_to_ptr.vmem [resolvable:$true] %s1016
          %1022 = dma.hbm_to_vmem [thread:$0]  %s1015, 256, %s1017, %s1003, 64, 64, 4
        $region88: #{pyramid_scene_transformer_forward.2} parent=43 // pred_fallthru
          _
        // Predicated region
        $region89: #{pyramid_scene_transformer_forward.2} parent=43 // pred_check
          %p1023 = pneg %p413
        $region90: #{pyramid_scene_transformer_forward.2} parent=43 // pred_check_branch
          %1025 = sbr.rel (%p1023) target = $region92
        $region91: #{pyramid_scene_transformer_forward.2} parent=43 // pred_region
          %s1026 = sand.u32 %s58, 1
          %s1027 = scalar_lea.sflag [#allocation18], %s1026
          %s1028 = sand.u32 %s403, 1
          %s1029 = scalar_lea.vmem [#allocation19], %s1028
          %1031 = vsyncadd %s1027, 0
          %s1032 = smul.addr %s65, 2
          %s1033 = sadd.s32 %s66, %s1032
          %s1034 = scalar_lea.hbm %s12, %s1033
          %s1036 = sshll.u32 %s1034, 4
          %s1037 = int_to_ptr.hbm [resolvable:$true] %s1036
          %s1038 = sshll.u32 %s1029, 4
          %s1039 = int_to_ptr.vmem [resolvable:$true] %s1038
          %1041 = dma.hbm_to_vmem [thread:$0]  %s1037, 16, %s1039, %s1027
        $region92: #{pyramid_scene_transformer_forward.2} parent=43 // pred_fallthru
          _
        // Predicated region
        $region93: #{pyramid_scene_transformer_forward.2} parent=43 // pred_check
          %p1042 = pneg %p441
        $region94: #{pyramid_scene_transformer_forward.2} parent=43 // pred_check_branch
          %1044 = sbr.rel (%p1042) target = $region96
        $region95: #{pyramid_scene_transformer_forward.2} parent=43 // pred_region
          %p1045 = scmp.lt.s32.totalorder %s65, 2
          %s1046 = scalar_select %p1045, %s65, 2
          %p1047 = scmp.lt.s32.totalorder %s66, 1
          %s1048 = scalar_select %p1047, %s66, 1
          %s1049 = smul.addr %s1048, 8
          %s1050 = smul.addr %s1046, 16
          %s1051 = sadd.s32 %s1049, %s1050
          %s1052 = smul.addr %s1051, 4
          %s1053 = scalar_lea.vmem %s13, %s1052
        $region96: #{pyramid_scene_transformer_forward.2} parent=43 // pred_fallthru
          _
        // Predicated region
        $region97: #{pyramid_scene_transformer_forward.2} parent=43 // pred_check
          %p1054 = pneg %p469
        $region98: #{pyramid_scene_transformer_forward.2} parent=43 // pred_check_branch
          %1056 = sbr.rel (%p1054) target = $region100
        $region99: #{pyramid_scene_transformer_forward.2} parent=43 // pred_region
          %s1057 = sand.u32 %s58, 1
          %s1058 = scalar_lea.sflag [#allocation21], %s1057
          %s1059 = sand.u32 %s459, 1
          %s1060 = scalar_lea.vmem [#allocation20], %s1059
          %1062 = vsyncadd %s1058, 0
          %s1063 = smul.addr %s65, 2
          %s1064 = sadd.s32 %s66, %s1063
          %s1065 = scalar_lea.hbm %s14, %s1064
          %s1067 = sshll.u32 %s1065, 4
          %s1068 = int_to_ptr.hbm [resolvable:$true] %s1067
          %s1069 = sshll.u32 %s1060, 4
          %s1070 = int_to_ptr.vmem [resolvable:$true] %s1069
          %1072 = dma.hbm_to_vmem [thread:$0]  %s1068, 16, %s1070, %s1058
        $region100: #{pyramid_scene_transformer_forward.2} parent=43 // pred_fallthru
          _
        // Predicated region
        $region101: #{pyramid_scene_transformer_forward.2} parent=43 // pred_check
          %p1073 = pneg %p497
        $region102: #{pyramid_scene_transformer_forward.2} parent=43 // pred_check_branch
          %1075 = sbr.rel (%p1073) target = $region104
        $region103: #{pyramid_scene_transformer_forward.2} parent=43 // pred_region
          %s1076 = sand.u32 %s58, 1
          %s1077 = scalar_lea.sflag [#allocation21], %s1076
          %s1078 = sand.u32 %s487, 1
          %s1079 = scalar_lea.vmem [#allocation22], %s1078
          %1081 = vsyncadd %s1077, 0
          %s1082 = smul.addr %s65, 2
          %s1083 = sadd.s32 %s66, %s1082
          %s1084 = scalar_lea.hbm %s15, %s1083
          %s1086 = sshll.u32 %s1084, 4
          %s1087 = int_to_ptr.hbm [resolvable:$true] %s1086
          %s1088 = sshll.u32 %s1079, 4
          %s1089 = int_to_ptr.vmem [resolvable:$true] %s1088
          %1091 = dma.hbm_to_vmem [thread:$0]  %s1087, 16, %s1089, %s1077
        $region104: #{pyramid_scene_transformer_forward.2} parent=43 // pred_fallthru
          _
        // Predicated region
        $region105: #{pyramid_scene_transformer_forward.2} parent=43 // pred_check
          %p1092 = pneg %p525
        $region106: #{pyramid_scene_transformer_forward.2} parent=43 // pred_check_branch
          %1094 = sbr.rel (%p1092) target = $region108
        $region107: #{pyramid_scene_transformer_forward.2} parent=43 // pred_region
          %s1095 = sand.u32 %s58, 1
          %s1096 = scalar_lea.sflag [#allocation24], %s1095
          %s1097 = sand.u32 %s515, 1
          %s1098 = scalar_lea.vmem [#allocation23], %s1097
          %1100 = vsyncadd %s1096, 0
          %s1101 = smul.addr %s65, 2
          %s1102 = sadd.s32 %s66, %s1101
          %s1103 = scalar_lea.hbm %s16, %s1102
          %s1105 = sshll.u32 %s1103, 4
          %s1106 = int_to_ptr.hbm [resolvable:$true] %s1105
          %s1107 = sshll.u32 %s1098, 4
          %s1108 = int_to_ptr.vmem [resolvable:$true] %s1107
          %1110 = dma.hbm_to_vmem [thread:$0]  %s1106, 16, %s1108, %s1096
        $region108: #{pyramid_scene_transformer_forward.2} parent=43 // pred_fallthru
          _
      $region44: #{pyramid_scene_transformer_forward.2} parent=5 // pred_fallthru
        _
      %p1111 = scmp.le.s32.totalorder 1, %s58
      %p1112 = scmp.lt.s32.totalorder %s58, 7
      %p1113 = pnand %p1111, %p1112
      %p1114 = pneg %p1113
      // Predicated region
      $region109: #{pyramid_scene_transformer_forward.2} parent=5 // pred_check
        _
      $region110: #{pyramid_scene_transformer_forward.2} parent=5 // pred_check_branch
        %1116 = sbr.rel (%p1113) target = $region112
      $region111: #{pyramid_scene_transformer_forward.2} parent=5 // pred_region
        %s1117 = ssub.s32 %s58, 1
        %s1118 = sand.u32 %s104, 1
        %s1119 = scalar_lea.sflag [#allocation4], %s1118
        %s1120 = sand.u32 %s104, 1
        %s1121 = smul.addr %s1120, 176
        %s1122 = scalar_lea.vmem [#allocation3], %s1121
        // Predicated region
        $region113: #{pyramid_scene_transformer_forward.2} parent=111 // pred_check
          %p1123 = pneg %p117
        $region114: #{pyramid_scene_transformer_forward.2} parent=111 // pred_check_branch
          %1125 = sbr.rel (%p1123) target = $region116
        $region115: #{pyramid_scene_transformer_forward.2} parent=111 // pred_region
          %1127 = dma.done %s1119, 2816
        $region116: #{pyramid_scene_transformer_forward.2} parent=111 // pred_fallthru
          _
        %s1128 = sand.u32 %s63, 1
        %s1129 = scalar_lea.sflag [#allocation6], %s1128
        %s1130 = sand.u32 %s130, 1
        %s1131 = smul.addr %s1130, 4
        %s1132 = scalar_lea.vmem [#allocation5], %s1131
        // Predicated region
        $region117: #{pyramid_scene_transformer_forward.2} parent=111 // pred_check
          %p1133 = pneg %p143
        $region118: #{pyramid_scene_transformer_forward.2} parent=111 // pred_check_branch
          %1135 = sbr.rel (%p1133) target = $region120
        $region119: #{pyramid_scene_transformer_forward.2} parent=111 // pred_region
          %1137 = dma.done %s1129, 64
        $region120: #{pyramid_scene_transformer_forward.2} parent=111 // pred_fallthru
          _
        %s1138 = sand.u32 %s63, 1
        %s1139 = scalar_lea.sflag [#allocation6], %s1138
        %s1140 = sand.u32 %s182, 1
        %s1141 = scalar_lea.vmem [#allocation7], %s1140
        // Predicated region
        $region121: #{pyramid_scene_transformer_forward.2} parent=111 // pred_check
          %p1142 = pneg %p195
        $region122: #{pyramid_scene_transformer_forward.2} parent=111 // pred_check_branch
          %1144 = sbr.rel (%p1142) target = $region124
        $region123: #{pyramid_scene_transformer_forward.2} parent=111 // pred_region
          %1146 = dma.done %s1139, 16
        $region124: #{pyramid_scene_transformer_forward.2} parent=111 // pred_fallthru
          _
        %s1147 = sand.u32 %s63, 1
        %s1148 = scalar_lea.sflag [#allocation9], %s1147
        %s1149 = sand.u32 %s210, 1
        %s1150 = smul.addr %s1149, 16
        %s1151 = scalar_lea.vmem [#allocation8], %s1150
        // Predicated region
        $region125: #{pyramid_scene_transformer_forward.2} parent=111 // pred_check
          %p1152 = pneg %p223
        $region126: #{pyramid_scene_transformer_forward.2} parent=111 // pred_check_branch
          %1154 = sbr.rel (%p1152) target = $region128
        $region127: #{pyramid_scene_transformer_forward.2} parent=111 // pred_region
          %1156 = dma.done %s1148, 256
        $region128: #{pyramid_scene_transformer_forward.2} parent=111 // pred_fallthru
          _
        %s1157 = sand.u32 %s63, 1
        %s1158 = scalar_lea.sflag [#allocation9], %s1157
        %s1159 = sand.u32 %s238, 1
        %s1160 = scalar_lea.vmem [#allocation10], %s1159
        // Predicated region
        $region129: #{pyramid_scene_transformer_forward.2} parent=111 // pred_check
          %p1161 = pneg %p251
        $region130: #{pyramid_scene_transformer_forward.2} parent=111 // pred_check_branch
          %1163 = sbr.rel (%p1161) target = $region132
        $region131: #{pyramid_scene_transformer_forward.2} parent=111 // pred_region
          %1165 = dma.done %s1158, 16
        $region132: #{pyramid_scene_transformer_forward.2} parent=111 // pred_fallthru
          _
        %s1166 = sand.u32 %s63, 1
        %s1167 = scalar_lea.sflag [#allocation12], %s1166
        %s1168 = sand.u32 %s266, 1
        %s1169 = smul.addr %s1168, 16
        %s1170 = scalar_lea.vmem [#allocation11], %s1169
        // Predicated region
        $region133: #{pyramid_scene_transformer_forward.2} parent=111 // pred_check
          %p1171 = pneg %p279
        $region134: #{pyramid_scene_transformer_forward.2} parent=111 // pred_check_branch
          %1173 = sbr.rel (%p1171) target = $region136
        $region135: #{pyramid_scene_transformer_forward.2} parent=111 // pred_region
          %1175 = dma.done %s1167, 256
        $region136: #{pyramid_scene_transformer_forward.2} parent=111 // pred_fallthru
          _
        %s1176 = sand.u32 %s63, 1
        %s1177 = scalar_lea.sflag [#allocation12], %s1176
        %s1178 = sand.u32 %s294, 1
        %s1179 = scalar_lea.vmem [#allocation13], %s1178
        // Predicated region
        $region137: #{pyramid_scene_transformer_forward.2} parent=111 // pred_check
          %p1180 = pneg %p307
        $region138: #{pyramid_scene_transformer_forward.2} parent=111 // pred_check_branch
          %1182 = sbr.rel (%p1180) target = $region140
        $region139: #{pyramid_scene_transformer_forward.2} parent=111 // pred_region
          %1184 = dma.done %s1177, 16
        $region140: #{pyramid_scene_transformer_forward.2} parent=111 // pred_fallthru
          _
        %s1185 = sand.u32 %s63, 1
        %s1186 = scalar_lea.sflag [#allocation15], %s1185
        %s1187 = sand.u32 %s322, 1
        %s1188 = scalar_lea.vmem [#allocation14], %s1187
        // Predicated region
        $region141: #{pyramid_scene_transformer_forward.2} parent=111 // pred_check
          %p1189 = pneg %p335
        $region142: #{pyramid_scene_transformer_forward.2} parent=111 // pred_check_branch
          %1191 = sbr.rel (%p1189) target = $region144
        $region143: #{pyramid_scene_transformer_forward.2} parent=111 // pred_region
          %1193 = dma.done %s1186, 16
        $region144: #{pyramid_scene_transformer_forward.2} parent=111 // pred_fallthru
          _
        %s1194 = sand.u32 %s63, 1
        %s1195 = scalar_lea.sflag [#allocation15], %s1194
        %s1196 = sand.u32 %s350, 1
        %s1197 = scalar_lea.vmem [#allocation16], %s1196
        // Predicated region
        $region145: #{pyramid_scene_transformer_forward.2} parent=111 // pred_check
          %p1198 = pneg %p363
        $region146: #{pyramid_scene_transformer_forward.2} parent=111 // pred_check_branch
          %1200 = sbr.rel (%p1198) target = $region148
        $region147: #{pyramid_scene_transformer_forward.2} parent=111 // pred_region
          %1202 = dma.done %s1195, 16
        $region148: #{pyramid_scene_transformer_forward.2} parent=111 // pred_fallthru
          _
        %s1203 = sand.u32 %s63, 1
        %s1204 = scalar_lea.sflag [#allocation18], %s1203
        %s1205 = sand.u32 %s378, 1
        %s1206 = smul.addr %s1205, 16
        %s1207 = scalar_lea.vmem [#allocation17], %s1206
        // Predicated region
        $region149: #{pyramid_scene_transformer_forward.2} parent=111 // pred_check
          %p1208 = pneg %p391
        $region150: #{pyramid_scene_transformer_forward.2} parent=111 // pred_check_branch
          %1210 = sbr.rel (%p1208) target = $region152
        $region151: #{pyramid_scene_transformer_forward.2} parent=111 // pred_region
          %1212 = dma.done %s1204, 256
        $region152: #{pyramid_scene_transformer_forward.2} parent=111 // pred_fallthru
          _
        %s1213 = sand.u32 %s63, 1
        %s1214 = scalar_lea.sflag [#allocation18], %s1213
        %s1215 = sand.u32 %s406, 1
        %s1216 = scalar_lea.vmem [#allocation19], %s1215
        // Predicated region
        $region153: #{pyramid_scene_transformer_forward.2} parent=111 // pred_check
          %p1217 = pneg %p419
        $region154: #{pyramid_scene_transformer_forward.2} parent=111 // pred_check_branch
          %1219 = sbr.rel (%p1217) target = $region156
        $region155: #{pyramid_scene_transformer_forward.2} parent=111 // pred_region
          %1221 = dma.done %s1214, 16
        $region156: #{pyramid_scene_transformer_forward.2} parent=111 // pred_fallthru
          _
        %s1222 = sand.u32 %s63, 1
        %s1223 = scalar_lea.sflag [#allocation21], %s1222
        %s1224 = sand.u32 %s462, 1
        %s1225 = scalar_lea.vmem [#allocation20], %s1224
        // Predicated region
        $region157: #{pyramid_scene_transformer_forward.2} parent=111 // pred_check
          %p1226 = pneg %p475
        $region158: #{pyramid_scene_transformer_forward.2} parent=111 // pred_check_branch
          %1228 = sbr.rel (%p1226) target = $region160
        $region159: #{pyramid_scene_transformer_forward.2} parent=111 // pred_region
          %1230 = dma.done %s1223, 16
        $region160: #{pyramid_scene_transformer_forward.2} parent=111 // pred_fallthru
          _
        %s1231 = sand.u32 %s63, 1
        %s1232 = scalar_lea.sflag [#allocation21], %s1231
        %s1233 = sand.u32 %s490, 1
        %s1234 = scalar_lea.vmem [#allocation22], %s1233
        // Predicated region
        $region161: #{pyramid_scene_transformer_forward.2} parent=111 // pred_check
          %p1235 = pneg %p503
        $region162: #{pyramid_scene_transformer_forward.2} parent=111 // pred_check_branch
          %1237 = sbr.rel (%p1235) target = $region164
        $region163: #{pyramid_scene_transformer_forward.2} parent=111 // pred_region
          %1239 = dma.done %s1232, 16
        $region164: #{pyramid_scene_transformer_forward.2} parent=111 // pred_fallthru
          _
        %s1240 = sand.u32 %s63, 1
        %s1241 = scalar_lea.sflag [#allocation24], %s1240
        %s1242 = sand.u32 %s518, 1
        %s1243 = scalar_lea.vmem [#allocation23], %s1242
        // Predicated region
        $region165: #{pyramid_scene_transformer_forward.2} parent=111 // pred_check
          %p1244 = pneg %p531
        $region166: #{pyramid_scene_transformer_forward.2} parent=111 // pred_check_branch
          %1246 = sbr.rel (%p1244) target = $region168
        $region167: #{pyramid_scene_transformer_forward.2} parent=111 // pred_region
          %1248 = dma.done %s1241, 16
        $region168: #{pyramid_scene_transformer_forward.2} parent=111 // pred_fallthru
          _
        // Predicated region
        $region169: #{pyramid_scene_transformer_forward.2} parent=111 // pred_check
          %p1249 = pneg %p552
        $region170: #{pyramid_scene_transformer_forward.2} parent=111 // pred_check_branch
          %1251 = sbr.rel (%p1249) target = $region172
        $region171: #{pyramid_scene_transformer_forward.2} parent=111 // pred_region
          %1253 = dma.done [#allocation24], 512
        $region172: #{pyramid_scene_transformer_forward.2} parent=111 // pred_fallthru
          _
        // Predicated region
        $region173: #{pyramid_scene_transformer_forward.2} parent=111 // pred_check
          %p1254 = pneg %p573
        $region174: #{pyramid_scene_transformer_forward.2} parent=111 // pred_check_branch
          %1256 = sbr.rel (%p1254) target = $region176
        $region175: #{pyramid_scene_transformer_forward.2} parent=111 // pred_region
          %1258 = dma.done [#allocation27], 16
        $region176: #{pyramid_scene_transformer_forward.2} parent=111 // pred_fallthru
          _
        // Predicated region
        $region177: #{pyramid_scene_transformer_forward.2} parent=111 // pred_check
          %p1259 = pneg %p594
        $region178: #{pyramid_scene_transformer_forward.2} parent=111 // pred_check_branch
          %1261 = sbr.rel (%p1259) target = $region180
        $region179: #{pyramid_scene_transformer_forward.2} parent=111 // pred_region
          %1263 = dma.done [#allocation27], 2048
        $region180: #{pyramid_scene_transformer_forward.2} parent=111 // pred_fallthru
          _
        // Predicated region
        $region181: #{pyramid_scene_transformer_forward.2} parent=111 // pred_check
          %p1264 = pneg %p615
        $region182: #{pyramid_scene_transformer_forward.2} parent=111 // pred_check_branch
          %1266 = sbr.rel (%p1264) target = $region184
        $region183: #{pyramid_scene_transformer_forward.2} parent=111 // pred_region
          %1268 = dma.done [#allocation30], 16
        $region184: #{pyramid_scene_transformer_forward.2} parent=111 // pred_fallthru
          _
        // Predicated region
        $region185: #{pyramid_scene_transformer_forward.2} parent=111 // pred_check
          %p1269 = pneg %p636
        $region186: #{pyramid_scene_transformer_forward.2} parent=111 // pred_check_branch
          %1271 = sbr.rel (%p1269) target = $region188
        $region187: #{pyramid_scene_transformer_forward.2} parent=111 // pred_region
          %1273 = dma.done [#allocation30], 4096
        $region188: #{pyramid_scene_transformer_forward.2} parent=111 // pred_fallthru
          _
        // Predicated region
        $region189: #{pyramid_scene_transformer_forward.2} parent=111 // pred_check
          %p1274 = pneg %p657
        $region190: #{pyramid_scene_transformer_forward.2} parent=111 // pred_check_branch
          %1276 = sbr.rel (%p1274) target = $region192
        $region191: #{pyramid_scene_transformer_forward.2} parent=111 // pred_region
          %1278 = dma.done [#allocation33], 32
        $region192: #{pyramid_scene_transformer_forward.2} parent=111 // pred_fallthru
          _
        %p1279 = pneg %p91
        %p1280 = pneg %p88
        %s1281 = sand.u32 %s104, 1
        %s1282 = scalar_lea.sflag [#allocation4], %s1281
        %s1283 = sand.u32 %s104, 1
        %s1284 = smul.addr %s1283, 176
        %s1285 = scalar_lea.vmem [#allocation3], %s1284
        %p1286 = pneg %p117
        %p1287 = pneg %p114
        %s1288 = sand.u32 %s63, 1
        %s1289 = scalar_lea.sflag [#allocation6], %s1288
        %s1290 = sand.u32 %s130, 1
        %s1291 = smul.addr %s1290, 4
        %s1292 = scalar_lea.vmem [#allocation5], %s1291
        %p1293 = pneg %p143
        %p1294 = pneg %p140
        %p1295 = scmp.lt.s32.totalorder %s67, 2
        %s1296 = scalar_select %p1295, %s67, 2
        %s1297 = smul.addr %s1296, 11
        %s1298 = smul.addr %s1297, 8
        %s1299 = scalar_lea.vmem %s3, %s1298
        %p1300 = pneg %p169
        %p1301 = pneg %p166
        %s1302 = sand.u32 %s63, 1
        %s1303 = scalar_lea.sflag [#allocation6], %s1302
        %s1304 = sand.u32 %s182, 1
        %s1305 = scalar_lea.vmem [#allocation7], %s1304
        %p1306 = pneg %p195
        %p1307 = pneg %p192
        %s1308 = sand.u32 %s63, 1
        %s1309 = scalar_lea.sflag [#allocation9], %s1308
        %s1310 = sand.u32 %s210, 1
        %s1311 = smul.addr %s1310, 16
        %s1312 = scalar_lea.vmem [#allocation8], %s1311
        %p1313 = pneg %p223
        %p1314 = pneg %p220
        %s1315 = sand.u32 %s63, 1
        %s1316 = scalar_lea.sflag [#allocation9], %s1315
        %s1317 = sand.u32 %s238, 1
        %s1318 = scalar_lea.vmem [#allocation10], %s1317
        %p1319 = pneg %p251
        %p1320 = pneg %p248
        %s1321 = sand.u32 %s63, 1
        %s1322 = scalar_lea.sflag [#allocation12], %s1321
        %s1323 = sand.u32 %s266, 1
        %s1324 = smul.addr %s1323, 16
        %s1325 = scalar_lea.vmem [#allocation11], %s1324
        %p1326 = pneg %p279
        %p1327 = pneg %p276
        %s1328 = sand.u32 %s63, 1
        %s1329 = scalar_lea.sflag [#allocation12], %s1328
        %s1330 = sand.u32 %s294, 1
        %s1331 = scalar_lea.vmem [#allocation13], %s1330
        %p1332 = pneg %p307
        %p1333 = pneg %p304
        %s1334 = sand.u32 %s63, 1
        %s1335 = scalar_lea.sflag [#allocation15], %s1334
        %s1336 = sand.u32 %s322, 1
        %s1337 = scalar_lea.vmem [#allocation14], %s1336
        %p1338 = pneg %p335
        %p1339 = pneg %p332
        %s1340 = sand.u32 %s63, 1
        %s1341 = scalar_lea.sflag [#allocation15], %s1340
        %s1342 = sand.u32 %s350, 1
        %s1343 = scalar_lea.vmem [#allocation16], %s1342
        %p1344 = pneg %p363
        %p1345 = pneg %p360
        %s1346 = sand.u32 %s63, 1
        %s1347 = scalar_lea.sflag [#allocation18], %s1346
        %s1348 = sand.u32 %s378, 1
        %s1349 = smul.addr %s1348, 16
        %s1350 = scalar_lea.vmem [#allocation17], %s1349
        %p1351 = pneg %p391
        %p1352 = pneg %p388
        %s1353 = sand.u32 %s63, 1
        %s1354 = scalar_lea.sflag [#allocation18], %s1353
        %s1355 = sand.u32 %s406, 1
        %s1356 = scalar_lea.vmem [#allocation19], %s1355
        %p1357 = pneg %p419
        %p1358 = pneg %p416
        %p1359 = scmp.lt.s32.totalorder %s67, 2
        %s1360 = scalar_select %p1359, %s67, 2
        %p1361 = scmp.lt.s32.totalorder %s68, 1
        %s1362 = scalar_select %p1361, %s68, 1
        %s1363 = smul.addr %s1362, 8
        %s1364 = smul.addr %s1360, 16
        %s1365 = sadd.s32 %s1363, %s1364
        %s1366 = smul.addr %s1365, 4
        %s1367 = scalar_lea.vmem %s13, %s1366
        %p1368 = pneg %p447
        %p1369 = pneg %p444
        %s1370 = sand.u32 %s63, 1
        %s1371 = scalar_lea.sflag [#allocation21], %s1370
        %s1372 = sand.u32 %s462, 1
        %s1373 = scalar_lea.vmem [#allocation20], %s1372
        %p1374 = pneg %p475
        %p1375 = pneg %p472
        %s1376 = sand.u32 %s63, 1
        %s1377 = scalar_lea.sflag [#allocation21], %s1376
        %s1378 = sand.u32 %s490, 1
        %s1379 = scalar_lea.vmem [#allocation22], %s1378
        %p1380 = pneg %p503
        %p1381 = pneg %p500
        %s1382 = sand.u32 %s63, 1
        %s1383 = scalar_lea.sflag [#allocation24], %s1382
        %s1384 = sand.u32 %s518, 1
        %s1385 = scalar_lea.vmem [#allocation23], %s1384
        %p1386 = pneg %p531
        %p1387 = pneg %p528
        %p1388 = pneg %p552
        %p1389 = pneg %p549
        %p1390 = pneg %p573
        %p1391 = pneg %p570
        %p1392 = pneg %p594
        %p1393 = pneg %p591
        %p1394 = pneg %p615
        %p1395 = pneg %p612
        %p1396 = pneg %p636
        %p1397 = pneg %p633
        %p1398 = pneg %p657
        %p1399 = pneg %p654
        %p1400 = pneg %p683
        %p1401 = pneg %p680
        %p1402 = scmp.lt.s32.totalorder %s67, 2
        %s1403 = scalar_select %p1402, %s67, 2
        %s1404 = smul.addr %s1403, 22
        %s1405 = smul.addr %s1404, 8
        %s1406 = scalar_lea.vmem %s23, %s1405
        %p1407 = pneg %p709
        %p1408 = pneg %p706
        %p1409 = scmp.lt.s32.totalorder %s67, 2
        %s1410 = scalar_select %p1409, %s67, 2
        %s1411 = smul.addr %s1410, 2
        %s1412 = smul.addr %s1411, 2
        %s1413 = scalar_lea.vmem %s24, %s1412
        %p1414 = scmp.lt.s32.totalorder %s67, 2
        %s1415 = scalar_select %p1414, %s67, 2
        %s1416 = smul.addr %s1415, 11
        %s1417 = smul.addr %s1416, 8
        %s1418 = scalar_lea.vmem %s3, %s1417
        %p1419 = scmp.lt.s32.totalorder %s67, 2
        %s1420 = scalar_select %p1419, %s67, 2
        %p1421 = scmp.lt.s32.totalorder %s68, 1
        %s1422 = scalar_select %p1421, %s68, 1
        %s1423 = smul.addr %s1422, 8
        %s1424 = smul.addr %s1420, 16
        %s1425 = sadd.s32 %s1423, %s1424
        %s1426 = smul.addr %s1425, 4
        %s1427 = scalar_lea.vmem %s13, %s1426
        %p1428 = scmp.lt.s32.totalorder %s67, 2
        %s1429 = scalar_select %p1428, %s67, 2
        %s1430 = smul.addr %s1429, 22
        %s1431 = smul.addr %s1430, 8
        %s1432 = scalar_lea.vmem %s23, %s1431
        %p1433 = scmp.lt.s32.totalorder %s67, 2
        %s1434 = scalar_select %p1433, %s67, 2
        %s1435 = smul.addr %s1434, 2
        %s1436 = smul.addr %s1435, 2
        %s1437 = scalar_lea.vmem %s24, %s1436
        %p1439 = scmp.eq.s32.totalorder %s68, 0
        // Predicated region
        $region193: #{pyramid_scene_transformer_forward.2} parent=111 // pred_check
          %p1440 = pneg %p1439
        $region194: #{pyramid_scene_transformer_forward.2} parent=111 // pred_check_branch
          %1442 = sbr.rel (%p1440) target = $region196
        $region195: #{pyramid_scene_transformer_forward.2} parent=111 // pred_region
          %v1443 = vld [vmem:[%s1122] sm:$0xff]
          %v1444 = vld [vmem:[%s1122 + $0x8] sm:$0xff]
          %v1445 = vld [vmem:[%s1122 + $0x10] sm:$0xff]
          %v1446 = vld [vmem:[%s1122 + $0x18] sm:$0xff]
          %v1447 = vld [vmem:[%s1122 + $0x20] sm:$0xff]
          %v1448 = vld [vmem:[%s1122 + $0x28] sm:$0xff]
          %v1449 = vld [vmem:[%s1122 + $0x30] sm:$0xff]
          %v1450 = vld [vmem:[%s1122 + $0x38] sm:$0xff]
          %v1451 = vld [vmem:[%s1122 + $0x40] sm:$0xff]
          %v1452 = vld [vmem:[%s1122 + $0x48] sm:$0xff]
          %v1453 = vld [vmem:[%s1122 + $0x50] sm:$0xff]
          %v1454 = vld [vmem:[%s1122 + $0x58] sm:$0xff]
          %v1455 = vld [vmem:[%s1122 + $0x60] sm:$0xff]
          %v1456 = vld [vmem:[%s1122 + $0x68] sm:$0xff]
          %v1457 = vld [vmem:[%s1122 + $0x70] sm:$0xff]
          %v1458 = vld [vmem:[%s1122 + $0x78] sm:$0xff]
          %v1459 = vld [vmem:[%s1122 + $0x80] sm:$0xff]
          %v1460 = vld [vmem:[%s1122 + $0x88] sm:$0xff]
          %v1461 = vld [vmem:[%s1122 + $0x90] sm:$0xff]
          %v1462 = vld [vmem:[%s1122 + $0x98] sm:$0xff]
          %v1463 = vld [vmem:[%s1122 + $0xa0] sm:$0xff]
          %v1464 = vld [vmem:[%s1122 + $0xa8] sm:$0xff]
          %v1465 = vld [vmem:[%s1132] sm:$0xf]
          %v1466 = vld [vmem:[%s1418] sm:$0xff]
          %v1467 = vld [vmem:[%s1418 + $0x8] sm:$0xff]
          %v1468 = vld [vmem:[%s1418 + $0x10] sm:$0xff]
          %v1469 = vld [vmem:[%s1418 + $0x18] sm:$0xff]
          %v1470 = vld [vmem:[%s1418 + $0x20] sm:$0xff]
          %v1471 = vld [vmem:[%s1418 + $0x28] sm:$0xff]
          %v1472 = vld [vmem:[%s1418 + $0x30] sm:$0xff]
          %v1473 = vld [vmem:[%s1418 + $0x38] sm:$0xff]
          %v1474 = vld [vmem:[%s1418 + $0x40] sm:$0xff]
          %v1475 = vld [vmem:[%s1418 + $0x48] sm:$0xff]
          %v1476 = vld [vmem:[%s1418 + $0x50] sm:$0xff]
          %v1477 = vld [vmem:[%s0] sm:$0xff]
          %v1478 = vld [vmem:[%s0 + $0x8] sm:$0xff]
          %v1479 = vld [vmem:[%s0 + $0x10] sm:$0xff]
          %v1480 = vld [vmem:[%s0 + $0x18] sm:$0xff]
          %v1481 = vld [vmem:[%s0 + $0x20] sm:$0xff]
          %v1482 = vld [vmem:[%s0 + $0x28] sm:$0xff]
          %v1483 = vld [vmem:[%s0 + $0x30] sm:$0xff]
          %v1484 = vld [vmem:[%s0 + $0x38] sm:$0xff]
          %v1485 = vld [vmem:[%s0 + $0x40] sm:$0xff]
          %v1486 = vld [vmem:[%s0 + $0x48] sm:$0xff]
          %v1487 = vld [vmem:[%s0 + $0x50] sm:$0xff]
          %v1488 = vld [vmem:[%s0 + $0x58] sm:$0xff]
          %v1489 = vld [vmem:[%s0 + $0x60] sm:$0xff]
          %v1490 = vld [vmem:[%s0 + $0x68] sm:$0xff]
          %v1491 = vld [vmem:[%s0 + $0x70] sm:$0xff]
          %v1492 = vld [vmem:[%s0 + $0x78] sm:$0xff]
          %v1493 = vld [vmem:[%s0 + $0x80] sm:$0xff]
          %v1494 = vld [vmem:[%s0 + $0x88] sm:$0xff]
          %v1495 = vld [vmem:[%s0 + $0x90] sm:$0xff]
          %v1496 = vld [vmem:[%s0 + $0x98] sm:$0xff]
          %v1497 = vld [vmem:[%s0 + $0xa0] sm:$0xff]
          %v1498 = vld [vmem:[%s0 + $0xa8] sm:$0xff]
          %v1499 = vld [vmem:[%s0 + $0xb0] sm:$0xff]
          %v1500 = vld [vmem:[%s0 + $0xb8] sm:$0xff]
          %v1501 = vld [vmem:[%s0 + $0xc0] sm:$0xff]
          %v1502 = vld [vmem:[%s0 + $0xc8] sm:$0xff]
          %v1503 = vld [vmem:[%s0 + $0xd0] sm:$0xff]
          %v1504 = vld [vmem:[%s0 + $0xd8] sm:$0xff]
          %v1505 = vld [vmem:[%s0 + $0xe0] sm:$0xff]
          %v1506 = vld [vmem:[%s0 + $0xe8] sm:$0xff]
          %v1507 = vld [vmem:[%s0 + $0xf0] sm:$0xff]
          %v1508 = vld [vmem:[%s0 + $0xf8] sm:$0xff]
          %1509 = vmatpush.msra.mxu0 %v1492
          %1510 = vmatpush.msra.mxu0 %v1491
          %1511 = vmatpush.msra.mxu0 %v1490
          %1512 = vmatpush.msra.mxu0 %v1489
          %1513 = vmatpush.msra.mxu0 %v1488
          %1514 = vmatpush.msra.mxu0 %v1487
          %1515 = vmatpush.msra.mxu0 %v1486
          %1516 = vmatpush.msra.mxu0 %v1485
          %1517 = vmatpush.msra.mxu0 %v1484
          %1518 = vmatpush.msra.mxu0 %v1483
          %1519 = vmatpush.msra.mxu0 %v1482
          %1520 = vmatpush.msra.mxu0 %v1481
          %1521 = vmatpush.msra.mxu0 %v1480
          %1522 = vmatpush.msra.mxu0 %v1479
          %1523 = vmatpush.msra.mxu0 %v1478
          %1524 = vmatpush.msra.mxu0 %v1477
          %1525 = vmatmul.f32.gmra.mxu0 %v1443
          %v1526 = vpop.f32.mrf.mxu0
          %v1527 = vadd.f32 0.0, %v1526
          %1528 = vmatmul.f32.gmra.mxu0 %v1445
          %v1529 = vpop.f32.mrf.mxu0
          %v1530 = vadd.f32 0.0, %v1529
          %1531 = vmatmul.f32.gmra.mxu0 %v1447
          %v1532 = vpop.f32.mrf.mxu0
          %v1533 = vadd.f32 0.0, %v1532
          %1534 = vmatmul.f32.gmra.mxu0 %v1449
          %v1535 = vpop.f32.mrf.mxu0
          %v1536 = vadd.f32 0.0, %v1535
          %1537 = vmatmul.f32.gmra.mxu0 %v1451
          %v1538 = vpop.f32.mrf.mxu0
          %v1539 = vadd.f32 0.0, %v1538
          %1540 = vmatmul.f32.gmra.mxu0 %v1453
          %v1541 = vpop.f32.mrf.mxu0
          %v1542 = vadd.f32 0.0, %v1541
          %1543 = vmatmul.f32.gmra.mxu0 %v1455
          %v1544 = vpop.f32.mrf.mxu0
          %v1545 = vadd.f32 0.0, %v1544
          %1546 = vmatmul.f32.gmra.mxu0 %v1457
          %v1547 = vpop.f32.mrf.mxu0
          %v1548 = vadd.f32 0.0, %v1547
          %1549 = vmatmul.f32.gmra.mxu0 %v1459
          %v1550 = vpop.f32.mrf.mxu0
          %v1551 = vadd.f32 0.0, %v1550
          %1552 = vmatmul.f32.gmra.mxu0 %v1461
          %v1553 = vpop.f32.mrf.mxu0
          %v1554 = vadd.f32 0.0, %v1553
          %1555 = vmatmul.f32.gmra.mxu0 %v1463
          %v1556 = vpop.f32.mrf.mxu0
          %v1557 = vadd.f32 0.0, %v1556
          %1558 = vdwg.mxu0
          %1559 = vmatpush.msra.mxu0 %v1508
          %1560 = vmatpush.msra.mxu0 %v1507
          %1561 = vmatpush.msra.mxu0 %v1506
          %1562 = vmatpush.msra.mxu0 %v1505
          %1563 = vmatpush.msra.mxu0 %v1504
          %1564 = vmatpush.msra.mxu0 %v1503
          %1565 = vmatpush.msra.mxu0 %v1502
          %1566 = vmatpush.msra.mxu0 %v1501
          %1567 = vmatpush.msra.mxu0 %v1500
          %1568 = vmatpush.msra.mxu0 %v1499
          %1569 = vmatpush.msra.mxu0 %v1498
          %1570 = vmatpush.msra.mxu0 %v1497
          %1571 = vmatpush.msra.mxu0 %v1496
          %1572 = vmatpush.msra.mxu0 %v1495
          %1573 = vmatpush.msra.mxu0 %v1494
          %1574 = vmatpush.msra.mxu0 %v1493
          %1575 = vmatmul.f32.gmra.mxu0 %v1444
          %v1576 = vpop.f32.mrf.mxu0
          %v1577 = vadd.f32 %v1527, %v1576
          %1578 = vmatmul.f32.gmra.mxu0 %v1446
          %v1579 = vpop.f32.mrf.mxu0
          %v1580 = vadd.f32 %v1530, %v1579
          %1581 = vmatmul.f32.gmra.mxu0 %v1448
          %v1582 = vpop.f32.mrf.mxu0
          %v1583 = vadd.f32 %v1533, %v1582
          %1584 = vmatmul.f32.gmra.mxu0 %v1450
          %v1585 = vpop.f32.mrf.mxu0
          %v1586 = vadd.f32 %v1536, %v1585
          %1587 = vmatmul.f32.gmra.mxu0 %v1452
          %v1588 = vpop.f32.mrf.mxu0
          %v1589 = vadd.f32 %v1539, %v1588
          %1590 = vmatmul.f32.gmra.mxu0 %v1454
          %v1591 = vpop.f32.mrf.mxu0
          %v1592 = vadd.f32 %v1542, %v1591
          %1593 = vmatmul.f32.gmra.mxu0 %v1456
          %v1594 = vpop.f32.mrf.mxu0
          %v1595 = vadd.f32 %v1545, %v1594
          %1596 = vmatmul.f32.gmra.mxu0 %v1458
          %v1597 = vpop.f32.mrf.mxu0
          %v1598 = vadd.f32 %v1548, %v1597
          %1599 = vmatmul.f32.gmra.mxu0 %v1460
          %v1600 = vpop.f32.mrf.mxu0
          %v1601 = vadd.f32 %v1551, %v1600
          %1602 = vmatmul.f32.gmra.mxu0 %v1462
          %v1603 = vpop.f32.mrf.mxu0
          %v1604 = vadd.f32 %v1554, %v1603
          %1605 = vmatmul.f32.gmra.mxu0 %v1464
          %v1606 = vpop.f32.mrf.mxu0
          %v1607 = vadd.f32 %v1557, %v1606
          %1608 = vdwg.mxu0
          %v1609 = vpack.c.bf16 %v1580, %v1577
          %v1610 = vpack.c.bf16 %v1586, %v1583
          %v1611 = vpack.c.bf16 %v1592, %v1589
          %v1612 = vpack.c.bf16 %v1598, %v1595
          %v1613 = vpack.c.bf16 %v1604, %v1601
          %v1614 = vpack.c.bf16 %v1607, %v1607
          %vm1615 = vcmask 64512
          %v1617 = vsel %vm1615, %v1609, 0
          %v1620 = vsel %vm1615, %v1610, 0
          %v1623 = vsel %vm1615, %v1611, 0
          %v1626 = vsel %vm1615, %v1612, 0
          %v1629 = vsel %vm1615, %v1613, 0
          %v1632 = vsel %vm1615, %v1614, 0
          %vm1634 = vcmask 1043456
          %v1636 = vsel %vm1634, %v1465, 0
          %1638 = vmatpush.bf16.msra.mxu0 0
          %1639 = vmatpush.bf16.msra.mxu0 0
          %1640 = vmatpush.bf16.msra.mxu0 0
          %1641 = vmatpush.bf16.msra.mxu0 0
          %1642 = vmatpush.bf16.msra.mxu0 0
          %1643 = vmatpush.bf16.msra.mxu0 0
          %1644 = vmatpush.bf16.msra.mxu0 0
          %1645 = vmatpush.bf16.msra.mxu0 %v1636
          %1646 = vmatmul.bf16.gmra.mxu0 %v1617
          %v1647 = vpop.f32.mrf.mxu0
          %v1648 = vadd.f32 %v1466, %v1647
          %v1649 = vpop.f32.mrf.mxu0
          %v1650 = vadd.f32 %v1467, %v1649
          %1651 = vmatmul.bf16.gmra.mxu0 %v1620
          %v1652 = vpop.f32.mrf.mxu0
          %v1653 = vadd.f32 %v1468, %v1652
          %v1654 = vpop.f32.mrf.mxu0
          %v1655 = vadd.f32 %v1469, %v1654
          %1656 = vmatmul.bf16.gmra.mxu0 %v1623
          %v1657 = vpop.f32.mrf.mxu0
          %v1658 = vadd.f32 %v1470, %v1657
          %v1659 = vpop.f32.mrf.mxu0
          %v1660 = vadd.f32 %v1471, %v1659
          %1661 = vmatmul.bf16.gmra.mxu0 %v1626
          %v1662 = vpop.f32.mrf.mxu0
          %v1663 = vadd.f32 %v1472, %v1662
          %v1664 = vpop.f32.mrf.mxu0
          %v1665 = vadd.f32 %v1473, %v1664
          %1666 = vmatmul.bf16.gmra.mxu0 %v1629
          %v1667 = vpop.f32.mrf.mxu0
          %v1668 = vadd.f32 %v1474, %v1667
          %v1669 = vpop.f32.mrf.mxu0
          %v1670 = vadd.f32 %v1475, %v1669
          %1671 = vmatmul.bf16.gmra.mxu0 %v1632
          %v1672 = vpop.f32.mrf.mxu0
          %v1673 = vadd.f32 %v1476, %v1672
          %v1674 = vpop.f32.mrf.mxu0
          %1675 = vdwg.mxu0
          %vm1676 = vcmask 261120
          %1677 = vst.msk [vmem:[#allocation2] sm:$0xff] %vm1676, %v1648
          %1678 = vst.msk [vmem:[#allocation2 + $0x8] sm:$0xff] %vm1676, %v1650
          %1679 = vst.msk [vmem:[#allocation2 + $0x10] sm:$0xff] %vm1676, %v1653
          %1680 = vst.msk [vmem:[#allocation2 + $0x18] sm:$0xff] %vm1676, %v1655
          %1681 = vst.msk [vmem:[#allocation2 + $0x20] sm:$0xff] %vm1676, %v1658
          %1682 = vst.msk [vmem:[#allocation2 + $0x28] sm:$0xff] %vm1676, %v1660
          %1683 = vst.msk [vmem:[#allocation2 + $0x30] sm:$0xff] %vm1676, %v1663
          %1684 = vst.msk [vmem:[#allocation2 + $0x38] sm:$0xff] %vm1676, %v1665
          %1685 = vst.msk [vmem:[#allocation2 + $0x40] sm:$0xff] %vm1676, %v1668
          %1686 = vst.msk [vmem:[#allocation2 + $0x48] sm:$0xff] %vm1676, %v1670
          %1687 = vst.msk [vmem:[#allocation2 + $0x50] sm:$0xff] %vm1676, %v1673
          %s1688 = scalar_lea.vmem %s0, 256
          %v1689 = vld [vmem:[%s1688] sm:$0xff]
          %v1690 = vld [vmem:[%s1688 + $0x8] sm:$0xff]
          %v1691 = vld [vmem:[%s1688 + $0x10] sm:$0xff]
          %v1692 = vld [vmem:[%s1688 + $0x18] sm:$0xff]
          %v1693 = vld [vmem:[%s1688 + $0x20] sm:$0xff]
          %v1694 = vld [vmem:[%s1688 + $0x28] sm:$0xff]
          %v1695 = vld [vmem:[%s1688 + $0x30] sm:$0xff]
          %v1696 = vld [vmem:[%s1688 + $0x38] sm:$0xff]
          %v1697 = vld [vmem:[%s1688 + $0x40] sm:$0xff]
          %v1698 = vld [vmem:[%s1688 + $0x48] sm:$0xff]
          %v1699 = vld [vmem:[%s1688 + $0x50] sm:$0xff]
          %v1700 = vld [vmem:[%s1688 + $0x58] sm:$0xff]
          %v1701 = vld [vmem:[%s1688 + $0x60] sm:$0xff]
          %v1702 = vld [vmem:[%s1688 + $0x68] sm:$0xff]
          %v1703 = vld [vmem:[%s1688 + $0x70] sm:$0xff]
          %v1704 = vld [vmem:[%s1688 + $0x78] sm:$0xff]
          %v1705 = vld [vmem:[%s1688 + $0x80] sm:$0xff]
          %v1706 = vld [vmem:[%s1688 + $0x88] sm:$0xff]
          %v1707 = vld [vmem:[%s1688 + $0x90] sm:$0xff]
          %v1708 = vld [vmem:[%s1688 + $0x98] sm:$0xff]
          %v1709 = vld [vmem:[%s1688 + $0xa0] sm:$0xff]
          %v1710 = vld [vmem:[%s1688 + $0xa8] sm:$0xff]
          %v1711 = vld [vmem:[%s1688 + $0xb0] sm:$0xff]
          %v1712 = vld [vmem:[%s1688 + $0xb8] sm:$0xff]
          %v1713 = vld [vmem:[%s1688 + $0xc0] sm:$0xff]
          %v1714 = vld [vmem:[%s1688 + $0xc8] sm:$0xff]
          %v1715 = vld [vmem:[%s1688 + $0xd0] sm:$0xff]
          %v1716 = vld [vmem:[%s1688 + $0xd8] sm:$0xff]
          %v1717 = vld [vmem:[%s1688 + $0xe0] sm:$0xff]
          %v1718 = vld [vmem:[%s1688 + $0xe8] sm:$0xff]
          %v1719 = vld [vmem:[%s1688 + $0xf0] sm:$0xff]
          %v1720 = vld [vmem:[%s1688 + $0xf8] sm:$0xff]
          %1721 = vmatpush.msra.mxu0 %v1704
          %1722 = vmatpush.msra.mxu0 %v1703
          %1723 = vmatpush.msra.mxu0 %v1702
          %1724 = vmatpush.msra.mxu0 %v1701
          %1725 = vmatpush.msra.mxu0 %v1700
          %1726 = vmatpush.msra.mxu0 %v1699
          %1727 = vmatpush.msra.mxu0 %v1698
          %1728 = vmatpush.msra.mxu0 %v1697
          %1729 = vmatpush.msra.mxu0 %v1696
          %1730 = vmatpush.msra.mxu0 %v1695
          %1731 = vmatpush.msra.mxu0 %v1694
          %1732 = vmatpush.msra.mxu0 %v1693
          %1733 = vmatpush.msra.mxu0 %v1692
          %1734 = vmatpush.msra.mxu0 %v1691
          %1735 = vmatpush.msra.mxu0 %v1690
          %1736 = vmatpush.msra.mxu0 %v1689
          %1737 = vmatmul.f32.gmra.mxu0 %v1443
          %v1738 = vpop.f32.mrf.mxu0
          %v1739 = vadd.f32 0.0, %v1738
          %1740 = vmatmul.f32.gmra.mxu0 %v1445
          %v1741 = vpop.f32.mrf.mxu0
          %v1742 = vadd.f32 0.0, %v1741
          %1743 = vmatmul.f32.gmra.mxu0 %v1447
          %v1744 = vpop.f32.mrf.mxu0
          %v1745 = vadd.f32 0.0, %v1744
          %1746 = vmatmul.f32.gmra.mxu0 %v1449
          %v1747 = vpop.f32.mrf.mxu0
          %v1748 = vadd.f32 0.0, %v1747
          %1749 = vmatmul.f32.gmra.mxu0 %v1451
          %v1750 = vpop.f32.mrf.mxu0
          %v1751 = vadd.f32 0.0, %v1750
          %1752 = vmatmul.f32.gmra.mxu0 %v1453
          %v1753 = vpop.f32.mrf.mxu0
          %v1754 = vadd.f32 0.0, %v1753
          %1755 = vmatmul.f32.gmra.mxu0 %v1455
          %v1756 = vpop.f32.mrf.mxu0
          %v1757 = vadd.f32 0.0, %v1756
          %1758 = vmatmul.f32.gmra.mxu0 %v1457
          %v1759 = vpop.f32.mrf.mxu0
          %v1760 = vadd.f32 0.0, %v1759
          %1761 = vmatmul.f32.gmra.mxu0 %v1459
          %v1762 = vpop.f32.mrf.mxu0
          %v1763 = vadd.f32 0.0, %v1762
          %1764 = vmatmul.f32.gmra.mxu0 %v1461
          %v1765 = vpop.f32.mrf.mxu0
          %v1766 = vadd.f32 0.0, %v1765
          %1767 = vmatmul.f32.gmra.mxu0 %v1463
          %v1768 = vpop.f32.mrf.mxu0
          %v1769 = vadd.f32 0.0, %v1768
          %1770 = vdwg.mxu0
          %1771 = vmatpush.msra.mxu0 %v1720
          %1772 = vmatpush.msra.mxu0 %v1719
          %1773 = vmatpush.msra.mxu0 %v1718
          %1774 = vmatpush.msra.mxu0 %v1717
          %1775 = vmatpush.msra.mxu0 %v1716
          %1776 = vmatpush.msra.mxu0 %v1715
          %1777 = vmatpush.msra.mxu0 %v1714
          %1778 = vmatpush.msra.mxu0 %v1713
          %1779 = vmatpush.msra.mxu0 %v1712
          %1780 = vmatpush.msra.mxu0 %v1711
          %1781 = vmatpush.msra.mxu0 %v1710
          %1782 = vmatpush.msra.mxu0 %v1709
          %1783 = vmatpush.msra.mxu0 %v1708
          %1784 = vmatpush.msra.mxu0 %v1707
          %1785 = vmatpush.msra.mxu0 %v1706
          %1786 = vmatpush.msra.mxu0 %v1705
          %1787 = vmatmul.f32.gmra.mxu0 %v1444
          %v1788 = vpop.f32.mrf.mxu0
          %v1789 = vadd.f32 %v1739, %v1788
          %1790 = vmatmul.f32.gmra.mxu0 %v1446
          %v1791 = vpop.f32.mrf.mxu0
          %v1792 = vadd.f32 %v1742, %v1791
          %1793 = vmatmul.f32.gmra.mxu0 %v1448
          %v1794 = vpop.f32.mrf.mxu0
          %v1795 = vadd.f32 %v1745, %v1794
          %1796 = vmatmul.f32.gmra.mxu0 %v1450
          %v1797 = vpop.f32.mrf.mxu0
          %v1798 = vadd.f32 %v1748, %v1797
          %1799 = vmatmul.f32.gmra.mxu0 %v1452
          %v1800 = vpop.f32.mrf.mxu0
          %v1801 = vadd.f32 %v1751, %v1800
          %1802 = vmatmul.f32.gmra.mxu0 %v1454
          %v1803 = vpop.f32.mrf.mxu0
          %v1804 = vadd.f32 %v1754, %v1803
          %1805 = vmatmul.f32.gmra.mxu0 %v1456
          %v1806 = vpop.f32.mrf.mxu0
          %v1807 = vadd.f32 %v1757, %v1806
          %1808 = vmatmul.f32.gmra.mxu0 %v1458
          %v1809 = vpop.f32.mrf.mxu0
          %v1810 = vadd.f32 %v1760, %v1809
          %1811 = vmatmul.f32.gmra.mxu0 %v1460
          %v1812 = vpop.f32.mrf.mxu0
          %v1813 = vadd.f32 %v1763, %v1812
          %1814 = vmatmul.f32.gmra.mxu0 %v1462
          %v1815 = vpop.f32.mrf.mxu0
          %v1816 = vadd.f32 %v1766, %v1815
          %1817 = vmatmul.f32.gmra.mxu0 %v1464
          %v1818 = vpop.f32.mrf.mxu0
          %v1819 = vadd.f32 %v1769, %v1818
          %1820 = vdwg.mxu0
          %v1821 = vpack.c.bf16 %v1792, %v1789
          %v1822 = vpack.c.bf16 %v1798, %v1795
          %v1823 = vpack.c.bf16 %v1804, %v1801
          %v1824 = vpack.c.bf16 %v1810, %v1807
          %v1825 = vpack.c.bf16 %v1816, %v1813
          %v1826 = vpack.c.bf16 %v1819, %v1819
          %v1828 = vsel %vm1615, %v1821, 0
          %v1831 = vsel %vm1615, %v1822, 0
          %v1834 = vsel %vm1615, %v1823, 0
          %v1837 = vsel %vm1615, %v1824, 0
          %v1840 = vsel %vm1615, %v1825, 0
          %v1843 = vsel %vm1615, %v1826, 0
          %1845 = vmatpush.bf16.msra.mxu0 0
          %1846 = vmatpush.bf16.msra.mxu0 0
          %1847 = vmatpush.bf16.msra.mxu0 0
          %1848 = vmatpush.bf16.msra.mxu0 0
          %1849 = vmatpush.bf16.msra.mxu0 0
          %1850 = vmatpush.bf16.msra.mxu0 0
          %1851 = vmatpush.bf16.msra.mxu0 0
          %1852 = vmatpush.bf16.msra.mxu0 %v1636
          %1853 = vmatmul.bf16.gmra.mxu0 %v1828
          %v1854 = vpop.f32.mrf.mxu0
          %v1855 = vadd.f32 %v1466, %v1854
          %v1856 = vpop.f32.mrf.mxu0
          %v1857 = vadd.f32 %v1467, %v1856
          %1858 = vmatmul.bf16.gmra.mxu0 %v1831
          %v1859 = vpop.f32.mrf.mxu0
          %v1860 = vadd.f32 %v1468, %v1859
          %v1861 = vpop.f32.mrf.mxu0
          %v1862 = vadd.f32 %v1469, %v1861
          %1863 = vmatmul.bf16.gmra.mxu0 %v1834
          %v1864 = vpop.f32.mrf.mxu0
          %v1865 = vadd.f32 %v1470, %v1864
          %v1866 = vpop.f32.mrf.mxu0
          %v1867 = vadd.f32 %v1471, %v1866
          %1868 = vmatmul.bf16.gmra.mxu0 %v1837
          %v1869 = vpop.f32.mrf.mxu0
          %v1870 = vadd.f32 %v1472, %v1869
          %v1871 = vpop.f32.mrf.mxu0
          %v1872 = vadd.f32 %v1473, %v1871
          %1873 = vmatmul.bf16.gmra.mxu0 %v1840
          %v1874 = vpop.f32.mrf.mxu0
          %v1875 = vadd.f32 %v1474, %v1874
          %v1876 = vpop.f32.mrf.mxu0
          %v1877 = vadd.f32 %v1475, %v1876
          %1878 = vmatmul.bf16.gmra.mxu0 %v1843
          %v1879 = vpop.f32.mrf.mxu0
          %v1880 = vadd.f32 %v1476, %v1879
          %v1881 = vpop.f32.mrf.mxu0
          %1882 = vdwg.mxu0
          %1883 = vst.msk [vmem:[#allocation2 + $0x58] sm:$0xff] %vm1676, %v1855
          %1884 = vst.msk [vmem:[#allocation2 + $0x60] sm:$0xff] %vm1676, %v1857
          %1885 = vst.msk [vmem:[#allocation2 + $0x68] sm:$0xff] %vm1676, %v1860
          %1886 = vst.msk [vmem:[#allocation2 + $0x70] sm:$0xff] %vm1676, %v1862
          %1887 = vst.msk [vmem:[#allocation2 + $0x78] sm:$0xff] %vm1676, %v1865
          %1888 = vst.msk [vmem:[#allocation2 + $0x80] sm:$0xff] %vm1676, %v1867
          %1889 = vst.msk [vmem:[#allocation2 + $0x88] sm:$0xff] %vm1676, %v1870
          %1890 = vst.msk [vmem:[#allocation2 + $0x90] sm:$0xff] %vm1676, %v1872
          %1891 = vst.msk [vmem:[#allocation2 + $0x98] sm:$0xff] %vm1676, %v1875
          %1892 = vst.msk [vmem:[#allocation2 + $0xa0] sm:$0xff] %vm1676, %v1877
          %1893 = vst.msk [vmem:[#allocation2 + $0xa8] sm:$0xff] %vm1676, %v1880
        $region196: #{pyramid_scene_transformer_forward.2} parent=111 // pred_fallthru
          _
        %v1894 = vld [vmem:[#allocation2] sm:$0xff]
        %v1895 = vld [vmem:[#allocation2 + $0x8] sm:$0xff]
        %v1896 = vld [vmem:[#allocation2 + $0x10] sm:$0xff]
        %v1897 = vld [vmem:[#allocation2 + $0x18] sm:$0xff]
        %v1898 = vld [vmem:[#allocation2 + $0x20] sm:$0xff]
        %v1899 = vld [vmem:[#allocation2 + $0x28] sm:$0xff]
        %v1900 = vld [vmem:[#allocation2 + $0x30] sm:$0xff]
        %v1901 = vld [vmem:[#allocation2 + $0x38] sm:$0xff]
        %v1902 = vld [vmem:[#allocation2 + $0x40] sm:$0xff]
        %v1903 = vld [vmem:[#allocation2 + $0x48] sm:$0xff]
        %v1904 = vld [vmem:[#allocation2 + $0x50] sm:$0xff]
        %v1905 = vld [vmem:[#allocation2 + $0x58] sm:$0xff]
        %v1906 = vld [vmem:[#allocation2 + $0x60] sm:$0xff]
        %v1907 = vld [vmem:[#allocation2 + $0x68] sm:$0xff]
        %v1908 = vld [vmem:[#allocation2 + $0x70] sm:$0xff]
        %v1909 = vld [vmem:[#allocation2 + $0x78] sm:$0xff]
        %v1910 = vld [vmem:[#allocation2 + $0x80] sm:$0xff]
        %v1911 = vld [vmem:[#allocation2 + $0x88] sm:$0xff]
        %v1912 = vld [vmem:[#allocation2 + $0x90] sm:$0xff]
        %v1913 = vld [vmem:[#allocation2 + $0x98] sm:$0xff]
        %v1914 = vld [vmem:[#allocation2 + $0xa0] sm:$0xff]
        %v1915 = vld [vmem:[#allocation2 + $0xa8] sm:$0xff]
        %v1916 = vld [vmem:[%s1141] sm:$0x1]
        %v1917 = vpack.c.bf16 %v1895, %v1894
        %v1918 = vpack.c.bf16 %v1897, %v1896
        %v1919 = vpack.c.bf16 %v1899, %v1898
        %v1920 = vpack.c.bf16 %v1901, %v1900
        %v1921 = vpack.c.bf16 %v1903, %v1902
        %v1922 = vpack.c.bf16 %v1905, %v1904
        %v1923 = vpack.c.bf16 %v1907, %v1906
        %v1924 = vpack.c.bf16 %v1909, %v1908
        %v1925 = vpack.c.bf16 %v1911, %v1910
        %v1926 = vpack.c.bf16 %v1913, %v1912
        %v1927 = vpack.c.bf16 %v1915, %v1914
        %v1928 = vld [vmem:[%s1151] sm:$0xf]
        %v1929 = vld [vmem:[%s1151 + $0x4] sm:$0xf]
        %v1930 = vld [vmem:[%s1151 + $0x8] sm:$0xf]
        %v1931 = vld [vmem:[%s1151 + $0xc] sm:$0xf]
        %v1932 = vld [vmem:[%s1160] sm:$0x1]
        %v1934 = vperm.slane %v1932, 0
        %v1940 = vunpack.c.l.b16 %v1928
        %v1941 = vunpack.c.l.b16 %v1929
        %v1942 = vunpack.c.l.b16 %v1930
        %v1943 = vunpack.c.l.b16 %v1931
        %v1944 = vpack.c.b16 %v1941, %v1940
        %v1945 = vpack.c.b16 %v1943, %v1942
        %vm1948 = vcmask 261120
        %v1950 = vsel %vm1948, %v1917, 0
        %v1953 = vsel %vm1948, %v1918, 0
        %v1956 = vsel %vm1948, %v1919, 0
        %v1959 = vsel %vm1948, %v1920, 0
        %v1962 = vsel %vm1948, %v1921, 0
        %v1965 = vsel %vm1948, %v1922, 0
        %v1968 = vsel %vm1948, %v1923, 0
        %v1971 = vsel %vm1948, %v1924, 0
        %v1974 = vsel %vm1948, %v1925, 0
        %v1977 = vsel %vm1948, %v1926, 0
        %v1980 = vsel %vm1948, %v1927, 0
        %1982 = vmatpush.bf16.msra.mxu0 0
        %1983 = vmatpush.bf16.msra.mxu0 0
        %1984 = vmatpush.bf16.msra.mxu0 0
        %1985 = vmatpush.bf16.msra.mxu0 0
        %1986 = vmatpush.bf16.msra.mxu0 0
        %1987 = vmatpush.bf16.msra.mxu0 0
        %1988 = vmatpush.bf16.msra.mxu0 %v1945
        %1989 = vmatpush.bf16.msra.mxu0 %v1944
        %1990 = vmatmul.bf16.gmra.mxu0 %v1950
        %v1991 = vpop.f32.mrf.mxu0
        %v1992 = vadd.f32 %v1934, %v1991
        %v1993 = vpop.f32.mrf.mxu0
        %v1994 = vadd.f32 %v1934, %v1993
        %1995 = vmatmul.bf16.gmra.mxu0 %v1953
        %v1996 = vpop.f32.mrf.mxu0
        %v1997 = vadd.f32 %v1934, %v1996
        %v1998 = vpop.f32.mrf.mxu0
        %v1999 = vadd.f32 %v1934, %v1998
        %2000 = vmatmul.bf16.gmra.mxu0 %v1956
        %v2001 = vpop.f32.mrf.mxu0
        %v2002 = vadd.f32 %v1934, %v2001
        %v2003 = vpop.f32.mrf.mxu0
        %v2004 = vadd.f32 %v1934, %v2003
        %2005 = vmatmul.bf16.gmra.mxu0 %v1959
        %v2006 = vpop.f32.mrf.mxu0
        %v2007 = vadd.f32 %v1934, %v2006
        %v2008 = vpop.f32.mrf.mxu0
        %v2009 = vadd.f32 %v1934, %v2008
        %2010 = vmatmul.bf16.gmra.mxu0 %v1962
        %v2011 = vpop.f32.mrf.mxu0
        %v2012 = vadd.f32 %v1934, %v2011
        %v2013 = vpop.f32.mrf.mxu0
        %v2014 = vadd.f32 %v1934, %v2013
        %2015 = vmatmul.bf16.gmra.mxu0 %v1965
        %v2016 = vpop.f32.mrf.mxu0
        %v2017 = vadd.f32 %v1934, %v2016
        %v2018 = vpop.f32.mrf.mxu0
        %v2019 = vadd.f32 %v1934, %v2018
        %2020 = vmatmul.bf16.gmra.mxu0 %v1968
        %v2021 = vpop.f32.mrf.mxu0
        %v2022 = vadd.f32 %v1934, %v2021
        %v2023 = vpop.f32.mrf.mxu0
        %v2024 = vadd.f32 %v1934, %v2023
        %2025 = vmatmul.bf16.gmra.mxu0 %v1971
        %v2026 = vpop.f32.mrf.mxu0
        %v2027 = vadd.f32 %v1934, %v2026
        %v2028 = vpop.f32.mrf.mxu0
        %v2029 = vadd.f32 %v1934, %v2028
        %2030 = vmatmul.bf16.gmra.mxu0 %v1974
        %v2031 = vpop.f32.mrf.mxu0
        %v2032 = vadd.f32 %v1934, %v2031
        %v2033 = vpop.f32.mrf.mxu0
        %v2034 = vadd.f32 %v1934, %v2033
        %2035 = vmatmul.bf16.gmra.mxu0 %v1977
        %v2036 = vpop.f32.mrf.mxu0
        %v2037 = vadd.f32 %v1934, %v2036
        %v2038 = vpop.f32.mrf.mxu0
        %v2039 = vadd.f32 %v1934, %v2038
        %2040 = vmatmul.bf16.gmra.mxu0 %v1980
        %v2041 = vpop.f32.mrf.mxu0
        %v2042 = vadd.f32 %v1934, %v2041
        %v2043 = vpop.f32.mrf.mxu0
        %v2044 = vadd.f32 %v1934, %v2043
        %2045 = vdwg.mxu0
        %2057 = vrot.lane.b32.xlu0 %v1992, 96
        %v2058 = vpop.permute.xlu0 %2057
        %2059 = vrot.lane.b32.xlu0 %v1994, 96
        %v2060 = vpop.permute.xlu0 %2059
        %2061 = vrot.lane.b32.xlu0 %v1997, 96
        %v2062 = vpop.permute.xlu0 %2061
        %2063 = vrot.lane.b32.xlu0 %v1999, 96
        %v2064 = vpop.permute.xlu0 %2063
        %2065 = vrot.lane.b32.xlu0 %v2002, 96
        %v2066 = vpop.permute.xlu0 %2065
        %2067 = vrot.lane.b32.xlu0 %v2004, 96
        %v2068 = vpop.permute.xlu0 %2067
        %2069 = vrot.lane.b32.xlu0 %v2007, 96
        %v2070 = vpop.permute.xlu0 %2069
        %2071 = vrot.lane.b32.xlu0 %v2009, 96
        %v2072 = vpop.permute.xlu0 %2071
        %2073 = vrot.lane.b32.xlu0 %v2012, 96
        %v2074 = vpop.permute.xlu0 %2073
        %2075 = vrot.lane.b32.xlu0 %v2014, 96
        %v2076 = vpop.permute.xlu0 %2075
        %2077 = vrot.lane.b32.xlu0 %v2017, 96
        %v2078 = vpop.permute.xlu0 %2077
        %vm2079 = vcmask 64512
        %v2080 = vsel %vm2079, %v1992, 0
        %v2082 = vsel %vm2079, %v1994, 0
        %v2084 = vsel %vm2079, %v1997, 0
        %v2086 = vsel %vm2079, %v1999, 0
        %v2088 = vsel %vm2079, %v2002, 0
        %v2090 = vsel %vm2079, %v2004, 0
        %v2092 = vsel %vm2079, %v2007, 0
        %v2094 = vsel %vm2079, %v2009, 0
        %v2096 = vsel %vm2079, %v2012, 0
        %v2098 = vsel %vm2079, %v2014, 0
        %v2100 = vsel %vm2079, %v2017, 0
        %v2102 = vsel %vm2079, %v2058, 0
        %v2104 = vsel %vm2079, %v2060, 0
        %v2106 = vsel %vm2079, %v2062, 0
        %v2108 = vsel %vm2079, %v2064, 0
        %v2110 = vsel %vm2079, %v2066, 0
        %v2112 = vsel %vm2079, %v2068, 0
        %v2114 = vsel %vm2079, %v2070, 0
        %v2116 = vsel %vm2079, %v2072, 0
        %v2118 = vsel %vm2079, %v2074, 0
        %v2120 = vsel %vm2079, %v2076, 0
        %v2122 = vsel %vm2079, %v2078, 0
        %2124 = vmatpush.xpose.msra.mxu0 0.0
        %2125 = vmatpush.xpose.msra.mxu0 0.0
        %2126 = vmatpush.xpose.msra.mxu0 0.0
        %2127 = vmatpush.xpose.msra.mxu0 0.0
        %2128 = vmatpush.xpose.msra.mxu0 0.0
        %2129 = vmatpush.xpose.msra.mxu0 %v2122
        %2130 = vmatpush.xpose.msra.mxu0 %v2120
        %2131 = vmatpush.xpose.msra.mxu0 %v2118
        %2132 = vmatpush.xpose.msra.mxu0 %v2116
        %2133 = vmatpush.xpose.msra.mxu0 %v2114
        %2134 = vmatpush.xpose.msra.mxu0 %v2112
        %2135 = vmatpush.xpose.msra.mxu0 %v2110
        %2136 = vmatpush.xpose.msra.mxu0 %v2108
        %2137 = vmatpush.xpose.msra.mxu0 %v2106
        %2138 = vmatpush.xpose.msra.mxu0 %v2104
        %2139 = vmatpush.xpose.msra.mxu0 %v2102
        %2140 = vmatmul.f32.gmra.mxu0 %v2080
        %v2141 = vpop.f32.mrf.mxu0
        %v2142 = vadd.f32 0.0, %v2141
        %2143 = vmatmul.f32.gmra.mxu0 %v2082
        %v2144 = vpop.f32.mrf.mxu0
        %v2145 = vadd.f32 0.0, %v2144
        %2146 = vmatmul.f32.gmra.mxu0 %v2084
        %v2147 = vpop.f32.mrf.mxu0
        %v2148 = vadd.f32 0.0, %v2147
        %2149 = vmatmul.f32.gmra.mxu0 %v2086
        %v2150 = vpop.f32.mrf.mxu0
        %v2151 = vadd.f32 0.0, %v2150
        %2152 = vmatmul.f32.gmra.mxu0 %v2088
        %v2153 = vpop.f32.mrf.mxu0
        %v2154 = vadd.f32 0.0, %v2153
        %2155 = vmatmul.f32.gmra.mxu0 %v2090
        %v2156 = vpop.f32.mrf.mxu0
        %v2157 = vadd.f32 0.0, %v2156
        %2158 = vmatmul.f32.gmra.mxu0 %v2092
        %v2159 = vpop.f32.mrf.mxu0
        %v2160 = vadd.f32 0.0, %v2159
        %2161 = vmatmul.f32.gmra.mxu0 %v2094
        %v2162 = vpop.f32.mrf.mxu0
        %v2163 = vadd.f32 0.0, %v2162
        %2164 = vmatmul.f32.gmra.mxu0 %v2096
        %v2165 = vpop.f32.mrf.mxu0
        %v2166 = vadd.f32 0.0, %v2165
        %2167 = vmatmul.f32.gmra.mxu0 %v2098
        %v2168 = vpop.f32.mrf.mxu0
        %v2169 = vadd.f32 0.0, %v2168
        %2170 = vmatmul.f32.gmra.mxu0 %v2100
        %v2171 = vpop.f32.mrf.mxu0
        %v2172 = vadd.f32 0.0, %v2171
        %2173 = vdwg.mxu0
        %v2174 = vmul.f32 %v2142, 0.35355338
        %v2175 = vmul.f32 %v2145, 0.35355338
        %v2176 = vmul.f32 %v2148, 0.35355338
        %v2177 = vmul.f32 %v2151, 0.35355338
        %v2178 = vmul.f32 %v2154, 0.35355338
        %v2179 = vmul.f32 %v2157, 0.35355338
        %v2180 = vmul.f32 %v2160, 0.35355338
        %v2181 = vmul.f32 %v2163, 0.35355338
        %v2182 = vmul.f32 %v2166, 0.35355338
        %v2183 = vmul.f32 %v2169, 0.35355338
        %v2184 = vmul.f32 %v2172, 0.35355338
        %v2186 = vperm.slane %v1916, 0
        %v2188 = vadd.f32 %v2174, %v2186
        %v2189 = vadd.f32 %v2175, %v2186
        %v2190 = vadd.f32 %v2176, %v2186
        %v2191 = vadd.f32 %v2177, %v2186
        %v2192 = vadd.f32 %v2178, %v2186
        %v2193 = vadd.f32 %v2179, %v2186
        %v2194 = vadd.f32 %v2180, %v2186
        %v2195 = vadd.f32 %v2181, %v2186
        %v2196 = vadd.f32 %v2182, %v2186
        %v2197 = vadd.f32 %v2183, %v2186
        %v2198 = vadd.f32 %v2184, %v2186
        %vm2199 = vcmask 719872
        %v2200 = vsel %vm2199, %v2188, -inf
        %2201 = vmax.xlane.f32.xlu0 %v2200
        %v2202 = vpop.xlane.xlu0 %2201
        %v2203 = vsel %vm2199, %v2189, -inf
        %2204 = vmax.xlane.f32.xlu0 %v2203
        %v2205 = vpop.xlane.xlu0 %2204
        %v2206 = vsel %vm2199, %v2190, -inf
        %2207 = vmax.xlane.f32.xlu0 %v2206
        %v2208 = vpop.xlane.xlu0 %2207
        %v2209 = vsel %vm2199, %v2191, -inf
        %2210 = vmax.xlane.f32.xlu0 %v2209
        %v2211 = vpop.xlane.xlu0 %2210
        %v2212 = vsel %vm2199, %v2192, -inf
        %2213 = vmax.xlane.f32.xlu0 %v2212
        %v2214 = vpop.xlane.xlu0 %2213
        %v2215 = vsel %vm2199, %v2193, -inf
        %2216 = vmax.xlane.f32.xlu0 %v2215
        %v2217 = vpop.xlane.xlu0 %2216
        %v2218 = vsel %vm2199, %v2194, -inf
        %2219 = vmax.xlane.f32.xlu0 %v2218
        %v2220 = vpop.xlane.xlu0 %2219
        %v2221 = vsel %vm2199, %v2195, -inf
        %2222 = vmax.xlane.f32.xlu0 %v2221
        %v2223 = vpop.xlane.xlu0 %2222
        %v2224 = vsel %vm2199, %v2196, -inf
        %2225 = vmax.xlane.f32.xlu0 %v2224
        %v2226 = vpop.xlane.xlu0 %2225
        %v2227 = vsel %vm2199, %v2197, -inf
        %2228 = vmax.xlane.f32.xlu0 %v2227
        %v2229 = vpop.xlane.xlu0 %2228
        %v2230 = vsel %vm2199, %v2198, -inf
        %2231 = vmax.xlane.f32.xlu0 %v2230
        %v2232 = vpop.xlane.xlu0 %2231
        %v2233 = vsub.f32 %v2188, %v2202
        %v2234 = vsub.f32 %v2189, %v2205
        %v2235 = vsub.f32 %v2190, %v2208
        %v2236 = vsub.f32 %v2191, %v2211
        %v2237 = vsub.f32 %v2192, %v2214
        %v2238 = vsub.f32 %v2193, %v2217
        %v2239 = vsub.f32 %v2194, %v2220
        %v2240 = vsub.f32 %v2195, %v2223
        %v2241 = vsub.f32 %v2196, %v2226
        %v2242 = vsub.f32 %v2197, %v2229
        %v2243 = vsub.f32 %v2198, %v2232
        %v2244 = vmul.f32 %v2233, 1.442695
        %v2245 = vpow.pop %v2244
        %v2246 = vmul.f32 %v2234, 1.442695
        %v2247 = vpow.pop %v2246
        %v2248 = vmul.f32 %v2235, 1.442695
        %v2249 = vpow.pop %v2248
        %v2250 = vmul.f32 %v2236, 1.442695
        %v2251 = vpow.pop %v2250
        %v2252 = vmul.f32 %v2237, 1.442695
        %v2253 = vpow.pop %v2252
        %v2254 = vmul.f32 %v2238, 1.442695
        %v2255 = vpow.pop %v2254
        %v2256 = vmul.f32 %v2239, 1.442695
        %v2257 = vpow.pop %v2256
        %v2258 = vmul.f32 %v2240, 1.442695
        %v2259 = vpow.pop %v2258
        %v2260 = vmul.f32 %v2241, 1.442695
        %v2261 = vpow.pop %v2260
        %v2262 = vmul.f32 %v2242, 1.442695
        %v2263 = vpow.pop %v2262
        %v2264 = vmul.f32 %v2243, 1.442695
        %v2265 = vpow.pop %v2264
        %v2266 = vsel %vm2199, %v2245, 0.0
        %2267 = vadd.xlane.f32.xlu0 %v2266
        %v2268 = vpop.xlane.xlu0 %2267
        %v2269 = vsel %vm2199, %v2247, 0.0
        %2270 = vadd.xlane.f32.xlu0 %v2269
        %v2271 = vpop.xlane.xlu0 %2270
        %v2272 = vsel %vm2199, %v2249, 0.0
        %2273 = vadd.xlane.f32.xlu0 %v2272
        %v2274 = vpop.xlane.xlu0 %2273
        %v2275 = vsel %vm2199, %v2251, 0.0
        %2276 = vadd.xlane.f32.xlu0 %v2275
        %v2277 = vpop.xlane.xlu0 %2276
        %v2278 = vsel %vm2199, %v2253, 0.0
        %2279 = vadd.xlane.f32.xlu0 %v2278
        %v2280 = vpop.xlane.xlu0 %2279
        %v2281 = vsel %vm2199, %v2255, 0.0
        %2282 = vadd.xlane.f32.xlu0 %v2281
        %v2283 = vpop.xlane.xlu0 %2282
        %v2284 = vsel %vm2199, %v2257, 0.0
        %2285 = vadd.xlane.f32.xlu0 %v2284
        %v2286 = vpop.xlane.xlu0 %2285
        %v2287 = vsel %vm2199, %v2259, 0.0
        %2288 = vadd.xlane.f32.xlu0 %v2287
        %v2289 = vpop.xlane.xlu0 %2288
        %v2290 = vsel %vm2199, %v2261, 0.0
        %2291 = vadd.xlane.f32.xlu0 %v2290
        %v2292 = vpop.xlane.xlu0 %2291
        %v2293 = vsel %vm2199, %v2263, 0.0
        %2294 = vadd.xlane.f32.xlu0 %v2293
        %v2295 = vpop.xlane.xlu0 %2294
        %v2296 = vsel %vm2199, %v2265, 0.0
        %2297 = vadd.xlane.f32.xlu0 %v2296
        %v2298 = vpop.xlane.xlu0 %2297
        %v2299 = vrcp.pop %v2268
        %v2300 = vrcp.pop %v2271
        %v2301 = vrcp.pop %v2274
        %v2302 = vrcp.pop %v2277
        %v2303 = vrcp.pop %v2280
        %v2304 = vrcp.pop %v2283
        %v2305 = vrcp.pop %v2286
        %v2306 = vrcp.pop %v2289
        %v2307 = vrcp.pop %v2292
        %v2308 = vrcp.pop %v2295
        %v2309 = vrcp.pop %v2298
        %v2310 = vmul.f32 %v2245, %v2299
        %v2311 = vmul.f32 %v2247, %v2300
        %v2312 = vmul.f32 %v2249, %v2301
        %v2313 = vmul.f32 %v2251, %v2302
        %v2314 = vmul.f32 %v2253, %v2303
        %v2315 = vmul.f32 %v2255, %v2304
        %v2316 = vmul.f32 %v2257, %v2305
        %v2317 = vmul.f32 %v2259, %v2306
        %v2318 = vmul.f32 %v2261, %v2307
        %v2319 = vmul.f32 %v2263, %v2308
        %v2320 = vmul.f32 %v2265, %v2309
        %v2321 = vpack.c.bf16 %v2311, %v2310
        %v2322 = vpack.c.bf16 %v2313, %v2312
        %v2323 = vpack.c.bf16 %v2315, %v2314
        %v2324 = vpack.c.bf16 %v2317, %v2316
        %v2325 = vpack.c.bf16 %v2319, %v2318
        %v2326 = vpack.c.bf16 %v2320, %v2320
        %v2327 = vpack.c.bf16 %v1994, %v1992
        %v2328 = vpack.c.bf16 %v1999, %v1997
        %v2329 = vpack.c.bf16 %v2004, %v2002
        %v2330 = vpack.c.bf16 %v2009, %v2007
        %v2331 = vpack.c.bf16 %v2014, %v2012
        %v2332 = vpack.c.bf16 %v2017, %v2017
        %2339 = vrot.lane.b32.xlu0 %v2327, 64
        %v2340 = vpop.permute.xlu0 %2339
        %2341 = vrot.lane.b32.xlu0 %v2328, 64
        %v2342 = vpop.permute.xlu0 %2341
        %2343 = vrot.lane.b32.xlu0 %v2329, 64
        %v2344 = vpop.permute.xlu0 %2343
        %2345 = vrot.lane.b32.xlu0 %v2330, 64
        %v2346 = vpop.permute.xlu0 %2345
        %2347 = vrot.lane.b32.xlu0 %v2331, 64
        %v2348 = vpop.permute.xlu0 %2347
        %2349 = vrot.lane.b32.xlu0 %v2332, 64
        %v2350 = vpop.permute.xlu0 %2349
        %v2357 = vsel %vm2199, %v2321, 0
        %v2360 = vsel %vm2199, %v2322, 0
        %v2363 = vsel %vm2199, %v2323, 0
        %v2366 = vsel %vm2199, %v2324, 0
        %v2369 = vsel %vm2199, %v2325, 0
        %v2372 = vsel %vm2199, %v2326, 0
        %vm2374 = vcmask 1043456
        %v2376 = vsel %vm2374, %v2350, 0
        %2378 = vmatpush.bf16.msra.mxu0 0
        %2379 = vmatpush.bf16.msra.mxu0 0
        %2380 = vmatpush.bf16.msra.mxu0 %v2376
        %2381 = vmatpush.bf16.msra.mxu0 %v2348
        %2382 = vmatpush.bf16.msra.mxu0 %v2346
        %2383 = vmatpush.bf16.msra.mxu0 %v2344
        %2384 = vmatpush.bf16.msra.mxu0 %v2342
        %2385 = vmatpush.bf16.msra.mxu0 %v2340
        %2386 = vmatmul.bf16.gmra.mxu0 %v2357
        %v2387 = vpop.f32.mrf.mxu0
        %v2388 = vadd.f32 0.0, %v2387
        %v2389 = vpop.f32.mrf.mxu0
        %v2390 = vadd.f32 0.0, %v2389
        %2391 = vmatmul.bf16.gmra.mxu0 %v2360
        %v2392 = vpop.f32.mrf.mxu0
        %v2393 = vadd.f32 0.0, %v2392
        %v2394 = vpop.f32.mrf.mxu0
        %v2395 = vadd.f32 0.0, %v2394
        %2396 = vmatmul.bf16.gmra.mxu0 %v2363
        %v2397 = vpop.f32.mrf.mxu0
        %v2398 = vadd.f32 0.0, %v2397
        %v2399 = vpop.f32.mrf.mxu0
        %v2400 = vadd.f32 0.0, %v2399
        %2401 = vmatmul.bf16.gmra.mxu0 %v2366
        %v2402 = vpop.f32.mrf.mxu0
        %v2403 = vadd.f32 0.0, %v2402
        %v2404 = vpop.f32.mrf.mxu0
        %v2405 = vadd.f32 0.0, %v2404
        %2406 = vmatmul.bf16.gmra.mxu0 %v2369
        %v2407 = vpop.f32.mrf.mxu0
        %v2408 = vadd.f32 0.0, %v2407
        %v2409 = vpop.f32.mrf.mxu0
        %v2410 = vadd.f32 0.0, %v2409
        %2411 = vmatmul.bf16.gmra.mxu0 %v2372
        %v2412 = vpop.f32.mrf.mxu0
        %v2413 = vadd.f32 0.0, %v2412
        %v2414 = vpop.f32.mrf.mxu0
        %2415 = vdwg.mxu0
        %2416 = vrot.lane.b32.xlu0 %v1992, 120
        %v2417 = vpop.permute.xlu0 %2416
        %2418 = vrot.lane.b32.xlu0 %v1994, 120
        %v2419 = vpop.permute.xlu0 %2418
        %2420 = vrot.lane.b32.xlu0 %v1997, 120
        %v2421 = vpop.permute.xlu0 %2420
        %2422 = vrot.lane.b32.xlu0 %v1999, 120
        %v2423 = vpop.permute.xlu0 %2422
        %2424 = vrot.lane.b32.xlu0 %v2002, 120
        %v2425 = vpop.permute.xlu0 %2424
        %2426 = vrot.lane.b32.xlu0 %v2004, 120
        %v2427 = vpop.permute.xlu0 %2426
        %2428 = vrot.lane.b32.xlu0 %v2007, 120
        %v2429 = vpop.permute.xlu0 %2428
        %2430 = vrot.lane.b32.xlu0 %v2009, 120
        %v2431 = vpop.permute.xlu0 %2430
        %2432 = vrot.lane.b32.xlu0 %v2012, 120
        %v2433 = vpop.permute.xlu0 %2432
        %2434 = vrot.lane.b32.xlu0 %v2014, 120
        %v2435 = vpop.permute.xlu0 %2434
        %2436 = vrot.lane.b32.xlu0 %v2017, 120
        %v2437 = vpop.permute.xlu0 %2436
        %2438 = vrot.lane.b32.xlu0 %v1992, 88
        %v2439 = vpop.permute.xlu0 %2438
        %2440 = vrot.lane.b32.xlu0 %v1994, 88
        %v2441 = vpop.permute.xlu0 %2440
        %2442 = vrot.lane.b32.xlu0 %v1997, 88
        %v2443 = vpop.permute.xlu0 %2442
        %2444 = vrot.lane.b32.xlu0 %v1999, 88
        %v2445 = vpop.permute.xlu0 %2444
        %2446 = vrot.lane.b32.xlu0 %v2002, 88
        %v2447 = vpop.permute.xlu0 %2446
        %2448 = vrot.lane.b32.xlu0 %v2004, 88
        %v2449 = vpop.permute.xlu0 %2448
        %2450 = vrot.lane.b32.xlu0 %v2007, 88
        %v2451 = vpop.permute.xlu0 %2450
        %2452 = vrot.lane.b32.xlu0 %v2009, 88
        %v2453 = vpop.permute.xlu0 %2452
        %2454 = vrot.lane.b32.xlu0 %v2012, 88
        %v2455 = vpop.permute.xlu0 %2454
        %2456 = vrot.lane.b32.xlu0 %v2014, 88
        %v2457 = vpop.permute.xlu0 %2456
        %2458 = vrot.lane.b32.xlu0 %v2017, 88
        %v2459 = vpop.permute.xlu0 %2458
        %v2460 = vsel %vm2079, %v2417, 0
        %v2462 = vsel %vm2079, %v2419, 0
        %v2464 = vsel %vm2079, %v2421, 0
        %v2466 = vsel %vm2079, %v2423, 0
        %v2468 = vsel %vm2079, %v2425, 0
        %v2470 = vsel %vm2079, %v2427, 0
        %v2472 = vsel %vm2079, %v2429, 0
        %v2474 = vsel %vm2079, %v2431, 0
        %v2476 = vsel %vm2079, %v2433, 0
        %v2478 = vsel %vm2079, %v2435, 0
        %v2480 = vsel %vm2079, %v2437, 0
        %v2482 = vsel %vm2079, %v2439, 0
        %v2484 = vsel %vm2079, %v2441, 0
        %v2486 = vsel %vm2079, %v2443, 0
        %v2488 = vsel %vm2079, %v2445, 0
        %v2490 = vsel %vm2079, %v2447, 0
        %v2492 = vsel %vm2079, %v2449, 0
        %v2494 = vsel %vm2079, %v2451, 0
        %v2496 = vsel %vm2079, %v2453, 0
        %v2498 = vsel %vm2079, %v2455, 0
        %v2500 = vsel %vm2079, %v2457, 0
        %v2502 = vsel %vm2079, %v2459, 0
        %2504 = vmatpush.xpose.msra.mxu0 0.0
        %2505 = vmatpush.xpose.msra.mxu0 0.0
        %2506 = vmatpush.xpose.msra.mxu0 0.0
        %2507 = vmatpush.xpose.msra.mxu0 0.0
        %2508 = vmatpush.xpose.msra.mxu0 0.0
        %2509 = vmatpush.xpose.msra.mxu0 %v2502
        %2510 = vmatpush.xpose.msra.mxu0 %v2500
        %2511 = vmatpush.xpose.msra.mxu0 %v2498
        %2512 = vmatpush.xpose.msra.mxu0 %v2496
        %2513 = vmatpush.xpose.msra.mxu0 %v2494
        %2514 = vmatpush.xpose.msra.mxu0 %v2492
        %2515 = vmatpush.xpose.msra.mxu0 %v2490
        %2516 = vmatpush.xpose.msra.mxu0 %v2488
        %2517 = vmatpush.xpose.msra.mxu0 %v2486
        %2518 = vmatpush.xpose.msra.mxu0 %v2484
        %2519 = vmatpush.xpose.msra.mxu0 %v2482
        %2520 = vmatmul.f32.gmra.mxu0 %v2460
        %v2521 = vpop.f32.mrf.mxu0
        %v2522 = vadd.f32 0.0, %v2521
        %2523 = vmatmul.f32.gmra.mxu0 %v2462
        %v2524 = vpop.f32.mrf.mxu0
        %v2525 = vadd.f32 0.0, %v2524
        %2526 = vmatmul.f32.gmra.mxu0 %v2464
        %v2527 = vpop.f32.mrf.mxu0
        %v2528 = vadd.f32 0.0, %v2527
        %2529 = vmatmul.f32.gmra.mxu0 %v2466
        %v2530 = vpop.f32.mrf.mxu0
        %v2531 = vadd.f32 0.0, %v2530
        %2532 = vmatmul.f32.gmra.mxu0 %v2468
        %v2533 = vpop.f32.mrf.mxu0
        %v2534 = vadd.f32 0.0, %v2533
        %2535 = vmatmul.f32.gmra.mxu0 %v2470
        %v2536 = vpop.f32.mrf.mxu0
        %v2537 = vadd.f32 0.0, %v2536
        %2538 = vmatmul.f32.gmra.mxu0 %v2472
        %v2539 = vpop.f32.mrf.mxu0
        %v2540 = vadd.f32 0.0, %v2539
        %2541 = vmatmul.f32.gmra.mxu0 %v2474
        %v2542 = vpop.f32.mrf.mxu0
        %v2543 = vadd.f32 0.0, %v2542
        %2544 = vmatmul.f32.gmra.mxu0 %v2476
        %v2545 = vpop.f32.mrf.mxu0
        %v2546 = vadd.f32 0.0, %v2545
        %2547 = vmatmul.f32.gmra.mxu0 %v2478
        %v2548 = vpop.f32.mrf.mxu0
        %v2549 = vadd.f32 0.0, %v2548
        %2550 = vmatmul.f32.gmra.mxu0 %v2480
        %v2551 = vpop.f32.mrf.mxu0
        %v2552 = vadd.f32 0.0, %v2551
        %2553 = vdwg.mxu0
        %v2554 = vmul.f32 %v2522, 0.35355338
        %v2555 = vmul.f32 %v2525, 0.35355338
        %v2556 = vmul.f32 %v2528, 0.35355338
        %v2557 = vmul.f32 %v2531, 0.35355338
        %v2558 = vmul.f32 %v2534, 0.35355338
        %v2559 = vmul.f32 %v2537, 0.35355338
        %v2560 = vmul.f32 %v2540, 0.35355338
        %v2561 = vmul.f32 %v2543, 0.35355338
        %v2562 = vmul.f32 %v2546, 0.35355338
        %v2563 = vmul.f32 %v2549, 0.35355338
        %v2564 = vmul.f32 %v2552, 0.35355338
        %v2565 = vadd.f32 %v2554, %v2186
        %v2566 = vadd.f32 %v2555, %v2186
        %v2567 = vadd.f32 %v2556, %v2186
        %v2568 = vadd.f32 %v2557, %v2186
        %v2569 = vadd.f32 %v2558, %v2186
        %v2570 = vadd.f32 %v2559, %v2186
        %v2571 = vadd.f32 %v2560, %v2186
        %v2572 = vadd.f32 %v2561, %v2186
        %v2573 = vadd.f32 %v2562, %v2186
        %v2574 = vadd.f32 %v2563, %v2186
        %v2575 = vadd.f32 %v2564, %v2186
        %v2576 = vsel %vm2199, %v2565, -inf
        %2577 = vmax.xlane.f32.xlu0 %v2576
        %v2578 = vpop.xlane.xlu0 %2577
        %v2579 = vsel %vm2199, %v2566, -inf
        %2580 = vmax.xlane.f32.xlu0 %v2579
        %v2581 = vpop.xlane.xlu0 %2580
        %v2582 = vsel %vm2199, %v2567, -inf
        %2583 = vmax.xlane.f32.xlu0 %v2582
        %v2584 = vpop.xlane.xlu0 %2583
        %v2585 = vsel %vm2199, %v2568, -inf
        %2586 = vmax.xlane.f32.xlu0 %v2585
        %v2587 = vpop.xlane.xlu0 %2586
        %v2588 = vsel %vm2199, %v2569, -inf
        %2589 = vmax.xlane.f32.xlu0 %v2588
        %v2590 = vpop.xlane.xlu0 %2589
        %v2591 = vsel %vm2199, %v2570, -inf
        %2592 = vmax.xlane.f32.xlu0 %v2591
        %v2593 = vpop.xlane.xlu0 %2592
        %v2594 = vsel %vm2199, %v2571, -inf
        %2595 = vmax.xlane.f32.xlu0 %v2594
        %v2596 = vpop.xlane.xlu0 %2595
        %v2597 = vsel %vm2199, %v2572, -inf
        %2598 = vmax.xlane.f32.xlu0 %v2597
        %v2599 = vpop.xlane.xlu0 %2598
        %v2600 = vsel %vm2199, %v2573, -inf
        %2601 = vmax.xlane.f32.xlu0 %v2600
        %v2602 = vpop.xlane.xlu0 %2601
        %v2603 = vsel %vm2199, %v2574, -inf
        %2604 = vmax.xlane.f32.xlu0 %v2603
        %v2605 = vpop.xlane.xlu0 %2604
        %v2606 = vsel %vm2199, %v2575, -inf
        %2607 = vmax.xlane.f32.xlu0 %v2606
        %v2608 = vpop.xlane.xlu0 %2607
        %v2609 = vsub.f32 %v2565, %v2578
        %v2610 = vsub.f32 %v2566, %v2581
        %v2611 = vsub.f32 %v2567, %v2584
        %v2612 = vsub.f32 %v2568, %v2587
        %v2613 = vsub.f32 %v2569, %v2590
        %v2614 = vsub.f32 %v2570, %v2593
        %v2615 = vsub.f32 %v2571, %v2596
        %v2616 = vsub.f32 %v2572, %v2599
        %v2617 = vsub.f32 %v2573, %v2602
        %v2618 = vsub.f32 %v2574, %v2605
        %v2619 = vsub.f32 %v2575, %v2608
        %v2620 = vmul.f32 %v2609, 1.442695
        %v2621 = vpow.pop %v2620
        %v2622 = vmul.f32 %v2610, 1.442695
        %v2623 = vpow.pop %v2622
        %v2624 = vmul.f32 %v2611, 1.442695
        %v2625 = vpow.pop %v2624
        %v2626 = vmul.f32 %v2612, 1.442695
        %v2627 = vpow.pop %v2626
        %v2628 = vmul.f32 %v2613, 1.442695
        %v2629 = vpow.pop %v2628
        %v2630 = vmul.f32 %v2614, 1.442695
        %v2631 = vpow.pop %v2630
        %v2632 = vmul.f32 %v2615, 1.442695
        %v2633 = vpow.pop %v2632
        %v2634 = vmul.f32 %v2616, 1.442695
        %v2635 = vpow.pop %v2634
        %v2636 = vmul.f32 %v2617, 1.442695
        %v2637 = vpow.pop %v2636
        %v2638 = vmul.f32 %v2618, 1.442695
        %v2639 = vpow.pop %v2638
        %v2640 = vmul.f32 %v2619, 1.442695
        %v2641 = vpow.pop %v2640
        %v2642 = vsel %vm2199, %v2621, 0.0
        %2643 = vadd.xlane.f32.xlu0 %v2642
        %v2644 = vpop.xlane.xlu0 %2643
        %v2645 = vsel %vm2199, %v2623, 0.0
        %2646 = vadd.xlane.f32.xlu0 %v2645
        %v2647 = vpop.xlane.xlu0 %2646
        %v2648 = vsel %vm2199, %v2625, 0.0
        %2649 = vadd.xlane.f32.xlu0 %v2648
        %v2650 = vpop.xlane.xlu0 %2649
        %v2651 = vsel %vm2199, %v2627, 0.0
        %2652 = vadd.xlane.f32.xlu0 %v2651
        %v2653 = vpop.xlane.xlu0 %2652
        %v2654 = vsel %vm2199, %v2629, 0.0
        %2655 = vadd.xlane.f32.xlu0 %v2654
        %v2656 = vpop.xlane.xlu0 %2655
        %v2657 = vsel %vm2199, %v2631, 0.0
        %2658 = vadd.xlane.f32.xlu0 %v2657
        %v2659 = vpop.xlane.xlu0 %2658
        %v2660 = vsel %vm2199, %v2633, 0.0
        %2661 = vadd.xlane.f32.xlu0 %v2660
        %v2662 = vpop.xlane.xlu0 %2661
        %v2663 = vsel %vm2199, %v2635, 0.0
        %2664 = vadd.xlane.f32.xlu0 %v2663
        %v2665 = vpop.xlane.xlu0 %2664
        %v2666 = vsel %vm2199, %v2637, 0.0
        %2667 = vadd.xlane.f32.xlu0 %v2666
        %v2668 = vpop.xlane.xlu0 %2667
        %v2669 = vsel %vm2199, %v2639, 0.0
        %2670 = vadd.xlane.f32.xlu0 %v2669
        %v2671 = vpop.xlane.xlu0 %2670
        %v2672 = vsel %vm2199, %v2641, 0.0
        %2673 = vadd.xlane.f32.xlu0 %v2672
        %v2674 = vpop.xlane.xlu0 %2673
        %v2675 = vrcp.pop %v2644
        %v2676 = vrcp.pop %v2647
        %v2677 = vrcp.pop %v2650
        %v2678 = vrcp.pop %v2653
        %v2679 = vrcp.pop %v2656
        %v2680 = vrcp.pop %v2659
        %v2681 = vrcp.pop %v2662
        %v2682 = vrcp.pop %v2665
        %v2683 = vrcp.pop %v2668
        %v2684 = vrcp.pop %v2671
        %v2685 = vrcp.pop %v2674
        %v2686 = vmul.f32 %v2621, %v2675
        %v2687 = vmul.f32 %v2623, %v2676
        %v2688 = vmul.f32 %v2625, %v2677
        %v2689 = vmul.f32 %v2627, %v2678
        %v2690 = vmul.f32 %v2629, %v2679
        %v2691 = vmul.f32 %v2631, %v2680
        %v2692 = vmul.f32 %v2633, %v2681
        %v2693 = vmul.f32 %v2635, %v2682
        %v2694 = vmul.f32 %v2637, %v2683
        %v2695 = vmul.f32 %v2639, %v2684
        %v2696 = vmul.f32 %v2641, %v2685
        %v2697 = vpack.c.bf16 %v2687, %v2686
        %v2698 = vpack.c.bf16 %v2689, %v2688
        %v2699 = vpack.c.bf16 %v2691, %v2690
        %v2700 = vpack.c.bf16 %v2693, %v2692
        %v2701 = vpack.c.bf16 %v2695, %v2694
        %v2702 = vpack.c.bf16 %v2696, %v2696
        %2703 = vrot.lane.b32.xlu0 %v2327, 56
        %v2704 = vpop.permute.xlu0 %2703
        %2705 = vrot.lane.b32.xlu0 %v2328, 56
        %v2706 = vpop.permute.xlu0 %2705
        %2707 = vrot.lane.b32.xlu0 %v2329, 56
        %v2708 = vpop.permute.xlu0 %2707
        %2709 = vrot.lane.b32.xlu0 %v2330, 56
        %v2710 = vpop.permute.xlu0 %2709
        %2711 = vrot.lane.b32.xlu0 %v2331, 56
        %v2712 = vpop.permute.xlu0 %2711
        %2713 = vrot.lane.b32.xlu0 %v2332, 56
        %v2714 = vpop.permute.xlu0 %2713
        %v2721 = vsel %vm2199, %v2697, 0
        %v2724 = vsel %vm2199, %v2698, 0
        %v2727 = vsel %vm2199, %v2699, 0
        %v2730 = vsel %vm2199, %v2700, 0
        %v2733 = vsel %vm2199, %v2701, 0
        %v2736 = vsel %vm2199, %v2702, 0
        %v2739 = vsel %vm2374, %v2714, 0
        %2741 = vmatpush.bf16.msra.mxu0 0
        %2742 = vmatpush.bf16.msra.mxu0 0
        %2743 = vmatpush.bf16.msra.mxu0 %v2739
        %2744 = vmatpush.bf16.msra.mxu0 %v2712
        %2745 = vmatpush.bf16.msra.mxu0 %v2710
        %2746 = vmatpush.bf16.msra.mxu0 %v2708
        %2747 = vmatpush.bf16.msra.mxu0 %v2706
        %2748 = vmatpush.bf16.msra.mxu0 %v2704
        %2749 = vmatmul.bf16.gmra.mxu0 %v2721
        %v2750 = vpop.f32.mrf.mxu0
        %v2751 = vadd.f32 0.0, %v2750
        %v2752 = vpop.f32.mrf.mxu0
        %v2753 = vadd.f32 0.0, %v2752
        %2754 = vmatmul.bf16.gmra.mxu0 %v2724
        %v2755 = vpop.f32.mrf.mxu0
        %v2756 = vadd.f32 0.0, %v2755
        %v2757 = vpop.f32.mrf.mxu0
        %v2758 = vadd.f32 0.0, %v2757
        %2759 = vmatmul.bf16.gmra.mxu0 %v2727
        %v2760 = vpop.f32.mrf.mxu0
        %v2761 = vadd.f32 0.0, %v2760
        %v2762 = vpop.f32.mrf.mxu0
        %v2763 = vadd.f32 0.0, %v2762
        %2764 = vmatmul.bf16.gmra.mxu0 %v2730
        %v2765 = vpop.f32.mrf.mxu0
        %v2766 = vadd.f32 0.0, %v2765
        %v2767 = vpop.f32.mrf.mxu0
        %v2768 = vadd.f32 0.0, %v2767
        %2769 = vmatmul.bf16.gmra.mxu0 %v2733
        %v2770 = vpop.f32.mrf.mxu0
        %v2771 = vadd.f32 0.0, %v2770
        %v2772 = vpop.f32.mrf.mxu0
        %v2773 = vadd.f32 0.0, %v2772
        %2774 = vmatmul.bf16.gmra.mxu0 %v2736
        %v2775 = vpop.f32.mrf.mxu0
        %v2776 = vadd.f32 0.0, %v2775
        %v2777 = vpop.f32.mrf.mxu0
        %2778 = vdwg.mxu0
        %2779 = vrot.lane.b32.xlu0 %v1992, 112
        %v2780 = vpop.permute.xlu0 %2779
        %2781 = vrot.lane.b32.xlu0 %v1994, 112
        %v2782 = vpop.permute.xlu0 %2781
        %2783 = vrot.lane.b32.xlu0 %v1997, 112
        %v2784 = vpop.permute.xlu0 %2783
        %2785 = vrot.lane.b32.xlu0 %v1999, 112
        %v2786 = vpop.permute.xlu0 %2785
        %2787 = vrot.lane.b32.xlu0 %v2002, 112
        %v2788 = vpop.permute.xlu0 %2787
        %2789 = vrot.lane.b32.xlu0 %v2004, 112
        %v2790 = vpop.permute.xlu0 %2789
        %2791 = vrot.lane.b32.xlu0 %v2007, 112
        %v2792 = vpop.permute.xlu0 %2791
        %2793 = vrot.lane.b32.xlu0 %v2009, 112
        %v2794 = vpop.permute.xlu0 %2793
        %2795 = vrot.lane.b32.xlu0 %v2012, 112
        %v2796 = vpop.permute.xlu0 %2795
        %2797 = vrot.lane.b32.xlu0 %v2014, 112
        %v2798 = vpop.permute.xlu0 %2797
        %2799 = vrot.lane.b32.xlu0 %v2017, 112
        %v2800 = vpop.permute.xlu0 %2799
        %2801 = vrot.lane.b32.xlu0 %v1992, 80
        %v2802 = vpop.permute.xlu0 %2801
        %2803 = vrot.lane.b32.xlu0 %v1994, 80
        %v2804 = vpop.permute.xlu0 %2803
        %2805 = vrot.lane.b32.xlu0 %v1997, 80
        %v2806 = vpop.permute.xlu0 %2805
        %2807 = vrot.lane.b32.xlu0 %v1999, 80
        %v2808 = vpop.permute.xlu0 %2807
        %2809 = vrot.lane.b32.xlu0 %v2002, 80
        %v2810 = vpop.permute.xlu0 %2809
        %2811 = vrot.lane.b32.xlu0 %v2004, 80
        %v2812 = vpop.permute.xlu0 %2811
        %2813 = vrot.lane.b32.xlu0 %v2007, 80
        %v2814 = vpop.permute.xlu0 %2813
        %2815 = vrot.lane.b32.xlu0 %v2009, 80
        %v2816 = vpop.permute.xlu0 %2815
        %2817 = vrot.lane.b32.xlu0 %v2012, 80
        %v2818 = vpop.permute.xlu0 %2817
        %2819 = vrot.lane.b32.xlu0 %v2014, 80
        %v2820 = vpop.permute.xlu0 %2819
        %2821 = vrot.lane.b32.xlu0 %v2017, 80
        %v2822 = vpop.permute.xlu0 %2821
        %v2823 = vsel %vm2079, %v2780, 0
        %v2825 = vsel %vm2079, %v2782, 0
        %v2827 = vsel %vm2079, %v2784, 0
        %v2829 = vsel %vm2079, %v2786, 0
        %v2831 = vsel %vm2079, %v2788, 0
        %v2833 = vsel %vm2079, %v2790, 0
        %v2835 = vsel %vm2079, %v2792, 0
        %v2837 = vsel %vm2079, %v2794, 0
        %v2839 = vsel %vm2079, %v2796, 0
        %v2841 = vsel %vm2079, %v2798, 0
        %v2843 = vsel %vm2079, %v2800, 0
        %v2845 = vsel %vm2079, %v2802, 0
        %v2847 = vsel %vm2079, %v2804, 0
        %v2849 = vsel %vm2079, %v2806, 0
        %v2851 = vsel %vm2079, %v2808, 0
        %v2853 = vsel %vm2079, %v2810, 0
        %v2855 = vsel %vm2079, %v2812, 0
        %v2857 = vsel %vm2079, %v2814, 0
        %v2859 = vsel %vm2079, %v2816, 0
        %v2861 = vsel %vm2079, %v2818, 0
        %v2863 = vsel %vm2079, %v2820, 0
        %v2865 = vsel %vm2079, %v2822, 0
        %2867 = vmatpush.xpose.msra.mxu0 0.0
        %2868 = vmatpush.xpose.msra.mxu0 0.0
        %2869 = vmatpush.xpose.msra.mxu0 0.0
        %2870 = vmatpush.xpose.msra.mxu0 0.0
        %2871 = vmatpush.xpose.msra.mxu0 0.0
        %2872 = vmatpush.xpose.msra.mxu0 %v2865
        %2873 = vmatpush.xpose.msra.mxu0 %v2863
        %2874 = vmatpush.xpose.msra.mxu0 %v2861
        %2875 = vmatpush.xpose.msra.mxu0 %v2859
        %2876 = vmatpush.xpose.msra.mxu0 %v2857
        %2877 = vmatpush.xpose.msra.mxu0 %v2855
        %2878 = vmatpush.xpose.msra.mxu0 %v2853
        %2879 = vmatpush.xpose.msra.mxu0 %v2851
        %2880 = vmatpush.xpose.msra.mxu0 %v2849
        %2881 = vmatpush.xpose.msra.mxu0 %v2847
        %2882 = vmatpush.xpose.msra.mxu0 %v2845
        %2883 = vmatmul.f32.gmra.mxu0 %v2823
        %v2884 = vpop.f32.mrf.mxu0
        %v2885 = vadd.f32 0.0, %v2884
        %2886 = vmatmul.f32.gmra.mxu0 %v2825
        %v2887 = vpop.f32.mrf.mxu0
        %v2888 = vadd.f32 0.0, %v2887
        %2889 = vmatmul.f32.gmra.mxu0 %v2827
        %v2890 = vpop.f32.mrf.mxu0
        %v2891 = vadd.f32 0.0, %v2890
        %2892 = vmatmul.f32.gmra.mxu0 %v2829
        %v2893 = vpop.f32.mrf.mxu0
        %v2894 = vadd.f32 0.0, %v2893
        %2895 = vmatmul.f32.gmra.mxu0 %v2831
        %v2896 = vpop.f32.mrf.mxu0
        %v2897 = vadd.f32 0.0, %v2896
        %2898 = vmatmul.f32.gmra.mxu0 %v2833
        %v2899 = vpop.f32.mrf.mxu0
        %v2900 = vadd.f32 0.0, %v2899
        %2901 = vmatmul.f32.gmra.mxu0 %v2835
        %v2902 = vpop.f32.mrf.mxu0
        %v2903 = vadd.f32 0.0, %v2902
        %2904 = vmatmul.f32.gmra.mxu0 %v2837
        %v2905 = vpop.f32.mrf.mxu0
        %v2906 = vadd.f32 0.0, %v2905
        %2907 = vmatmul.f32.gmra.mxu0 %v2839
        %v2908 = vpop.f32.mrf.mxu0
        %v2909 = vadd.f32 0.0, %v2908
        %2910 = vmatmul.f32.gmra.mxu0 %v2841
        %v2911 = vpop.f32.mrf.mxu0
        %v2912 = vadd.f32 0.0, %v2911
        %2913 = vmatmul.f32.gmra.mxu0 %v2843
        %v2914 = vpop.f32.mrf.mxu0
        %v2915 = vadd.f32 0.0, %v2914
        %2916 = vdwg.mxu0
        %v2917 = vmul.f32 %v2885, 0.35355338
        %v2918 = vmul.f32 %v2888, 0.35355338
        %v2919 = vmul.f32 %v2891, 0.35355338
        %v2920 = vmul.f32 %v2894, 0.35355338
        %v2921 = vmul.f32 %v2897, 0.35355338
        %v2922 = vmul.f32 %v2900, 0.35355338
        %v2923 = vmul.f32 %v2903, 0.35355338
        %v2924 = vmul.f32 %v2906, 0.35355338
        %v2925 = vmul.f32 %v2909, 0.35355338
        %v2926 = vmul.f32 %v2912, 0.35355338
        %v2927 = vmul.f32 %v2915, 0.35355338
        %v2928 = vadd.f32 %v2917, %v2186
        %v2929 = vadd.f32 %v2918, %v2186
        %v2930 = vadd.f32 %v2919, %v2186
        %v2931 = vadd.f32 %v2920, %v2186
        %v2932 = vadd.f32 %v2921, %v2186
        %v2933 = vadd.f32 %v2922, %v2186
        %v2934 = vadd.f32 %v2923, %v2186
        %v2935 = vadd.f32 %v2924, %v2186
        %v2936 = vadd.f32 %v2925, %v2186
        %v2937 = vadd.f32 %v2926, %v2186
        %v2938 = vadd.f32 %v2927, %v2186
        %v2939 = vsel %vm2199, %v2928, -inf
        %2940 = vmax.xlane.f32.xlu0 %v2939
        %v2941 = vpop.xlane.xlu0 %2940
        %v2942 = vsel %vm2199, %v2929, -inf
        %2943 = vmax.xlane.f32.xlu0 %v2942
        %v2944 = vpop.xlane.xlu0 %2943
        %v2945 = vsel %vm2199, %v2930, -inf
        %2946 = vmax.xlane.f32.xlu0 %v2945
        %v2947 = vpop.xlane.xlu0 %2946
        %v2948 = vsel %vm2199, %v2931, -inf
        %2949 = vmax.xlane.f32.xlu0 %v2948
        %v2950 = vpop.xlane.xlu0 %2949
        %v2951 = vsel %vm2199, %v2932, -inf
        %2952 = vmax.xlane.f32.xlu0 %v2951
        %v2953 = vpop.xlane.xlu0 %2952
        %v2954 = vsel %vm2199, %v2933, -inf
        %2955 = vmax.xlane.f32.xlu0 %v2954
        %v2956 = vpop.xlane.xlu0 %2955
        %v2957 = vsel %vm2199, %v2934, -inf
        %2958 = vmax.xlane.f32.xlu0 %v2957
        %v2959 = vpop.xlane.xlu0 %2958
        %v2960 = vsel %vm2199, %v2935, -inf
        %2961 = vmax.xlane.f32.xlu0 %v2960
        %v2962 = vpop.xlane.xlu0 %2961
        %v2963 = vsel %vm2199, %v2936, -inf
        %2964 = vmax.xlane.f32.xlu0 %v2963
        %v2965 = vpop.xlane.xlu0 %2964
        %v2966 = vsel %vm2199, %v2937, -inf
        %2967 = vmax.xlane.f32.xlu0 %v2966
        %v2968 = vpop.xlane.xlu0 %2967
        %v2969 = vsel %vm2199, %v2938, -inf
        %2970 = vmax.xlane.f32.xlu0 %v2969
        %v2971 = vpop.xlane.xlu0 %2970
        %v2972 = vsub.f32 %v2928, %v2941
        %v2973 = vsub.f32 %v2929, %v2944
        %v2974 = vsub.f32 %v2930, %v2947
        %v2975 = vsub.f32 %v2931, %v2950
        %v2976 = vsub.f32 %v2932, %v2953
        %v2977 = vsub.f32 %v2933, %v2956
        %v2978 = vsub.f32 %v2934, %v2959
        %v2979 = vsub.f32 %v2935, %v2962
        %v2980 = vsub.f32 %v2936, %v2965
        %v2981 = vsub.f32 %v2937, %v2968
        %v2982 = vsub.f32 %v2938, %v2971
        %v2983 = vmul.f32 %v2972, 1.442695
        %v2984 = vpow.pop %v2983
        %v2985 = vmul.f32 %v2973, 1.442695
        %v2986 = vpow.pop %v2985
        %v2987 = vmul.f32 %v2974, 1.442695
        %v2988 = vpow.pop %v2987
        %v2989 = vmul.f32 %v2975, 1.442695
        %v2990 = vpow.pop %v2989
        %v2991 = vmul.f32 %v2976, 1.442695
        %v2992 = vpow.pop %v2991
        %v2993 = vmul.f32 %v2977, 1.442695
        %v2994 = vpow.pop %v2993
        %v2995 = vmul.f32 %v2978, 1.442695
        %v2996 = vpow.pop %v2995
        %v2997 = vmul.f32 %v2979, 1.442695
        %v2998 = vpow.pop %v2997
        %v2999 = vmul.f32 %v2980, 1.442695
        %v3000 = vpow.pop %v2999
        %v3001 = vmul.f32 %v2981, 1.442695
        %v3002 = vpow.pop %v3001
        %v3003 = vmul.f32 %v2982, 1.442695
        %v3004 = vpow.pop %v3003
        %v3005 = vsel %vm2199, %v2984, 0.0
        %3006 = vadd.xlane.f32.xlu0 %v3005
        %v3007 = vpop.xlane.xlu0 %3006
        %v3008 = vsel %vm2199, %v2986, 0.0
        %3009 = vadd.xlane.f32.xlu0 %v3008
        %v3010 = vpop.xlane.xlu0 %3009
        %v3011 = vsel %vm2199, %v2988, 0.0
        %3012 = vadd.xlane.f32.xlu0 %v3011
        %v3013 = vpop.xlane.xlu0 %3012
        %v3014 = vsel %vm2199, %v2990, 0.0
        %3015 = vadd.xlane.f32.xlu0 %v3014
        %v3016 = vpop.xlane.xlu0 %3015
        %v3017 = vsel %vm2199, %v2992, 0.0
        %3018 = vadd.xlane.f32.xlu0 %v3017
        %v3019 = vpop.xlane.xlu0 %3018
        %v3020 = vsel %vm2199, %v2994, 0.0
        %3021 = vadd.xlane.f32.xlu0 %v3020
        %v3022 = vpop.xlane.xlu0 %3021
        %v3023 = vsel %vm2199, %v2996, 0.0
        %3024 = vadd.xlane.f32.xlu0 %v3023
        %v3025 = vpop.xlane.xlu0 %3024
        %v3026 = vsel %vm2199, %v2998, 0.0
        %3027 = vadd.xlane.f32.xlu0 %v3026
        %v3028 = vpop.xlane.xlu0 %3027
        %v3029 = vsel %vm2199, %v3000, 0.0
        %3030 = vadd.xlane.f32.xlu0 %v3029
        %v3031 = vpop.xlane.xlu0 %3030
        %v3032 = vsel %vm2199, %v3002, 0.0
        %3033 = vadd.xlane.f32.xlu0 %v3032
        %v3034 = vpop.xlane.xlu0 %3033
        %v3035 = vsel %vm2199, %v3004, 0.0
        %3036 = vadd.xlane.f32.xlu0 %v3035
        %v3037 = vpop.xlane.xlu0 %3036
        %v3038 = vrcp.pop %v3007
        %v3039 = vrcp.pop %v3010
        %v3040 = vrcp.pop %v3013
        %v3041 = vrcp.pop %v3016
        %v3042 = vrcp.pop %v3019
        %v3043 = vrcp.pop %v3022
        %v3044 = vrcp.pop %v3025
        %v3045 = vrcp.pop %v3028
        %v3046 = vrcp.pop %v3031
        %v3047 = vrcp.pop %v3034
        %v3048 = vrcp.pop %v3037
        %v3049 = vmul.f32 %v2984, %v3038
        %v3050 = vmul.f32 %v2986, %v3039
        %v3051 = vmul.f32 %v2988, %v3040
        %v3052 = vmul.f32 %v2990, %v3041
        %v3053 = vmul.f32 %v2992, %v3042
        %v3054 = vmul.f32 %v2994, %v3043
        %v3055 = vmul.f32 %v2996, %v3044
        %v3056 = vmul.f32 %v2998, %v3045
        %v3057 = vmul.f32 %v3000, %v3046
        %v3058 = vmul.f32 %v3002, %v3047
        %v3059 = vmul.f32 %v3004, %v3048
        %v3060 = vpack.c.bf16 %v3050, %v3049
        %v3061 = vpack.c.bf16 %v3052, %v3051
        %v3062 = vpack.c.bf16 %v3054, %v3053
        %v3063 = vpack.c.bf16 %v3056, %v3055
        %v3064 = vpack.c.bf16 %v3058, %v3057
        %v3065 = vpack.c.bf16 %v3059, %v3059
        %3066 = vrot.lane.b32.xlu0 %v2327, 48
        %v3067 = vpop.permute.xlu0 %3066
        %3068 = vrot.lane.b32.xlu0 %v2328, 48
        %v3069 = vpop.permute.xlu0 %3068
        %3070 = vrot.lane.b32.xlu0 %v2329, 48
        %v3071 = vpop.permute.xlu0 %3070
        %3072 = vrot.lane.b32.xlu0 %v2330, 48
        %v3073 = vpop.permute.xlu0 %3072
        %3074 = vrot.lane.b32.xlu0 %v2331, 48
        %v3075 = vpop.permute.xlu0 %3074
        %3076 = vrot.lane.b32.xlu0 %v2332, 48
        %v3077 = vpop.permute.xlu0 %3076
        %v3084 = vsel %vm2199, %v3060, 0
        %v3087 = vsel %vm2199, %v3061, 0
        %v3090 = vsel %vm2199, %v3062, 0
        %v3093 = vsel %vm2199, %v3063, 0
        %v3096 = vsel %vm2199, %v3064, 0
        %v3099 = vsel %vm2199, %v3065, 0
        %v3102 = vsel %vm2374, %v3077, 0
        %3104 = vmatpush.bf16.msra.mxu0 0
        %3105 = vmatpush.bf16.msra.mxu0 0
        %3106 = vmatpush.bf16.msra.mxu0 %v3102
        %3107 = vmatpush.bf16.msra.mxu0 %v3075
        %3108 = vmatpush.bf16.msra.mxu0 %v3073
        %3109 = vmatpush.bf16.msra.mxu0 %v3071
        %3110 = vmatpush.bf16.msra.mxu0 %v3069
        %3111 = vmatpush.bf16.msra.mxu0 %v3067
        %3112 = vmatmul.bf16.gmra.mxu0 %v3084
        %v3113 = vpop.f32.mrf.mxu0
        %v3114 = vadd.f32 0.0, %v3113
        %v3115 = vpop.f32.mrf.mxu0
        %v3116 = vadd.f32 0.0, %v3115
        %3117 = vmatmul.bf16.gmra.mxu0 %v3087
        %v3118 = vpop.f32.mrf.mxu0
        %v3119 = vadd.f32 0.0, %v3118
        %v3120 = vpop.f32.mrf.mxu0
        %v3121 = vadd.f32 0.0, %v3120
        %3122 = vmatmul.bf16.gmra.mxu0 %v3090
        %v3123 = vpop.f32.mrf.mxu0
        %v3124 = vadd.f32 0.0, %v3123
        %v3125 = vpop.f32.mrf.mxu0
        %v3126 = vadd.f32 0.0, %v3125
        %3127 = vmatmul.bf16.gmra.mxu0 %v3093
        %v3128 = vpop.f32.mrf.mxu0
        %v3129 = vadd.f32 0.0, %v3128
        %v3130 = vpop.f32.mrf.mxu0
        %v3131 = vadd.f32 0.0, %v3130
        %3132 = vmatmul.bf16.gmra.mxu0 %v3096
        %v3133 = vpop.f32.mrf.mxu0
        %v3134 = vadd.f32 0.0, %v3133
        %v3135 = vpop.f32.mrf.mxu0
        %v3136 = vadd.f32 0.0, %v3135
        %3137 = vmatmul.bf16.gmra.mxu0 %v3099
        %v3138 = vpop.f32.mrf.mxu0
        %v3139 = vadd.f32 0.0, %v3138
        %v3140 = vpop.f32.mrf.mxu0
        %3141 = vdwg.mxu0
        %3142 = vrot.lane.b32.xlu0 %v1992, 104
        %v3143 = vpop.permute.xlu0 %3142
        %3144 = vrot.lane.b32.xlu0 %v1994, 104
        %v3145 = vpop.permute.xlu0 %3144
        %3146 = vrot.lane.b32.xlu0 %v1997, 104
        %v3147 = vpop.permute.xlu0 %3146
        %3148 = vrot.lane.b32.xlu0 %v1999, 104
        %v3149 = vpop.permute.xlu0 %3148
        %3150 = vrot.lane.b32.xlu0 %v2002, 104
        %v3151 = vpop.permute.xlu0 %3150
        %3152 = vrot.lane.b32.xlu0 %v2004, 104
        %v3153 = vpop.permute.xlu0 %3152
        %3154 = vrot.lane.b32.xlu0 %v2007, 104
        %v3155 = vpop.permute.xlu0 %3154
        %3156 = vrot.lane.b32.xlu0 %v2009, 104
        %v3157 = vpop.permute.xlu0 %3156
        %3158 = vrot.lane.b32.xlu0 %v2012, 104
        %v3159 = vpop.permute.xlu0 %3158
        %3160 = vrot.lane.b32.xlu0 %v2014, 104
        %v3161 = vpop.permute.xlu0 %3160
        %3162 = vrot.lane.b32.xlu0 %v2017, 104
        %v3163 = vpop.permute.xlu0 %3162
        %3164 = vrot.lane.b32.xlu0 %v1992, 72
        %v3165 = vpop.permute.xlu0 %3164
        %3166 = vrot.lane.b32.xlu0 %v1994, 72
        %v3167 = vpop.permute.xlu0 %3166
        %3168 = vrot.lane.b32.xlu0 %v1997, 72
        %v3169 = vpop.permute.xlu0 %3168
        %3170 = vrot.lane.b32.xlu0 %v1999, 72
        %v3171 = vpop.permute.xlu0 %3170
        %3172 = vrot.lane.b32.xlu0 %v2002, 72
        %v3173 = vpop.permute.xlu0 %3172
        %3174 = vrot.lane.b32.xlu0 %v2004, 72
        %v3175 = vpop.permute.xlu0 %3174
        %3176 = vrot.lane.b32.xlu0 %v2007, 72
        %v3177 = vpop.permute.xlu0 %3176
        %3178 = vrot.lane.b32.xlu0 %v2009, 72
        %v3179 = vpop.permute.xlu0 %3178
        %3180 = vrot.lane.b32.xlu0 %v2012, 72
        %v3181 = vpop.permute.xlu0 %3180
        %3182 = vrot.lane.b32.xlu0 %v2014, 72
        %v3183 = vpop.permute.xlu0 %3182
        %3184 = vrot.lane.b32.xlu0 %v2017, 72
        %v3185 = vpop.permute.xlu0 %3184
        %v3186 = vsel %vm2079, %v3143, 0
        %v3188 = vsel %vm2079, %v3145, 0
        %v3190 = vsel %vm2079, %v3147, 0
        %v3192 = vsel %vm2079, %v3149, 0
        %v3194 = vsel %vm2079, %v3151, 0
        %v3196 = vsel %vm2079, %v3153, 0
        %v3198 = vsel %vm2079, %v3155, 0
        %v3200 = vsel %vm2079, %v3157, 0
        %v3202 = vsel %vm2079, %v3159, 0
        %v3204 = vsel %vm2079, %v3161, 0
        %v3206 = vsel %vm2079, %v3163, 0
        %v3208 = vsel %vm2079, %v3165, 0
        %v3210 = vsel %vm2079, %v3167, 0
        %v3212 = vsel %vm2079, %v3169, 0
        %v3214 = vsel %vm2079, %v3171, 0
        %v3216 = vsel %vm2079, %v3173, 0
        %v3218 = vsel %vm2079, %v3175, 0
        %v3220 = vsel %vm2079, %v3177, 0
        %v3222 = vsel %vm2079, %v3179, 0
        %v3224 = vsel %vm2079, %v3181, 0
        %v3226 = vsel %vm2079, %v3183, 0
        %v3228 = vsel %vm2079, %v3185, 0
        %3230 = vmatpush.xpose.msra.mxu0 0.0
        %3231 = vmatpush.xpose.msra.mxu0 0.0
        %3232 = vmatpush.xpose.msra.mxu0 0.0
        %3233 = vmatpush.xpose.msra.mxu0 0.0
        %3234 = vmatpush.xpose.msra.mxu0 0.0
        %3235 = vmatpush.xpose.msra.mxu0 %v3228
        %3236 = vmatpush.xpose.msra.mxu0 %v3226
        %3237 = vmatpush.xpose.msra.mxu0 %v3224
        %3238 = vmatpush.xpose.msra.mxu0 %v3222
        %3239 = vmatpush.xpose.msra.mxu0 %v3220
        %3240 = vmatpush.xpose.msra.mxu0 %v3218
        %3241 = vmatpush.xpose.msra.mxu0 %v3216
        %3242 = vmatpush.xpose.msra.mxu0 %v3214
        %3243 = vmatpush.xpose.msra.mxu0 %v3212
        %3244 = vmatpush.xpose.msra.mxu0 %v3210
        %3245 = vmatpush.xpose.msra.mxu0 %v3208
        %3246 = vmatmul.f32.gmra.mxu0 %v3186
        %v3247 = vpop.f32.mrf.mxu0
        %v3248 = vadd.f32 0.0, %v3247
        %3249 = vmatmul.f32.gmra.mxu0 %v3188
        %v3250 = vpop.f32.mrf.mxu0
        %v3251 = vadd.f32 0.0, %v3250
        %3252 = vmatmul.f32.gmra.mxu0 %v3190
        %v3253 = vpop.f32.mrf.mxu0
        %v3254 = vadd.f32 0.0, %v3253
        %3255 = vmatmul.f32.gmra.mxu0 %v3192
        %v3256 = vpop.f32.mrf.mxu0
        %v3257 = vadd.f32 0.0, %v3256
        %3258 = vmatmul.f32.gmra.mxu0 %v3194
        %v3259 = vpop.f32.mrf.mxu0
        %v3260 = vadd.f32 0.0, %v3259
        %3261 = vmatmul.f32.gmra.mxu0 %v3196
        %v3262 = vpop.f32.mrf.mxu0
        %v3263 = vadd.f32 0.0, %v3262
        %3264 = vmatmul.f32.gmra.mxu0 %v3198
        %v3265 = vpop.f32.mrf.mxu0
        %v3266 = vadd.f32 0.0, %v3265
        %3267 = vmatmul.f32.gmra.mxu0 %v3200
        %v3268 = vpop.f32.mrf.mxu0
        %v3269 = vadd.f32 0.0, %v3268
        %3270 = vmatmul.f32.gmra.mxu0 %v3202
        %v3271 = vpop.f32.mrf.mxu0
        %v3272 = vadd.f32 0.0, %v3271
        %3273 = vmatmul.f32.gmra.mxu0 %v3204
        %v3274 = vpop.f32.mrf.mxu0
        %v3275 = vadd.f32 0.0, %v3274
        %3276 = vmatmul.f32.gmra.mxu0 %v3206
        %v3277 = vpop.f32.mrf.mxu0
        %v3278 = vadd.f32 0.0, %v3277
        %3279 = vdwg.mxu0
        %v3280 = vmul.f32 %v3248, 0.35355338
        %v3281 = vmul.f32 %v3251, 0.35355338
        %v3282 = vmul.f32 %v3254, 0.35355338
        %v3283 = vmul.f32 %v3257, 0.35355338
        %v3284 = vmul.f32 %v3260, 0.35355338
        %v3285 = vmul.f32 %v3263, 0.35355338
        %v3286 = vmul.f32 %v3266, 0.35355338
        %v3287 = vmul.f32 %v3269, 0.35355338
        %v3288 = vmul.f32 %v3272, 0.35355338
        %v3289 = vmul.f32 %v3275, 0.35355338
        %v3290 = vmul.f32 %v3278, 0.35355338
        %v3291 = vadd.f32 %v3280, %v2186
        %v3292 = vadd.f32 %v3281, %v2186
        %v3293 = vadd.f32 %v3282, %v2186
        %v3294 = vadd.f32 %v3283, %v2186
        %v3295 = vadd.f32 %v3284, %v2186
        %v3296 = vadd.f32 %v3285, %v2186
        %v3297 = vadd.f32 %v3286, %v2186
        %v3298 = vadd.f32 %v3287, %v2186
        %v3299 = vadd.f32 %v3288, %v2186
        %v3300 = vadd.f32 %v3289, %v2186
        %v3301 = vadd.f32 %v3290, %v2186
        %v3302 = vsel %vm2199, %v3291, -inf
        %3303 = vmax.xlane.f32.xlu0 %v3302
        %v3304 = vpop.xlane.xlu0 %3303
        %v3305 = vsel %vm2199, %v3292, -inf
        %3306 = vmax.xlane.f32.xlu0 %v3305
        %v3307 = vpop.xlane.xlu0 %3306
        %v3308 = vsel %vm2199, %v3293, -inf
        %3309 = vmax.xlane.f32.xlu0 %v3308
        %v3310 = vpop.xlane.xlu0 %3309
        %v3311 = vsel %vm2199, %v3294, -inf
        %3312 = vmax.xlane.f32.xlu0 %v3311
        %v3313 = vpop.xlane.xlu0 %3312
        %v3314 = vsel %vm2199, %v3295, -inf
        %3315 = vmax.xlane.f32.xlu0 %v3314
        %v3316 = vpop.xlane.xlu0 %3315
        %v3317 = vsel %vm2199, %v3296, -inf
        %3318 = vmax.xlane.f32.xlu0 %v3317
        %v3319 = vpop.xlane.xlu0 %3318
        %v3320 = vsel %vm2199, %v3297, -inf
        %3321 = vmax.xlane.f32.xlu0 %v3320
        %v3322 = vpop.xlane.xlu0 %3321
        %v3323 = vsel %vm2199, %v3298, -inf
        %3324 = vmax.xlane.f32.xlu0 %v3323
        %v3325 = vpop.xlane.xlu0 %3324
        %v3326 = vsel %vm2199, %v3299, -inf
        %3327 = vmax.xlane.f32.xlu0 %v3326
        %v3328 = vpop.xlane.xlu0 %3327
        %v3329 = vsel %vm2199, %v3300, -inf
        %3330 = vmax.xlane.f32.xlu0 %v3329
        %v3331 = vpop.xlane.xlu0 %3330
        %v3332 = vsel %vm2199, %v3301, -inf
        %3333 = vmax.xlane.f32.xlu0 %v3332
        %v3334 = vpop.xlane.xlu0 %3333
        %v3335 = vsub.f32 %v3291, %v3304
        %v3336 = vsub.f32 %v3292, %v3307
        %v3337 = vsub.f32 %v3293, %v3310
        %v3338 = vsub.f32 %v3294, %v3313
        %v3339 = vsub.f32 %v3295, %v3316
        %v3340 = vsub.f32 %v3296, %v3319
        %v3341 = vsub.f32 %v3297, %v3322
        %v3342 = vsub.f32 %v3298, %v3325
        %v3343 = vsub.f32 %v3299, %v3328
        %v3344 = vsub.f32 %v3300, %v3331
        %v3345 = vsub.f32 %v3301, %v3334
        %v3346 = vmul.f32 %v3335, 1.442695
        %v3347 = vpow.pop %v3346
        %v3348 = vmul.f32 %v3336, 1.442695
        %v3349 = vpow.pop %v3348
        %v3350 = vmul.f32 %v3337, 1.442695
        %v3351 = vpow.pop %v3350
        %v3352 = vmul.f32 %v3338, 1.442695
        %v3353 = vpow.pop %v3352
        %v3354 = vmul.f32 %v3339, 1.442695
        %v3355 = vpow.pop %v3354
        %v3356 = vmul.f32 %v3340, 1.442695
        %v3357 = vpow.pop %v3356
        %v3358 = vmul.f32 %v3341, 1.442695
        %v3359 = vpow.pop %v3358
        %v3360 = vmul.f32 %v3342, 1.442695
        %v3361 = vpow.pop %v3360
        %v3362 = vmul.f32 %v3343, 1.442695
        %v3363 = vpow.pop %v3362
        %v3364 = vmul.f32 %v3344, 1.442695
        %v3365 = vpow.pop %v3364
        %v3366 = vmul.f32 %v3345, 1.442695
        %v3367 = vpow.pop %v3366
        %v3368 = vsel %vm2199, %v3347, 0.0
        %3369 = vadd.xlane.f32.xlu0 %v3368
        %v3370 = vpop.xlane.xlu0 %3369
        %v3371 = vsel %vm2199, %v3349, 0.0
        %3372 = vadd.xlane.f32.xlu0 %v3371
        %v3373 = vpop.xlane.xlu0 %3372
        %v3374 = vsel %vm2199, %v3351, 0.0
        %3375 = vadd.xlane.f32.xlu0 %v3374
        %v3376 = vpop.xlane.xlu0 %3375
        %v3377 = vsel %vm2199, %v3353, 0.0
        %3378 = vadd.xlane.f32.xlu0 %v3377
        %v3379 = vpop.xlane.xlu0 %3378
        %v3380 = vsel %vm2199, %v3355, 0.0
        %3381 = vadd.xlane.f32.xlu0 %v3380
        %v3382 = vpop.xlane.xlu0 %3381
        %v3383 = vsel %vm2199, %v3357, 0.0
        %3384 = vadd.xlane.f32.xlu0 %v3383
        %v3385 = vpop.xlane.xlu0 %3384
        %v3386 = vsel %vm2199, %v3359, 0.0
        %3387 = vadd.xlane.f32.xlu0 %v3386
        %v3388 = vpop.xlane.xlu0 %3387
        %v3389 = vsel %vm2199, %v3361, 0.0
        %3390 = vadd.xlane.f32.xlu0 %v3389
        %v3391 = vpop.xlane.xlu0 %3390
        %v3392 = vsel %vm2199, %v3363, 0.0
        %3393 = vadd.xlane.f32.xlu0 %v3392
        %v3394 = vpop.xlane.xlu0 %3393
        %v3395 = vsel %vm2199, %v3365, 0.0
        %3396 = vadd.xlane.f32.xlu0 %v3395
        %v3397 = vpop.xlane.xlu0 %3396
        %v3398 = vsel %vm2199, %v3367, 0.0
        %3399 = vadd.xlane.f32.xlu0 %v3398
        %v3400 = vpop.xlane.xlu0 %3399
        %v3401 = vrcp.pop %v3370
        %v3402 = vrcp.pop %v3373
        %v3403 = vrcp.pop %v3376
        %v3404 = vrcp.pop %v3379
        %v3405 = vrcp.pop %v3382
        %v3406 = vrcp.pop %v3385
        %v3407 = vrcp.pop %v3388
        %v3408 = vrcp.pop %v3391
        %v3409 = vrcp.pop %v3394
        %v3410 = vrcp.pop %v3397
        %v3411 = vrcp.pop %v3400
        %v3412 = vmul.f32 %v3347, %v3401
        %v3413 = vmul.f32 %v3349, %v3402
        %v3414 = vmul.f32 %v3351, %v3403
        %v3415 = vmul.f32 %v3353, %v3404
        %v3416 = vmul.f32 %v3355, %v3405
        %v3417 = vmul.f32 %v3357, %v3406
        %v3418 = vmul.f32 %v3359, %v3407
        %v3419 = vmul.f32 %v3361, %v3408
        %v3420 = vmul.f32 %v3363, %v3409
        %v3421 = vmul.f32 %v3365, %v3410
        %v3422 = vmul.f32 %v3367, %v3411
        %v3423 = vpack.c.bf16 %v3413, %v3412
        %v3424 = vpack.c.bf16 %v3415, %v3414
        %v3425 = vpack.c.bf16 %v3417, %v3416
        %v3426 = vpack.c.bf16 %v3419, %v3418
        %v3427 = vpack.c.bf16 %v3421, %v3420
        %v3428 = vpack.c.bf16 %v3422, %v3422
        %3429 = vrot.lane.b32.xlu0 %v2327, 40
        %v3430 = vpop.permute.xlu0 %3429
        %3431 = vrot.lane.b32.xlu0 %v2328, 40
        %v3432 = vpop.permute.xlu0 %3431
        %3433 = vrot.lane.b32.xlu0 %v2329, 40
        %v3434 = vpop.permute.xlu0 %3433
        %3435 = vrot.lane.b32.xlu0 %v2330, 40
        %v3436 = vpop.permute.xlu0 %3435
        %3437 = vrot.lane.b32.xlu0 %v2331, 40
        %v3438 = vpop.permute.xlu0 %3437
        %3439 = vrot.lane.b32.xlu0 %v2332, 40
        %v3440 = vpop.permute.xlu0 %3439
        %v3447 = vsel %vm2199, %v3423, 0
        %v3450 = vsel %vm2199, %v3424, 0
        %v3453 = vsel %vm2199, %v3425, 0
        %v3456 = vsel %vm2199, %v3426, 0
        %v3459 = vsel %vm2199, %v3427, 0
        %v3462 = vsel %vm2199, %v3428, 0
        %v3465 = vsel %vm2374, %v3440, 0
        %3467 = vmatpush.bf16.msra.mxu0 0
        %3468 = vmatpush.bf16.msra.mxu0 0
        %3469 = vmatpush.bf16.msra.mxu0 %v3465
        %3470 = vmatpush.bf16.msra.mxu0 %v3438
        %3471 = vmatpush.bf16.msra.mxu0 %v3436
        %3472 = vmatpush.bf16.msra.mxu0 %v3434
        %3473 = vmatpush.bf16.msra.mxu0 %v3432
        %3474 = vmatpush.bf16.msra.mxu0 %v3430
        %3475 = vmatmul.bf16.gmra.mxu0 %v3447
        %v3476 = vpop.f32.mrf.mxu0
        %v3477 = vadd.f32 0.0, %v3476
        %v3478 = vpop.f32.mrf.mxu0
        %v3479 = vadd.f32 0.0, %v3478
        %3480 = vmatmul.bf16.gmra.mxu0 %v3450
        %v3481 = vpop.f32.mrf.mxu0
        %v3482 = vadd.f32 0.0, %v3481
        %v3483 = vpop.f32.mrf.mxu0
        %v3484 = vadd.f32 0.0, %v3483
        %3485 = vmatmul.bf16.gmra.mxu0 %v3453
        %v3486 = vpop.f32.mrf.mxu0
        %v3487 = vadd.f32 0.0, %v3486
        %v3488 = vpop.f32.mrf.mxu0
        %v3489 = vadd.f32 0.0, %v3488
        %3490 = vmatmul.bf16.gmra.mxu0 %v3456
        %v3491 = vpop.f32.mrf.mxu0
        %v3492 = vadd.f32 0.0, %v3491
        %v3493 = vpop.f32.mrf.mxu0
        %v3494 = vadd.f32 0.0, %v3493
        %3495 = vmatmul.bf16.gmra.mxu0 %v3459
        %v3496 = vpop.f32.mrf.mxu0
        %v3497 = vadd.f32 0.0, %v3496
        %v3498 = vpop.f32.mrf.mxu0
        %v3499 = vadd.f32 0.0, %v3498
        %3500 = vmatmul.bf16.gmra.mxu0 %v3462
        %v3501 = vpop.f32.mrf.mxu0
        %v3502 = vadd.f32 0.0, %v3501
        %v3503 = vpop.f32.mrf.mxu0
        %3504 = vdwg.mxu0
        %3516 = vrot.lane.b32.xlu0 %v2751, 8
        %v3517 = vpop.permute.xlu0 %3516
        %3518 = vrot.lane.b32.xlu0 %v2753, 8
        %v3519 = vpop.permute.xlu0 %3518
        %3520 = vrot.lane.b32.xlu0 %v2756, 8
        %v3521 = vpop.permute.xlu0 %3520
        %3522 = vrot.lane.b32.xlu0 %v2758, 8
        %v3523 = vpop.permute.xlu0 %3522
        %3524 = vrot.lane.b32.xlu0 %v2761, 8
        %v3525 = vpop.permute.xlu0 %3524
        %3526 = vrot.lane.b32.xlu0 %v2763, 8
        %v3527 = vpop.permute.xlu0 %3526
        %3528 = vrot.lane.b32.xlu0 %v2766, 8
        %v3529 = vpop.permute.xlu0 %3528
        %3530 = vrot.lane.b32.xlu0 %v2768, 8
        %v3531 = vpop.permute.xlu0 %3530
        %3532 = vrot.lane.b32.xlu0 %v2771, 8
        %v3533 = vpop.permute.xlu0 %3532
        %3534 = vrot.lane.b32.xlu0 %v2773, 8
        %v3535 = vpop.permute.xlu0 %3534
        %3536 = vrot.lane.b32.xlu0 %v2776, 8
        %v3537 = vpop.permute.xlu0 %3536
        %3560 = vrot.lane.b32.xlu0 %v3114, 16
        %v3561 = vpop.permute.xlu0 %3560
        %3562 = vrot.lane.b32.xlu0 %v3116, 16
        %v3563 = vpop.permute.xlu0 %3562
        %3564 = vrot.lane.b32.xlu0 %v3119, 16
        %v3565 = vpop.permute.xlu0 %3564
        %3566 = vrot.lane.b32.xlu0 %v3121, 16
        %v3567 = vpop.permute.xlu0 %3566
        %3568 = vrot.lane.b32.xlu0 %v3124, 16
        %v3569 = vpop.permute.xlu0 %3568
        %3570 = vrot.lane.b32.xlu0 %v3126, 16
        %v3571 = vpop.permute.xlu0 %3570
        %3572 = vrot.lane.b32.xlu0 %v3129, 16
        %v3573 = vpop.permute.xlu0 %3572
        %3574 = vrot.lane.b32.xlu0 %v3131, 16
        %v3575 = vpop.permute.xlu0 %3574
        %3576 = vrot.lane.b32.xlu0 %v3134, 16
        %v3577 = vpop.permute.xlu0 %3576
        %3578 = vrot.lane.b32.xlu0 %v3136, 16
        %v3579 = vpop.permute.xlu0 %3578
        %3580 = vrot.lane.b32.xlu0 %v3139, 16
        %v3581 = vpop.permute.xlu0 %3580
        %3604 = vrot.lane.b32.xlu0 %v3477, 24
        %v3605 = vpop.permute.xlu0 %3604
        %3606 = vrot.lane.b32.xlu0 %v3479, 24
        %v3607 = vpop.permute.xlu0 %3606
        %3608 = vrot.lane.b32.xlu0 %v3482, 24
        %v3609 = vpop.permute.xlu0 %3608
        %3610 = vrot.lane.b32.xlu0 %v3484, 24
        %v3611 = vpop.permute.xlu0 %3610
        %3612 = vrot.lane.b32.xlu0 %v3487, 24
        %v3613 = vpop.permute.xlu0 %3612
        %3614 = vrot.lane.b32.xlu0 %v3489, 24
        %v3615 = vpop.permute.xlu0 %3614
        %3616 = vrot.lane.b32.xlu0 %v3492, 24
        %v3617 = vpop.permute.xlu0 %3616
        %3618 = vrot.lane.b32.xlu0 %v3494, 24
        %v3619 = vpop.permute.xlu0 %3618
        %3620 = vrot.lane.b32.xlu0 %v3497, 24
        %v3621 = vpop.permute.xlu0 %3620
        %3622 = vrot.lane.b32.xlu0 %v3499, 24
        %v3623 = vpop.permute.xlu0 %3622
        %3624 = vrot.lane.b32.xlu0 %v3502, 24
        %v3625 = vpop.permute.xlu0 %3624
        %v3637 = vsel %vm2079, %v2388, %v3517
        %v3638 = vsel %vm2079, %v2390, %v3519
        %v3639 = vsel %vm2079, %v2393, %v3521
        %v3640 = vsel %vm2079, %v2395, %v3523
        %v3641 = vsel %vm2079, %v2398, %v3525
        %v3642 = vsel %vm2079, %v2400, %v3527
        %v3643 = vsel %vm2079, %v2403, %v3529
        %v3644 = vsel %vm2079, %v2405, %v3531
        %v3645 = vsel %vm2079, %v2408, %v3533
        %v3646 = vsel %vm2079, %v2410, %v3535
        %v3647 = vsel %vm2079, %v2413, %v3537
        %vm3648 = vcmask 130048
        %v3649 = vsel %vm3648, %v3637, %v3561
        %v3650 = vsel %vm3648, %v3638, %v3563
        %v3651 = vsel %vm3648, %v3639, %v3565
        %v3652 = vsel %vm3648, %v3640, %v3567
        %v3653 = vsel %vm3648, %v3641, %v3569
        %v3654 = vsel %vm3648, %v3642, %v3571
        %v3655 = vsel %vm3648, %v3643, %v3573
        %v3656 = vsel %vm3648, %v3644, %v3575
        %v3657 = vsel %vm3648, %v3645, %v3577
        %v3658 = vsel %vm3648, %v3646, %v3579
        %v3659 = vsel %vm3648, %v3647, %v3581
        %vm3660 = vcmask 195584
        %v3661 = vsel %vm3660, %v3649, %v3605
        %v3662 = vsel %vm3660, %v3650, %v3607
        %v3663 = vsel %vm3660, %v3651, %v3609
        %v3664 = vsel %vm3660, %v3652, %v3611
        %v3665 = vsel %vm3660, %v3653, %v3613
        %v3666 = vsel %vm3660, %v3654, %v3615
        %v3667 = vsel %vm3660, %v3655, %v3617
        %v3668 = vsel %vm3660, %v3656, %v3619
        %v3669 = vsel %vm3660, %v3657, %v3621
        %v3670 = vsel %vm3660, %v3658, %v3623
        %v3671 = vsel %vm3660, %v3659, %v3625
        %3683 = vrot.lane.b32.xlu0 %v2019, 96
        %v3684 = vpop.permute.xlu0 %3683
        %3685 = vrot.lane.b32.xlu0 %v2022, 96
        %v3686 = vpop.permute.xlu0 %3685
        %3687 = vrot.lane.b32.xlu0 %v2024, 96
        %v3688 = vpop.permute.xlu0 %3687
        %3689 = vrot.lane.b32.xlu0 %v2027, 96
        %v3690 = vpop.permute.xlu0 %3689
        %3691 = vrot.lane.b32.xlu0 %v2029, 96
        %v3692 = vpop.permute.xlu0 %3691
        %3693 = vrot.lane.b32.xlu0 %v2032, 96
        %v3694 = vpop.permute.xlu0 %3693
        %3695 = vrot.lane.b32.xlu0 %v2034, 96
        %v3696 = vpop.permute.xlu0 %3695
        %3697 = vrot.lane.b32.xlu0 %v2037, 96
        %v3698 = vpop.permute.xlu0 %3697
        %3699 = vrot.lane.b32.xlu0 %v2039, 96
        %v3700 = vpop.permute.xlu0 %3699
        %3701 = vrot.lane.b32.xlu0 %v2042, 96
        %v3702 = vpop.permute.xlu0 %3701
        %3703 = vrot.lane.b32.xlu0 %v2044, 96
        %v3704 = vpop.permute.xlu0 %3703
        %v3705 = vsel %vm2079, %v2019, 0
        %v3707 = vsel %vm2079, %v2022, 0
        %v3709 = vsel %vm2079, %v2024, 0
        %v3711 = vsel %vm2079, %v2027, 0
        %v3713 = vsel %vm2079, %v2029, 0
        %v3715 = vsel %vm2079, %v2032, 0
        %v3717 = vsel %vm2079, %v2034, 0
        %v3719 = vsel %vm2079, %v2037, 0
        %v3721 = vsel %vm2079, %v2039, 0
        %v3723 = vsel %vm2079, %v2042, 0
        %v3725 = vsel %vm2079, %v2044, 0
        %v3727 = vsel %vm2079, %v3684, 0
        %v3729 = vsel %vm2079, %v3686, 0
        %v3731 = vsel %vm2079, %v3688, 0
        %v3733 = vsel %vm2079, %v3690, 0
        %v3735 = vsel %vm2079, %v3692, 0
        %v3737 = vsel %vm2079, %v3694, 0
        %v3739 = vsel %vm2079, %v3696, 0
        %v3741 = vsel %vm2079, %v3698, 0
        %v3743 = vsel %vm2079, %v3700, 0
        %v3745 = vsel %vm2079, %v3702, 0
        %v3747 = vsel %vm2079, %v3704, 0
        %3749 = vmatpush.xpose.msra.mxu0 0.0
        %3750 = vmatpush.xpose.msra.mxu0 0.0
        %3751 = vmatpush.xpose.msra.mxu0 0.0
        %3752 = vmatpush.xpose.msra.mxu0 0.0
        %3753 = vmatpush.xpose.msra.mxu0 0.0
        %3754 = vmatpush.xpose.msra.mxu0 %v3747
        %3755 = vmatpush.xpose.msra.mxu0 %v3745
        %3756 = vmatpush.xpose.msra.mxu0 %v3743
        %3757 = vmatpush.xpose.msra.mxu0 %v3741
        %3758 = vmatpush.xpose.msra.mxu0 %v3739
        %3759 = vmatpush.xpose.msra.mxu0 %v3737
        %3760 = vmatpush.xpose.msra.mxu0 %v3735
        %3761 = vmatpush.xpose.msra.mxu0 %v3733
        %3762 = vmatpush.xpose.msra.mxu0 %v3731
        %3763 = vmatpush.xpose.msra.mxu0 %v3729
        %3764 = vmatpush.xpose.msra.mxu0 %v3727
        %3765 = vmatmul.f32.gmra.mxu0 %v3705
        %v3766 = vpop.f32.mrf.mxu0
        %v3767 = vadd.f32 0.0, %v3766
        %3768 = vmatmul.f32.gmra.mxu0 %v3707
        %v3769 = vpop.f32.mrf.mxu0
        %v3770 = vadd.f32 0.0, %v3769
        %3771 = vmatmul.f32.gmra.mxu0 %v3709
        %v3772 = vpop.f32.mrf.mxu0
        %v3773 = vadd.f32 0.0, %v3772
        %3774 = vmatmul.f32.gmra.mxu0 %v3711
        %v3775 = vpop.f32.mrf.mxu0
        %v3776 = vadd.f32 0.0, %v3775
        %3777 = vmatmul.f32.gmra.mxu0 %v3713
        %v3778 = vpop.f32.mrf.mxu0
        %v3779 = vadd.f32 0.0, %v3778
        %3780 = vmatmul.f32.gmra.mxu0 %v3715
        %v3781 = vpop.f32.mrf.mxu0
        %v3782 = vadd.f32 0.0, %v3781
        %3783 = vmatmul.f32.gmra.mxu0 %v3717
        %v3784 = vpop.f32.mrf.mxu0
        %v3785 = vadd.f32 0.0, %v3784
        %3786 = vmatmul.f32.gmra.mxu0 %v3719
        %v3787 = vpop.f32.mrf.mxu0
        %v3788 = vadd.f32 0.0, %v3787
        %3789 = vmatmul.f32.gmra.mxu0 %v3721
        %v3790 = vpop.f32.mrf.mxu0
        %v3791 = vadd.f32 0.0, %v3790
        %3792 = vmatmul.f32.gmra.mxu0 %v3723
        %v3793 = vpop.f32.mrf.mxu0
        %v3794 = vadd.f32 0.0, %v3793
        %3795 = vmatmul.f32.gmra.mxu0 %v3725
        %v3796 = vpop.f32.mrf.mxu0
        %v3797 = vadd.f32 0.0, %v3796
        %3798 = vdwg.mxu0
        %v3799 = vmul.f32 %v3767, 0.35355338
        %v3800 = vmul.f32 %v3770, 0.35355338
        %v3801 = vmul.f32 %v3773, 0.35355338
        %v3802 = vmul.f32 %v3776, 0.35355338
        %v3803 = vmul.f32 %v3779, 0.35355338
        %v3804 = vmul.f32 %v3782, 0.35355338
        %v3805 = vmul.f32 %v3785, 0.35355338
        %v3806 = vmul.f32 %v3788, 0.35355338
        %v3807 = vmul.f32 %v3791, 0.35355338
        %v3808 = vmul.f32 %v3794, 0.35355338
        %v3809 = vmul.f32 %v3797, 0.35355338
        %v3810 = vadd.f32 %v3799, %v2186
        %v3811 = vadd.f32 %v3800, %v2186
        %v3812 = vadd.f32 %v3801, %v2186
        %v3813 = vadd.f32 %v3802, %v2186
        %v3814 = vadd.f32 %v3803, %v2186
        %v3815 = vadd.f32 %v3804, %v2186
        %v3816 = vadd.f32 %v3805, %v2186
        %v3817 = vadd.f32 %v3806, %v2186
        %v3818 = vadd.f32 %v3807, %v2186
        %v3819 = vadd.f32 %v3808, %v2186
        %v3820 = vadd.f32 %v3809, %v2186
        %v3821 = vsel %vm2199, %v3810, -inf
        %3822 = vmax.xlane.f32.xlu0 %v3821
        %v3823 = vpop.xlane.xlu0 %3822
        %v3824 = vsel %vm2199, %v3811, -inf
        %3825 = vmax.xlane.f32.xlu0 %v3824
        %v3826 = vpop.xlane.xlu0 %3825
        %v3827 = vsel %vm2199, %v3812, -inf
        %3828 = vmax.xlane.f32.xlu0 %v3827
        %v3829 = vpop.xlane.xlu0 %3828
        %v3830 = vsel %vm2199, %v3813, -inf
        %3831 = vmax.xlane.f32.xlu0 %v3830
        %v3832 = vpop.xlane.xlu0 %3831
        %v3833 = vsel %vm2199, %v3814, -inf
        %3834 = vmax.xlane.f32.xlu0 %v3833
        %v3835 = vpop.xlane.xlu0 %3834
        %v3836 = vsel %vm2199, %v3815, -inf
        %3837 = vmax.xlane.f32.xlu0 %v3836
        %v3838 = vpop.xlane.xlu0 %3837
        %v3839 = vsel %vm2199, %v3816, -inf
        %3840 = vmax.xlane.f32.xlu0 %v3839
        %v3841 = vpop.xlane.xlu0 %3840
        %v3842 = vsel %vm2199, %v3817, -inf
        %3843 = vmax.xlane.f32.xlu0 %v3842
        %v3844 = vpop.xlane.xlu0 %3843
        %v3845 = vsel %vm2199, %v3818, -inf
        %3846 = vmax.xlane.f32.xlu0 %v3845
        %v3847 = vpop.xlane.xlu0 %3846
        %v3848 = vsel %vm2199, %v3819, -inf
        %3849 = vmax.xlane.f32.xlu0 %v3848
        %v3850 = vpop.xlane.xlu0 %3849
        %v3851 = vsel %vm2199, %v3820, -inf
        %3852 = vmax.xlane.f32.xlu0 %v3851
        %v3853 = vpop.xlane.xlu0 %3852
        %v3854 = vsub.f32 %v3810, %v3823
        %v3855 = vsub.f32 %v3811, %v3826
        %v3856 = vsub.f32 %v3812, %v3829
        %v3857 = vsub.f32 %v3813, %v3832
        %v3858 = vsub.f32 %v3814, %v3835
        %v3859 = vsub.f32 %v3815, %v3838
        %v3860 = vsub.f32 %v3816, %v3841
        %v3861 = vsub.f32 %v3817, %v3844
        %v3862 = vsub.f32 %v3818, %v3847
        %v3863 = vsub.f32 %v3819, %v3850
        %v3864 = vsub.f32 %v3820, %v3853
        %v3865 = vmul.f32 %v3854, 1.442695
        %v3866 = vpow.pop %v3865
        %v3867 = vmul.f32 %v3855, 1.442695
        %v3868 = vpow.pop %v3867
        %v3869 = vmul.f32 %v3856, 1.442695
        %v3870 = vpow.pop %v3869
        %v3871 = vmul.f32 %v3857, 1.442695
        %v3872 = vpow.pop %v3871
        %v3873 = vmul.f32 %v3858, 1.442695
        %v3874 = vpow.pop %v3873
        %v3875 = vmul.f32 %v3859, 1.442695
        %v3876 = vpow.pop %v3875
        %v3877 = vmul.f32 %v3860, 1.442695
        %v3878 = vpow.pop %v3877
        %v3879 = vmul.f32 %v3861, 1.442695
        %v3880 = vpow.pop %v3879
        %v3881 = vmul.f32 %v3862, 1.442695
        %v3882 = vpow.pop %v3881
        %v3883 = vmul.f32 %v3863, 1.442695
        %v3884 = vpow.pop %v3883
        %v3885 = vmul.f32 %v3864, 1.442695
        %v3886 = vpow.pop %v3885
        %v3887 = vsel %vm2199, %v3866, 0.0
        %3888 = vadd.xlane.f32.xlu0 %v3887
        %v3889 = vpop.xlane.xlu0 %3888
        %v3890 = vsel %vm2199, %v3868, 0.0
        %3891 = vadd.xlane.f32.xlu0 %v3890
        %v3892 = vpop.xlane.xlu0 %3891
        %v3893 = vsel %vm2199, %v3870, 0.0
        %3894 = vadd.xlane.f32.xlu0 %v3893
        %v3895 = vpop.xlane.xlu0 %3894
        %v3896 = vsel %vm2199, %v3872, 0.0
        %3897 = vadd.xlane.f32.xlu0 %v3896
        %v3898 = vpop.xlane.xlu0 %3897
        %v3899 = vsel %vm2199, %v3874, 0.0
        %3900 = vadd.xlane.f32.xlu0 %v3899
        %v3901 = vpop.xlane.xlu0 %3900
        %v3902 = vsel %vm2199, %v3876, 0.0
        %3903 = vadd.xlane.f32.xlu0 %v3902
        %v3904 = vpop.xlane.xlu0 %3903
        %v3905 = vsel %vm2199, %v3878, 0.0
        %3906 = vadd.xlane.f32.xlu0 %v3905
        %v3907 = vpop.xlane.xlu0 %3906
        %v3908 = vsel %vm2199, %v3880, 0.0
        %3909 = vadd.xlane.f32.xlu0 %v3908
        %v3910 = vpop.xlane.xlu0 %3909
        %v3911 = vsel %vm2199, %v3882, 0.0
        %3912 = vadd.xlane.f32.xlu0 %v3911
        %v3913 = vpop.xlane.xlu0 %3912
        %v3914 = vsel %vm2199, %v3884, 0.0
        %3915 = vadd.xlane.f32.xlu0 %v3914
        %v3916 = vpop.xlane.xlu0 %3915
        %v3917 = vsel %vm2199, %v3886, 0.0
        %3918 = vadd.xlane.f32.xlu0 %v3917
        %v3919 = vpop.xlane.xlu0 %3918
        %v3920 = vrcp.pop %v3889
        %v3921 = vrcp.pop %v3892
        %v3922 = vrcp.pop %v3895
        %v3923 = vrcp.pop %v3898
        %v3924 = vrcp.pop %v3901
        %v3925 = vrcp.pop %v3904
        %v3926 = vrcp.pop %v3907
        %v3927 = vrcp.pop %v3910
        %v3928 = vrcp.pop %v3913
        %v3929 = vrcp.pop %v3916
        %v3930 = vrcp.pop %v3919
        %v3931 = vmul.f32 %v3866, %v3920
        %v3932 = vmul.f32 %v3868, %v3921
        %v3933 = vmul.f32 %v3870, %v3922
        %v3934 = vmul.f32 %v3872, %v3923
        %v3935 = vmul.f32 %v3874, %v3924
        %v3936 = vmul.f32 %v3876, %v3925
        %v3937 = vmul.f32 %v3878, %v3926
        %v3938 = vmul.f32 %v3880, %v3927
        %v3939 = vmul.f32 %v3882, %v3928
        %v3940 = vmul.f32 %v3884, %v3929
        %v3941 = vmul.f32 %v3886, %v3930
        %v3942 = vpack.c.bf16 %v3932, %v3931
        %v3943 = vpack.c.bf16 %v3934, %v3933
        %v3944 = vpack.c.bf16 %v3936, %v3935
        %v3945 = vpack.c.bf16 %v3938, %v3937
        %v3946 = vpack.c.bf16 %v3940, %v3939
        %v3947 = vpack.c.bf16 %v3941, %v3941
        %v3948 = vpack.c.bf16 %v2022, %v2019
        %v3949 = vpack.c.bf16 %v2027, %v2024
        %v3950 = vpack.c.bf16 %v2032, %v2029
        %v3951 = vpack.c.bf16 %v2037, %v2034
        %v3952 = vpack.c.bf16 %v2042, %v2039
        %v3953 = vpack.c.bf16 %v2044, %v2044
        %3960 = vrot.lane.b32.xlu0 %v3948, 64
        %v3961 = vpop.permute.xlu0 %3960
        %3962 = vrot.lane.b32.xlu0 %v3949, 64
        %v3963 = vpop.permute.xlu0 %3962
        %3964 = vrot.lane.b32.xlu0 %v3950, 64
        %v3965 = vpop.permute.xlu0 %3964
        %3966 = vrot.lane.b32.xlu0 %v3951, 64
        %v3967 = vpop.permute.xlu0 %3966
        %3968 = vrot.lane.b32.xlu0 %v3952, 64
        %v3969 = vpop.permute.xlu0 %3968
        %3970 = vrot.lane.b32.xlu0 %v3953, 64
        %v3971 = vpop.permute.xlu0 %3970
        %v3978 = vsel %vm2199, %v3942, 0
        %v3981 = vsel %vm2199, %v3943, 0
        %v3984 = vsel %vm2199, %v3944, 0
        %v3987 = vsel %vm2199, %v3945, 0
        %v3990 = vsel %vm2199, %v3946, 0
        %v3993 = vsel %vm2199, %v3947, 0
        %v3996 = vsel %vm2374, %v3971, 0
        %3998 = vmatpush.bf16.msra.mxu0 0
        %3999 = vmatpush.bf16.msra.mxu0 0
        %4000 = vmatpush.bf16.msra.mxu0 %v3996
        %4001 = vmatpush.bf16.msra.mxu0 %v3969
        %4002 = vmatpush.bf16.msra.mxu0 %v3967
        %4003 = vmatpush.bf16.msra.mxu0 %v3965
        %4004 = vmatpush.bf16.msra.mxu0 %v3963
        %4005 = vmatpush.bf16.msra.mxu0 %v3961
        %4006 = vmatmul.bf16.gmra.mxu0 %v3978
        %v4007 = vpop.f32.mrf.mxu0
        %v4008 = vadd.f32 0.0, %v4007
        %v4009 = vpop.f32.mrf.mxu0
        %v4010 = vadd.f32 0.0, %v4009
        %4011 = vmatmul.bf16.gmra.mxu0 %v3981
        %v4012 = vpop.f32.mrf.mxu0
        %v4013 = vadd.f32 0.0, %v4012
        %v4014 = vpop.f32.mrf.mxu0
        %v4015 = vadd.f32 0.0, %v4014
        %4016 = vmatmul.bf16.gmra.mxu0 %v3984
        %v4017 = vpop.f32.mrf.mxu0
        %v4018 = vadd.f32 0.0, %v4017
        %v4019 = vpop.f32.mrf.mxu0
        %v4020 = vadd.f32 0.0, %v4019
        %4021 = vmatmul.bf16.gmra.mxu0 %v3987
        %v4022 = vpop.f32.mrf.mxu0
        %v4023 = vadd.f32 0.0, %v4022
        %v4024 = vpop.f32.mrf.mxu0
        %v4025 = vadd.f32 0.0, %v4024
        %4026 = vmatmul.bf16.gmra.mxu0 %v3990
        %v4027 = vpop.f32.mrf.mxu0
        %v4028 = vadd.f32 0.0, %v4027
        %v4029 = vpop.f32.mrf.mxu0
        %v4030 = vadd.f32 0.0, %v4029
        %4031 = vmatmul.bf16.gmra.mxu0 %v3993
        %v4032 = vpop.f32.mrf.mxu0
        %v4033 = vadd.f32 0.0, %v4032
        %v4034 = vpop.f32.mrf.mxu0
        %4035 = vdwg.mxu0
        %4036 = vrot.lane.b32.xlu0 %v2019, 120
        %v4037 = vpop.permute.xlu0 %4036
        %4038 = vrot.lane.b32.xlu0 %v2022, 120
        %v4039 = vpop.permute.xlu0 %4038
        %4040 = vrot.lane.b32.xlu0 %v2024, 120
        %v4041 = vpop.permute.xlu0 %4040
        %4042 = vrot.lane.b32.xlu0 %v2027, 120
        %v4043 = vpop.permute.xlu0 %4042
        %4044 = vrot.lane.b32.xlu0 %v2029, 120
        %v4045 = vpop.permute.xlu0 %4044
        %4046 = vrot.lane.b32.xlu0 %v2032, 120
        %v4047 = vpop.permute.xlu0 %4046
        %4048 = vrot.lane.b32.xlu0 %v2034, 120
        %v4049 = vpop.permute.xlu0 %4048
        %4050 = vrot.lane.b32.xlu0 %v2037, 120
        %v4051 = vpop.permute.xlu0 %4050
        %4052 = vrot.lane.b32.xlu0 %v2039, 120
        %v4053 = vpop.permute.xlu0 %4052
        %4054 = vrot.lane.b32.xlu0 %v2042, 120
        %v4055 = vpop.permute.xlu0 %4054
        %4056 = vrot.lane.b32.xlu0 %v2044, 120
        %v4057 = vpop.permute.xlu0 %4056
        %4058 = vrot.lane.b32.xlu0 %v2019, 88
        %v4059 = vpop.permute.xlu0 %4058
        %4060 = vrot.lane.b32.xlu0 %v2022, 88
        %v4061 = vpop.permute.xlu0 %4060
        %4062 = vrot.lane.b32.xlu0 %v2024, 88
        %v4063 = vpop.permute.xlu0 %4062
        %4064 = vrot.lane.b32.xlu0 %v2027, 88
        %v4065 = vpop.permute.xlu0 %4064
        %4066 = vrot.lane.b32.xlu0 %v2029, 88
        %v4067 = vpop.permute.xlu0 %4066
        %4068 = vrot.lane.b32.xlu0 %v2032, 88
        %v4069 = vpop.permute.xlu0 %4068
        %4070 = vrot.lane.b32.xlu0 %v2034, 88
        %v4071 = vpop.permute.xlu0 %4070
        %4072 = vrot.lane.b32.xlu0 %v2037, 88
        %v4073 = vpop.permute.xlu0 %4072
        %4074 = vrot.lane.b32.xlu0 %v2039, 88
        %v4075 = vpop.permute.xlu0 %4074
        %4076 = vrot.lane.b32.xlu0 %v2042, 88
        %v4077 = vpop.permute.xlu0 %4076
        %4078 = vrot.lane.b32.xlu0 %v2044, 88
        %v4079 = vpop.permute.xlu0 %4078
        %v4080 = vsel %vm2079, %v4037, 0
        %v4082 = vsel %vm2079, %v4039, 0
        %v4084 = vsel %vm2079, %v4041, 0
        %v4086 = vsel %vm2079, %v4043, 0
        %v4088 = vsel %vm2079, %v4045, 0
        %v4090 = vsel %vm2079, %v4047, 0
        %v4092 = vsel %vm2079, %v4049, 0
        %v4094 = vsel %vm2079, %v4051, 0
        %v4096 = vsel %vm2079, %v4053, 0
        %v4098 = vsel %vm2079, %v4055, 0
        %v4100 = vsel %vm2079, %v4057, 0
        %v4102 = vsel %vm2079, %v4059, 0
        %v4104 = vsel %vm2079, %v4061, 0
        %v4106 = vsel %vm2079, %v4063, 0
        %v4108 = vsel %vm2079, %v4065, 0
        %v4110 = vsel %vm2079, %v4067, 0
        %v4112 = vsel %vm2079, %v4069, 0
        %v4114 = vsel %vm2079, %v4071, 0
        %v4116 = vsel %vm2079, %v4073, 0
        %v4118 = vsel %vm2079, %v4075, 0
        %v4120 = vsel %vm2079, %v4077, 0
        %v4122 = vsel %vm2079, %v4079, 0
        %4124 = vmatpush.xpose.msra.mxu0 0.0
        %4125 = vmatpush.xpose.msra.mxu0 0.0
        %4126 = vmatpush.xpose.msra.mxu0 0.0
        %4127 = vmatpush.xpose.msra.mxu0 0.0
        %4128 = vmatpush.xpose.msra.mxu0 0.0
        %4129 = vmatpush.xpose.msra.mxu0 %v4122
        %4130 = vmatpush.xpose.msra.mxu0 %v4120
        %4131 = vmatpush.xpose.msra.mxu0 %v4118
        %4132 = vmatpush.xpose.msra.mxu0 %v4116
        %4133 = vmatpush.xpose.msra.mxu0 %v4114
        %4134 = vmatpush.xpose.msra.mxu0 %v4112
        %4135 = vmatpush.xpose.msra.mxu0 %v4110
        %4136 = vmatpush.xpose.msra.mxu0 %v4108
        %4137 = vmatpush.xpose.msra.mxu0 %v4106
        %4138 = vmatpush.xpose.msra.mxu0 %v4104
        %4139 = vmatpush.xpose.msra.mxu0 %v4102
        %4140 = vmatmul.f32.gmra.mxu0 %v4080
        %v4141 = vpop.f32.mrf.mxu0
        %v4142 = vadd.f32 0.0, %v4141
        %4143 = vmatmul.f32.gmra.mxu0 %v4082
        %v4144 = vpop.f32.mrf.mxu0
        %v4145 = vadd.f32 0.0, %v4144
        %4146 = vmatmul.f32.gmra.mxu0 %v4084
        %v4147 = vpop.f32.mrf.mxu0
        %v4148 = vadd.f32 0.0, %v4147
        %4149 = vmatmul.f32.gmra.mxu0 %v4086
        %v4150 = vpop.f32.mrf.mxu0
        %v4151 = vadd.f32 0.0, %v4150
        %4152 = vmatmul.f32.gmra.mxu0 %v4088
        %v4153 = vpop.f32.mrf.mxu0
        %v4154 = vadd.f32 0.0, %v4153
        %4155 = vmatmul.f32.gmra.mxu0 %v4090
        %v4156 = vpop.f32.mrf.mxu0
        %v4157 = vadd.f32 0.0, %v4156
        %4158 = vmatmul.f32.gmra.mxu0 %v4092
        %v4159 = vpop.f32.mrf.mxu0
        %v4160 = vadd.f32 0.0, %v4159
        %4161 = vmatmul.f32.gmra.mxu0 %v4094
        %v4162 = vpop.f32.mrf.mxu0
        %v4163 = vadd.f32 0.0, %v4162
        %4164 = vmatmul.f32.gmra.mxu0 %v4096
        %v4165 = vpop.f32.mrf.mxu0
        %v4166 = vadd.f32 0.0, %v4165
        %4167 = vmatmul.f32.gmra.mxu0 %v4098
        %v4168 = vpop.f32.mrf.mxu0
        %v4169 = vadd.f32 0.0, %v4168
        %4170 = vmatmul.f32.gmra.mxu0 %v4100
        %v4171 = vpop.f32.mrf.mxu0
        %v4172 = vadd.f32 0.0, %v4171
        %4173 = vdwg.mxu0
        %v4174 = vmul.f32 %v4142, 0.35355338
        %v4175 = vmul.f32 %v4145, 0.35355338
        %v4176 = vmul.f32 %v4148, 0.35355338
        %v4177 = vmul.f32 %v4151, 0.35355338
        %v4178 = vmul.f32 %v4154, 0.35355338
        %v4179 = vmul.f32 %v4157, 0.35355338
        %v4180 = vmul.f32 %v4160, 0.35355338
        %v4181 = vmul.f32 %v4163, 0.35355338
        %v4182 = vmul.f32 %v4166, 0.35355338
        %v4183 = vmul.f32 %v4169, 0.35355338
        %v4184 = vmul.f32 %v4172, 0.35355338
        %v4185 = vadd.f32 %v4174, %v2186
        %v4186 = vadd.f32 %v4175, %v2186
        %v4187 = vadd.f32 %v4176, %v2186
        %v4188 = vadd.f32 %v4177, %v2186
        %v4189 = vadd.f32 %v4178, %v2186
        %v4190 = vadd.f32 %v4179, %v2186
        %v4191 = vadd.f32 %v4180, %v2186
        %v4192 = vadd.f32 %v4181, %v2186
        %v4193 = vadd.f32 %v4182, %v2186
        %v4194 = vadd.f32 %v4183, %v2186
        %v4195 = vadd.f32 %v4184, %v2186
        %v4196 = vsel %vm2199, %v4185, -inf
        %4197 = vmax.xlane.f32.xlu0 %v4196
        %v4198 = vpop.xlane.xlu0 %4197
        %v4199 = vsel %vm2199, %v4186, -inf
        %4200 = vmax.xlane.f32.xlu0 %v4199
        %v4201 = vpop.xlane.xlu0 %4200
        %v4202 = vsel %vm2199, %v4187, -inf
        %4203 = vmax.xlane.f32.xlu0 %v4202
        %v4204 = vpop.xlane.xlu0 %4203
        %v4205 = vsel %vm2199, %v4188, -inf
        %4206 = vmax.xlane.f32.xlu0 %v4205
        %v4207 = vpop.xlane.xlu0 %4206
        %v4208 = vsel %vm2199, %v4189, -inf
        %4209 = vmax.xlane.f32.xlu0 %v4208
        %v4210 = vpop.xlane.xlu0 %4209
        %v4211 = vsel %vm2199, %v4190, -inf
        %4212 = vmax.xlane.f32.xlu0 %v4211
        %v4213 = vpop.xlane.xlu0 %4212
        %v4214 = vsel %vm2199, %v4191, -inf
        %4215 = vmax.xlane.f32.xlu0 %v4214
        %v4216 = vpop.xlane.xlu0 %4215
        %v4217 = vsel %vm2199, %v4192, -inf
        %4218 = vmax.xlane.f32.xlu0 %v4217
        %v4219 = vpop.xlane.xlu0 %4218
        %v4220 = vsel %vm2199, %v4193, -inf
        %4221 = vmax.xlane.f32.xlu0 %v4220
        %v4222 = vpop.xlane.xlu0 %4221
        %v4223 = vsel %vm2199, %v4194, -inf
        %4224 = vmax.xlane.f32.xlu0 %v4223
        %v4225 = vpop.xlane.xlu0 %4224
        %v4226 = vsel %vm2199, %v4195, -inf
        %4227 = vmax.xlane.f32.xlu0 %v4226
        %v4228 = vpop.xlane.xlu0 %4227
        %v4229 = vsub.f32 %v4185, %v4198
        %v4230 = vsub.f32 %v4186, %v4201
        %v4231 = vsub.f32 %v4187, %v4204
        %v4232 = vsub.f32 %v4188, %v4207
        %v4233 = vsub.f32 %v4189, %v4210
        %v4234 = vsub.f32 %v4190, %v4213
        %v4235 = vsub.f32 %v4191, %v4216
        %v4236 = vsub.f32 %v4192, %v4219
        %v4237 = vsub.f32 %v4193, %v4222
        %v4238 = vsub.f32 %v4194, %v4225
        %v4239 = vsub.f32 %v4195, %v4228
        %v4240 = vmul.f32 %v4229, 1.442695
        %v4241 = vpow.pop %v4240
        %v4242 = vmul.f32 %v4230, 1.442695
        %v4243 = vpow.pop %v4242
        %v4244 = vmul.f32 %v4231, 1.442695
        %v4245 = vpow.pop %v4244
        %v4246 = vmul.f32 %v4232, 1.442695
        %v4247 = vpow.pop %v4246
        %v4248 = vmul.f32 %v4233, 1.442695
        %v4249 = vpow.pop %v4248
        %v4250 = vmul.f32 %v4234, 1.442695
        %v4251 = vpow.pop %v4250
        %v4252 = vmul.f32 %v4235, 1.442695
        %v4253 = vpow.pop %v4252
        %v4254 = vmul.f32 %v4236, 1.442695
        %v4255 = vpow.pop %v4254
        %v4256 = vmul.f32 %v4237, 1.442695
        %v4257 = vpow.pop %v4256
        %v4258 = vmul.f32 %v4238, 1.442695
        %v4259 = vpow.pop %v4258
        %v4260 = vmul.f32 %v4239, 1.442695
        %v4261 = vpow.pop %v4260
        %v4262 = vsel %vm2199, %v4241, 0.0
        %4263 = vadd.xlane.f32.xlu0 %v4262
        %v4264 = vpop.xlane.xlu0 %4263
        %v4265 = vsel %vm2199, %v4243, 0.0
        %4266 = vadd.xlane.f32.xlu0 %v4265
        %v4267 = vpop.xlane.xlu0 %4266
        %v4268 = vsel %vm2199, %v4245, 0.0
        %4269 = vadd.xlane.f32.xlu0 %v4268
        %v4270 = vpop.xlane.xlu0 %4269
        %v4271 = vsel %vm2199, %v4247, 0.0
        %4272 = vadd.xlane.f32.xlu0 %v4271
        %v4273 = vpop.xlane.xlu0 %4272
        %v4274 = vsel %vm2199, %v4249, 0.0
        %4275 = vadd.xlane.f32.xlu0 %v4274
        %v4276 = vpop.xlane.xlu0 %4275
        %v4277 = vsel %vm2199, %v4251, 0.0
        %4278 = vadd.xlane.f32.xlu0 %v4277
        %v4279 = vpop.xlane.xlu0 %4278
        %v4280 = vsel %vm2199, %v4253, 0.0
        %4281 = vadd.xlane.f32.xlu0 %v4280
        %v4282 = vpop.xlane.xlu0 %4281
        %v4283 = vsel %vm2199, %v4255, 0.0
        %4284 = vadd.xlane.f32.xlu0 %v4283
        %v4285 = vpop.xlane.xlu0 %4284
        %v4286 = vsel %vm2199, %v4257, 0.0
        %4287 = vadd.xlane.f32.xlu0 %v4286
        %v4288 = vpop.xlane.xlu0 %4287
        %v4289 = vsel %vm2199, %v4259, 0.0
        %4290 = vadd.xlane.f32.xlu0 %v4289
        %v4291 = vpop.xlane.xlu0 %4290
        %v4292 = vsel %vm2199, %v4261, 0.0
        %4293 = vadd.xlane.f32.xlu0 %v4292
        %v4294 = vpop.xlane.xlu0 %4293
        %v4295 = vrcp.pop %v4264
        %v4296 = vrcp.pop %v4267
        %v4297 = vrcp.pop %v4270
        %v4298 = vrcp.pop %v4273
        %v4299 = vrcp.pop %v4276
        %v4300 = vrcp.pop %v4279
        %v4301 = vrcp.pop %v4282
        %v4302 = vrcp.pop %v4285
        %v4303 = vrcp.pop %v4288
        %v4304 = vrcp.pop %v4291
        %v4305 = vrcp.pop %v4294
        %v4306 = vmul.f32 %v4241, %v4295
        %v4307 = vmul.f32 %v4243, %v4296
        %v4308 = vmul.f32 %v4245, %v4297
        %v4309 = vmul.f32 %v4247, %v4298
        %v4310 = vmul.f32 %v4249, %v4299
        %v4311 = vmul.f32 %v4251, %v4300
        %v4312 = vmul.f32 %v4253, %v4301
        %v4313 = vmul.f32 %v4255, %v4302
        %v4314 = vmul.f32 %v4257, %v4303
        %v4315 = vmul.f32 %v4259, %v4304
        %v4316 = vmul.f32 %v4261, %v4305
        %v4317 = vpack.c.bf16 %v4307, %v4306
        %v4318 = vpack.c.bf16 %v4309, %v4308
        %v4319 = vpack.c.bf16 %v4311, %v4310
        %v4320 = vpack.c.bf16 %v4313, %v4312
        %v4321 = vpack.c.bf16 %v4315, %v4314
        %v4322 = vpack.c.bf16 %v4316, %v4316
        %4323 = vrot.lane.b32.xlu0 %v3948, 56
        %v4324 = vpop.permute.xlu0 %4323
        %4325 = vrot.lane.b32.xlu0 %v3949, 56
        %v4326 = vpop.permute.xlu0 %4325
        %4327 = vrot.lane.b32.xlu0 %v3950, 56
        %v4328 = vpop.permute.xlu0 %4327
        %4329 = vrot.lane.b32.xlu0 %v3951, 56
        %v4330 = vpop.permute.xlu0 %4329
        %4331 = vrot.lane.b32.xlu0 %v3952, 56
        %v4332 = vpop.permute.xlu0 %4331
        %4333 = vrot.lane.b32.xlu0 %v3953, 56
        %v4334 = vpop.permute.xlu0 %4333
        %v4341 = vsel %vm2199, %v4317, 0
        %v4344 = vsel %vm2199, %v4318, 0
        %v4347 = vsel %vm2199, %v4319, 0
        %v4350 = vsel %vm2199, %v4320, 0
        %v4353 = vsel %vm2199, %v4321, 0
        %v4356 = vsel %vm2199, %v4322, 0
        %v4359 = vsel %vm2374, %v4334, 0
        %4361 = vmatpush.bf16.msra.mxu0 0
        %4362 = vmatpush.bf16.msra.mxu0 0
        %4363 = vmatpush.bf16.msra.mxu0 %v4359
        %4364 = vmatpush.bf16.msra.mxu0 %v4332
        %4365 = vmatpush.bf16.msra.mxu0 %v4330
        %4366 = vmatpush.bf16.msra.mxu0 %v4328
        %4367 = vmatpush.bf16.msra.mxu0 %v4326
        %4368 = vmatpush.bf16.msra.mxu0 %v4324
        %4369 = vmatmul.bf16.gmra.mxu0 %v4341
        %v4370 = vpop.f32.mrf.mxu0
        %v4371 = vadd.f32 0.0, %v4370
        %v4372 = vpop.f32.mrf.mxu0
        %v4373 = vadd.f32 0.0, %v4372
        %4374 = vmatmul.bf16.gmra.mxu0 %v4344
        %v4375 = vpop.f32.mrf.mxu0
        %v4376 = vadd.f32 0.0, %v4375
        %v4377 = vpop.f32.mrf.mxu0
        %v4378 = vadd.f32 0.0, %v4377
        %4379 = vmatmul.bf16.gmra.mxu0 %v4347
        %v4380 = vpop.f32.mrf.mxu0
        %v4381 = vadd.f32 0.0, %v4380
        %v4382 = vpop.f32.mrf.mxu0
        %v4383 = vadd.f32 0.0, %v4382
        %4384 = vmatmul.bf16.gmra.mxu0 %v4350
        %v4385 = vpop.f32.mrf.mxu0
        %v4386 = vadd.f32 0.0, %v4385
        %v4387 = vpop.f32.mrf.mxu0
        %v4388 = vadd.f32 0.0, %v4387
        %4389 = vmatmul.bf16.gmra.mxu0 %v4353
        %v4390 = vpop.f32.mrf.mxu0
        %v4391 = vadd.f32 0.0, %v4390
        %v4392 = vpop.f32.mrf.mxu0
        %v4393 = vadd.f32 0.0, %v4392
        %4394 = vmatmul.bf16.gmra.mxu0 %v4356
        %v4395 = vpop.f32.mrf.mxu0
        %v4396 = vadd.f32 0.0, %v4395
        %v4397 = vpop.f32.mrf.mxu0
        %4398 = vdwg.mxu0
        %4399 = vrot.lane.b32.xlu0 %v2019, 112
        %v4400 = vpop.permute.xlu0 %4399
        %4401 = vrot.lane.b32.xlu0 %v2022, 112
        %v4402 = vpop.permute.xlu0 %4401
        %4403 = vrot.lane.b32.xlu0 %v2024, 112
        %v4404 = vpop.permute.xlu0 %4403
        %4405 = vrot.lane.b32.xlu0 %v2027, 112
        %v4406 = vpop.permute.xlu0 %4405
        %4407 = vrot.lane.b32.xlu0 %v2029, 112
        %v4408 = vpop.permute.xlu0 %4407
        %4409 = vrot.lane.b32.xlu0 %v2032, 112
        %v4410 = vpop.permute.xlu0 %4409
        %4411 = vrot.lane.b32.xlu0 %v2034, 112
        %v4412 = vpop.permute.xlu0 %4411
        %4413 = vrot.lane.b32.xlu0 %v2037, 112
        %v4414 = vpop.permute.xlu0 %4413
        %4415 = vrot.lane.b32.xlu0 %v2039, 112
        %v4416 = vpop.permute.xlu0 %4415
        %4417 = vrot.lane.b32.xlu0 %v2042, 112
        %v4418 = vpop.permute.xlu0 %4417
        %4419 = vrot.lane.b32.xlu0 %v2044, 112
        %v4420 = vpop.permute.xlu0 %4419
        %4421 = vrot.lane.b32.xlu0 %v2019, 80
        %v4422 = vpop.permute.xlu0 %4421
        %4423 = vrot.lane.b32.xlu0 %v2022, 80
        %v4424 = vpop.permute.xlu0 %4423
        %4425 = vrot.lane.b32.xlu0 %v2024, 80
        %v4426 = vpop.permute.xlu0 %4425
        %4427 = vrot.lane.b32.xlu0 %v2027, 80
        %v4428 = vpop.permute.xlu0 %4427
        %4429 = vrot.lane.b32.xlu0 %v2029, 80
        %v4430 = vpop.permute.xlu0 %4429
        %4431 = vrot.lane.b32.xlu0 %v2032, 80
        %v4432 = vpop.permute.xlu0 %4431
        %4433 = vrot.lane.b32.xlu0 %v2034, 80
        %v4434 = vpop.permute.xlu0 %4433
        %4435 = vrot.lane.b32.xlu0 %v2037, 80
        %v4436 = vpop.permute.xlu0 %4435
        %4437 = vrot.lane.b32.xlu0 %v2039, 80
        %v4438 = vpop.permute.xlu0 %4437
        %4439 = vrot.lane.b32.xlu0 %v2042, 80
        %v4440 = vpop.permute.xlu0 %4439
        %4441 = vrot.lane.b32.xlu0 %v2044, 80
        %v4442 = vpop.permute.xlu0 %4441
        %v4443 = vsel %vm2079, %v4400, 0
        %v4445 = vsel %vm2079, %v4402, 0
        %v4447 = vsel %vm2079, %v4404, 0
        %v4449 = vsel %vm2079, %v4406, 0
        %v4451 = vsel %vm2079, %v4408, 0
        %v4453 = vsel %vm2079, %v4410, 0
        %v4455 = vsel %vm2079, %v4412, 0
        %v4457 = vsel %vm2079, %v4414, 0
        %v4459 = vsel %vm2079, %v4416, 0
        %v4461 = vsel %vm2079, %v4418, 0
        %v4463 = vsel %vm2079, %v4420, 0
        %v4465 = vsel %vm2079, %v4422, 0
        %v4467 = vsel %vm2079, %v4424, 0
        %v4469 = vsel %vm2079, %v4426, 0
        %v4471 = vsel %vm2079, %v4428, 0
        %v4473 = vsel %vm2079, %v4430, 0
        %v4475 = vsel %vm2079, %v4432, 0
        %v4477 = vsel %vm2079, %v4434, 0
        %v4479 = vsel %vm2079, %v4436, 0
        %v4481 = vsel %vm2079, %v4438, 0
        %v4483 = vsel %vm2079, %v4440, 0
        %v4485 = vsel %vm2079, %v4442, 0
        %4487 = vmatpush.xpose.msra.mxu0 0.0
        %4488 = vmatpush.xpose.msra.mxu0 0.0
        %4489 = vmatpush.xpose.msra.mxu0 0.0
        %4490 = vmatpush.xpose.msra.mxu0 0.0
        %4491 = vmatpush.xpose.msra.mxu0 0.0
        %4492 = vmatpush.xpose.msra.mxu0 %v4485
        %4493 = vmatpush.xpose.msra.mxu0 %v4483
        %4494 = vmatpush.xpose.msra.mxu0 %v4481
        %4495 = vmatpush.xpose.msra.mxu0 %v4479
        %4496 = vmatpush.xpose.msra.mxu0 %v4477
        %4497 = vmatpush.xpose.msra.mxu0 %v4475
        %4498 = vmatpush.xpose.msra.mxu0 %v4473
        %4499 = vmatpush.xpose.msra.mxu0 %v4471
        %4500 = vmatpush.xpose.msra.mxu0 %v4469
        %4501 = vmatpush.xpose.msra.mxu0 %v4467
        %4502 = vmatpush.xpose.msra.mxu0 %v4465
        %4503 = vmatmul.f32.gmra.mxu0 %v4443
        %v4504 = vpop.f32.mrf.mxu0
        %v4505 = vadd.f32 0.0, %v4504
        %4506 = vmatmul.f32.gmra.mxu0 %v4445
        %v4507 = vpop.f32.mrf.mxu0
        %v4508 = vadd.f32 0.0, %v4507
        %4509 = vmatmul.f32.gmra.mxu0 %v4447
        %v4510 = vpop.f32.mrf.mxu0
        %v4511 = vadd.f32 0.0, %v4510
        %4512 = vmatmul.f32.gmra.mxu0 %v4449
        %v4513 = vpop.f32.mrf.mxu0
        %v4514 = vadd.f32 0.0, %v4513
        %4515 = vmatmul.f32.gmra.mxu0 %v4451
        %v4516 = vpop.f32.mrf.mxu0
        %v4517 = vadd.f32 0.0, %v4516
        %4518 = vmatmul.f32.gmra.mxu0 %v4453
        %v4519 = vpop.f32.mrf.mxu0
        %v4520 = vadd.f32 0.0, %v4519
        %4521 = vmatmul.f32.gmra.mxu0 %v4455
        %v4522 = vpop.f32.mrf.mxu0
        %v4523 = vadd.f32 0.0, %v4522
        %4524 = vmatmul.f32.gmra.mxu0 %v4457
        %v4525 = vpop.f32.mrf.mxu0
        %v4526 = vadd.f32 0.0, %v4525
        %4527 = vmatmul.f32.gmra.mxu0 %v4459
        %v4528 = vpop.f32.mrf.mxu0
        %v4529 = vadd.f32 0.0, %v4528
        %4530 = vmatmul.f32.gmra.mxu0 %v4461
        %v4531 = vpop.f32.mrf.mxu0
        %v4532 = vadd.f32 0.0, %v4531
        %4533 = vmatmul.f32.gmra.mxu0 %v4463
        %v4534 = vpop.f32.mrf.mxu0
        %v4535 = vadd.f32 0.0, %v4534
        %4536 = vdwg.mxu0
        %v4537 = vmul.f32 %v4505, 0.35355338
        %v4538 = vmul.f32 %v4508, 0.35355338
        %v4539 = vmul.f32 %v4511, 0.35355338
        %v4540 = vmul.f32 %v4514, 0.35355338
        %v4541 = vmul.f32 %v4517, 0.35355338
        %v4542 = vmul.f32 %v4520, 0.35355338
        %v4543 = vmul.f32 %v4523, 0.35355338
        %v4544 = vmul.f32 %v4526, 0.35355338
        %v4545 = vmul.f32 %v4529, 0.35355338
        %v4546 = vmul.f32 %v4532, 0.35355338
        %v4547 = vmul.f32 %v4535, 0.35355338
        %v4548 = vadd.f32 %v4537, %v2186
        %v4549 = vadd.f32 %v4538, %v2186
        %v4550 = vadd.f32 %v4539, %v2186
        %v4551 = vadd.f32 %v4540, %v2186
        %v4552 = vadd.f32 %v4541, %v2186
        %v4553 = vadd.f32 %v4542, %v2186
        %v4554 = vadd.f32 %v4543, %v2186
        %v4555 = vadd.f32 %v4544, %v2186
        %v4556 = vadd.f32 %v4545, %v2186
        %v4557 = vadd.f32 %v4546, %v2186
        %v4558 = vadd.f32 %v4547, %v2186
        %v4559 = vsel %vm2199, %v4548, -inf
        %4560 = vmax.xlane.f32.xlu0 %v4559
        %v4561 = vpop.xlane.xlu0 %4560
        %v4562 = vsel %vm2199, %v4549, -inf
        %4563 = vmax.xlane.f32.xlu0 %v4562
        %v4564 = vpop.xlane.xlu0 %4563
        %v4565 = vsel %vm2199, %v4550, -inf
        %4566 = vmax.xlane.f32.xlu0 %v4565
        %v4567 = vpop.xlane.xlu0 %4566
        %v4568 = vsel %vm2199, %v4551, -inf
        %4569 = vmax.xlane.f32.xlu0 %v4568
        %v4570 = vpop.xlane.xlu0 %4569
        %v4571 = vsel %vm2199, %v4552, -inf
        %4572 = vmax.xlane.f32.xlu0 %v4571
        %v4573 = vpop.xlane.xlu0 %4572
        %v4574 = vsel %vm2199, %v4553, -inf
        %4575 = vmax.xlane.f32.xlu0 %v4574
        %v4576 = vpop.xlane.xlu0 %4575
        %v4577 = vsel %vm2199, %v4554, -inf
        %4578 = vmax.xlane.f32.xlu0 %v4577
        %v4579 = vpop.xlane.xlu0 %4578
        %v4580 = vsel %vm2199, %v4555, -inf
        %4581 = vmax.xlane.f32.xlu0 %v4580
        %v4582 = vpop.xlane.xlu0 %4581
        %v4583 = vsel %vm2199, %v4556, -inf
        %4584 = vmax.xlane.f32.xlu0 %v4583
        %v4585 = vpop.xlane.xlu0 %4584
        %v4586 = vsel %vm2199, %v4557, -inf
        %4587 = vmax.xlane.f32.xlu0 %v4586
        %v4588 = vpop.xlane.xlu0 %4587
        %v4589 = vsel %vm2199, %v4558, -inf
        %4590 = vmax.xlane.f32.xlu0 %v4589
        %v4591 = vpop.xlane.xlu0 %4590
        %v4592 = vsub.f32 %v4548, %v4561
        %v4593 = vsub.f32 %v4549, %v4564
        %v4594 = vsub.f32 %v4550, %v4567
        %v4595 = vsub.f32 %v4551, %v4570
        %v4596 = vsub.f32 %v4552, %v4573
        %v4597 = vsub.f32 %v4553, %v4576
        %v4598 = vsub.f32 %v4554, %v4579
        %v4599 = vsub.f32 %v4555, %v4582
        %v4600 = vsub.f32 %v4556, %v4585
        %v4601 = vsub.f32 %v4557, %v4588
        %v4602 = vsub.f32 %v4558, %v4591
        %v4603 = vmul.f32 %v4592, 1.442695
        %v4604 = vpow.pop %v4603
        %v4605 = vmul.f32 %v4593, 1.442695
        %v4606 = vpow.pop %v4605
        %v4607 = vmul.f32 %v4594, 1.442695
        %v4608 = vpow.pop %v4607
        %v4609 = vmul.f32 %v4595, 1.442695
        %v4610 = vpow.pop %v4609
        %v4611 = vmul.f32 %v4596, 1.442695
        %v4612 = vpow.pop %v4611
        %v4613 = vmul.f32 %v4597, 1.442695
        %v4614 = vpow.pop %v4613
        %v4615 = vmul.f32 %v4598, 1.442695
        %v4616 = vpow.pop %v4615
        %v4617 = vmul.f32 %v4599, 1.442695
        %v4618 = vpow.pop %v4617
        %v4619 = vmul.f32 %v4600, 1.442695
        %v4620 = vpow.pop %v4619
        %v4621 = vmul.f32 %v4601, 1.442695
        %v4622 = vpow.pop %v4621
        %v4623 = vmul.f32 %v4602, 1.442695
        %v4624 = vpow.pop %v4623
        %v4625 = vsel %vm2199, %v4604, 0.0
        %4626 = vadd.xlane.f32.xlu0 %v4625
        %v4627 = vpop.xlane.xlu0 %4626
        %v4628 = vsel %vm2199, %v4606, 0.0
        %4629 = vadd.xlane.f32.xlu0 %v4628
        %v4630 = vpop.xlane.xlu0 %4629
        %v4631 = vsel %vm2199, %v4608, 0.0
        %4632 = vadd.xlane.f32.xlu0 %v4631
        %v4633 = vpop.xlane.xlu0 %4632
        %v4634 = vsel %vm2199, %v4610, 0.0
        %4635 = vadd.xlane.f32.xlu0 %v4634
        %v4636 = vpop.xlane.xlu0 %4635
        %v4637 = vsel %vm2199, %v4612, 0.0
        %4638 = vadd.xlane.f32.xlu0 %v4637
        %v4639 = vpop.xlane.xlu0 %4638
        %v4640 = vsel %vm2199, %v4614, 0.0
        %4641 = vadd.xlane.f32.xlu0 %v4640
        %v4642 = vpop.xlane.xlu0 %4641
        %v4643 = vsel %vm2199, %v4616, 0.0
        %4644 = vadd.xlane.f32.xlu0 %v4643
        %v4645 = vpop.xlane.xlu0 %4644
        %v4646 = vsel %vm2199, %v4618, 0.0
        %4647 = vadd.xlane.f32.xlu0 %v4646
        %v4648 = vpop.xlane.xlu0 %4647
        %v4649 = vsel %vm2199, %v4620, 0.0
        %4650 = vadd.xlane.f32.xlu0 %v4649
        %v4651 = vpop.xlane.xlu0 %4650
        %v4652 = vsel %vm2199, %v4622, 0.0
        %4653 = vadd.xlane.f32.xlu0 %v4652
        %v4654 = vpop.xlane.xlu0 %4653
        %v4655 = vsel %vm2199, %v4624, 0.0
        %4656 = vadd.xlane.f32.xlu0 %v4655
        %v4657 = vpop.xlane.xlu0 %4656
        %v4658 = vrcp.pop %v4627
        %v4659 = vrcp.pop %v4630
        %v4660 = vrcp.pop %v4633
        %v4661 = vrcp.pop %v4636
        %v4662 = vrcp.pop %v4639
        %v4663 = vrcp.pop %v4642
        %v4664 = vrcp.pop %v4645
        %v4665 = vrcp.pop %v4648
        %v4666 = vrcp.pop %v4651
        %v4667 = vrcp.pop %v4654
        %v4668 = vrcp.pop %v4657
        %v4669 = vmul.f32 %v4604, %v4658
        %v4670 = vmul.f32 %v4606, %v4659
        %v4671 = vmul.f32 %v4608, %v4660
        %v4672 = vmul.f32 %v4610, %v4661
        %v4673 = vmul.f32 %v4612, %v4662
        %v4674 = vmul.f32 %v4614, %v4663
        %v4675 = vmul.f32 %v4616, %v4664
        %v4676 = vmul.f32 %v4618, %v4665
        %v4677 = vmul.f32 %v4620, %v4666
        %v4678 = vmul.f32 %v4622, %v4667
        %v4679 = vmul.f32 %v4624, %v4668
        %v4680 = vpack.c.bf16 %v4670, %v4669
        %v4681 = vpack.c.bf16 %v4672, %v4671
        %v4682 = vpack.c.bf16 %v4674, %v4673
        %v4683 = vpack.c.bf16 %v4676, %v4675
        %v4684 = vpack.c.bf16 %v4678, %v4677
        %v4685 = vpack.c.bf16 %v4679, %v4679
        %4686 = vrot.lane.b32.xlu0 %v3948, 48
        %v4687 = vpop.permute.xlu0 %4686
        %4688 = vrot.lane.b32.xlu0 %v3949, 48
        %v4689 = vpop.permute.xlu0 %4688
        %4690 = vrot.lane.b32.xlu0 %v3950, 48
        %v4691 = vpop.permute.xlu0 %4690
        %4692 = vrot.lane.b32.xlu0 %v3951, 48
        %v4693 = vpop.permute.xlu0 %4692
        %4694 = vrot.lane.b32.xlu0 %v3952, 48
        %v4695 = vpop.permute.xlu0 %4694
        %4696 = vrot.lane.b32.xlu0 %v3953, 48
        %v4697 = vpop.permute.xlu0 %4696
        %v4704 = vsel %vm2199, %v4680, 0
        %v4707 = vsel %vm2199, %v4681, 0
        %v4710 = vsel %vm2199, %v4682, 0
        %v4713 = vsel %vm2199, %v4683, 0
        %v4716 = vsel %vm2199, %v4684, 0
        %v4719 = vsel %vm2199, %v4685, 0
        %v4722 = vsel %vm2374, %v4697, 0
        %4724 = vmatpush.bf16.msra.mxu0 0
        %4725 = vmatpush.bf16.msra.mxu0 0
        %4726 = vmatpush.bf16.msra.mxu0 %v4722
        %4727 = vmatpush.bf16.msra.mxu0 %v4695
        %4728 = vmatpush.bf16.msra.mxu0 %v4693
        %4729 = vmatpush.bf16.msra.mxu0 %v4691
        %4730 = vmatpush.bf16.msra.mxu0 %v4689
        %4731 = vmatpush.bf16.msra.mxu0 %v4687
        %4732 = vmatmul.bf16.gmra.mxu0 %v4704
        %v4733 = vpop.f32.mrf.mxu0
        %v4734 = vadd.f32 0.0, %v4733
        %v4735 = vpop.f32.mrf.mxu0
        %v4736 = vadd.f32 0.0, %v4735
        %4737 = vmatmul.bf16.gmra.mxu0 %v4707
        %v4738 = vpop.f32.mrf.mxu0
        %v4739 = vadd.f32 0.0, %v4738
        %v4740 = vpop.f32.mrf.mxu0
        %v4741 = vadd.f32 0.0, %v4740
        %4742 = vmatmul.bf16.gmra.mxu0 %v4710
        %v4743 = vpop.f32.mrf.mxu0
        %v4744 = vadd.f32 0.0, %v4743
        %v4745 = vpop.f32.mrf.mxu0
        %v4746 = vadd.f32 0.0, %v4745
        %4747 = vmatmul.bf16.gmra.mxu0 %v4713
        %v4748 = vpop.f32.mrf.mxu0
        %v4749 = vadd.f32 0.0, %v4748
        %v4750 = vpop.f32.mrf.mxu0
        %v4751 = vadd.f32 0.0, %v4750
        %4752 = vmatmul.bf16.gmra.mxu0 %v4716
        %v4753 = vpop.f32.mrf.mxu0
        %v4754 = vadd.f32 0.0, %v4753
        %v4755 = vpop.f32.mrf.mxu0
        %v4756 = vadd.f32 0.0, %v4755
        %4757 = vmatmul.bf16.gmra.mxu0 %v4719
        %v4758 = vpop.f32.mrf.mxu0
        %v4759 = vadd.f32 0.0, %v4758
        %v4760 = vpop.f32.mrf.mxu0
        %4761 = vdwg.mxu0
        %4762 = vrot.lane.b32.xlu0 %v2019, 104
        %v4763 = vpop.permute.xlu0 %4762
        %4764 = vrot.lane.b32.xlu0 %v2022, 104
        %v4765 = vpop.permute.xlu0 %4764
        %4766 = vrot.lane.b32.xlu0 %v2024, 104
        %v4767 = vpop.permute.xlu0 %4766
        %4768 = vrot.lane.b32.xlu0 %v2027, 104
        %v4769 = vpop.permute.xlu0 %4768
        %4770 = vrot.lane.b32.xlu0 %v2029, 104
        %v4771 = vpop.permute.xlu0 %4770
        %4772 = vrot.lane.b32.xlu0 %v2032, 104
        %v4773 = vpop.permute.xlu0 %4772
        %4774 = vrot.lane.b32.xlu0 %v2034, 104
        %v4775 = vpop.permute.xlu0 %4774
        %4776 = vrot.lane.b32.xlu0 %v2037, 104
        %v4777 = vpop.permute.xlu0 %4776
        %4778 = vrot.lane.b32.xlu0 %v2039, 104
        %v4779 = vpop.permute.xlu0 %4778
        %4780 = vrot.lane.b32.xlu0 %v2042, 104
        %v4781 = vpop.permute.xlu0 %4780
        %4782 = vrot.lane.b32.xlu0 %v2044, 104
        %v4783 = vpop.permute.xlu0 %4782
        %4784 = vrot.lane.b32.xlu0 %v2019, 72
        %v4785 = vpop.permute.xlu0 %4784
        %4786 = vrot.lane.b32.xlu0 %v2022, 72
        %v4787 = vpop.permute.xlu0 %4786
        %4788 = vrot.lane.b32.xlu0 %v2024, 72
        %v4789 = vpop.permute.xlu0 %4788
        %4790 = vrot.lane.b32.xlu0 %v2027, 72
        %v4791 = vpop.permute.xlu0 %4790
        %4792 = vrot.lane.b32.xlu0 %v2029, 72
        %v4793 = vpop.permute.xlu0 %4792
        %4794 = vrot.lane.b32.xlu0 %v2032, 72
        %v4795 = vpop.permute.xlu0 %4794
        %4796 = vrot.lane.b32.xlu0 %v2034, 72
        %v4797 = vpop.permute.xlu0 %4796
        %4798 = vrot.lane.b32.xlu0 %v2037, 72
        %v4799 = vpop.permute.xlu0 %4798
        %4800 = vrot.lane.b32.xlu0 %v2039, 72
        %v4801 = vpop.permute.xlu0 %4800
        %4802 = vrot.lane.b32.xlu0 %v2042, 72
        %v4803 = vpop.permute.xlu0 %4802
        %4804 = vrot.lane.b32.xlu0 %v2044, 72
        %v4805 = vpop.permute.xlu0 %4804
        %v4806 = vsel %vm2079, %v4763, 0
        %v4808 = vsel %vm2079, %v4765, 0
        %v4810 = vsel %vm2079, %v4767, 0
        %v4812 = vsel %vm2079, %v4769, 0
        %v4814 = vsel %vm2079, %v4771, 0
        %v4816 = vsel %vm2079, %v4773, 0
        %v4818 = vsel %vm2079, %v4775, 0
        %v4820 = vsel %vm2079, %v4777, 0
        %v4822 = vsel %vm2079, %v4779, 0
        %v4824 = vsel %vm2079, %v4781, 0
        %v4826 = vsel %vm2079, %v4783, 0
        %v4828 = vsel %vm2079, %v4785, 0
        %v4830 = vsel %vm2079, %v4787, 0
        %v4832 = vsel %vm2079, %v4789, 0
        %v4834 = vsel %vm2079, %v4791, 0
        %v4836 = vsel %vm2079, %v4793, 0
        %v4838 = vsel %vm2079, %v4795, 0
        %v4840 = vsel %vm2079, %v4797, 0
        %v4842 = vsel %vm2079, %v4799, 0
        %v4844 = vsel %vm2079, %v4801, 0
        %v4846 = vsel %vm2079, %v4803, 0
        %v4848 = vsel %vm2079, %v4805, 0
        %4850 = vmatpush.xpose.msra.mxu0 0.0
        %4851 = vmatpush.xpose.msra.mxu0 0.0
        %4852 = vmatpush.xpose.msra.mxu0 0.0
        %4853 = vmatpush.xpose.msra.mxu0 0.0
        %4854 = vmatpush.xpose.msra.mxu0 0.0
        %4855 = vmatpush.xpose.msra.mxu0 %v4848
        %4856 = vmatpush.xpose.msra.mxu0 %v4846
        %4857 = vmatpush.xpose.msra.mxu0 %v4844
        %4858 = vmatpush.xpose.msra.mxu0 %v4842
        %4859 = vmatpush.xpose.msra.mxu0 %v4840
        %4860 = vmatpush.xpose.msra.mxu0 %v4838
        %4861 = vmatpush.xpose.msra.mxu0 %v4836
        %4862 = vmatpush.xpose.msra.mxu0 %v4834
        %4863 = vmatpush.xpose.msra.mxu0 %v4832
        %4864 = vmatpush.xpose.msra.mxu0 %v4830
        %4865 = vmatpush.xpose.msra.mxu0 %v4828
        %4866 = vmatmul.f32.gmra.mxu0 %v4806
        %v4867 = vpop.f32.mrf.mxu0
        %v4868 = vadd.f32 0.0, %v4867
        %4869 = vmatmul.f32.gmra.mxu0 %v4808
        %v4870 = vpop.f32.mrf.mxu0
        %v4871 = vadd.f32 0.0, %v4870
        %4872 = vmatmul.f32.gmra.mxu0 %v4810
        %v4873 = vpop.f32.mrf.mxu0
        %v4874 = vadd.f32 0.0, %v4873
        %4875 = vmatmul.f32.gmra.mxu0 %v4812
        %v4876 = vpop.f32.mrf.mxu0
        %v4877 = vadd.f32 0.0, %v4876
        %4878 = vmatmul.f32.gmra.mxu0 %v4814
        %v4879 = vpop.f32.mrf.mxu0
        %v4880 = vadd.f32 0.0, %v4879
        %4881 = vmatmul.f32.gmra.mxu0 %v4816
        %v4882 = vpop.f32.mrf.mxu0
        %v4883 = vadd.f32 0.0, %v4882
        %4884 = vmatmul.f32.gmra.mxu0 %v4818
        %v4885 = vpop.f32.mrf.mxu0
        %v4886 = vadd.f32 0.0, %v4885
        %4887 = vmatmul.f32.gmra.mxu0 %v4820
        %v4888 = vpop.f32.mrf.mxu0
        %v4889 = vadd.f32 0.0, %v4888
        %4890 = vmatmul.f32.gmra.mxu0 %v4822
        %v4891 = vpop.f32.mrf.mxu0
        %v4892 = vadd.f32 0.0, %v4891
        %4893 = vmatmul.f32.gmra.mxu0 %v4824
        %v4894 = vpop.f32.mrf.mxu0
        %v4895 = vadd.f32 0.0, %v4894
        %4896 = vmatmul.f32.gmra.mxu0 %v4826
        %v4897 = vpop.f32.mrf.mxu0
        %v4898 = vadd.f32 0.0, %v4897
        %4899 = vdwg.mxu0
        %v4900 = vmul.f32 %v4868, 0.35355338
        %v4901 = vmul.f32 %v4871, 0.35355338
        %v4902 = vmul.f32 %v4874, 0.35355338
        %v4903 = vmul.f32 %v4877, 0.35355338
        %v4904 = vmul.f32 %v4880, 0.35355338
        %v4905 = vmul.f32 %v4883, 0.35355338
        %v4906 = vmul.f32 %v4886, 0.35355338
        %v4907 = vmul.f32 %v4889, 0.35355338
        %v4908 = vmul.f32 %v4892, 0.35355338
        %v4909 = vmul.f32 %v4895, 0.35355338
        %v4910 = vmul.f32 %v4898, 0.35355338
        %v4911 = vadd.f32 %v4900, %v2186
        %v4912 = vadd.f32 %v4901, %v2186
        %v4913 = vadd.f32 %v4902, %v2186
        %v4914 = vadd.f32 %v4903, %v2186
        %v4915 = vadd.f32 %v4904, %v2186
        %v4916 = vadd.f32 %v4905, %v2186
        %v4917 = vadd.f32 %v4906, %v2186
        %v4918 = vadd.f32 %v4907, %v2186
        %v4919 = vadd.f32 %v4908, %v2186
        %v4920 = vadd.f32 %v4909, %v2186
        %v4921 = vadd.f32 %v4910, %v2186
        %v4922 = vsel %vm2199, %v4911, -inf
        %4923 = vmax.xlane.f32.xlu0 %v4922
        %v4924 = vpop.xlane.xlu0 %4923
        %v4925 = vsel %vm2199, %v4912, -inf
        %4926 = vmax.xlane.f32.xlu0 %v4925
        %v4927 = vpop.xlane.xlu0 %4926
        %v4928 = vsel %vm2199, %v4913, -inf
        %4929 = vmax.xlane.f32.xlu0 %v4928
        %v4930 = vpop.xlane.xlu0 %4929
        %v4931 = vsel %vm2199, %v4914, -inf
        %4932 = vmax.xlane.f32.xlu0 %v4931
        %v4933 = vpop.xlane.xlu0 %4932
        %v4934 = vsel %vm2199, %v4915, -inf
        %4935 = vmax.xlane.f32.xlu0 %v4934
        %v4936 = vpop.xlane.xlu0 %4935
        %v4937 = vsel %vm2199, %v4916, -inf
        %4938 = vmax.xlane.f32.xlu0 %v4937
        %v4939 = vpop.xlane.xlu0 %4938
        %v4940 = vsel %vm2199, %v4917, -inf
        %4941 = vmax.xlane.f32.xlu0 %v4940
        %v4942 = vpop.xlane.xlu0 %4941
        %v4943 = vsel %vm2199, %v4918, -inf
        %4944 = vmax.xlane.f32.xlu0 %v4943
        %v4945 = vpop.xlane.xlu0 %4944
        %v4946 = vsel %vm2199, %v4919, -inf
        %4947 = vmax.xlane.f32.xlu0 %v4946
        %v4948 = vpop.xlane.xlu0 %4947
        %v4949 = vsel %vm2199, %v4920, -inf
        %4950 = vmax.xlane.f32.xlu0 %v4949
        %v4951 = vpop.xlane.xlu0 %4950
        %v4952 = vsel %vm2199, %v4921, -inf
        %4953 = vmax.xlane.f32.xlu0 %v4952
        %v4954 = vpop.xlane.xlu0 %4953
        %v4955 = vsub.f32 %v4911, %v4924
        %v4956 = vsub.f32 %v4912, %v4927
        %v4957 = vsub.f32 %v4913, %v4930
        %v4958 = vsub.f32 %v4914, %v4933
        %v4959 = vsub.f32 %v4915, %v4936
        %v4960 = vsub.f32 %v4916, %v4939
        %v4961 = vsub.f32 %v4917, %v4942
        %v4962 = vsub.f32 %v4918, %v4945
        %v4963 = vsub.f32 %v4919, %v4948
        %v4964 = vsub.f32 %v4920, %v4951
        %v4965 = vsub.f32 %v4921, %v4954
        %v4966 = vmul.f32 %v4955, 1.442695
        %v4967 = vpow.pop %v4966
        %v4968 = vmul.f32 %v4956, 1.442695
        %v4969 = vpow.pop %v4968
        %v4970 = vmul.f32 %v4957, 1.442695
        %v4971 = vpow.pop %v4970
        %v4972 = vmul.f32 %v4958, 1.442695
        %v4973 = vpow.pop %v4972
        %v4974 = vmul.f32 %v4959, 1.442695
        %v4975 = vpow.pop %v4974
        %v4976 = vmul.f32 %v4960, 1.442695
        %v4977 = vpow.pop %v4976
        %v4978 = vmul.f32 %v4961, 1.442695
        %v4979 = vpow.pop %v4978
        %v4980 = vmul.f32 %v4962, 1.442695
        %v4981 = vpow.pop %v4980
        %v4982 = vmul.f32 %v4963, 1.442695
        %v4983 = vpow.pop %v4982
        %v4984 = vmul.f32 %v4964, 1.442695
        %v4985 = vpow.pop %v4984
        %v4986 = vmul.f32 %v4965, 1.442695
        %v4987 = vpow.pop %v4986
        %v4988 = vsel %vm2199, %v4967, 0.0
        %4989 = vadd.xlane.f32.xlu0 %v4988
        %v4990 = vpop.xlane.xlu0 %4989
        %v4991 = vsel %vm2199, %v4969, 0.0
        %4992 = vadd.xlane.f32.xlu0 %v4991
        %v4993 = vpop.xlane.xlu0 %4992
        %v4994 = vsel %vm2199, %v4971, 0.0
        %4995 = vadd.xlane.f32.xlu0 %v4994
        %v4996 = vpop.xlane.xlu0 %4995
        %v4997 = vsel %vm2199, %v4973, 0.0
        %4998 = vadd.xlane.f32.xlu0 %v4997
        %v4999 = vpop.xlane.xlu0 %4998
        %v5000 = vsel %vm2199, %v4975, 0.0
        %5001 = vadd.xlane.f32.xlu0 %v5000
        %v5002 = vpop.xlane.xlu0 %5001
        %v5003 = vsel %vm2199, %v4977, 0.0
        %5004 = vadd.xlane.f32.xlu0 %v5003
        %v5005 = vpop.xlane.xlu0 %5004
        %v5006 = vsel %vm2199, %v4979, 0.0
        %5007 = vadd.xlane.f32.xlu0 %v5006
        %v5008 = vpop.xlane.xlu0 %5007
        %v5009 = vsel %vm2199, %v4981, 0.0
        %5010 = vadd.xlane.f32.xlu0 %v5009
        %v5011 = vpop.xlane.xlu0 %5010
        %v5012 = vsel %vm2199, %v4983, 0.0
        %5013 = vadd.xlane.f32.xlu0 %v5012
        %v5014 = vpop.xlane.xlu0 %5013
        %v5015 = vsel %vm2199, %v4985, 0.0
        %5016 = vadd.xlane.f32.xlu0 %v5015
        %v5017 = vpop.xlane.xlu0 %5016
        %v5018 = vsel %vm2199, %v4987, 0.0
        %5019 = vadd.xlane.f32.xlu0 %v5018
        %v5020 = vpop.xlane.xlu0 %5019
        %v5021 = vrcp.pop %v4990
        %v5022 = vrcp.pop %v4993
        %v5023 = vrcp.pop %v4996
        %v5024 = vrcp.pop %v4999
        %v5025 = vrcp.pop %v5002
        %v5026 = vrcp.pop %v5005
        %v5027 = vrcp.pop %v5008
        %v5028 = vrcp.pop %v5011
        %v5029 = vrcp.pop %v5014
        %v5030 = vrcp.pop %v5017
        %v5031 = vrcp.pop %v5020
        %v5032 = vmul.f32 %v4967, %v5021
        %v5033 = vmul.f32 %v4969, %v5022
        %v5034 = vmul.f32 %v4971, %v5023
        %v5035 = vmul.f32 %v4973, %v5024
        %v5036 = vmul.f32 %v4975, %v5025
        %v5037 = vmul.f32 %v4977, %v5026
        %v5038 = vmul.f32 %v4979, %v5027
        %v5039 = vmul.f32 %v4981, %v5028
        %v5040 = vmul.f32 %v4983, %v5029
        %v5041 = vmul.f32 %v4985, %v5030
        %v5042 = vmul.f32 %v4987, %v5031
        %v5043 = vpack.c.bf16 %v5033, %v5032
        %v5044 = vpack.c.bf16 %v5035, %v5034
        %v5045 = vpack.c.bf16 %v5037, %v5036
        %v5046 = vpack.c.bf16 %v5039, %v5038
        %v5047 = vpack.c.bf16 %v5041, %v5040
        %v5048 = vpack.c.bf16 %v5042, %v5042
        %5049 = vrot.lane.b32.xlu0 %v3948, 40
        %v5050 = vpop.permute.xlu0 %5049
        %5051 = vrot.lane.b32.xlu0 %v3949, 40
        %v5052 = vpop.permute.xlu0 %5051
        %5053 = vrot.lane.b32.xlu0 %v3950, 40
        %v5054 = vpop.permute.xlu0 %5053
        %5055 = vrot.lane.b32.xlu0 %v3951, 40
        %v5056 = vpop.permute.xlu0 %5055
        %5057 = vrot.lane.b32.xlu0 %v3952, 40
        %v5058 = vpop.permute.xlu0 %5057
        %5059 = vrot.lane.b32.xlu0 %v3953, 40
        %v5060 = vpop.permute.xlu0 %5059
        %v5067 = vsel %vm2199, %v5043, 0
        %v5070 = vsel %vm2199, %v5044, 0
        %v5073 = vsel %vm2199, %v5045, 0
        %v5076 = vsel %vm2199, %v5046, 0
        %v5079 = vsel %vm2199, %v5047, 0
        %v5082 = vsel %vm2199, %v5048, 0
        %v5085 = vsel %vm2374, %v5060, 0
        %5087 = vmatpush.bf16.msra.mxu0 0
        %5088 = vmatpush.bf16.msra.mxu0 0
        %5089 = vmatpush.bf16.msra.mxu0 %v5085
        %5090 = vmatpush.bf16.msra.mxu0 %v5058
        %5091 = vmatpush.bf16.msra.mxu0 %v5056
        %5092 = vmatpush.bf16.msra.mxu0 %v5054
        %5093 = vmatpush.bf16.msra.mxu0 %v5052
        %5094 = vmatpush.bf16.msra.mxu0 %v5050
        %5095 = vmatmul.bf16.gmra.mxu0 %v5067
        %v5096 = vpop.f32.mrf.mxu0
        %v5097 = vadd.f32 0.0, %v5096
        %v5098 = vpop.f32.mrf.mxu0
        %v5099 = vadd.f32 0.0, %v5098
        %5100 = vmatmul.bf16.gmra.mxu0 %v5070
        %v5101 = vpop.f32.mrf.mxu0
        %v5102 = vadd.f32 0.0, %v5101
        %v5103 = vpop.f32.mrf.mxu0
        %v5104 = vadd.f32 0.0, %v5103
        %5105 = vmatmul.bf16.gmra.mxu0 %v5073
        %v5106 = vpop.f32.mrf.mxu0
        %v5107 = vadd.f32 0.0, %v5106
        %v5108 = vpop.f32.mrf.mxu0
        %v5109 = vadd.f32 0.0, %v5108
        %5110 = vmatmul.bf16.gmra.mxu0 %v5076
        %v5111 = vpop.f32.mrf.mxu0
        %v5112 = vadd.f32 0.0, %v5111
        %v5113 = vpop.f32.mrf.mxu0
        %v5114 = vadd.f32 0.0, %v5113
        %5115 = vmatmul.bf16.gmra.mxu0 %v5079
        %v5116 = vpop.f32.mrf.mxu0
        %v5117 = vadd.f32 0.0, %v5116
        %v5118 = vpop.f32.mrf.mxu0
        %v5119 = vadd.f32 0.0, %v5118
        %5120 = vmatmul.bf16.gmra.mxu0 %v5082
        %v5121 = vpop.f32.mrf.mxu0
        %v5122 = vadd.f32 0.0, %v5121
        %v5123 = vpop.f32.mrf.mxu0
        %5124 = vdwg.mxu0
        %5136 = vrot.lane.b32.xlu0 %v4371, 8
        %v5137 = vpop.permute.xlu0 %5136
        %5138 = vrot.lane.b32.xlu0 %v4373, 8
        %v5139 = vpop.permute.xlu0 %5138
        %5140 = vrot.lane.b32.xlu0 %v4376, 8
        %v5141 = vpop.permute.xlu0 %5140
        %5142 = vrot.lane.b32.xlu0 %v4378, 8
        %v5143 = vpop.permute.xlu0 %5142
        %5144 = vrot.lane.b32.xlu0 %v4381, 8
        %v5145 = vpop.permute.xlu0 %5144
        %5146 = vrot.lane.b32.xlu0 %v4383, 8
        %v5147 = vpop.permute.xlu0 %5146
        %5148 = vrot.lane.b32.xlu0 %v4386, 8
        %v5149 = vpop.permute.xlu0 %5148
        %5150 = vrot.lane.b32.xlu0 %v4388, 8
        %v5151 = vpop.permute.xlu0 %5150
        %5152 = vrot.lane.b32.xlu0 %v4391, 8
        %v5153 = vpop.permute.xlu0 %5152
        %5154 = vrot.lane.b32.xlu0 %v4393, 8
        %v5155 = vpop.permute.xlu0 %5154
        %5156 = vrot.lane.b32.xlu0 %v4396, 8
        %v5157 = vpop.permute.xlu0 %5156
        %5180 = vrot.lane.b32.xlu0 %v4734, 16
        %v5181 = vpop.permute.xlu0 %5180
        %5182 = vrot.lane.b32.xlu0 %v4736, 16
        %v5183 = vpop.permute.xlu0 %5182
        %5184 = vrot.lane.b32.xlu0 %v4739, 16
        %v5185 = vpop.permute.xlu0 %5184
        %5186 = vrot.lane.b32.xlu0 %v4741, 16
        %v5187 = vpop.permute.xlu0 %5186
        %5188 = vrot.lane.b32.xlu0 %v4744, 16
        %v5189 = vpop.permute.xlu0 %5188
        %5190 = vrot.lane.b32.xlu0 %v4746, 16
        %v5191 = vpop.permute.xlu0 %5190
        %5192 = vrot.lane.b32.xlu0 %v4749, 16
        %v5193 = vpop.permute.xlu0 %5192
        %5194 = vrot.lane.b32.xlu0 %v4751, 16
        %v5195 = vpop.permute.xlu0 %5194
        %5196 = vrot.lane.b32.xlu0 %v4754, 16
        %v5197 = vpop.permute.xlu0 %5196
        %5198 = vrot.lane.b32.xlu0 %v4756, 16
        %v5199 = vpop.permute.xlu0 %5198
        %5200 = vrot.lane.b32.xlu0 %v4759, 16
        %v5201 = vpop.permute.xlu0 %5200
        %5224 = vrot.lane.b32.xlu0 %v5097, 24
        %v5225 = vpop.permute.xlu0 %5224
        %5226 = vrot.lane.b32.xlu0 %v5099, 24
        %v5227 = vpop.permute.xlu0 %5226
        %5228 = vrot.lane.b32.xlu0 %v5102, 24
        %v5229 = vpop.permute.xlu0 %5228
        %5230 = vrot.lane.b32.xlu0 %v5104, 24
        %v5231 = vpop.permute.xlu0 %5230
        %5232 = vrot.lane.b32.xlu0 %v5107, 24
        %v5233 = vpop.permute.xlu0 %5232
        %5234 = vrot.lane.b32.xlu0 %v5109, 24
        %v5235 = vpop.permute.xlu0 %5234
        %5236 = vrot.lane.b32.xlu0 %v5112, 24
        %v5237 = vpop.permute.xlu0 %5236
        %5238 = vrot.lane.b32.xlu0 %v5114, 24
        %v5239 = vpop.permute.xlu0 %5238
        %5240 = vrot.lane.b32.xlu0 %v5117, 24
        %v5241 = vpop.permute.xlu0 %5240
        %5242 = vrot.lane.b32.xlu0 %v5119, 24
        %v5243 = vpop.permute.xlu0 %5242
        %5244 = vrot.lane.b32.xlu0 %v5122, 24
        %v5245 = vpop.permute.xlu0 %5244
        %v5257 = vsel %vm2079, %v4008, %v5137
        %v5258 = vsel %vm2079, %v4010, %v5139
        %v5259 = vsel %vm2079, %v4013, %v5141
        %v5260 = vsel %vm2079, %v4015, %v5143
        %v5261 = vsel %vm2079, %v4018, %v5145
        %v5262 = vsel %vm2079, %v4020, %v5147
        %v5263 = vsel %vm2079, %v4023, %v5149
        %v5264 = vsel %vm2079, %v4025, %v5151
        %v5265 = vsel %vm2079, %v4028, %v5153
        %v5266 = vsel %vm2079, %v4030, %v5155
        %v5267 = vsel %vm2079, %v4033, %v5157
        %v5268 = vsel %vm3648, %v5257, %v5181
        %v5269 = vsel %vm3648, %v5258, %v5183
        %v5270 = vsel %vm3648, %v5259, %v5185
        %v5271 = vsel %vm3648, %v5260, %v5187
        %v5272 = vsel %vm3648, %v5261, %v5189
        %v5273 = vsel %vm3648, %v5262, %v5191
        %v5274 = vsel %vm3648, %v5263, %v5193
        %v5275 = vsel %vm3648, %v5264, %v5195
        %v5276 = vsel %vm3648, %v5265, %v5197
        %v5277 = vsel %vm3648, %v5266, %v5199
        %v5278 = vsel %vm3648, %v5267, %v5201
        %v5279 = vsel %vm3660, %v5268, %v5225
        %v5280 = vsel %vm3660, %v5269, %v5227
        %v5281 = vsel %vm3660, %v5270, %v5229
        %v5282 = vsel %vm3660, %v5271, %v5231
        %v5283 = vsel %vm3660, %v5272, %v5233
        %v5284 = vsel %vm3660, %v5273, %v5235
        %v5285 = vsel %vm3660, %v5274, %v5237
        %v5286 = vsel %vm3660, %v5275, %v5239
        %v5287 = vsel %vm3660, %v5276, %v5241
        %v5288 = vsel %vm3660, %v5277, %v5243
        %v5289 = vsel %vm3660, %v5278, %v5245
        %v5290 = vpack.c.bf16 %v3662, %v3661
        %v5291 = vpack.c.bf16 %v3664, %v3663
        %v5292 = vpack.c.bf16 %v3666, %v3665
        %v5293 = vpack.c.bf16 %v3668, %v3667
        %v5294 = vpack.c.bf16 %v3670, %v3669
        %v5295 = vpack.c.bf16 %v5279, %v3671
        %v5296 = vpack.c.bf16 %v5281, %v5280
        %v5297 = vpack.c.bf16 %v5283, %v5282
        %v5298 = vpack.c.bf16 %v5285, %v5284
        %v5299 = vpack.c.bf16 %v5287, %v5286
        %v5300 = vpack.c.bf16 %v5289, %v5288
        %v5301 = vld [vmem:[%s1170] sm:$0xf]
        %v5302 = vld [vmem:[%s1170 + $0x4] sm:$0xf]
        %v5303 = vld [vmem:[%s1170 + $0x8] sm:$0xf]
        %v5304 = vld [vmem:[%s1170 + $0xc] sm:$0xf]
        %v5305 = vld [vmem:[%s1179] sm:$0x1]
        %v5307 = vperm.slane %v5305, 0
        %v5313 = vunpack.c.l.b16 %v5301
        %v5314 = vunpack.c.l.b16 %v5302
        %v5315 = vunpack.c.l.b16 %v5303
        %v5316 = vunpack.c.l.b16 %v5304
        %v5317 = vpack.c.b16 %v5314, %v5313
        %v5318 = vpack.c.b16 %v5316, %v5315
        %v5322 = vsel %vm1948, %v5290, 0
        %v5325 = vsel %vm1948, %v5291, 0
        %v5328 = vsel %vm1948, %v5292, 0
        %v5331 = vsel %vm1948, %v5293, 0
        %v5334 = vsel %vm1948, %v5294, 0
        %v5337 = vsel %vm1948, %v5295, 0
        %v5340 = vsel %vm1948, %v5296, 0
        %v5343 = vsel %vm1948, %v5297, 0
        %v5346 = vsel %vm1948, %v5298, 0
        %v5349 = vsel %vm1948, %v5299, 0
        %v5352 = vsel %vm1948, %v5300, 0
        %5354 = vmatpush.bf16.msra.mxu0 0
        %5355 = vmatpush.bf16.msra.mxu0 0
        %5356 = vmatpush.bf16.msra.mxu0 0
        %5357 = vmatpush.bf16.msra.mxu0 0
        %5358 = vmatpush.bf16.msra.mxu0 0
        %5359 = vmatpush.bf16.msra.mxu0 0
        %5360 = vmatpush.bf16.msra.mxu0 %v5318
        %5361 = vmatpush.bf16.msra.mxu0 %v5317
        %5362 = vmatmul.bf16.gmra.mxu0 %v5322
        %v5363 = vpop.f32.mrf.mxu0
        %v5364 = vadd.f32 %v5307, %v5363
        %v5365 = vpop.f32.mrf.mxu0
        %v5366 = vadd.f32 %v5307, %v5365
        %5367 = vmatmul.bf16.gmra.mxu0 %v5325
        %v5368 = vpop.f32.mrf.mxu0
        %v5369 = vadd.f32 %v5307, %v5368
        %v5370 = vpop.f32.mrf.mxu0
        %v5371 = vadd.f32 %v5307, %v5370
        %5372 = vmatmul.bf16.gmra.mxu0 %v5328
        %v5373 = vpop.f32.mrf.mxu0
        %v5374 = vadd.f32 %v5307, %v5373
        %v5375 = vpop.f32.mrf.mxu0
        %v5376 = vadd.f32 %v5307, %v5375
        %5377 = vmatmul.bf16.gmra.mxu0 %v5331
        %v5378 = vpop.f32.mrf.mxu0
        %v5379 = vadd.f32 %v5307, %v5378
        %v5380 = vpop.f32.mrf.mxu0
        %v5381 = vadd.f32 %v5307, %v5380
        %5382 = vmatmul.bf16.gmra.mxu0 %v5334
        %v5383 = vpop.f32.mrf.mxu0
        %v5384 = vadd.f32 %v5307, %v5383
        %v5385 = vpop.f32.mrf.mxu0
        %v5386 = vadd.f32 %v5307, %v5385
        %5387 = vmatmul.bf16.gmra.mxu0 %v5337
        %v5388 = vpop.f32.mrf.mxu0
        %v5389 = vadd.f32 %v5307, %v5388
        %v5390 = vpop.f32.mrf.mxu0
        %v5391 = vadd.f32 %v5307, %v5390
        %5392 = vmatmul.bf16.gmra.mxu0 %v5340
        %v5393 = vpop.f32.mrf.mxu0
        %v5394 = vadd.f32 %v5307, %v5393
        %v5395 = vpop.f32.mrf.mxu0
        %v5396 = vadd.f32 %v5307, %v5395
        %5397 = vmatmul.bf16.gmra.mxu0 %v5343
        %v5398 = vpop.f32.mrf.mxu0
        %v5399 = vadd.f32 %v5307, %v5398
        %v5400 = vpop.f32.mrf.mxu0
        %v5401 = vadd.f32 %v5307, %v5400
        %5402 = vmatmul.bf16.gmra.mxu0 %v5346
        %v5403 = vpop.f32.mrf.mxu0
        %v5404 = vadd.f32 %v5307, %v5403
        %v5405 = vpop.f32.mrf.mxu0
        %v5406 = vadd.f32 %v5307, %v5405
        %5407 = vmatmul.bf16.gmra.mxu0 %v5349
        %v5408 = vpop.f32.mrf.mxu0
        %v5409 = vadd.f32 %v5307, %v5408
        %v5410 = vpop.f32.mrf.mxu0
        %v5411 = vadd.f32 %v5307, %v5410
        %5412 = vmatmul.bf16.gmra.mxu0 %v5352
        %v5413 = vpop.f32.mrf.mxu0
        %v5414 = vadd.f32 %v5307, %v5413
        %v5415 = vpop.f32.mrf.mxu0
        %v5416 = vadd.f32 %v5307, %v5415
        %5417 = vdwg.mxu0
        %v5418 = vadd.f32 %v1894, %v5364
        %v5419 = vadd.f32 %v1895, %v5366
        %v5420 = vadd.f32 %v1896, %v5369
        %v5421 = vadd.f32 %v1897, %v5371
        %v5422 = vadd.f32 %v1898, %v5374
        %v5423 = vadd.f32 %v1899, %v5376
        %v5424 = vadd.f32 %v1900, %v5379
        %v5425 = vadd.f32 %v1901, %v5381
        %v5426 = vadd.f32 %v1902, %v5384
        %v5427 = vadd.f32 %v1903, %v5386
        %v5428 = vadd.f32 %v1904, %v5389
        %v5429 = vadd.f32 %v1905, %v5391
        %v5430 = vadd.f32 %v1906, %v5394
        %v5431 = vadd.f32 %v1907, %v5396
        %v5432 = vadd.f32 %v1908, %v5399
        %v5433 = vadd.f32 %v1909, %v5401
        %v5434 = vadd.f32 %v1910, %v5404
        %v5435 = vadd.f32 %v1911, %v5406
        %v5436 = vadd.f32 %v1912, %v5409
        %v5437 = vadd.f32 %v1913, %v5411
        %v5438 = vadd.f32 %v1914, %v5414
        %v5439 = vadd.f32 %v1915, %v5416
        %v5440 = vld [vmem:[%s1188] sm:$0x1]
        %v5441 = vld [vmem:[%s1197] sm:$0x1]
        %v5442 = vsel %vm1948, %v5418, 0.0
        %5443 = vadd.xlane.f32.xlu0 %v5442
        %v5444 = vpop.xlane.xlu0 %5443
        %v5445 = vsel %vm1948, %v5419, 0.0
        %5446 = vadd.xlane.f32.xlu0 %v5445
        %v5447 = vpop.xlane.xlu0 %5446
        %v5448 = vsel %vm1948, %v5420, 0.0
        %5449 = vadd.xlane.f32.xlu0 %v5448
        %v5450 = vpop.xlane.xlu0 %5449
        %v5451 = vsel %vm1948, %v5421, 0.0
        %5452 = vadd.xlane.f32.xlu0 %v5451
        %v5453 = vpop.xlane.xlu0 %5452
        %v5454 = vsel %vm1948, %v5422, 0.0
        %5455 = vadd.xlane.f32.xlu0 %v5454
        %v5456 = vpop.xlane.xlu0 %5455
        %v5457 = vsel %vm1948, %v5423, 0.0
        %5458 = vadd.xlane.f32.xlu0 %v5457
        %v5459 = vpop.xlane.xlu0 %5458
        %v5460 = vsel %vm1948, %v5424, 0.0
        %5461 = vadd.xlane.f32.xlu0 %v5460
        %v5462 = vpop.xlane.xlu0 %5461
        %v5463 = vsel %vm1948, %v5425, 0.0
        %5464 = vadd.xlane.f32.xlu0 %v5463
        %v5465 = vpop.xlane.xlu0 %5464
        %v5466 = vsel %vm1948, %v5426, 0.0
        %5467 = vadd.xlane.f32.xlu0 %v5466
        %v5468 = vpop.xlane.xlu0 %5467
        %v5469 = vsel %vm1948, %v5427, 0.0
        %5470 = vadd.xlane.f32.xlu0 %v5469
        %v5471 = vpop.xlane.xlu0 %5470
        %v5472 = vsel %vm1948, %v5428, 0.0
        %5473 = vadd.xlane.f32.xlu0 %v5472
        %v5474 = vpop.xlane.xlu0 %5473
        %v5475 = vsel %vm1948, %v5429, 0.0
        %5476 = vadd.xlane.f32.xlu0 %v5475
        %v5477 = vpop.xlane.xlu0 %5476
        %v5478 = vsel %vm1948, %v5430, 0.0
        %5479 = vadd.xlane.f32.xlu0 %v5478
        %v5480 = vpop.xlane.xlu0 %5479
        %v5481 = vsel %vm1948, %v5431, 0.0
        %5482 = vadd.xlane.f32.xlu0 %v5481
        %v5483 = vpop.xlane.xlu0 %5482
        %v5484 = vsel %vm1948, %v5432, 0.0
        %5485 = vadd.xlane.f32.xlu0 %v5484
        %v5486 = vpop.xlane.xlu0 %5485
        %v5487 = vsel %vm1948, %v5433, 0.0
        %5488 = vadd.xlane.f32.xlu0 %v5487
        %v5489 = vpop.xlane.xlu0 %5488
        %v5490 = vsel %vm1948, %v5434, 0.0
        %5491 = vadd.xlane.f32.xlu0 %v5490
        %v5492 = vpop.xlane.xlu0 %5491
        %v5493 = vsel %vm1948, %v5435, 0.0
        %5494 = vadd.xlane.f32.xlu0 %v5493
        %v5495 = vpop.xlane.xlu0 %5494
        %v5496 = vsel %vm1948, %v5436, 0.0
        %5497 = vadd.xlane.f32.xlu0 %v5496
        %v5498 = vpop.xlane.xlu0 %5497
        %v5499 = vsel %vm1948, %v5437, 0.0
        %5500 = vadd.xlane.f32.xlu0 %v5499
        %v5501 = vpop.xlane.xlu0 %5500
        %v5502 = vsel %vm1948, %v5438, 0.0
        %5503 = vadd.xlane.f32.xlu0 %v5502
        %v5504 = vpop.xlane.xlu0 %5503
        %v5505 = vsel %vm1948, %v5439, 0.0
        %5506 = vadd.xlane.f32.xlu0 %v5505
        %v5507 = vpop.xlane.xlu0 %5506
        %v5508 = vrcp.pop 32.0
        %v5509 = vmul.f32 32.0, %v5508
        %v5510 = vsub.f32 1.0, %v5509
        %v5511 = vmul.f32 %v5508, %v5510
        %v5512 = vadd.f32 %v5508, %v5511
        %vm5513 = vweird.f32 %v5508
        %v5514 = vsel %vm5513, %v5508, %v5512
        %v5515 = vmul.f32 %v5444, %v5514
        %v5516 = vmul.f32 %v5447, %v5514
        %v5517 = vmul.f32 %v5450, %v5514
        %v5518 = vmul.f32 %v5453, %v5514
        %v5519 = vmul.f32 %v5456, %v5514
        %v5520 = vmul.f32 %v5459, %v5514
        %v5521 = vmul.f32 %v5462, %v5514
        %v5522 = vmul.f32 %v5465, %v5514
        %v5523 = vmul.f32 %v5468, %v5514
        %v5524 = vmul.f32 %v5471, %v5514
        %v5525 = vmul.f32 %v5474, %v5514
        %v5526 = vmul.f32 %v5477, %v5514
        %v5527 = vmul.f32 %v5480, %v5514
        %v5528 = vmul.f32 %v5483, %v5514
        %v5529 = vmul.f32 %v5486, %v5514
        %v5530 = vmul.f32 %v5489, %v5514
        %v5531 = vmul.f32 %v5492, %v5514
        %v5532 = vmul.f32 %v5495, %v5514
        %v5533 = vmul.f32 %v5498, %v5514
        %v5534 = vmul.f32 %v5501, %v5514
        %v5535 = vmul.f32 %v5504, %v5514
        %v5536 = vmul.f32 %v5507, %v5514
        %v5537 = vsub.f32 %v5418, %v5515
        %v5538 = vsub.f32 %v5419, %v5516
        %v5539 = vsub.f32 %v5420, %v5517
        %v5540 = vsub.f32 %v5421, %v5518
        %v5541 = vsub.f32 %v5422, %v5519
        %v5542 = vsub.f32 %v5423, %v5520
        %v5543 = vsub.f32 %v5424, %v5521
        %v5544 = vsub.f32 %v5425, %v5522
        %v5545 = vsub.f32 %v5426, %v5523
        %v5546 = vsub.f32 %v5427, %v5524
        %v5547 = vsub.f32 %v5428, %v5525
        %v5548 = vsub.f32 %v5429, %v5526
        %v5549 = vsub.f32 %v5430, %v5527
        %v5550 = vsub.f32 %v5431, %v5528
        %v5551 = vsub.f32 %v5432, %v5529
        %v5552 = vsub.f32 %v5433, %v5530
        %v5553 = vsub.f32 %v5434, %v5531
        %v5554 = vsub.f32 %v5435, %v5532
        %v5555 = vsub.f32 %v5436, %v5533
        %v5556 = vsub.f32 %v5437, %v5534
        %v5557 = vsub.f32 %v5438, %v5535
        %v5558 = vsub.f32 %v5439, %v5536
        %v5559 = vmul.f32 %v5537, %v5537
        %v5560 = vmul.f32 %v5538, %v5538
        %v5561 = vmul.f32 %v5539, %v5539
        %v5562 = vmul.f32 %v5540, %v5540
        %v5563 = vmul.f32 %v5541, %v5541
        %v5564 = vmul.f32 %v5542, %v5542
        %v5565 = vmul.f32 %v5543, %v5543
        %v5566 = vmul.f32 %v5544, %v5544
        %v5567 = vmul.f32 %v5545, %v5545
        %v5568 = vmul.f32 %v5546, %v5546
        %v5569 = vmul.f32 %v5547, %v5547
        %v5570 = vmul.f32 %v5548, %v5548
        %v5571 = vmul.f32 %v5549, %v5549
        %v5572 = vmul.f32 %v5550, %v5550
        %v5573 = vmul.f32 %v5551, %v5551
        %v5574 = vmul.f32 %v5552, %v5552
        %v5575 = vmul.f32 %v5553, %v5553
        %v5576 = vmul.f32 %v5554, %v5554
        %v5577 = vmul.f32 %v5555, %v5555
        %v5578 = vmul.f32 %v5556, %v5556
        %v5579 = vmul.f32 %v5557, %v5557
        %v5580 = vmul.f32 %v5558, %v5558
        %v5581 = vsel %vm1948, %v5559, 0.0
        %5582 = vadd.xlane.f32.xlu0 %v5581
        %v5583 = vpop.xlane.xlu0 %5582
        %v5584 = vsel %vm1948, %v5560, 0.0
        %5585 = vadd.xlane.f32.xlu0 %v5584
        %v5586 = vpop.xlane.xlu0 %5585
        %v5587 = vsel %vm1948, %v5561, 0.0
        %5588 = vadd.xlane.f32.xlu0 %v5587
        %v5589 = vpop.xlane.xlu0 %5588
        %v5590 = vsel %vm1948, %v5562, 0.0
        %5591 = vadd.xlane.f32.xlu0 %v5590
        %v5592 = vpop.xlane.xlu0 %5591
        %v5593 = vsel %vm1948, %v5563, 0.0
        %5594 = vadd.xlane.f32.xlu0 %v5593
        %v5595 = vpop.xlane.xlu0 %5594
        %v5596 = vsel %vm1948, %v5564, 0.0
        %5597 = vadd.xlane.f32.xlu0 %v5596
        %v5598 = vpop.xlane.xlu0 %5597
        %v5599 = vsel %vm1948, %v5565, 0.0
        %5600 = vadd.xlane.f32.xlu0 %v5599
        %v5601 = vpop.xlane.xlu0 %5600
        %v5602 = vsel %vm1948, %v5566, 0.0
        %5603 = vadd.xlane.f32.xlu0 %v5602
        %v5604 = vpop.xlane.xlu0 %5603
        %v5605 = vsel %vm1948, %v5567, 0.0
        %5606 = vadd.xlane.f32.xlu0 %v5605
        %v5607 = vpop.xlane.xlu0 %5606
        %v5608 = vsel %vm1948, %v5568, 0.0
        %5609 = vadd.xlane.f32.xlu0 %v5608
        %v5610 = vpop.xlane.xlu0 %5609
        %v5611 = vsel %vm1948, %v5569, 0.0
        %5612 = vadd.xlane.f32.xlu0 %v5611
        %v5613 = vpop.xlane.xlu0 %5612
        %v5614 = vsel %vm1948, %v5570, 0.0
        %5615 = vadd.xlane.f32.xlu0 %v5614
        %v5616 = vpop.xlane.xlu0 %5615
        %v5617 = vsel %vm1948, %v5571, 0.0
        %5618 = vadd.xlane.f32.xlu0 %v5617
        %v5619 = vpop.xlane.xlu0 %5618
        %v5620 = vsel %vm1948, %v5572, 0.0
        %5621 = vadd.xlane.f32.xlu0 %v5620
        %v5622 = vpop.xlane.xlu0 %5621
        %v5623 = vsel %vm1948, %v5573, 0.0
        %5624 = vadd.xlane.f32.xlu0 %v5623
        %v5625 = vpop.xlane.xlu0 %5624
        %v5626 = vsel %vm1948, %v5574, 0.0
        %5627 = vadd.xlane.f32.xlu0 %v5626
        %v5628 = vpop.xlane.xlu0 %5627
        %v5629 = vsel %vm1948, %v5575, 0.0
        %5630 = vadd.xlane.f32.xlu0 %v5629
        %v5631 = vpop.xlane.xlu0 %5630
        %v5632 = vsel %vm1948, %v5576, 0.0
        %5633 = vadd.xlane.f32.xlu0 %v5632
        %v5634 = vpop.xlane.xlu0 %5633
        %v5635 = vsel %vm1948, %v5577, 0.0
        %5636 = vadd.xlane.f32.xlu0 %v5635
        %v5637 = vpop.xlane.xlu0 %5636
        %v5638 = vsel %vm1948, %v5578, 0.0
        %5639 = vadd.xlane.f32.xlu0 %v5638
        %v5640 = vpop.xlane.xlu0 %5639
        %v5641 = vsel %vm1948, %v5579, 0.0
        %5642 = vadd.xlane.f32.xlu0 %v5641
        %v5643 = vpop.xlane.xlu0 %5642
        %v5644 = vsel %vm1948, %v5580, 0.0
        %5645 = vadd.xlane.f32.xlu0 %v5644
        %v5646 = vpop.xlane.xlu0 %5645
        %v5647 = vmul.f32 %v5583, %v5514
        %v5648 = vmul.f32 %v5586, %v5514
        %v5649 = vmul.f32 %v5589, %v5514
        %v5650 = vmul.f32 %v5592, %v5514
        %v5651 = vmul.f32 %v5595, %v5514
        %v5652 = vmul.f32 %v5598, %v5514
        %v5653 = vmul.f32 %v5601, %v5514
        %v5654 = vmul.f32 %v5604, %v5514
        %v5655 = vmul.f32 %v5607, %v5514
        %v5656 = vmul.f32 %v5610, %v5514
        %v5657 = vmul.f32 %v5613, %v5514
        %v5658 = vmul.f32 %v5616, %v5514
        %v5659 = vmul.f32 %v5619, %v5514
        %v5660 = vmul.f32 %v5622, %v5514
        %v5661 = vmul.f32 %v5625, %v5514
        %v5662 = vmul.f32 %v5628, %v5514
        %v5663 = vmul.f32 %v5631, %v5514
        %v5664 = vmul.f32 %v5634, %v5514
        %v5665 = vmul.f32 %v5637, %v5514
        %v5666 = vmul.f32 %v5640, %v5514
        %v5667 = vmul.f32 %v5643, %v5514
        %v5668 = vmul.f32 %v5646, %v5514
        %v5669 = vadd.f32 %v5647, 1e-05
        %v5670 = vadd.f32 %v5648, 1e-05
        %v5671 = vadd.f32 %v5649, 1e-05
        %v5672 = vadd.f32 %v5650, 1e-05
        %v5673 = vadd.f32 %v5651, 1e-05
        %v5674 = vadd.f32 %v5652, 1e-05
        %v5675 = vadd.f32 %v5653, 1e-05
        %v5676 = vadd.f32 %v5654, 1e-05
        %v5677 = vadd.f32 %v5655, 1e-05
        %v5678 = vadd.f32 %v5656, 1e-05
        %v5679 = vadd.f32 %v5657, 1e-05
        %v5680 = vadd.f32 %v5658, 1e-05
        %v5681 = vadd.f32 %v5659, 1e-05
        %v5682 = vadd.f32 %v5660, 1e-05
        %v5683 = vadd.f32 %v5661, 1e-05
        %v5684 = vadd.f32 %v5662, 1e-05
        %v5685 = vadd.f32 %v5663, 1e-05
        %v5686 = vadd.f32 %v5664, 1e-05
        %v5687 = vadd.f32 %v5665, 1e-05
        %v5688 = vadd.f32 %v5666, 1e-05
        %v5689 = vadd.f32 %v5667, 1e-05
        %v5690 = vadd.f32 %v5668, 1e-05
        %v5691 = vrsqrt.pop %v5669
        %v5692 = vmul.f32 %v5691, %v5669
        %v5693 = vmul.f32 %v5692, %v5691
        %v5694 = vmul.f32 0.5, %v5693
        %v5695 = vsub.f32 1.5, %v5694
        %v5696 = vmul.f32 %v5691, %v5695
        %vm5697 = vweird.f32 %v5669
        %vm5698 = vweird.f32 %v5691
        %vm5699 = vmor %vm5697, %vm5698
        %v5700 = vsel %vm5699, %v5691, %v5696
        %v5701 = vrsqrt.pop %v5670
        %v5702 = vmul.f32 %v5701, %v5670
        %v5703 = vmul.f32 %v5702, %v5701
        %v5704 = vmul.f32 0.5, %v5703
        %v5705 = vsub.f32 1.5, %v5704
        %v5706 = vmul.f32 %v5701, %v5705
        %vm5707 = vweird.f32 %v5670
        %vm5708 = vweird.f32 %v5701
        %vm5709 = vmor %vm5707, %vm5708
        %v5710 = vsel %vm5709, %v5701, %v5706
        %v5711 = vrsqrt.pop %v5671
        %v5712 = vmul.f32 %v5711, %v5671
        %v5713 = vmul.f32 %v5712, %v5711
        %v5714 = vmul.f32 0.5, %v5713
        %v5715 = vsub.f32 1.5, %v5714
        %v5716 = vmul.f32 %v5711, %v5715
        %vm5717 = vweird.f32 %v5671
        %vm5718 = vweird.f32 %v5711
        %vm5719 = vmor %vm5717, %vm5718
        %v5720 = vsel %vm5719, %v5711, %v5716
        %v5721 = vrsqrt.pop %v5672
        %v5722 = vmul.f32 %v5721, %v5672
        %v5723 = vmul.f32 %v5722, %v5721
        %v5724 = vmul.f32 0.5, %v5723
        %v5725 = vsub.f32 1.5, %v5724
        %v5726 = vmul.f32 %v5721, %v5725
        %vm5727 = vweird.f32 %v5672
        %vm5728 = vweird.f32 %v5721
        %vm5729 = vmor %vm5727, %vm5728
        %v5730 = vsel %vm5729, %v5721, %v5726
        %v5731 = vrsqrt.pop %v5673
        %v5732 = vmul.f32 %v5731, %v5673
        %v5733 = vmul.f32 %v5732, %v5731
        %v5734 = vmul.f32 0.5, %v5733
        %v5735 = vsub.f32 1.5, %v5734
        %v5736 = vmul.f32 %v5731, %v5735
        %vm5737 = vweird.f32 %v5673
        %vm5738 = vweird.f32 %v5731
        %vm5739 = vmor %vm5737, %vm5738
        %v5740 = vsel %vm5739, %v5731, %v5736
        %v5741 = vrsqrt.pop %v5674
        %v5742 = vmul.f32 %v5741, %v5674
        %v5743 = vmul.f32 %v5742, %v5741
        %v5744 = vmul.f32 0.5, %v5743
        %v5745 = vsub.f32 1.5, %v5744
        %v5746 = vmul.f32 %v5741, %v5745
        %vm5747 = vweird.f32 %v5674
        %vm5748 = vweird.f32 %v5741
        %vm5749 = vmor %vm5747, %vm5748
        %v5750 = vsel %vm5749, %v5741, %v5746
        %v5751 = vrsqrt.pop %v5675
        %v5752 = vmul.f32 %v5751, %v5675
        %v5753 = vmul.f32 %v5752, %v5751
        %v5754 = vmul.f32 0.5, %v5753
        %v5755 = vsub.f32 1.5, %v5754
        %v5756 = vmul.f32 %v5751, %v5755
        %vm5757 = vweird.f32 %v5675
        %vm5758 = vweird.f32 %v5751
        %vm5759 = vmor %vm5757, %vm5758
        %v5760 = vsel %vm5759, %v5751, %v5756
        %v5761 = vrsqrt.pop %v5676
        %v5762 = vmul.f32 %v5761, %v5676
        %v5763 = vmul.f32 %v5762, %v5761
        %v5764 = vmul.f32 0.5, %v5763
        %v5765 = vsub.f32 1.5, %v5764
        %v5766 = vmul.f32 %v5761, %v5765
        %vm5767 = vweird.f32 %v5676
        %vm5768 = vweird.f32 %v5761
        %vm5769 = vmor %vm5767, %vm5768
        %v5770 = vsel %vm5769, %v5761, %v5766
        %v5771 = vrsqrt.pop %v5677
        %v5772 = vmul.f32 %v5771, %v5677
        %v5773 = vmul.f32 %v5772, %v5771
        %v5774 = vmul.f32 0.5, %v5773
        %v5775 = vsub.f32 1.5, %v5774
        %v5776 = vmul.f32 %v5771, %v5775
        %vm5777 = vweird.f32 %v5677
        %vm5778 = vweird.f32 %v5771
        %vm5779 = vmor %vm5777, %vm5778
        %v5780 = vsel %vm5779, %v5771, %v5776
        %v5781 = vrsqrt.pop %v5678
        %v5782 = vmul.f32 %v5781, %v5678
        %v5783 = vmul.f32 %v5782, %v5781
        %v5784 = vmul.f32 0.5, %v5783
        %v5785 = vsub.f32 1.5, %v5784
        %v5786 = vmul.f32 %v5781, %v5785
        %vm5787 = vweird.f32 %v5678
        %vm5788 = vweird.f32 %v5781
        %vm5789 = vmor %vm5787, %vm5788
        %v5790 = vsel %vm5789, %v5781, %v5786
        %v5791 = vrsqrt.pop %v5679
        %v5792 = vmul.f32 %v5791, %v5679
        %v5793 = vmul.f32 %v5792, %v5791
        %v5794 = vmul.f32 0.5, %v5793
        %v5795 = vsub.f32 1.5, %v5794
        %v5796 = vmul.f32 %v5791, %v5795
        %vm5797 = vweird.f32 %v5679
        %vm5798 = vweird.f32 %v5791
        %vm5799 = vmor %vm5797, %vm5798
        %v5800 = vsel %vm5799, %v5791, %v5796
        %v5801 = vrsqrt.pop %v5680
        %v5802 = vmul.f32 %v5801, %v5680
        %v5803 = vmul.f32 %v5802, %v5801
        %v5804 = vmul.f32 0.5, %v5803
        %v5805 = vsub.f32 1.5, %v5804
        %v5806 = vmul.f32 %v5801, %v5805
        %vm5807 = vweird.f32 %v5680
        %vm5808 = vweird.f32 %v5801
        %vm5809 = vmor %vm5807, %vm5808
        %v5810 = vsel %vm5809, %v5801, %v5806
        %v5811 = vrsqrt.pop %v5681
        %v5812 = vmul.f32 %v5811, %v5681
        %v5813 = vmul.f32 %v5812, %v5811
        %v5814 = vmul.f32 0.5, %v5813
        %v5815 = vsub.f32 1.5, %v5814
        %v5816 = vmul.f32 %v5811, %v5815
        %vm5817 = vweird.f32 %v5681
        %vm5818 = vweird.f32 %v5811
        %vm5819 = vmor %vm5817, %vm5818
        %v5820 = vsel %vm5819, %v5811, %v5816
        %v5821 = vrsqrt.pop %v5682
        %v5822 = vmul.f32 %v5821, %v5682
        %v5823 = vmul.f32 %v5822, %v5821
        %v5824 = vmul.f32 0.5, %v5823
        %v5825 = vsub.f32 1.5, %v5824
        %v5826 = vmul.f32 %v5821, %v5825
        %vm5827 = vweird.f32 %v5682
        %vm5828 = vweird.f32 %v5821
        %vm5829 = vmor %vm5827, %vm5828
        %v5830 = vsel %vm5829, %v5821, %v5826
        %v5831 = vrsqrt.pop %v5683
        %v5832 = vmul.f32 %v5831, %v5683
        %v5833 = vmul.f32 %v5832, %v5831
        %v5834 = vmul.f32 0.5, %v5833
        %v5835 = vsub.f32 1.5, %v5834
        %v5836 = vmul.f32 %v5831, %v5835
        %vm5837 = vweird.f32 %v5683
        %vm5838 = vweird.f32 %v5831
        %vm5839 = vmor %vm5837, %vm5838
        %v5840 = vsel %vm5839, %v5831, %v5836
        %v5841 = vrsqrt.pop %v5684
        %v5842 = vmul.f32 %v5841, %v5684
        %v5843 = vmul.f32 %v5842, %v5841
        %v5844 = vmul.f32 0.5, %v5843
        %v5845 = vsub.f32 1.5, %v5844
        %v5846 = vmul.f32 %v5841, %v5845
        %vm5847 = vweird.f32 %v5684
        %vm5848 = vweird.f32 %v5841
        %vm5849 = vmor %vm5847, %vm5848
        %v5850 = vsel %vm5849, %v5841, %v5846
        %v5851 = vrsqrt.pop %v5685
        %v5852 = vmul.f32 %v5851, %v5685
        %v5853 = vmul.f32 %v5852, %v5851
        %v5854 = vmul.f32 0.5, %v5853
        %v5855 = vsub.f32 1.5, %v5854
        %v5856 = vmul.f32 %v5851, %v5855
        %vm5857 = vweird.f32 %v5685
        %vm5858 = vweird.f32 %v5851
        %vm5859 = vmor %vm5857, %vm5858
        %v5860 = vsel %vm5859, %v5851, %v5856
        %v5861 = vrsqrt.pop %v5686
        %v5862 = vmul.f32 %v5861, %v5686
        %v5863 = vmul.f32 %v5862, %v5861
        %v5864 = vmul.f32 0.5, %v5863
        %v5865 = vsub.f32 1.5, %v5864
        %v5866 = vmul.f32 %v5861, %v5865
        %vm5867 = vweird.f32 %v5686
        %vm5868 = vweird.f32 %v5861
        %vm5869 = vmor %vm5867, %vm5868
        %v5870 = vsel %vm5869, %v5861, %v5866
        %v5871 = vrsqrt.pop %v5687
        %v5872 = vmul.f32 %v5871, %v5687
        %v5873 = vmul.f32 %v5872, %v5871
        %v5874 = vmul.f32 0.5, %v5873
        %v5875 = vsub.f32 1.5, %v5874
        %v5876 = vmul.f32 %v5871, %v5875
        %vm5877 = vweird.f32 %v5687
        %vm5878 = vweird.f32 %v5871
        %vm5879 = vmor %vm5877, %vm5878
        %v5880 = vsel %vm5879, %v5871, %v5876
        %v5881 = vrsqrt.pop %v5688
        %v5882 = vmul.f32 %v5881, %v5688
        %v5883 = vmul.f32 %v5882, %v5881
        %v5884 = vmul.f32 0.5, %v5883
        %v5885 = vsub.f32 1.5, %v5884
        %v5886 = vmul.f32 %v5881, %v5885
        %vm5887 = vweird.f32 %v5688
        %vm5888 = vweird.f32 %v5881
        %vm5889 = vmor %vm5887, %vm5888
        %v5890 = vsel %vm5889, %v5881, %v5886
        %v5891 = vrsqrt.pop %v5689
        %v5892 = vmul.f32 %v5891, %v5689
        %v5893 = vmul.f32 %v5892, %v5891
        %v5894 = vmul.f32 0.5, %v5893
        %v5895 = vsub.f32 1.5, %v5894
        %v5896 = vmul.f32 %v5891, %v5895
        %vm5897 = vweird.f32 %v5689
        %vm5898 = vweird.f32 %v5891
        %vm5899 = vmor %vm5897, %vm5898
        %v5900 = vsel %vm5899, %v5891, %v5896
        %v5901 = vrsqrt.pop %v5690
        %v5902 = vmul.f32 %v5901, %v5690
        %v5903 = vmul.f32 %v5902, %v5901
        %v5904 = vmul.f32 0.5, %v5903
        %v5905 = vsub.f32 1.5, %v5904
        %v5906 = vmul.f32 %v5901, %v5905
        %vm5907 = vweird.f32 %v5690
        %vm5908 = vweird.f32 %v5901
        %vm5909 = vmor %vm5907, %vm5908
        %v5910 = vsel %vm5909, %v5901, %v5906
        %v5911 = vmul.f32 %v5537, %v5700
        %v5912 = vmul.f32 %v5538, %v5710
        %v5913 = vmul.f32 %v5539, %v5720
        %v5914 = vmul.f32 %v5540, %v5730
        %v5915 = vmul.f32 %v5541, %v5740
        %v5916 = vmul.f32 %v5542, %v5750
        %v5917 = vmul.f32 %v5543, %v5760
        %v5918 = vmul.f32 %v5544, %v5770
        %v5919 = vmul.f32 %v5545, %v5780
        %v5920 = vmul.f32 %v5546, %v5790
        %v5921 = vmul.f32 %v5547, %v5800
        %v5922 = vmul.f32 %v5548, %v5810
        %v5923 = vmul.f32 %v5549, %v5820
        %v5924 = vmul.f32 %v5550, %v5830
        %v5925 = vmul.f32 %v5551, %v5840
        %v5926 = vmul.f32 %v5552, %v5850
        %v5927 = vmul.f32 %v5553, %v5860
        %v5928 = vmul.f32 %v5554, %v5870
        %v5929 = vmul.f32 %v5555, %v5880
        %v5930 = vmul.f32 %v5556, %v5890
        %v5931 = vmul.f32 %v5557, %v5900
        %v5932 = vmul.f32 %v5558, %v5910
        %v5934 = vperm.slane %v5440, 0
        %v5936 = vmul.f32 %v5911, %v5934
        %v5937 = vmul.f32 %v5912, %v5934
        %v5938 = vmul.f32 %v5913, %v5934
        %v5939 = vmul.f32 %v5914, %v5934
        %v5940 = vmul.f32 %v5915, %v5934
        %v5941 = vmul.f32 %v5916, %v5934
        %v5942 = vmul.f32 %v5917, %v5934
        %v5943 = vmul.f32 %v5918, %v5934
        %v5944 = vmul.f32 %v5919, %v5934
        %v5945 = vmul.f32 %v5920, %v5934
        %v5946 = vmul.f32 %v5921, %v5934
        %v5947 = vmul.f32 %v5922, %v5934
        %v5948 = vmul.f32 %v5923, %v5934
        %v5949 = vmul.f32 %v5924, %v5934
        %v5950 = vmul.f32 %v5925, %v5934
        %v5951 = vmul.f32 %v5926, %v5934
        %v5952 = vmul.f32 %v5927, %v5934
        %v5953 = vmul.f32 %v5928, %v5934
        %v5954 = vmul.f32 %v5929, %v5934
        %v5955 = vmul.f32 %v5930, %v5934
        %v5956 = vmul.f32 %v5931, %v5934
        %v5957 = vmul.f32 %v5932, %v5934
        %v5959 = vperm.slane %v5441, 0
        %v5961 = vadd.f32 %v5936, %v5959
        %v5962 = vadd.f32 %v5937, %v5959
        %v5963 = vadd.f32 %v5938, %v5959
        %v5964 = vadd.f32 %v5939, %v5959
        %v5965 = vadd.f32 %v5940, %v5959
        %v5966 = vadd.f32 %v5941, %v5959
        %v5967 = vadd.f32 %v5942, %v5959
        %v5968 = vadd.f32 %v5943, %v5959
        %v5969 = vadd.f32 %v5944, %v5959
        %v5970 = vadd.f32 %v5945, %v5959
        %v5971 = vadd.f32 %v5946, %v5959
        %v5972 = vadd.f32 %v5947, %v5959
        %v5973 = vadd.f32 %v5948, %v5959
        %v5974 = vadd.f32 %v5949, %v5959
        %v5975 = vadd.f32 %v5950, %v5959
        %v5976 = vadd.f32 %v5951, %v5959
        %v5977 = vadd.f32 %v5952, %v5959
        %v5978 = vadd.f32 %v5953, %v5959
        %v5979 = vadd.f32 %v5954, %v5959
        %v5980 = vadd.f32 %v5955, %v5959
        %v5981 = vadd.f32 %v5956, %v5959
        %v5982 = vadd.f32 %v5957, %v5959
        %v5983 = vpack.c.bf16 %v5962, %v5961
        %v5984 = vpack.c.bf16 %v5964, %v5963
        %v5985 = vpack.c.bf16 %v5966, %v5965
        %v5986 = vpack.c.bf16 %v5968, %v5967
        %v5987 = vpack.c.bf16 %v5970, %v5969
        %v5988 = vpack.c.bf16 %v5972, %v5971
        %v5989 = vpack.c.bf16 %v5974, %v5973
        %v5990 = vpack.c.bf16 %v5976, %v5975
        %v5991 = vpack.c.bf16 %v5978, %v5977
        %v5992 = vpack.c.bf16 %v5980, %v5979
        %v5993 = vpack.c.bf16 %v5982, %v5981
        %v5994 = vld [vmem:[%s1207] sm:$0xf]
        %v5995 = vld [vmem:[%s1207 + $0x4] sm:$0xf]
        %v5996 = vld [vmem:[%s1207 + $0x8] sm:$0xf]
        %v5997 = vld [vmem:[%s1207 + $0xc] sm:$0xf]
        %v5998 = vld [vmem:[%s1216] sm:$0x1]
        %v6000 = vperm.slane %v5998, 0
        %v6006 = vunpack.c.l.b16 %v5994
        %v6007 = vunpack.c.l.b16 %v5995
        %v6008 = vunpack.c.l.b16 %v5996
        %v6009 = vunpack.c.l.b16 %v5997
        %v6010 = vpack.c.b16 %v6007, %v6006
        %v6011 = vpack.c.b16 %v6009, %v6008
        %v6015 = vsel %vm1948, %v5983, 0
        %v6018 = vsel %vm1948, %v5984, 0
        %v6021 = vsel %vm1948, %v5985, 0
        %v6024 = vsel %vm1948, %v5986, 0
        %v6027 = vsel %vm1948, %v5987, 0
        %v6030 = vsel %vm1948, %v5988, 0
        %v6033 = vsel %vm1948, %v5989, 0
        %v6036 = vsel %vm1948, %v5990, 0
        %v6039 = vsel %vm1948, %v5991, 0
        %v6042 = vsel %vm1948, %v5992, 0
        %v6045 = vsel %vm1948, %v5993, 0
        %6047 = vmatpush.bf16.msra.mxu0 0
        %6048 = vmatpush.bf16.msra.mxu0 0
        %6049 = vmatpush.bf16.msra.mxu0 0
        %6050 = vmatpush.bf16.msra.mxu0 0
        %6051 = vmatpush.bf16.msra.mxu0 0
        %6052 = vmatpush.bf16.msra.mxu0 0
        %6053 = vmatpush.bf16.msra.mxu0 %v6011
        %6054 = vmatpush.bf16.msra.mxu0 %v6010
        %6055 = vmatmul.bf16.gmra.mxu0 %v6015
        %v6056 = vpop.f32.mrf.mxu0
        %v6057 = vadd.f32 %v6000, %v6056
        %v6058 = vpop.f32.mrf.mxu0
        %v6059 = vadd.f32 %v6000, %v6058
        %6060 = vmatmul.bf16.gmra.mxu0 %v6018
        %v6061 = vpop.f32.mrf.mxu0
        %v6062 = vadd.f32 %v6000, %v6061
        %v6063 = vpop.f32.mrf.mxu0
        %v6064 = vadd.f32 %v6000, %v6063
        %6065 = vmatmul.bf16.gmra.mxu0 %v6021
        %v6066 = vpop.f32.mrf.mxu0
        %v6067 = vadd.f32 %v6000, %v6066
        %v6068 = vpop.f32.mrf.mxu0
        %v6069 = vadd.f32 %v6000, %v6068
        %6070 = vmatmul.bf16.gmra.mxu0 %v6024
        %v6071 = vpop.f32.mrf.mxu0
        %v6072 = vadd.f32 %v6000, %v6071
        %v6073 = vpop.f32.mrf.mxu0
        %v6074 = vadd.f32 %v6000, %v6073
        %6075 = vmatmul.bf16.gmra.mxu0 %v6027
        %v6076 = vpop.f32.mrf.mxu0
        %v6077 = vadd.f32 %v6000, %v6076
        %v6078 = vpop.f32.mrf.mxu0
        %v6079 = vadd.f32 %v6000, %v6078
        %6080 = vmatmul.bf16.gmra.mxu0 %v6030
        %v6081 = vpop.f32.mrf.mxu0
        %v6082 = vadd.f32 %v6000, %v6081
        %v6083 = vpop.f32.mrf.mxu0
        %v6084 = vadd.f32 %v6000, %v6083
        %6085 = vmatmul.bf16.gmra.mxu0 %v6033
        %v6086 = vpop.f32.mrf.mxu0
        %v6087 = vadd.f32 %v6000, %v6086
        %v6088 = vpop.f32.mrf.mxu0
        %v6089 = vadd.f32 %v6000, %v6088
        %6090 = vmatmul.bf16.gmra.mxu0 %v6036
        %v6091 = vpop.f32.mrf.mxu0
        %v6092 = vadd.f32 %v6000, %v6091
        %v6093 = vpop.f32.mrf.mxu0
        %v6094 = vadd.f32 %v6000, %v6093
        %6095 = vmatmul.bf16.gmra.mxu0 %v6039
        %v6096 = vpop.f32.mrf.mxu0
        %v6097 = vadd.f32 %v6000, %v6096
        %v6098 = vpop.f32.mrf.mxu0
        %v6099 = vadd.f32 %v6000, %v6098
        %6100 = vmatmul.bf16.gmra.mxu0 %v6042
        %v6101 = vpop.f32.mrf.mxu0
        %v6102 = vadd.f32 %v6000, %v6101
        %v6103 = vpop.f32.mrf.mxu0
        %v6104 = vadd.f32 %v6000, %v6103
        %6105 = vmatmul.bf16.gmra.mxu0 %v6045
        %v6106 = vpop.f32.mrf.mxu0
        %v6107 = vadd.f32 %v6000, %v6106
        %v6108 = vpop.f32.mrf.mxu0
        %v6109 = vadd.f32 %v6000, %v6108
        %6110 = vdwg.mxu0
        %v6111 = vmax.f32 %v6057, 0.0
        %v6112 = vmax.f32 %v6059, 0.0
        %v6113 = vmax.f32 %v6062, 0.0
        %v6114 = vmax.f32 %v6064, 0.0
        %v6115 = vmax.f32 %v6067, 0.0
        %v6116 = vmax.f32 %v6069, 0.0
        %v6117 = vmax.f32 %v6072, 0.0
        %v6118 = vmax.f32 %v6074, 0.0
        %v6119 = vmax.f32 %v6077, 0.0
        %v6120 = vmax.f32 %v6079, 0.0
        %v6121 = vmax.f32 %v6082, 0.0
        %v6122 = vmax.f32 %v6084, 0.0
        %v6123 = vmax.f32 %v6087, 0.0
        %v6124 = vmax.f32 %v6089, 0.0
        %v6125 = vmax.f32 %v6092, 0.0
        %v6126 = vmax.f32 %v6094, 0.0
        %v6127 = vmax.f32 %v6097, 0.0
        %v6128 = vmax.f32 %v6099, 0.0
        %v6129 = vmax.f32 %v6102, 0.0
        %v6130 = vmax.f32 %v6104, 0.0
        %v6131 = vmax.f32 %v6107, 0.0
        %v6132 = vmax.f32 %v6109, 0.0
        %v6133 = vpack.c.bf16 %v6112, %v6111
        %v6134 = vpack.c.bf16 %v6114, %v6113
        %v6135 = vpack.c.bf16 %v6116, %v6115
        %v6136 = vpack.c.bf16 %v6118, %v6117
        %v6137 = vpack.c.bf16 %v6120, %v6119
        %v6138 = vpack.c.bf16 %v6122, %v6121
        %v6139 = vpack.c.bf16 %v6124, %v6123
        %v6140 = vpack.c.bf16 %v6126, %v6125
        %v6141 = vpack.c.bf16 %v6128, %v6127
        %v6142 = vpack.c.bf16 %v6130, %v6129
        %v6143 = vpack.c.bf16 %v6132, %v6131
        %v6144 = vld [vmem:[%s1427] sm:$0xf]
        %v6145 = vld [vmem:[%s1427 + $0x4] sm:$0xf]
        %v6146 = vld [vmem:[%s1427 + $0x8] sm:$0xf]
        %v6147 = vld [vmem:[%s1427 + $0xc] sm:$0xf]
        %v6148 = vld [vmem:[%s1427 + $0x10] sm:$0xf]
        %v6149 = vld [vmem:[%s1427 + $0x14] sm:$0xf]
        %v6150 = vld [vmem:[%s1427 + $0x18] sm:$0xf]
        %v6151 = vld [vmem:[%s1427 + $0x1c] sm:$0xf]
        %v6152 = vld [vmem:[%s1225] sm:$0x1]
        %v6154 = vperm.slane %v6152, 0
        %v6164 = vunpack.c.l.b16 %v6144
        %v6165 = vunpack.c.l.b16 %v6145
        %v6166 = vunpack.c.l.b16 %v6146
        %v6167 = vunpack.c.l.b16 %v6147
        %v6168 = vunpack.c.l.b16 %v6148
        %v6169 = vunpack.c.l.b16 %v6149
        %v6170 = vunpack.c.l.b16 %v6150
        %v6171 = vunpack.c.l.b16 %v6151
        %v6172 = vpack.c.b16 %v6165, %v6164
        %v6173 = vpack.c.b16 %v6167, %v6166
        %v6174 = vpack.c.b16 %v6169, %v6168
        %v6175 = vpack.c.b16 %v6171, %v6170
        %vm6180 = vcmask 523264
        %v6182 = vsel %vm6180, %v6133, 0
        %v6185 = vsel %vm6180, %v6134, 0
        %v6188 = vsel %vm6180, %v6135, 0
        %v6191 = vsel %vm6180, %v6136, 0
        %v6194 = vsel %vm6180, %v6137, 0
        %v6197 = vsel %vm6180, %v6138, 0
        %v6200 = vsel %vm6180, %v6139, 0
        %v6203 = vsel %vm6180, %v6140, 0
        %v6206 = vsel %vm6180, %v6141, 0
        %v6209 = vsel %vm6180, %v6142, 0
        %v6212 = vsel %vm6180, %v6143, 0
        %6214 = vmatpush.bf16.msra.mxu0 0
        %6215 = vmatpush.bf16.msra.mxu0 0
        %6216 = vmatpush.bf16.msra.mxu0 0
        %6217 = vmatpush.bf16.msra.mxu0 0
        %6218 = vmatpush.bf16.msra.mxu0 %v6175
        %6219 = vmatpush.bf16.msra.mxu0 %v6174
        %6220 = vmatpush.bf16.msra.mxu0 %v6173
        %6221 = vmatpush.bf16.msra.mxu0 %v6172
        %6222 = vmatmul.bf16.gmra.mxu0 %v6182
        %v6223 = vpop.f32.mrf.mxu0
        %v6224 = vadd.f32 %v6154, %v6223
        %v6225 = vpop.f32.mrf.mxu0
        %v6226 = vadd.f32 %v6154, %v6225
        %6227 = vmatmul.bf16.gmra.mxu0 %v6185
        %v6228 = vpop.f32.mrf.mxu0
        %v6229 = vadd.f32 %v6154, %v6228
        %v6230 = vpop.f32.mrf.mxu0
        %v6231 = vadd.f32 %v6154, %v6230
        %6232 = vmatmul.bf16.gmra.mxu0 %v6188
        %v6233 = vpop.f32.mrf.mxu0
        %v6234 = vadd.f32 %v6154, %v6233
        %v6235 = vpop.f32.mrf.mxu0
        %v6236 = vadd.f32 %v6154, %v6235
        %6237 = vmatmul.bf16.gmra.mxu0 %v6191
        %v6238 = vpop.f32.mrf.mxu0
        %v6239 = vadd.f32 %v6154, %v6238
        %v6240 = vpop.f32.mrf.mxu0
        %v6241 = vadd.f32 %v6154, %v6240
        %6242 = vmatmul.bf16.gmra.mxu0 %v6194
        %v6243 = vpop.f32.mrf.mxu0
        %v6244 = vadd.f32 %v6154, %v6243
        %v6245 = vpop.f32.mrf.mxu0
        %v6246 = vadd.f32 %v6154, %v6245
        %6247 = vmatmul.bf16.gmra.mxu0 %v6197
        %v6248 = vpop.f32.mrf.mxu0
        %v6249 = vadd.f32 %v6154, %v6248
        %v6250 = vpop.f32.mrf.mxu0
        %v6251 = vadd.f32 %v6154, %v6250
        %6252 = vmatmul.bf16.gmra.mxu0 %v6200
        %v6253 = vpop.f32.mrf.mxu0
        %v6254 = vadd.f32 %v6154, %v6253
        %v6255 = vpop.f32.mrf.mxu0
        %v6256 = vadd.f32 %v6154, %v6255
        %6257 = vmatmul.bf16.gmra.mxu0 %v6203
        %v6258 = vpop.f32.mrf.mxu0
        %v6259 = vadd.f32 %v6154, %v6258
        %v6260 = vpop.f32.mrf.mxu0
        %v6261 = vadd.f32 %v6154, %v6260
        %6262 = vmatmul.bf16.gmra.mxu0 %v6206
        %v6263 = vpop.f32.mrf.mxu0
        %v6264 = vadd.f32 %v6154, %v6263
        %v6265 = vpop.f32.mrf.mxu0
        %v6266 = vadd.f32 %v6154, %v6265
        %6267 = vmatmul.bf16.gmra.mxu0 %v6209
        %v6268 = vpop.f32.mrf.mxu0
        %v6269 = vadd.f32 %v6154, %v6268
        %v6270 = vpop.f32.mrf.mxu0
        %v6271 = vadd.f32 %v6154, %v6270
        %6272 = vmatmul.bf16.gmra.mxu0 %v6212
        %v6273 = vpop.f32.mrf.mxu0
        %v6274 = vadd.f32 %v6154, %v6273
        %v6275 = vpop.f32.mrf.mxu0
        %v6276 = vadd.f32 %v6154, %v6275
        %6277 = vdwg.mxu0
        %v6278 = vadd.f32 %v5961, %v6224
        %v6279 = vadd.f32 %v5962, %v6226
        %v6280 = vadd.f32 %v5963, %v6229
        %v6281 = vadd.f32 %v5964, %v6231
        %v6282 = vadd.f32 %v5965, %v6234
        %v6283 = vadd.f32 %v5966, %v6236
        %v6284 = vadd.f32 %v5967, %v6239
        %v6285 = vadd.f32 %v5968, %v6241
        %v6286 = vadd.f32 %v5969, %v6244
        %v6287 = vadd.f32 %v5970, %v6246
        %v6288 = vadd.f32 %v5971, %v6249
        %v6289 = vadd.f32 %v5972, %v6251
        %v6290 = vadd.f32 %v5973, %v6254
        %v6291 = vadd.f32 %v5974, %v6256
        %v6292 = vadd.f32 %v5975, %v6259
        %v6293 = vadd.f32 %v5976, %v6261
        %v6294 = vadd.f32 %v5977, %v6264
        %v6295 = vadd.f32 %v5978, %v6266
        %v6296 = vadd.f32 %v5979, %v6269
        %v6297 = vadd.f32 %v5980, %v6271
        %v6298 = vadd.f32 %v5981, %v6274
        %v6299 = vadd.f32 %v5982, %v6276
        %v6300 = vld [vmem:[%s1234] sm:$0x1]
        %v6301 = vld [vmem:[%s1243] sm:$0x1]
        %v6302 = vsel %vm1948, %v6278, 0.0
        %6303 = vadd.xlane.f32.xlu0 %v6302
        %v6304 = vpop.xlane.xlu0 %6303
        %v6305 = vsel %vm1948, %v6279, 0.0
        %6306 = vadd.xlane.f32.xlu0 %v6305
        %v6307 = vpop.xlane.xlu0 %6306
        %v6308 = vsel %vm1948, %v6280, 0.0
        %6309 = vadd.xlane.f32.xlu0 %v6308
        %v6310 = vpop.xlane.xlu0 %6309
        %v6311 = vsel %vm1948, %v6281, 0.0
        %6312 = vadd.xlane.f32.xlu0 %v6311
        %v6313 = vpop.xlane.xlu0 %6312
        %v6314 = vsel %vm1948, %v6282, 0.0
        %6315 = vadd.xlane.f32.xlu0 %v6314
        %v6316 = vpop.xlane.xlu0 %6315
        %v6317 = vsel %vm1948, %v6283, 0.0
        %6318 = vadd.xlane.f32.xlu0 %v6317
        %v6319 = vpop.xlane.xlu0 %6318
        %v6320 = vsel %vm1948, %v6284, 0.0
        %6321 = vadd.xlane.f32.xlu0 %v6320
        %v6322 = vpop.xlane.xlu0 %6321
        %v6323 = vsel %vm1948, %v6285, 0.0
        %6324 = vadd.xlane.f32.xlu0 %v6323
        %v6325 = vpop.xlane.xlu0 %6324
        %v6326 = vsel %vm1948, %v6286, 0.0
        %6327 = vadd.xlane.f32.xlu0 %v6326
        %v6328 = vpop.xlane.xlu0 %6327
        %v6329 = vsel %vm1948, %v6287, 0.0
        %6330 = vadd.xlane.f32.xlu0 %v6329
        %v6331 = vpop.xlane.xlu0 %6330
        %v6332 = vsel %vm1948, %v6288, 0.0
        %6333 = vadd.xlane.f32.xlu0 %v6332
        %v6334 = vpop.xlane.xlu0 %6333
        %v6335 = vsel %vm1948, %v6289, 0.0
        %6336 = vadd.xlane.f32.xlu0 %v6335
        %v6337 = vpop.xlane.xlu0 %6336
        %v6338 = vsel %vm1948, %v6290, 0.0
        %6339 = vadd.xlane.f32.xlu0 %v6338
        %v6340 = vpop.xlane.xlu0 %6339
        %v6341 = vsel %vm1948, %v6291, 0.0
        %6342 = vadd.xlane.f32.xlu0 %v6341
        %v6343 = vpop.xlane.xlu0 %6342
        %v6344 = vsel %vm1948, %v6292, 0.0
        %6345 = vadd.xlane.f32.xlu0 %v6344
        %v6346 = vpop.xlane.xlu0 %6345
        %v6347 = vsel %vm1948, %v6293, 0.0
        %6348 = vadd.xlane.f32.xlu0 %v6347
        %v6349 = vpop.xlane.xlu0 %6348
        %v6350 = vsel %vm1948, %v6294, 0.0
        %6351 = vadd.xlane.f32.xlu0 %v6350
        %v6352 = vpop.xlane.xlu0 %6351
        %v6353 = vsel %vm1948, %v6295, 0.0
        %6354 = vadd.xlane.f32.xlu0 %v6353
        %v6355 = vpop.xlane.xlu0 %6354
        %v6356 = vsel %vm1948, %v6296, 0.0
        %6357 = vadd.xlane.f32.xlu0 %v6356
        %v6358 = vpop.xlane.xlu0 %6357
        %v6359 = vsel %vm1948, %v6297, 0.0
        %6360 = vadd.xlane.f32.xlu0 %v6359
        %v6361 = vpop.xlane.xlu0 %6360
        %v6362 = vsel %vm1948, %v6298, 0.0
        %6363 = vadd.xlane.f32.xlu0 %v6362
        %v6364 = vpop.xlane.xlu0 %6363
        %v6365 = vsel %vm1948, %v6299, 0.0
        %6366 = vadd.xlane.f32.xlu0 %v6365
        %v6367 = vpop.xlane.xlu0 %6366
        %v6368 = vmul.f32 %v6304, %v5514
        %v6369 = vmul.f32 %v6307, %v5514
        %v6370 = vmul.f32 %v6310, %v5514
        %v6371 = vmul.f32 %v6313, %v5514
        %v6372 = vmul.f32 %v6316, %v5514
        %v6373 = vmul.f32 %v6319, %v5514
        %v6374 = vmul.f32 %v6322, %v5514
        %v6375 = vmul.f32 %v6325, %v5514
        %v6376 = vmul.f32 %v6328, %v5514
        %v6377 = vmul.f32 %v6331, %v5514
        %v6378 = vmul.f32 %v6334, %v5514
        %v6379 = vmul.f32 %v6337, %v5514
        %v6380 = vmul.f32 %v6340, %v5514
        %v6381 = vmul.f32 %v6343, %v5514
        %v6382 = vmul.f32 %v6346, %v5514
        %v6383 = vmul.f32 %v6349, %v5514
        %v6384 = vmul.f32 %v6352, %v5514
        %v6385 = vmul.f32 %v6355, %v5514
        %v6386 = vmul.f32 %v6358, %v5514
        %v6387 = vmul.f32 %v6361, %v5514
        %v6388 = vmul.f32 %v6364, %v5514
        %v6389 = vmul.f32 %v6367, %v5514
        %v6390 = vsub.f32 %v6278, %v6368
        %v6391 = vsub.f32 %v6279, %v6369
        %v6392 = vsub.f32 %v6280, %v6370
        %v6393 = vsub.f32 %v6281, %v6371
        %v6394 = vsub.f32 %v6282, %v6372
        %v6395 = vsub.f32 %v6283, %v6373
        %v6396 = vsub.f32 %v6284, %v6374
        %v6397 = vsub.f32 %v6285, %v6375
        %v6398 = vsub.f32 %v6286, %v6376
        %v6399 = vsub.f32 %v6287, %v6377
        %v6400 = vsub.f32 %v6288, %v6378
        %v6401 = vsub.f32 %v6289, %v6379
        %v6402 = vsub.f32 %v6290, %v6380
        %v6403 = vsub.f32 %v6291, %v6381
        %v6404 = vsub.f32 %v6292, %v6382
        %v6405 = vsub.f32 %v6293, %v6383
        %v6406 = vsub.f32 %v6294, %v6384
        %v6407 = vsub.f32 %v6295, %v6385
        %v6408 = vsub.f32 %v6296, %v6386
        %v6409 = vsub.f32 %v6297, %v6387
        %v6410 = vsub.f32 %v6298, %v6388
        %v6411 = vsub.f32 %v6299, %v6389
        %v6412 = vmul.f32 %v6390, %v6390
        %v6413 = vmul.f32 %v6391, %v6391
        %v6414 = vmul.f32 %v6392, %v6392
        %v6415 = vmul.f32 %v6393, %v6393
        %v6416 = vmul.f32 %v6394, %v6394
        %v6417 = vmul.f32 %v6395, %v6395
        %v6418 = vmul.f32 %v6396, %v6396
        %v6419 = vmul.f32 %v6397, %v6397
        %v6420 = vmul.f32 %v6398, %v6398
        %v6421 = vmul.f32 %v6399, %v6399
        %v6422 = vmul.f32 %v6400, %v6400
        %v6423 = vmul.f32 %v6401, %v6401
        %v6424 = vmul.f32 %v6402, %v6402
        %v6425 = vmul.f32 %v6403, %v6403
        %v6426 = vmul.f32 %v6404, %v6404
        %v6427 = vmul.f32 %v6405, %v6405
        %v6428 = vmul.f32 %v6406, %v6406
        %v6429 = vmul.f32 %v6407, %v6407
        %v6430 = vmul.f32 %v6408, %v6408
        %v6431 = vmul.f32 %v6409, %v6409
        %v6432 = vmul.f32 %v6410, %v6410
        %v6433 = vmul.f32 %v6411, %v6411
        %v6434 = vsel %vm1948, %v6412, 0.0
        %6435 = vadd.xlane.f32.xlu0 %v6434
        %v6436 = vpop.xlane.xlu0 %6435
        %v6437 = vsel %vm1948, %v6413, 0.0
        %6438 = vadd.xlane.f32.xlu0 %v6437
        %v6439 = vpop.xlane.xlu0 %6438
        %v6440 = vsel %vm1948, %v6414, 0.0
        %6441 = vadd.xlane.f32.xlu0 %v6440
        %v6442 = vpop.xlane.xlu0 %6441
        %v6443 = vsel %vm1948, %v6415, 0.0
        %6444 = vadd.xlane.f32.xlu0 %v6443
        %v6445 = vpop.xlane.xlu0 %6444
        %v6446 = vsel %vm1948, %v6416, 0.0
        %6447 = vadd.xlane.f32.xlu0 %v6446
        %v6448 = vpop.xlane.xlu0 %6447
        %v6449 = vsel %vm1948, %v6417, 0.0
        %6450 = vadd.xlane.f32.xlu0 %v6449
        %v6451 = vpop.xlane.xlu0 %6450
        %v6452 = vsel %vm1948, %v6418, 0.0
        %6453 = vadd.xlane.f32.xlu0 %v6452
        %v6454 = vpop.xlane.xlu0 %6453
        %v6455 = vsel %vm1948, %v6419, 0.0
        %6456 = vadd.xlane.f32.xlu0 %v6455
        %v6457 = vpop.xlane.xlu0 %6456
        %v6458 = vsel %vm1948, %v6420, 0.0
        %6459 = vadd.xlane.f32.xlu0 %v6458
        %v6460 = vpop.xlane.xlu0 %6459
        %v6461 = vsel %vm1948, %v6421, 0.0
        %6462 = vadd.xlane.f32.xlu0 %v6461
        %v6463 = vpop.xlane.xlu0 %6462
        %v6464 = vsel %vm1948, %v6422, 0.0
        %6465 = vadd.xlane.f32.xlu0 %v6464
        %v6466 = vpop.xlane.xlu0 %6465
        %v6467 = vsel %vm1948, %v6423, 0.0
        %6468 = vadd.xlane.f32.xlu0 %v6467
        %v6469 = vpop.xlane.xlu0 %6468
        %v6470 = vsel %vm1948, %v6424, 0.0
        %6471 = vadd.xlane.f32.xlu0 %v6470
        %v6472 = vpop.xlane.xlu0 %6471
        %v6473 = vsel %vm1948, %v6425, 0.0
        %6474 = vadd.xlane.f32.xlu0 %v6473
        %v6475 = vpop.xlane.xlu0 %6474
        %v6476 = vsel %vm1948, %v6426, 0.0
        %6477 = vadd.xlane.f32.xlu0 %v6476
        %v6478 = vpop.xlane.xlu0 %6477
        %v6479 = vsel %vm1948, %v6427, 0.0
        %6480 = vadd.xlane.f32.xlu0 %v6479
        %v6481 = vpop.xlane.xlu0 %6480
        %v6482 = vsel %vm1948, %v6428, 0.0
        %6483 = vadd.xlane.f32.xlu0 %v6482
        %v6484 = vpop.xlane.xlu0 %6483
        %v6485 = vsel %vm1948, %v6429, 0.0
        %6486 = vadd.xlane.f32.xlu0 %v6485
        %v6487 = vpop.xlane.xlu0 %6486
        %v6488 = vsel %vm1948, %v6430, 0.0
        %6489 = vadd.xlane.f32.xlu0 %v6488
        %v6490 = vpop.xlane.xlu0 %6489
        %v6491 = vsel %vm1948, %v6431, 0.0
        %6492 = vadd.xlane.f32.xlu0 %v6491
        %v6493 = vpop.xlane.xlu0 %6492
        %v6494 = vsel %vm1948, %v6432, 0.0
        %6495 = vadd.xlane.f32.xlu0 %v6494
        %v6496 = vpop.xlane.xlu0 %6495
        %v6497 = vsel %vm1948, %v6433, 0.0
        %6498 = vadd.xlane.f32.xlu0 %v6497
        %v6499 = vpop.xlane.xlu0 %6498
        %v6500 = vmul.f32 %v6436, %v5514
        %v6501 = vmul.f32 %v6439, %v5514
        %v6502 = vmul.f32 %v6442, %v5514
        %v6503 = vmul.f32 %v6445, %v5514
        %v6504 = vmul.f32 %v6448, %v5514
        %v6505 = vmul.f32 %v6451, %v5514
        %v6506 = vmul.f32 %v6454, %v5514
        %v6507 = vmul.f32 %v6457, %v5514
        %v6508 = vmul.f32 %v6460, %v5514
        %v6509 = vmul.f32 %v6463, %v5514
        %v6510 = vmul.f32 %v6466, %v5514
        %v6511 = vmul.f32 %v6469, %v5514
        %v6512 = vmul.f32 %v6472, %v5514
        %v6513 = vmul.f32 %v6475, %v5514
        %v6514 = vmul.f32 %v6478, %v5514
        %v6515 = vmul.f32 %v6481, %v5514
        %v6516 = vmul.f32 %v6484, %v5514
        %v6517 = vmul.f32 %v6487, %v5514
        %v6518 = vmul.f32 %v6490, %v5514
        %v6519 = vmul.f32 %v6493, %v5514
        %v6520 = vmul.f32 %v6496, %v5514
        %v6521 = vmul.f32 %v6499, %v5514
        %v6522 = vadd.f32 %v6500, 1e-05
        %v6523 = vadd.f32 %v6501, 1e-05
        %v6524 = vadd.f32 %v6502, 1e-05
        %v6525 = vadd.f32 %v6503, 1e-05
        %v6526 = vadd.f32 %v6504, 1e-05
        %v6527 = vadd.f32 %v6505, 1e-05
        %v6528 = vadd.f32 %v6506, 1e-05
        %v6529 = vadd.f32 %v6507, 1e-05
        %v6530 = vadd.f32 %v6508, 1e-05
        %v6531 = vadd.f32 %v6509, 1e-05
        %v6532 = vadd.f32 %v6510, 1e-05
        %v6533 = vadd.f32 %v6511, 1e-05
        %v6534 = vadd.f32 %v6512, 1e-05
        %v6535 = vadd.f32 %v6513, 1e-05
        %v6536 = vadd.f32 %v6514, 1e-05
        %v6537 = vadd.f32 %v6515, 1e-05
        %v6538 = vadd.f32 %v6516, 1e-05
        %v6539 = vadd.f32 %v6517, 1e-05
        %v6540 = vadd.f32 %v6518, 1e-05
        %v6541 = vadd.f32 %v6519, 1e-05
        %v6542 = vadd.f32 %v6520, 1e-05
        %v6543 = vadd.f32 %v6521, 1e-05
        %v6544 = vrsqrt.pop %v6522
        %v6545 = vmul.f32 %v6544, %v6522
        %v6546 = vmul.f32 %v6545, %v6544
        %v6547 = vmul.f32 0.5, %v6546
        %v6548 = vsub.f32 1.5, %v6547
        %v6549 = vmul.f32 %v6544, %v6548
        %vm6550 = vweird.f32 %v6522
        %vm6551 = vweird.f32 %v6544
        %vm6552 = vmor %vm6550, %vm6551
        %v6553 = vsel %vm6552, %v6544, %v6549
        %v6554 = vrsqrt.pop %v6523
        %v6555 = vmul.f32 %v6554, %v6523
        %v6556 = vmul.f32 %v6555, %v6554
        %v6557 = vmul.f32 0.5, %v6556
        %v6558 = vsub.f32 1.5, %v6557
        %v6559 = vmul.f32 %v6554, %v6558
        %vm6560 = vweird.f32 %v6523
        %vm6561 = vweird.f32 %v6554
        %vm6562 = vmor %vm6560, %vm6561
        %v6563 = vsel %vm6562, %v6554, %v6559
        %v6564 = vrsqrt.pop %v6524
        %v6565 = vmul.f32 %v6564, %v6524
        %v6566 = vmul.f32 %v6565, %v6564
        %v6567 = vmul.f32 0.5, %v6566
        %v6568 = vsub.f32 1.5, %v6567
        %v6569 = vmul.f32 %v6564, %v6568
        %vm6570 = vweird.f32 %v6524
        %vm6571 = vweird.f32 %v6564
        %vm6572 = vmor %vm6570, %vm6571
        %v6573 = vsel %vm6572, %v6564, %v6569
        %v6574 = vrsqrt.pop %v6525
        %v6575 = vmul.f32 %v6574, %v6525
        %v6576 = vmul.f32 %v6575, %v6574
        %v6577 = vmul.f32 0.5, %v6576
        %v6578 = vsub.f32 1.5, %v6577
        %v6579 = vmul.f32 %v6574, %v6578
        %vm6580 = vweird.f32 %v6525
        %vm6581 = vweird.f32 %v6574
        %vm6582 = vmor %vm6580, %vm6581
        %v6583 = vsel %vm6582, %v6574, %v6579
        %v6584 = vrsqrt.pop %v6526
        %v6585 = vmul.f32 %v6584, %v6526
        %v6586 = vmul.f32 %v6585, %v6584
        %v6587 = vmul.f32 0.5, %v6586
        %v6588 = vsub.f32 1.5, %v6587
        %v6589 = vmul.f32 %v6584, %v6588
        %vm6590 = vweird.f32 %v6526
        %vm6591 = vweird.f32 %v6584
        %vm6592 = vmor %vm6590, %vm6591
        %v6593 = vsel %vm6592, %v6584, %v6589
        %v6594 = vrsqrt.pop %v6527
        %v6595 = vmul.f32 %v6594, %v6527
        %v6596 = vmul.f32 %v6595, %v6594
        %v6597 = vmul.f32 0.5, %v6596
        %v6598 = vsub.f32 1.5, %v6597
        %v6599 = vmul.f32 %v6594, %v6598
        %vm6600 = vweird.f32 %v6527
        %vm6601 = vweird.f32 %v6594
        %vm6602 = vmor %vm6600, %vm6601
        %v6603 = vsel %vm6602, %v6594, %v6599
        %v6604 = vrsqrt.pop %v6528
        %v6605 = vmul.f32 %v6604, %v6528
        %v6606 = vmul.f32 %v6605, %v6604
        %v6607 = vmul.f32 0.5, %v6606
        %v6608 = vsub.f32 1.5, %v6607
        %v6609 = vmul.f32 %v6604, %v6608
        %vm6610 = vweird.f32 %v6528
        %vm6611 = vweird.f32 %v6604
        %vm6612 = vmor %vm6610, %vm6611
        %v6613 = vsel %vm6612, %v6604, %v6609
        %v6614 = vrsqrt.pop %v6529
        %v6615 = vmul.f32 %v6614, %v6529
        %v6616 = vmul.f32 %v6615, %v6614
        %v6617 = vmul.f32 0.5, %v6616
        %v6618 = vsub.f32 1.5, %v6617
        %v6619 = vmul.f32 %v6614, %v6618
        %vm6620 = vweird.f32 %v6529
        %vm6621 = vweird.f32 %v6614
        %vm6622 = vmor %vm6620, %vm6621
        %v6623 = vsel %vm6622, %v6614, %v6619
        %v6624 = vrsqrt.pop %v6530
        %v6625 = vmul.f32 %v6624, %v6530
        %v6626 = vmul.f32 %v6625, %v6624
        %v6627 = vmul.f32 0.5, %v6626
        %v6628 = vsub.f32 1.5, %v6627
        %v6629 = vmul.f32 %v6624, %v6628
        %vm6630 = vweird.f32 %v6530
        %vm6631 = vweird.f32 %v6624
        %vm6632 = vmor %vm6630, %vm6631
        %v6633 = vsel %vm6632, %v6624, %v6629
        %v6634 = vrsqrt.pop %v6531
        %v6635 = vmul.f32 %v6634, %v6531
        %v6636 = vmul.f32 %v6635, %v6634
        %v6637 = vmul.f32 0.5, %v6636
        %v6638 = vsub.f32 1.5, %v6637
        %v6639 = vmul.f32 %v6634, %v6638
        %vm6640 = vweird.f32 %v6531
        %vm6641 = vweird.f32 %v6634
        %vm6642 = vmor %vm6640, %vm6641
        %v6643 = vsel %vm6642, %v6634, %v6639
        %v6644 = vrsqrt.pop %v6532
        %v6645 = vmul.f32 %v6644, %v6532
        %v6646 = vmul.f32 %v6645, %v6644
        %v6647 = vmul.f32 0.5, %v6646
        %v6648 = vsub.f32 1.5, %v6647
        %v6649 = vmul.f32 %v6644, %v6648
        %vm6650 = vweird.f32 %v6532
        %vm6651 = vweird.f32 %v6644
        %vm6652 = vmor %vm6650, %vm6651
        %v6653 = vsel %vm6652, %v6644, %v6649
        %v6654 = vrsqrt.pop %v6533
        %v6655 = vmul.f32 %v6654, %v6533
        %v6656 = vmul.f32 %v6655, %v6654
        %v6657 = vmul.f32 0.5, %v6656
        %v6658 = vsub.f32 1.5, %v6657
        %v6659 = vmul.f32 %v6654, %v6658
        %vm6660 = vweird.f32 %v6533
        %vm6661 = vweird.f32 %v6654
        %vm6662 = vmor %vm6660, %vm6661
        %v6663 = vsel %vm6662, %v6654, %v6659
        %v6664 = vrsqrt.pop %v6534
        %v6665 = vmul.f32 %v6664, %v6534
        %v6666 = vmul.f32 %v6665, %v6664
        %v6667 = vmul.f32 0.5, %v6666
        %v6668 = vsub.f32 1.5, %v6667
        %v6669 = vmul.f32 %v6664, %v6668
        %vm6670 = vweird.f32 %v6534
        %vm6671 = vweird.f32 %v6664
        %vm6672 = vmor %vm6670, %vm6671
        %v6673 = vsel %vm6672, %v6664, %v6669
        %v6674 = vrsqrt.pop %v6535
        %v6675 = vmul.f32 %v6674, %v6535
        %v6676 = vmul.f32 %v6675, %v6674
        %v6677 = vmul.f32 0.5, %v6676
        %v6678 = vsub.f32 1.5, %v6677
        %v6679 = vmul.f32 %v6674, %v6678
        %vm6680 = vweird.f32 %v6535
        %vm6681 = vweird.f32 %v6674
        %vm6682 = vmor %vm6680, %vm6681
        %v6683 = vsel %vm6682, %v6674, %v6679
        %v6684 = vrsqrt.pop %v6536
        %v6685 = vmul.f32 %v6684, %v6536
        %v6686 = vmul.f32 %v6685, %v6684
        %v6687 = vmul.f32 0.5, %v6686
        %v6688 = vsub.f32 1.5, %v6687
        %v6689 = vmul.f32 %v6684, %v6688
        %vm6690 = vweird.f32 %v6536
        %vm6691 = vweird.f32 %v6684
        %vm6692 = vmor %vm6690, %vm6691
        %v6693 = vsel %vm6692, %v6684, %v6689
        %v6694 = vrsqrt.pop %v6537
        %v6695 = vmul.f32 %v6694, %v6537
        %v6696 = vmul.f32 %v6695, %v6694
        %v6697 = vmul.f32 0.5, %v6696
        %v6698 = vsub.f32 1.5, %v6697
        %v6699 = vmul.f32 %v6694, %v6698
        %vm6700 = vweird.f32 %v6537
        %vm6701 = vweird.f32 %v6694
        %vm6702 = vmor %vm6700, %vm6701
        %v6703 = vsel %vm6702, %v6694, %v6699
        %v6704 = vrsqrt.pop %v6538
        %v6705 = vmul.f32 %v6704, %v6538
        %v6706 = vmul.f32 %v6705, %v6704
        %v6707 = vmul.f32 0.5, %v6706
        %v6708 = vsub.f32 1.5, %v6707
        %v6709 = vmul.f32 %v6704, %v6708
        %vm6710 = vweird.f32 %v6538
        %vm6711 = vweird.f32 %v6704
        %vm6712 = vmor %vm6710, %vm6711
        %v6713 = vsel %vm6712, %v6704, %v6709
        %v6714 = vrsqrt.pop %v6539
        %v6715 = vmul.f32 %v6714, %v6539
        %v6716 = vmul.f32 %v6715, %v6714
        %v6717 = vmul.f32 0.5, %v6716
        %v6718 = vsub.f32 1.5, %v6717
        %v6719 = vmul.f32 %v6714, %v6718
        %vm6720 = vweird.f32 %v6539
        %vm6721 = vweird.f32 %v6714
        %vm6722 = vmor %vm6720, %vm6721
        %v6723 = vsel %vm6722, %v6714, %v6719
        %v6724 = vrsqrt.pop %v6540
        %v6725 = vmul.f32 %v6724, %v6540
        %v6726 = vmul.f32 %v6725, %v6724
        %v6727 = vmul.f32 0.5, %v6726
        %v6728 = vsub.f32 1.5, %v6727
        %v6729 = vmul.f32 %v6724, %v6728
        %vm6730 = vweird.f32 %v6540
        %vm6731 = vweird.f32 %v6724
        %vm6732 = vmor %vm6730, %vm6731
        %v6733 = vsel %vm6732, %v6724, %v6729
        %v6734 = vrsqrt.pop %v6541
        %v6735 = vmul.f32 %v6734, %v6541
        %v6736 = vmul.f32 %v6735, %v6734
        %v6737 = vmul.f32 0.5, %v6736
        %v6738 = vsub.f32 1.5, %v6737
        %v6739 = vmul.f32 %v6734, %v6738
        %vm6740 = vweird.f32 %v6541
        %vm6741 = vweird.f32 %v6734
        %vm6742 = vmor %vm6740, %vm6741
        %v6743 = vsel %vm6742, %v6734, %v6739
        %v6744 = vrsqrt.pop %v6542
        %v6745 = vmul.f32 %v6744, %v6542
        %v6746 = vmul.f32 %v6745, %v6744
        %v6747 = vmul.f32 0.5, %v6746
        %v6748 = vsub.f32 1.5, %v6747
        %v6749 = vmul.f32 %v6744, %v6748
        %vm6750 = vweird.f32 %v6542
        %vm6751 = vweird.f32 %v6744
        %vm6752 = vmor %vm6750, %vm6751
        %v6753 = vsel %vm6752, %v6744, %v6749
        %v6754 = vrsqrt.pop %v6543
        %v6755 = vmul.f32 %v6754, %v6543
        %v6756 = vmul.f32 %v6755, %v6754
        %v6757 = vmul.f32 0.5, %v6756
        %v6758 = vsub.f32 1.5, %v6757
        %v6759 = vmul.f32 %v6754, %v6758
        %vm6760 = vweird.f32 %v6543
        %vm6761 = vweird.f32 %v6754
        %vm6762 = vmor %vm6760, %vm6761
        %v6763 = vsel %vm6762, %v6754, %v6759
        %v6764 = vmul.f32 %v6390, %v6553
        %v6765 = vmul.f32 %v6391, %v6563
        %v6766 = vmul.f32 %v6392, %v6573
        %v6767 = vmul.f32 %v6393, %v6583
        %v6768 = vmul.f32 %v6394, %v6593
        %v6769 = vmul.f32 %v6395, %v6603
        %v6770 = vmul.f32 %v6396, %v6613
        %v6771 = vmul.f32 %v6397, %v6623
        %v6772 = vmul.f32 %v6398, %v6633
        %v6773 = vmul.f32 %v6399, %v6643
        %v6774 = vmul.f32 %v6400, %v6653
        %v6775 = vmul.f32 %v6401, %v6663
        %v6776 = vmul.f32 %v6402, %v6673
        %v6777 = vmul.f32 %v6403, %v6683
        %v6778 = vmul.f32 %v6404, %v6693
        %v6779 = vmul.f32 %v6405, %v6703
        %v6780 = vmul.f32 %v6406, %v6713
        %v6781 = vmul.f32 %v6407, %v6723
        %v6782 = vmul.f32 %v6408, %v6733
        %v6783 = vmul.f32 %v6409, %v6743
        %v6784 = vmul.f32 %v6410, %v6753
        %v6785 = vmul.f32 %v6411, %v6763
        %v6787 = vperm.slane %v6300, 0
        %v6789 = vmul.f32 %v6764, %v6787
        %v6790 = vmul.f32 %v6765, %v6787
        %v6791 = vmul.f32 %v6766, %v6787
        %v6792 = vmul.f32 %v6767, %v6787
        %v6793 = vmul.f32 %v6768, %v6787
        %v6794 = vmul.f32 %v6769, %v6787
        %v6795 = vmul.f32 %v6770, %v6787
        %v6796 = vmul.f32 %v6771, %v6787
        %v6797 = vmul.f32 %v6772, %v6787
        %v6798 = vmul.f32 %v6773, %v6787
        %v6799 = vmul.f32 %v6774, %v6787
        %v6800 = vmul.f32 %v6775, %v6787
        %v6801 = vmul.f32 %v6776, %v6787
        %v6802 = vmul.f32 %v6777, %v6787
        %v6803 = vmul.f32 %v6778, %v6787
        %v6804 = vmul.f32 %v6779, %v6787
        %v6805 = vmul.f32 %v6780, %v6787
        %v6806 = vmul.f32 %v6781, %v6787
        %v6807 = vmul.f32 %v6782, %v6787
        %v6808 = vmul.f32 %v6783, %v6787
        %v6809 = vmul.f32 %v6784, %v6787
        %v6810 = vmul.f32 %v6785, %v6787
        %v6812 = vperm.slane %v6301, 0
        %v6814 = vadd.f32 %v6789, %v6812
        %v6815 = vadd.f32 %v6790, %v6812
        %v6816 = vadd.f32 %v6791, %v6812
        %v6817 = vadd.f32 %v6792, %v6812
        %v6818 = vadd.f32 %v6793, %v6812
        %v6819 = vadd.f32 %v6794, %v6812
        %v6820 = vadd.f32 %v6795, %v6812
        %v6821 = vadd.f32 %v6796, %v6812
        %v6822 = vadd.f32 %v6797, %v6812
        %v6823 = vadd.f32 %v6798, %v6812
        %v6824 = vadd.f32 %v6799, %v6812
        %v6825 = vadd.f32 %v6800, %v6812
        %v6826 = vadd.f32 %v6801, %v6812
        %v6827 = vadd.f32 %v6802, %v6812
        %v6828 = vadd.f32 %v6803, %v6812
        %v6829 = vadd.f32 %v6804, %v6812
        %v6830 = vadd.f32 %v6805, %v6812
        %v6831 = vadd.f32 %v6806, %v6812
        %v6832 = vadd.f32 %v6807, %v6812
        %v6833 = vadd.f32 %v6808, %v6812
        %v6834 = vadd.f32 %v6809, %v6812
        %v6835 = vadd.f32 %v6810, %v6812
        %6836 = vst.msk [vmem:[#allocation2] sm:$0xff] %vm1948, %v6814
        %6837 = vst.msk [vmem:[#allocation2 + $0x8] sm:$0xff] %vm1948, %v6815
        %6838 = vst.msk [vmem:[#allocation2 + $0x10] sm:$0xff] %vm1948, %v6816
        %6839 = vst.msk [vmem:[#allocation2 + $0x18] sm:$0xff] %vm1948, %v6817
        %6840 = vst.msk [vmem:[#allocation2 + $0x20] sm:$0xff] %vm1948, %v6818
        %6841 = vst.msk [vmem:[#allocation2 + $0x28] sm:$0xff] %vm1948, %v6819
        %6842 = vst.msk [vmem:[#allocation2 + $0x30] sm:$0xff] %vm1948, %v6820
        %6843 = vst.msk [vmem:[#allocation2 + $0x38] sm:$0xff] %vm1948, %v6821
        %6844 = vst.msk [vmem:[#allocation2 + $0x40] sm:$0xff] %vm1948, %v6822
        %6845 = vst.msk [vmem:[#allocation2 + $0x48] sm:$0xff] %vm1948, %v6823
        %6846 = vst.msk [vmem:[#allocation2 + $0x50] sm:$0xff] %vm1948, %v6824
        %6847 = vst.msk [vmem:[#allocation2 + $0x58] sm:$0xff] %vm1948, %v6825
        %6848 = vst.msk [vmem:[#allocation2 + $0x60] sm:$0xff] %vm1948, %v6826
        %6849 = vst.msk [vmem:[#allocation2 + $0x68] sm:$0xff] %vm1948, %v6827
        %6850 = vst.msk [vmem:[#allocation2 + $0x70] sm:$0xff] %vm1948, %v6828
        %6851 = vst.msk [vmem:[#allocation2 + $0x78] sm:$0xff] %vm1948, %v6829
        %6852 = vst.msk [vmem:[#allocation2 + $0x80] sm:$0xff] %vm1948, %v6830
        %6853 = vst.msk [vmem:[#allocation2 + $0x88] sm:$0xff] %vm1948, %v6831
        %6854 = vst.msk [vmem:[#allocation2 + $0x90] sm:$0xff] %vm1948, %v6832
        %6855 = vst.msk [vmem:[#allocation2 + $0x98] sm:$0xff] %vm1948, %v6833
        %6856 = vst.msk [vmem:[#allocation2 + $0xa0] sm:$0xff] %vm1948, %v6834
        %6857 = vst.msk [vmem:[#allocation2 + $0xa8] sm:$0xff] %vm1948, %v6835
        %p6858 = scmp.eq.s32.totalorder %s68, 1
        // Predicated region
        $region197: #{pyramid_scene_transformer_forward.2} parent=111 // pred_check
          %p6859 = pneg %p6858
        $region198: #{pyramid_scene_transformer_forward.2} parent=111 // pred_check_branch
          %6861 = sbr.rel (%p6859) target = $region200
        $region199: #{pyramid_scene_transformer_forward.2} parent=111 // pred_region
          %6862 = vst.msk [vmem:[%s1432] sm:$0xff] %vm1948, %v6814
          %6863 = vst.msk [vmem:[%s1432 + $0x8] sm:$0xff] %vm1948, %v6815
          %6864 = vst.msk [vmem:[%s1432 + $0x10] sm:$0xff] %vm1948, %v6816
          %6865 = vst.msk [vmem:[%s1432 + $0x18] sm:$0xff] %vm1948, %v6817
          %6866 = vst.msk [vmem:[%s1432 + $0x20] sm:$0xff] %vm1948, %v6818
          %6867 = vst.msk [vmem:[%s1432 + $0x28] sm:$0xff] %vm1948, %v6819
          %6868 = vst.msk [vmem:[%s1432 + $0x30] sm:$0xff] %vm1948, %v6820
          %6869 = vst.msk [vmem:[%s1432 + $0x38] sm:$0xff] %vm1948, %v6821
          %6870 = vst.msk [vmem:[%s1432 + $0x40] sm:$0xff] %vm1948, %v6822
          %6871 = vst.msk [vmem:[%s1432 + $0x48] sm:$0xff] %vm1948, %v6823
          %6872 = vst.msk [vmem:[%s1432 + $0x50] sm:$0xff] %vm1948, %v6824
          %6873 = vst.msk [vmem:[%s1432 + $0x58] sm:$0xff] %vm1948, %v6825
          %6874 = vst.msk [vmem:[%s1432 + $0x60] sm:$0xff] %vm1948, %v6826
          %6875 = vst.msk [vmem:[%s1432 + $0x68] sm:$0xff] %vm1948, %v6827
          %6876 = vst.msk [vmem:[%s1432 + $0x70] sm:$0xff] %vm1948, %v6828
          %6877 = vst.msk [vmem:[%s1432 + $0x78] sm:$0xff] %vm1948, %v6829
          %6878 = vst.msk [vmem:[%s1432 + $0x80] sm:$0xff] %vm1948, %v6830
          %6879 = vst.msk [vmem:[%s1432 + $0x88] sm:$0xff] %vm1948, %v6831
          %6880 = vst.msk [vmem:[%s1432 + $0x90] sm:$0xff] %vm1948, %v6832
          %6881 = vst.msk [vmem:[%s1432 + $0x98] sm:$0xff] %vm1948, %v6833
          %6882 = vst.msk [vmem:[%s1432 + $0xa0] sm:$0xff] %vm1948, %v6834
          %6883 = vst.msk [vmem:[%s1432 + $0xa8] sm:$0xff] %vm1948, %v6835
          %v6885 = vrot.slane %v6825, 7
          %vm6887 = vcmask 1040384
          %v6888 = vsel %vm6887, %v6814, %v6885
          %v6889 = vld [vmem:[#allocation25] sm:$0xff]
          %v6890 = vld [vmem:[#allocation25 + $0x8] sm:$0xff]
          %v6891 = vld [vmem:[#allocation25 + $0x10] sm:$0xff]
          %v6892 = vld [vmem:[#allocation25 + $0x18] sm:$0xff]
          %v6893 = vld [vmem:[#allocation26] sm:$0x1]
          %v6895 = vperm.slane %v6893, 0
          %v6898 = vsel %vm1948, %v6888, 0
          %6900 = vmatpush.msra.mxu0 0.0
          %6901 = vmatpush.msra.mxu0 0.0
          %6902 = vmatpush.msra.mxu0 0.0
          %6903 = vmatpush.msra.mxu0 0.0
          %6904 = vmatpush.msra.mxu0 0.0
          %6905 = vmatpush.msra.mxu0 0.0
          %6906 = vmatpush.msra.mxu0 0.0
          %6907 = vmatpush.msra.mxu0 0.0
          %6908 = vmatpush.msra.mxu0 0.0
          %6909 = vmatpush.msra.mxu0 0.0
          %6910 = vmatpush.msra.mxu0 0.0
          %6911 = vmatpush.msra.mxu0 0.0
          %6912 = vmatpush.msra.mxu0 %v6892
          %6913 = vmatpush.msra.mxu0 %v6891
          %6914 = vmatpush.msra.mxu0 %v6890
          %6915 = vmatpush.msra.mxu0 %v6889
          %6916 = vmatmul.f32.gmra.mxu0 %v6898
          %v6917 = vpop.f32.mrf.mxu0
          %v6918 = vadd.f32 %v6895, %v6917
          %6919 = vdwg.mxu0
          %vm6920 = vcmp.ge.f32.partialorder %v6918, 0.0
          %v6921 = vmul.f32 %v6918, 0.01
          %v6922 = vsel %vm6920, %v6918, %v6921
          %v6923 = vld [vmem:[#allocation28] sm:$0xff]
          %v6924 = vld [vmem:[#allocation28 + $0x8] sm:$0xff]
          %v6925 = vld [vmem:[#allocation28 + $0x10] sm:$0xff]
          %v6926 = vld [vmem:[#allocation28 + $0x18] sm:$0xff]
          %v6927 = vld [vmem:[#allocation28 + $0x20] sm:$0xff]
          %v6928 = vld [vmem:[#allocation28 + $0x28] sm:$0xff]
          %v6929 = vld [vmem:[#allocation28 + $0x30] sm:$0xff]
          %v6930 = vld [vmem:[#allocation28 + $0x38] sm:$0xff]
          %v6931 = vld [vmem:[#allocation28 + $0x40] sm:$0xff]
          %v6932 = vld [vmem:[#allocation28 + $0x48] sm:$0xff]
          %v6933 = vld [vmem:[#allocation28 + $0x50] sm:$0xff]
          %v6934 = vld [vmem:[#allocation28 + $0x58] sm:$0xff]
          %v6935 = vld [vmem:[#allocation28 + $0x60] sm:$0xff]
          %v6936 = vld [vmem:[#allocation28 + $0x68] sm:$0xff]
          %v6937 = vld [vmem:[#allocation28 + $0x70] sm:$0xff]
          %v6938 = vld [vmem:[#allocation28 + $0x78] sm:$0xff]
          %v6939 = vld [vmem:[#allocation29] sm:$0x1]
          %v6941 = vperm.slane %v6939, 0
          %6943 = vmatpush.msra.mxu0 %v6938
          %6944 = vmatpush.msra.mxu0 %v6937
          %6945 = vmatpush.msra.mxu0 %v6936
          %6946 = vmatpush.msra.mxu0 %v6935
          %6947 = vmatpush.msra.mxu0 %v6934
          %6948 = vmatpush.msra.mxu0 %v6933
          %6949 = vmatpush.msra.mxu0 %v6932
          %6950 = vmatpush.msra.mxu0 %v6931
          %6951 = vmatpush.msra.mxu0 %v6930
          %6952 = vmatpush.msra.mxu0 %v6929
          %6953 = vmatpush.msra.mxu0 %v6928
          %6954 = vmatpush.msra.mxu0 %v6927
          %6955 = vmatpush.msra.mxu0 %v6926
          %6956 = vmatpush.msra.mxu0 %v6925
          %6957 = vmatpush.msra.mxu0 %v6924
          %6958 = vmatpush.msra.mxu0 %v6923
          %6959 = vmatmul.f32.gmra.mxu0 %v6922
          %v6960 = vpop.f32.mrf.mxu0
          %v6961 = vadd.f32 %v6941, %v6960
          %6962 = vdwg.mxu0
          %vm6963 = vcmp.ge.f32.partialorder %v6961, 0.0
          %v6964 = vmul.f32 %v6961, 0.01
          %v6965 = vsel %vm6963, %v6961, %v6964
          %v6966 = vld [vmem:[#allocation31] sm:$0xff]
          %v6967 = vld [vmem:[#allocation31 + $0x8] sm:$0xff]
          %v6968 = vld [vmem:[#allocation31 + $0x10] sm:$0xff]
          %v6969 = vld [vmem:[#allocation31 + $0x18] sm:$0xff]
          %v6970 = vld [vmem:[#allocation31 + $0x20] sm:$0xff]
          %v6971 = vld [vmem:[#allocation31 + $0x28] sm:$0xff]
          %v6972 = vld [vmem:[#allocation31 + $0x30] sm:$0xff]
          %v6973 = vld [vmem:[#allocation31 + $0x38] sm:$0xff]
          %v6974 = vld [vmem:[#allocation31 + $0x40] sm:$0xff]
          %v6975 = vld [vmem:[#allocation31 + $0x48] sm:$0xff]
          %v6976 = vld [vmem:[#allocation31 + $0x50] sm:$0xff]
          %v6977 = vld [vmem:[#allocation31 + $0x58] sm:$0xff]
          %v6978 = vld [vmem:[#allocation31 + $0x60] sm:$0xff]
          %v6979 = vld [vmem:[#allocation31 + $0x68] sm:$0xff]
          %v6980 = vld [vmem:[#allocation31 + $0x70] sm:$0xff]
          %v6981 = vld [vmem:[#allocation31 + $0x78] sm:$0xff]
          %v6982 = vld [vmem:[#allocation31 + $0x80] sm:$0xff]
          %v6983 = vld [vmem:[#allocation31 + $0x88] sm:$0xff]
          %v6984 = vld [vmem:[#allocation31 + $0x90] sm:$0xff]
          %v6985 = vld [vmem:[#allocation31 + $0x98] sm:$0xff]
          %v6986 = vld [vmem:[#allocation31 + $0xa0] sm:$0xff]
          %v6987 = vld [vmem:[#allocation31 + $0xa8] sm:$0xff]
          %v6988 = vld [vmem:[#allocation31 + $0xb0] sm:$0xff]
          %v6989 = vld [vmem:[#allocation31 + $0xb8] sm:$0xff]
          %v6990 = vld [vmem:[#allocation31 + $0xc0] sm:$0xff]
          %v6991 = vld [vmem:[#allocation31 + $0xc8] sm:$0xff]
          %v6992 = vld [vmem:[#allocation31 + $0xd0] sm:$0xff]
          %v6993 = vld [vmem:[#allocation31 + $0xd8] sm:$0xff]
          %v6994 = vld [vmem:[#allocation31 + $0xe0] sm:$0xff]
          %v6995 = vld [vmem:[#allocation31 + $0xe8] sm:$0xff]
          %v6996 = vld [vmem:[#allocation31 + $0xf0] sm:$0xff]
          %v6997 = vld [vmem:[#allocation31 + $0xf8] sm:$0xff]
          %v6998 = vld [vmem:[#allocation32] sm:$0x3]
          %v7000 = vperm.slane %v6998, 0
          %v7001 = vperm.slane %v6998, 1
          %7004 = vmatpush.msra.mxu0 %v6996
          %7005 = vmatpush.msra.mxu0 %v6994
          %7006 = vmatpush.msra.mxu0 %v6992
          %7007 = vmatpush.msra.mxu0 %v6990
          %7008 = vmatpush.msra.mxu0 %v6988
          %7009 = vmatpush.msra.mxu0 %v6986
          %7010 = vmatpush.msra.mxu0 %v6984
          %7011 = vmatpush.msra.mxu0 %v6982
          %7012 = vmatpush.msra.mxu0 %v6980
          %7013 = vmatpush.msra.mxu0 %v6978
          %7014 = vmatpush.msra.mxu0 %v6976
          %7015 = vmatpush.msra.mxu0 %v6974
          %7016 = vmatpush.msra.mxu0 %v6972
          %7017 = vmatpush.msra.mxu0 %v6970
          %7018 = vmatpush.msra.mxu0 %v6968
          %7019 = vmatpush.msra.mxu0 %v6966
          %7020 = vmatmul.f32.gmra.mxu0 %v6965
          %v7021 = vpop.f32.mrf.mxu0
          %v7022 = vadd.f32 %v7000, %v7021
          %7023 = vdwg.mxu0
          %7024 = vmatpush.msra.mxu0 %v6997
          %7025 = vmatpush.msra.mxu0 %v6995
          %7026 = vmatpush.msra.mxu0 %v6993
          %7027 = vmatpush.msra.mxu0 %v6991
          %7028 = vmatpush.msra.mxu0 %v6989
          %7029 = vmatpush.msra.mxu0 %v6987
          %7030 = vmatpush.msra.mxu0 %v6985
          %7031 = vmatpush.msra.mxu0 %v6983
          %7032 = vmatpush.msra.mxu0 %v6981
          %7033 = vmatpush.msra.mxu0 %v6979
          %7034 = vmatpush.msra.mxu0 %v6977
          %7035 = vmatpush.msra.mxu0 %v6975
          %7036 = vmatpush.msra.mxu0 %v6973
          %7037 = vmatpush.msra.mxu0 %v6971
          %7038 = vmatpush.msra.mxu0 %v6969
          %7039 = vmatpush.msra.mxu0 %v6967
          %7040 = vmatmul.f32.gmra.mxu0 %v6965
          %v7041 = vpop.f32.mrf.mxu0
          %v7042 = vadd.f32 %v7001, %v7041
          %7043 = vdwg.mxu0
          %v7044 = vadd.f32 %v7022, 0.1
          %v7045 = vadd.f32 %v7042, 0.1
          %vm7046 = vcmask 1041408
          %v7047 = vsel %vm7046, %v7044, 0.0
          %v7048 = vsel %vm7046, %v7045, 0.0
          %v7049 = vadd.f32 %v7047, %v7048
          %7050 = vadd.xlane.f32.xlu0 %v7049
          %v7051 = vpop.xlane.xlu0 %7050
          %v7052 = vrcp.pop %v7051
          %v7053 = vmul.f32 %v7051, %v7052
          %v7054 = vsub.f32 1.0, %v7053
          %v7055 = vmul.f32 %v7052, %v7054
          %v7056 = vadd.f32 %v7052, %v7055
          %vm7057 = vweird.f32 %v7051
          %vm7058 = vweird.f32 %v7052
          %vm7059 = vmor %vm7057, %vm7058
          %v7060 = vsel %vm7059, %v7052, %v7056
          %v7061 = vand.u32 2147483647, %v7051
          %vm7062 = vcmp.eq.f32.partialorder %v7061, 8.507059e+37
          %v7063 = vand.u32 %v7051, 2147483648
          %v7064 = vor.u32 1.1754944e-38, %v7063
          %v7065 = vsel %vm7062, %v7064, %v7060
          %v7066 = vmul.f32 %v7044, %v7065
          %v7067 = vmul.f32 %v7045, %v7065
          %v7070 = vrot.slane %v7067, 6
          %v7071 = vsel %vm7046, %v7066, %v7070
          %7073 = vst [vmem:[%s1437] sm:$0xf] %v7071
        $region200: #{pyramid_scene_transformer_forward.2} parent=111 // pred_fallthru
          _
        %p7074 = scmp.lt.s32.totalorder %s67, 2
        %s7075 = scalar_select %p7074, %s67, 2
        %s7076 = smul.addr %s7075, 22
        %s7077 = smul.addr %s7076, 8
        %s7078 = scalar_lea.vmem %s23, %s7077
        %p7079 = scmp.lt.s32.totalorder %s67, 2
        %s7080 = scalar_select %p7079, %s67, 2
        %s7081 = smul.addr %s7080, 2
        %s7082 = smul.addr %s7081, 2
        %s7083 = scalar_lea.vmem %s24, %s7082
        // Predicated region
        $region201: #{pyramid_scene_transformer_forward.2} parent=111 // pred_check
          %p7084 = pneg %p680
        $region202: #{pyramid_scene_transformer_forward.2} parent=111 // pred_check_branch
          %7086 = sbr.rel (%p7084) target = $region204
        $region203: #{pyramid_scene_transformer_forward.2} parent=111 // pred_region
          _
        $region204: #{pyramid_scene_transformer_forward.2} parent=111 // pred_fallthru
          _
        // Predicated region
        $region205: #{pyramid_scene_transformer_forward.2} parent=111 // pred_check
          %p7087 = pneg %p706
        $region206: #{pyramid_scene_transformer_forward.2} parent=111 // pred_check_branch
          %7089 = sbr.rel (%p7087) target = $region208
        $region207: #{pyramid_scene_transformer_forward.2} parent=111 // pred_region
          _
        $region208: #{pyramid_scene_transformer_forward.2} parent=111 // pred_fallthru
          _
      $region112: #{pyramid_scene_transformer_forward.2} parent=5 // pred_fallthru
        _
      %p7090 = scmp.le.s32.totalorder 2, %s58
      // Predicated region
      $region209: #{pyramid_scene_transformer_forward.2} parent=5 // pred_check
        %p7091 = pneg %p7090
      $region210: #{pyramid_scene_transformer_forward.2} parent=5 // pred_check_branch
        %7093 = sbr.rel (%p7091) target = $region212
      $region211: #{pyramid_scene_transformer_forward.2} parent=5 // pred_region
        %s7094 = ssub.s32 %s58, 2
        // Predicated region
        $region213: #{pyramid_scene_transformer_forward.2} parent=211 // pred_check
          %p7095 = pneg %p686
        $region214: #{pyramid_scene_transformer_forward.2} parent=211 // pred_check_branch
          %7097 = sbr.rel (%p7095) target = $region216
        $region215: #{pyramid_scene_transformer_forward.2} parent=211 // pred_region
          %p7098 = scmp.lt.s32.totalorder %s69, 2
          %s7099 = scalar_select %p7098, %s69, 2
          %s7100 = smul.addr %s7099, 22
          %s7101 = smul.addr %s7100, 8
          %s7102 = scalar_lea.vmem %s23, %s7101
        $region216: #{pyramid_scene_transformer_forward.2} parent=211 // pred_fallthru
          _
        // Predicated region
        $region217: #{pyramid_scene_transformer_forward.2} parent=211 // pred_check
          %p7103 = pneg %p712
        $region218: #{pyramid_scene_transformer_forward.2} parent=211 // pred_check_branch
          %7105 = sbr.rel (%p7103) target = $region220
        $region219: #{pyramid_scene_transformer_forward.2} parent=211 // pred_region
          %p7106 = scmp.lt.s32.totalorder %s69, 2
          %s7107 = scalar_select %p7106, %s69, 2
          %s7108 = smul.addr %s7107, 2
          %s7109 = smul.addr %s7108, 2
          %s7110 = scalar_lea.vmem %s24, %s7109
        $region220: #{pyramid_scene_transformer_forward.2} parent=211 // pred_fallthru
          _
      $region212: #{pyramid_scene_transformer_forward.2} parent=5 // pred_fallthru
        _
    $region6: #{pyramid_scene_transformer_forward.2} parent=1 // loop_footer
      %s62 = sadd.s32 1, %s58
    $region7: #{pyramid_scene_transformer_forward.2} parent=1 // loop_footer_branch
      %57 = sbr.rel target = $region3
    $region8: #{pyramid_scene_transformer_forward.2} parent=1 // loop_exit
      _
    %7111 = vsyncpa [#allocation4], 1
    %s7112 = scalar_lea.sflag [#allocation4], 1
    %7113 = vsyncpa %s7112, 1
    %7114 = vsyncpa [#allocation6], 1
    %s7115 = scalar_lea.sflag [#allocation6], 1
    %7116 = vsyncpa %s7115, 1
    %7117 = vsyncpa [#allocation9], 1
    %s7118 = scalar_lea.sflag [#allocation9], 1
    %7119 = vsyncpa %s7118, 1
    %7120 = vsyncpa [#allocation12], 1
    %s7121 = scalar_lea.sflag [#allocation12], 1
    %7122 = vsyncpa %s7121, 1
    %7123 = vsyncpa [#allocation15], 1
    %s7124 = scalar_lea.sflag [#allocation15], 1
    %7125 = vsyncpa %s7124, 1
    %7126 = vsyncpa [#allocation18], 1
    %s7127 = scalar_lea.sflag [#allocation18], 1
    %7128 = vsyncpa %s7127, 1
    %7129 = vsyncpa [#allocation21], 1
    %s7130 = scalar_lea.sflag [#allocation21], 1
    %7131 = vsyncpa %s7130, 1
    %7132 = vsyncpa [#allocation24], 1
    %s7133 = scalar_lea.sflag [#allocation24], 1
    %7134 = vsyncpa %s7133, 1
    %7135 = vsyncpa [#allocation27], 1
    %7136 = vsyncpa [#allocation30], 1
    %7137 = vsyncpa [#allocation33], 1

// kernel: pyramid_scene_transformer_forward.3
$region0: #{pyramid_scene_transformer_forward.3}
  #allocation0 [shape = 'u32[]', space=smem, size = 0x4, offset = 0x4, fixed_abs, tag = 'smem constant byte address 0x4 - core index']
  #allocation1 [shape = 'u32[72,128]{1,0:T(1,128)}', space=vmem, size = 0x9000, scoped, tag = 'internal scratch']
  %s0 = inlined_call_operand.vmem [shape: bf16[8,864], index: 0, kind: input, shape index: {}]
  %s1 = inlined_call_operand.vmem [shape: bf16[864,512], index: 1, kind: input, shape index: {}]
  %s2 = inlined_call_operand.vmem [shape: f32[8,1], index: 2, kind: input, shape index: {}]
  %s3 = inlined_call_operand.vmem [shape: f32[8,512], index: 3, kind: output, shape index: {}]
  %s4 = sld [smem:[#allocation0]]
  $region22: #{pyramid_scene_transformer_forward.3} parent=0
    _
  %s6 = ssub.s32 1, %s4
  %s7 = scalar_select 0, %s6, %s4
  // Predicated region
  $region2: #{pyramid_scene_transformer_forward.3} parent=0 // pred_check
    _
  $region3: #{pyramid_scene_transformer_forward.3} parent=0 // pred_check_branch
    %9 = sbr.rel (0) target = $region5
  $region4: #{pyramid_scene_transformer_forward.3} parent=0 // pred_region
    _
  $region5: #{pyramid_scene_transformer_forward.3} parent=0 // pred_fallthru
    _
  // Predicated region
  $region6: #{pyramid_scene_transformer_forward.3} parent=0 // pred_check
    _
  $region7: #{pyramid_scene_transformer_forward.3} parent=0 // pred_check_branch
    %11 = sbr.rel (0) target = $region9
  $region8: #{pyramid_scene_transformer_forward.3} parent=0 // pred_region
    _
  $region9: #{pyramid_scene_transformer_forward.3} parent=0 // pred_fallthru
    _
  // Predicated region
  $region10: #{pyramid_scene_transformer_forward.3} parent=0 // pred_check
    _
  $region11: #{pyramid_scene_transformer_forward.3} parent=0 // pred_check_branch
    %13 = sbr.rel (0) target = $region13
  $region12: #{pyramid_scene_transformer_forward.3} parent=0 // pred_region
    _
  $region13: #{pyramid_scene_transformer_forward.3} parent=0 // pred_fallthru
    _
  %v15 = vld [vmem:[%s0] sm:$0xff]
  %v16 = vld [vmem:[%s0 + $0x8] sm:$0xff]
  %v17 = vld [vmem:[%s0 + $0x10] sm:$0xff]
  %v18 = vld [vmem:[%s0 + $0x18] sm:$0xf]
  %v19 = vld [vmem:[%s1] sm:$0xff]
  %v20 = vld [vmem:[%s1 + $0x8] sm:$0xff]
  %v21 = vld [vmem:[%s1 + $0x10] sm:$0xff]
  %v22 = vld [vmem:[%s1 + $0x18] sm:$0xff]
  %v23 = vld [vmem:[%s1 + $0x20] sm:$0xff]
  %v24 = vld [vmem:[%s1 + $0x28] sm:$0xff]
  %v25 = vld [vmem:[%s1 + $0x30] sm:$0xff]
  %v26 = vld [vmem:[%s1 + $0x38] sm:$0xff]
  %v27 = vld [vmem:[%s1 + $0x40] sm:$0xff]
  %v28 = vld [vmem:[%s1 + $0x48] sm:$0xff]
  %v29 = vld [vmem:[%s1 + $0x50] sm:$0xff]
  %v30 = vld [vmem:[%s1 + $0x58] sm:$0xff]
  %v31 = vld [vmem:[%s1 + $0x60] sm:$0xff]
  %v32 = vld [vmem:[%s1 + $0x68] sm:$0xff]
  %v33 = vld [vmem:[%s1 + $0x70] sm:$0xff]
  %v34 = vld [vmem:[%s1 + $0x78] sm:$0xff]
  %v35 = vld [vmem:[%s1 + $0x80] sm:$0xff]
  %v36 = vld [vmem:[%s1 + $0x88] sm:$0xff]
  %v37 = vld [vmem:[%s1 + $0x90] sm:$0xff]
  %v38 = vld [vmem:[%s1 + $0x98] sm:$0xff]
  %v39 = vld [vmem:[%s1 + $0xa0] sm:$0xff]
  %v40 = vld [vmem:[%s1 + $0xa8] sm:$0xff]
  %v41 = vld [vmem:[%s1 + $0xb0] sm:$0xff]
  %v42 = vld [vmem:[%s1 + $0xb8] sm:$0xff]
  %v43 = vld [vmem:[%s1 + $0xc0] sm:$0xff]
  %v44 = vld [vmem:[%s1 + $0xc8] sm:$0xff]
  %v45 = vld [vmem:[%s1 + $0xd0] sm:$0xff]
  %v46 = vld [vmem:[%s1 + $0xd8] sm:$0xff]
  %v47 = vld [vmem:[%s1 + $0xe0] sm:$0xff]
  %v48 = vld [vmem:[%s1 + $0xe8] sm:$0xff]
  %v49 = vld [vmem:[%s1 + $0xf0] sm:$0xff]
  %v50 = vld [vmem:[%s1 + $0xf8] sm:$0xff]
  %v51 = vld [vmem:[%s1 + $0x100] sm:$0xff]
  %v52 = vld [vmem:[%s1 + $0x108] sm:$0xff]
  %v53 = vld [vmem:[%s1 + $0x110] sm:$0xff]
  %v54 = vld [vmem:[%s1 + $0x118] sm:$0xff]
  %v55 = vld [vmem:[%s1 + $0x120] sm:$0xff]
  %v56 = vld [vmem:[%s1 + $0x128] sm:$0xff]
  %v57 = vld [vmem:[%s1 + $0x130] sm:$0xff]
  %v58 = vld [vmem:[%s1 + $0x138] sm:$0xff]
  %v59 = vld [vmem:[%s1 + $0x140] sm:$0xff]
  %v60 = vld [vmem:[%s1 + $0x148] sm:$0xff]
  %v61 = vld [vmem:[%s1 + $0x150] sm:$0xff]
  %v62 = vld [vmem:[%s1 + $0x158] sm:$0xff]
  %v63 = vld [vmem:[%s1 + $0x160] sm:$0xff]
  %v64 = vld [vmem:[%s1 + $0x168] sm:$0xff]
  %v65 = vld [vmem:[%s1 + $0x170] sm:$0xff]
  %v66 = vld [vmem:[%s1 + $0x178] sm:$0xff]
  %v67 = vld [vmem:[%s1 + $0x180] sm:$0xff]
  %v68 = vld [vmem:[%s1 + $0x188] sm:$0xff]
  %v69 = vld [vmem:[%s1 + $0x190] sm:$0xff]
  %v70 = vld [vmem:[%s1 + $0x198] sm:$0xff]
  %v71 = vld [vmem:[%s1 + $0x1a0] sm:$0xff]
  %v72 = vld [vmem:[%s1 + $0x1a8] sm:$0xff]
  %v73 = vld [vmem:[%s1 + $0x1b0] sm:$0xff]
  %v74 = vld [vmem:[%s1 + $0x1b8] sm:$0xff]
  %v75 = vld [vmem:[%s1 + $0x1c0] sm:$0xff]
  %v76 = vld [vmem:[%s1 + $0x1c8] sm:$0xff]
  %v77 = vld [vmem:[%s1 + $0x1d0] sm:$0xff]
  %v78 = vld [vmem:[%s1 + $0x1d8] sm:$0xff]
  %v79 = vld [vmem:[%s1 + $0x1e0] sm:$0xff]
  %v80 = vld [vmem:[%s1 + $0x1e8] sm:$0xff]
  %v81 = vld [vmem:[%s1 + $0x1f0] sm:$0xff]
  %v82 = vld [vmem:[%s1 + $0x1f8] sm:$0xff]
  %v83 = vld [vmem:[%s1 + $0x200] sm:$0xff]
  %v84 = vld [vmem:[%s1 + $0x208] sm:$0xff]
  %v85 = vld [vmem:[%s1 + $0x210] sm:$0xff]
  %v86 = vld [vmem:[%s1 + $0x218] sm:$0xff]
  %v87 = vld [vmem:[%s1 + $0x220] sm:$0xff]
  %v88 = vld [vmem:[%s1 + $0x228] sm:$0xff]
  %v89 = vld [vmem:[%s1 + $0x230] sm:$0xff]
  %v90 = vld [vmem:[%s1 + $0x238] sm:$0xff]
  %v91 = vld [vmem:[%s1 + $0x240] sm:$0xff]
  %v92 = vld [vmem:[%s1 + $0x248] sm:$0xff]
  %v93 = vld [vmem:[%s1 + $0x250] sm:$0xff]
  %v94 = vld [vmem:[%s1 + $0x258] sm:$0xff]
  %v95 = vld [vmem:[%s1 + $0x260] sm:$0xff]
  %v96 = vld [vmem:[%s1 + $0x268] sm:$0xff]
  %v97 = vld [vmem:[%s1 + $0x270] sm:$0xff]
  %v98 = vld [vmem:[%s1 + $0x278] sm:$0xff]
  %v99 = vld [vmem:[%s1 + $0x280] sm:$0xff]
  %v100 = vld [vmem:[%s1 + $0x288] sm:$0xff]
  %v101 = vld [vmem:[%s1 + $0x290] sm:$0xff]
  %v102 = vld [vmem:[%s1 + $0x298] sm:$0xff]
  %v103 = vld [vmem:[%s1 + $0x2a0] sm:$0xff]
  %v104 = vld [vmem:[%s1 + $0x2a8] sm:$0xff]
  %v105 = vld [vmem:[%s1 + $0x2b0] sm:$0xff]
  %v106 = vld [vmem:[%s1 + $0x2b8] sm:$0xff]
  %v107 = vld [vmem:[%s1 + $0x2c0] sm:$0xff]
  %v108 = vld [vmem:[%s1 + $0x2c8] sm:$0xff]
  %v109 = vld [vmem:[%s1 + $0x2d0] sm:$0xff]
  %v110 = vld [vmem:[%s1 + $0x2d8] sm:$0xff]
  %v111 = vld [vmem:[%s1 + $0x2e0] sm:$0xff]
  %v112 = vld [vmem:[%s1 + $0x2e8] sm:$0xff]
  %v113 = vld [vmem:[%s1 + $0x2f0] sm:$0xff]
  %v114 = vld [vmem:[%s1 + $0x2f8] sm:$0xff]
  %v115 = vld [vmem:[%s1 + $0x300] sm:$0xff]
  %v116 = vld [vmem:[%s1 + $0x308] sm:$0xff]
  %v117 = vld [vmem:[%s1 + $0x310] sm:$0xff]
  %v118 = vld [vmem:[%s1 + $0x318] sm:$0xff]
  %v119 = vld [vmem:[%s1 + $0x320] sm:$0xff]
  %v120 = vld [vmem:[%s1 + $0x328] sm:$0xff]
  %v121 = vld [vmem:[%s1 + $0x330] sm:$0xff]
  %v122 = vld [vmem:[%s1 + $0x338] sm:$0xff]
  %v123 = vld [vmem:[%s1 + $0x340] sm:$0xff]
  %v124 = vld [vmem:[%s1 + $0x348] sm:$0xff]
  %v125 = vld [vmem:[%s1 + $0x350] sm:$0xff]
  %v126 = vld [vmem:[%s1 + $0x358] sm:$0xff]
  %v127 = vld [vmem:[%s1 + $0x360] sm:$0xff]
  %v128 = vld [vmem:[%s1 + $0x368] sm:$0xff]
  %v129 = vld [vmem:[%s1 + $0x370] sm:$0xff]
  %v130 = vld [vmem:[%s1 + $0x378] sm:$0xff]
  %v131 = vld [vmem:[%s1 + $0x380] sm:$0xff]
  %v132 = vld [vmem:[%s1 + $0x388] sm:$0xff]
  %v133 = vld [vmem:[%s1 + $0x390] sm:$0xff]
  %v134 = vld [vmem:[%s1 + $0x398] sm:$0xff]
  %v135 = vld [vmem:[%s1 + $0x3a0] sm:$0xff]
  %v136 = vld [vmem:[%s1 + $0x3a8] sm:$0xff]
  %v137 = vld [vmem:[%s1 + $0x3b0] sm:$0xff]
  %v138 = vld [vmem:[%s1 + $0x3b8] sm:$0xff]
  %v139 = vld [vmem:[%s1 + $0x3c0] sm:$0xff]
  %v140 = vld [vmem:[%s1 + $0x3c8] sm:$0xff]
  %v141 = vld [vmem:[%s1 + $0x3d0] sm:$0xff]
  %v142 = vld [vmem:[%s1 + $0x3d8] sm:$0xff]
  %v143 = vld [vmem:[%s1 + $0x3e0] sm:$0xff]
  %v144 = vld [vmem:[%s1 + $0x3e8] sm:$0xff]
  %v145 = vld [vmem:[%s1 + $0x3f0] sm:$0xff]
  %v146 = vld [vmem:[%s1 + $0x3f8] sm:$0xff]
  %v147 = vld [vmem:[%s1 + $0x400] sm:$0xff]
  %v148 = vld [vmem:[%s1 + $0x408] sm:$0xff]
  %v149 = vld [vmem:[%s1 + $0x410] sm:$0xff]
  %v150 = vld [vmem:[%s1 + $0x418] sm:$0xff]
  %v151 = vld [vmem:[%s1 + $0x420] sm:$0xff]
  %v152 = vld [vmem:[%s1 + $0x428] sm:$0xff]
  %v153 = vld [vmem:[%s1 + $0x430] sm:$0xff]
  %v154 = vld [vmem:[%s1 + $0x438] sm:$0xff]
  %v155 = vld [vmem:[%s1 + $0x440] sm:$0xff]
  %v156 = vld [vmem:[%s1 + $0x448] sm:$0xff]
  %v157 = vld [vmem:[%s1 + $0x450] sm:$0xff]
  %v158 = vld [vmem:[%s1 + $0x458] sm:$0xff]
  %v159 = vld [vmem:[%s1 + $0x460] sm:$0xff]
  %v160 = vld [vmem:[%s1 + $0x468] sm:$0xff]
  %v161 = vld [vmem:[%s1 + $0x470] sm:$0xff]
  %v162 = vld [vmem:[%s1 + $0x478] sm:$0xff]
  %v163 = vld [vmem:[%s1 + $0x480] sm:$0xff]
  %v164 = vld [vmem:[%s1 + $0x488] sm:$0xff]
  %v165 = vld [vmem:[%s1 + $0x490] sm:$0xff]
  %v166 = vld [vmem:[%s1 + $0x498] sm:$0xff]
  %v167 = vld [vmem:[%s1 + $0x4a0] sm:$0xff]
  %v168 = vld [vmem:[%s1 + $0x4a8] sm:$0xff]
  %v169 = vld [vmem:[%s1 + $0x4b0] sm:$0xff]
  %v170 = vld [vmem:[%s1 + $0x4b8] sm:$0xff]
  %v171 = vld [vmem:[%s1 + $0x4c0] sm:$0xff]
  %v172 = vld [vmem:[%s1 + $0x4c8] sm:$0xff]
  %v173 = vld [vmem:[%s1 + $0x4d0] sm:$0xff]
  %v174 = vld [vmem:[%s1 + $0x4d8] sm:$0xff]
  %v175 = vld [vmem:[%s1 + $0x4e0] sm:$0xff]
  %v176 = vld [vmem:[%s1 + $0x4e8] sm:$0xff]
  %v177 = vld [vmem:[%s1 + $0x4f0] sm:$0xff]
  %v178 = vld [vmem:[%s1 + $0x4f8] sm:$0xff]
  %v179 = vld [vmem:[%s1 + $0x500] sm:$0xff]
  %v180 = vld [vmem:[%s1 + $0x508] sm:$0xff]
  %v181 = vld [vmem:[%s1 + $0x510] sm:$0xff]
  %v182 = vld [vmem:[%s1 + $0x518] sm:$0xff]
  %v183 = vld [vmem:[%s1 + $0x520] sm:$0xff]
  %v184 = vld [vmem:[%s1 + $0x528] sm:$0xff]
  %v185 = vld [vmem:[%s1 + $0x530] sm:$0xff]
  %v186 = vld [vmem:[%s1 + $0x538] sm:$0xff]
  %v187 = vld [vmem:[%s1 + $0x540] sm:$0xff]
  %v188 = vld [vmem:[%s1 + $0x548] sm:$0xff]
  %v189 = vld [vmem:[%s1 + $0x550] sm:$0xff]
  %v190 = vld [vmem:[%s1 + $0x558] sm:$0xff]
  %v191 = vld [vmem:[%s1 + $0x560] sm:$0xff]
  %v192 = vld [vmem:[%s1 + $0x568] sm:$0xff]
  %v193 = vld [vmem:[%s1 + $0x570] sm:$0xff]
  %v194 = vld [vmem:[%s1 + $0x578] sm:$0xff]
  %v195 = vld [vmem:[%s1 + $0x580] sm:$0xff]
  %v196 = vld [vmem:[%s1 + $0x588] sm:$0xff]
  %v197 = vld [vmem:[%s1 + $0x590] sm:$0xff]
  %v198 = vld [vmem:[%s1 + $0x598] sm:$0xff]
  %v199 = vld [vmem:[%s1 + $0x5a0] sm:$0xff]
  %v200 = vld [vmem:[%s1 + $0x5a8] sm:$0xff]
  %v201 = vld [vmem:[%s1 + $0x5b0] sm:$0xff]
  %v202 = vld [vmem:[%s1 + $0x5b8] sm:$0xff]
  %v203 = vld [vmem:[%s1 + $0x5c0] sm:$0xff]
  %v204 = vld [vmem:[%s1 + $0x5c8] sm:$0xff]
  %v205 = vld [vmem:[%s1 + $0x5d0] sm:$0xff]
  %v206 = vld [vmem:[%s1 + $0x5d8] sm:$0xff]
  %v207 = vld [vmem:[%s1 + $0x5e0] sm:$0xff]
  %v208 = vld [vmem:[%s1 + $0x5e8] sm:$0xff]
  %v209 = vld [vmem:[%s1 + $0x5f0] sm:$0xff]
  %v210 = vld [vmem:[%s1 + $0x5f8] sm:$0xff]
  %v211 = vld [vmem:[%s1 + $0x600] sm:$0xff]
  %v212 = vld [vmem:[%s1 + $0x608] sm:$0xff]
  %v213 = vld [vmem:[%s1 + $0x610] sm:$0xff]
  %v214 = vld [vmem:[%s1 + $0x618] sm:$0xff]
  %v215 = vld [vmem:[%s1 + $0x620] sm:$0xff]
  %v216 = vld [vmem:[%s1 + $0x628] sm:$0xff]
  %v217 = vld [vmem:[%s1 + $0x630] sm:$0xff]
  %v218 = vld [vmem:[%s1 + $0x638] sm:$0xff]
  %v219 = vld [vmem:[%s1 + $0x640] sm:$0xff]
  %v220 = vld [vmem:[%s1 + $0x648] sm:$0xff]
  %v221 = vld [vmem:[%s1 + $0x650] sm:$0xff]
  %v222 = vld [vmem:[%s1 + $0x658] sm:$0xff]
  %v223 = vld [vmem:[%s1 + $0x660] sm:$0xff]
  %v224 = vld [vmem:[%s1 + $0x668] sm:$0xff]
  %v225 = vld [vmem:[%s1 + $0x670] sm:$0xff]
  %v226 = vld [vmem:[%s1 + $0x678] sm:$0xff]
  %v227 = vld [vmem:[%s1 + $0x680] sm:$0xff]
  %v228 = vld [vmem:[%s1 + $0x688] sm:$0xff]
  %v229 = vld [vmem:[%s1 + $0x690] sm:$0xff]
  %v230 = vld [vmem:[%s1 + $0x698] sm:$0xff]
  %v231 = vld [vmem:[%s1 + $0x6a0] sm:$0xff]
  %v232 = vld [vmem:[%s1 + $0x6a8] sm:$0xff]
  %v233 = vld [vmem:[%s1 + $0x6b0] sm:$0xff]
  %v234 = vld [vmem:[%s1 + $0x6b8] sm:$0xff]
  %v235 = vld [vmem:[%s2] sm:$0xff]
  %237 = vset.pattern.permute.xlu0 0
  %238 = vperm.xlu0 %237, %v235
  %v239 = vpop.permute.xlu0 %238
  %v245 = vunpack.c.l.b16 %v15
  %v246 = vunpack.c.h.b16 %v15
  %v247 = vunpack.c.l.b16 %v16
  %v248 = vunpack.c.h.b16 %v16
  %v249 = vunpack.c.l.b16 %v17
  %v250 = vunpack.c.h.b16 %v17
  %v251 = vunpack.c.l.b16 %v18
  %v252 = vpack.c.b16 %v245, %v245
  %v253 = vpack.c.b16 %v246, %v246
  %v254 = vpack.c.b16 %v247, %v247
  %v255 = vpack.c.b16 %v248, %v248
  %v256 = vpack.c.b16 %v249, %v249
  %v257 = vpack.c.b16 %v250, %v250
  %v258 = vpack.c.b16 %v251, %v251
  %v481 = vunpack.c.l.b16 %v19
  %v482 = vunpack.c.h.b16 %v19
  %v483 = vunpack.c.l.b16 %v20
  %v484 = vunpack.c.h.b16 %v20
  %v485 = vunpack.c.l.b16 %v21
  %v486 = vunpack.c.h.b16 %v21
  %v487 = vunpack.c.l.b16 %v22
  %v488 = vunpack.c.h.b16 %v22
  %v489 = vunpack.c.l.b16 %v23
  %v490 = vunpack.c.h.b16 %v23
  %v491 = vunpack.c.l.b16 %v24
  %v492 = vunpack.c.h.b16 %v24
  %v493 = vunpack.c.l.b16 %v25
  %v494 = vunpack.c.h.b16 %v25
  %v495 = vunpack.c.l.b16 %v26
  %v496 = vunpack.c.h.b16 %v26
  %v497 = vunpack.c.l.b16 %v27
  %v498 = vunpack.c.h.b16 %v27
  %v499 = vunpack.c.l.b16 %v28
  %v500 = vunpack.c.h.b16 %v28
  %v501 = vunpack.c.l.b16 %v29
  %v502 = vunpack.c.h.b16 %v29
  %v503 = vunpack.c.l.b16 %v30
  %v504 = vunpack.c.h.b16 %v30
  %v505 = vunpack.c.l.b16 %v31
  %v506 = vunpack.c.h.b16 %v31
  %v507 = vunpack.c.l.b16 %v32
  %v508 = vunpack.c.h.b16 %v32
  %v509 = vunpack.c.l.b16 %v33
  %v510 = vunpack.c.h.b16 %v33
  %v511 = vunpack.c.l.b16 %v34
  %v512 = vunpack.c.h.b16 %v34
  %v513 = vunpack.c.l.b16 %v35
  %v514 = vunpack.c.h.b16 %v35
  %v515 = vunpack.c.l.b16 %v36
  %v516 = vunpack.c.h.b16 %v36
  %v517 = vunpack.c.l.b16 %v37
  %v518 = vunpack.c.h.b16 %v37
  %v519 = vunpack.c.l.b16 %v38
  %v520 = vunpack.c.h.b16 %v38
  %v521 = vunpack.c.l.b16 %v39
  %v522 = vunpack.c.h.b16 %v39
  %v523 = vunpack.c.l.b16 %v40
  %v524 = vunpack.c.h.b16 %v40
  %v525 = vunpack.c.l.b16 %v41
  %v526 = vunpack.c.h.b16 %v41
  %v527 = vunpack.c.l.b16 %v42
  %v528 = vunpack.c.h.b16 %v42
  %v529 = vunpack.c.l.b16 %v43
  %v530 = vunpack.c.h.b16 %v43
  %v531 = vunpack.c.l.b16 %v44
  %v532 = vunpack.c.h.b16 %v44
  %v533 = vunpack.c.l.b16 %v45
  %v534 = vunpack.c.h.b16 %v45
  %v535 = vunpack.c.l.b16 %v46
  %v536 = vunpack.c.h.b16 %v46
  %v537 = vunpack.c.l.b16 %v47
  %v538 = vunpack.c.h.b16 %v47
  %v539 = vunpack.c.l.b16 %v48
  %v540 = vunpack.c.h.b16 %v48
  %v541 = vunpack.c.l.b16 %v49
  %v542 = vunpack.c.h.b16 %v49
  %v543 = vunpack.c.l.b16 %v50
  %v544 = vunpack.c.h.b16 %v50
  %v545 = vunpack.c.l.b16 %v51
  %v546 = vunpack.c.h.b16 %v51
  %v547 = vunpack.c.l.b16 %v52
  %v548 = vunpack.c.h.b16 %v52
  %v549 = vunpack.c.l.b16 %v53
  %v550 = vunpack.c.h.b16 %v53
  %v551 = vunpack.c.l.b16 %v54
  %v552 = vunpack.c.h.b16 %v54
  %v553 = vunpack.c.l.b16 %v55
  %v554 = vunpack.c.h.b16 %v55
  %v555 = vunpack.c.l.b16 %v56
  %v556 = vunpack.c.h.b16 %v56
  %v557 = vunpack.c.l.b16 %v57
  %v558 = vunpack.c.h.b16 %v57
  %v559 = vunpack.c.l.b16 %v58
  %v560 = vunpack.c.h.b16 %v58
  %v561 = vunpack.c.l.b16 %v59
  %v562 = vunpack.c.h.b16 %v59
  %v563 = vunpack.c.l.b16 %v60
  %v564 = vunpack.c.h.b16 %v60
  %v565 = vunpack.c.l.b16 %v61
  %v566 = vunpack.c.h.b16 %v61
  %v567 = vunpack.c.l.b16 %v62
  %v568 = vunpack.c.h.b16 %v62
  %v569 = vunpack.c.l.b16 %v63
  %v570 = vunpack.c.h.b16 %v63
  %v571 = vunpack.c.l.b16 %v64
  %v572 = vunpack.c.h.b16 %v64
  %v573 = vunpack.c.l.b16 %v65
  %v574 = vunpack.c.h.b16 %v65
  %v575 = vunpack.c.l.b16 %v66
  %v576 = vunpack.c.h.b16 %v66
  %v577 = vunpack.c.l.b16 %v67
  %v578 = vunpack.c.h.b16 %v67
  %v579 = vunpack.c.l.b16 %v68
  %v580 = vunpack.c.h.b16 %v68
  %v581 = vunpack.c.l.b16 %v69
  %v582 = vunpack.c.h.b16 %v69
  %v583 = vunpack.c.l.b16 %v70
  %v584 = vunpack.c.h.b16 %v70
  %v585 = vunpack.c.l.b16 %v71
  %v586 = vunpack.c.h.b16 %v71
  %v587 = vunpack.c.l.b16 %v72
  %v588 = vunpack.c.h.b16 %v72
  %v589 = vunpack.c.l.b16 %v73
  %v590 = vunpack.c.h.b16 %v73
  %v591 = vunpack.c.l.b16 %v74
  %v592 = vunpack.c.h.b16 %v74
  %v593 = vunpack.c.l.b16 %v75
  %v594 = vunpack.c.h.b16 %v75
  %v595 = vunpack.c.l.b16 %v76
  %v596 = vunpack.c.h.b16 %v76
  %v597 = vunpack.c.l.b16 %v77
  %v598 = vunpack.c.h.b16 %v77
  %v599 = vunpack.c.l.b16 %v78
  %v600 = vunpack.c.h.b16 %v78
  %v601 = vunpack.c.l.b16 %v79
  %v602 = vunpack.c.h.b16 %v79
  %v603 = vunpack.c.l.b16 %v80
  %v604 = vunpack.c.h.b16 %v80
  %v605 = vunpack.c.l.b16 %v81
  %v606 = vunpack.c.h.b16 %v81
  %v607 = vunpack.c.l.b16 %v82
  %v608 = vunpack.c.h.b16 %v82
  %v609 = vunpack.c.l.b16 %v83
  %v610 = vunpack.c.h.b16 %v83
  %v611 = vunpack.c.l.b16 %v84
  %v612 = vunpack.c.h.b16 %v84
  %v613 = vunpack.c.l.b16 %v85
  %v614 = vunpack.c.h.b16 %v85
  %v615 = vunpack.c.l.b16 %v86
  %v616 = vunpack.c.h.b16 %v86
  %v617 = vunpack.c.l.b16 %v87
  %v618 = vunpack.c.h.b16 %v87
  %v619 = vunpack.c.l.b16 %v88
  %v620 = vunpack.c.h.b16 %v88
  %v621 = vunpack.c.l.b16 %v89
  %v622 = vunpack.c.h.b16 %v89
  %v623 = vunpack.c.l.b16 %v90
  %v624 = vunpack.c.h.b16 %v90
  %v625 = vunpack.c.l.b16 %v91
  %v626 = vunpack.c.h.b16 %v91
  %v627 = vunpack.c.l.b16 %v92
  %v628 = vunpack.c.h.b16 %v92
  %v629 = vunpack.c.l.b16 %v93
  %v630 = vunpack.c.h.b16 %v93
  %v631 = vunpack.c.l.b16 %v94
  %v632 = vunpack.c.h.b16 %v94
  %v633 = vunpack.c.l.b16 %v95
  %v634 = vunpack.c.h.b16 %v95
  %v635 = vunpack.c.l.b16 %v96
  %v636 = vunpack.c.h.b16 %v96
  %v637 = vunpack.c.l.b16 %v97
  %v638 = vunpack.c.h.b16 %v97
  %v639 = vunpack.c.l.b16 %v98
  %v640 = vunpack.c.h.b16 %v98
  %v641 = vunpack.c.l.b16 %v99
  %v642 = vunpack.c.h.b16 %v99
  %v643 = vunpack.c.l.b16 %v100
  %v644 = vunpack.c.h.b16 %v100
  %v645 = vunpack.c.l.b16 %v101
  %v646 = vunpack.c.h.b16 %v101
  %v647 = vunpack.c.l.b16 %v102
  %v648 = vunpack.c.h.b16 %v102
  %v649 = vunpack.c.l.b16 %v103
  %v650 = vunpack.c.h.b16 %v103
  %v651 = vunpack.c.l.b16 %v104
  %v652 = vunpack.c.h.b16 %v104
  %v653 = vunpack.c.l.b16 %v105
  %v654 = vunpack.c.h.b16 %v105
  %v655 = vunpack.c.l.b16 %v106
  %v656 = vunpack.c.h.b16 %v106
  %v657 = vunpack.c.l.b16 %v107
  %v658 = vunpack.c.h.b16 %v107
  %v659 = vunpack.c.l.b16 %v108
  %v660 = vunpack.c.h.b16 %v108
  %v661 = vunpack.c.l.b16 %v109
  %v662 = vunpack.c.h.b16 %v109
  %v663 = vunpack.c.l.b16 %v110
  %v664 = vunpack.c.h.b16 %v110
  %v665 = vunpack.c.l.b16 %v111
  %v666 = vunpack.c.h.b16 %v111
  %v667 = vunpack.c.l.b16 %v112
  %v668 = vunpack.c.h.b16 %v112
  %v669 = vunpack.c.l.b16 %v113
  %v670 = vunpack.c.h.b16 %v113
  %v671 = vunpack.c.l.b16 %v114
  %v672 = vunpack.c.h.b16 %v114
  %v673 = vunpack.c.l.b16 %v115
  %v674 = vunpack.c.h.b16 %v115
  %v675 = vunpack.c.l.b16 %v116
  %v676 = vunpack.c.h.b16 %v116
  %v677 = vunpack.c.l.b16 %v117
  %v678 = vunpack.c.h.b16 %v117
  %v679 = vunpack.c.l.b16 %v118
  %v680 = vunpack.c.h.b16 %v118
  %v681 = vunpack.c.l.b16 %v119
  %v682 = vunpack.c.h.b16 %v119
  %v683 = vunpack.c.l.b16 %v120
  %v684 = vunpack.c.h.b16 %v120
  %v685 = vunpack.c.l.b16 %v121
  %v686 = vunpack.c.h.b16 %v121
  %v687 = vunpack.c.l.b16 %v122
  %v688 = vunpack.c.h.b16 %v122
  %v689 = vunpack.c.l.b16 %v123
  %v690 = vunpack.c.h.b16 %v123
  %v691 = vunpack.c.l.b16 %v124
  %v692 = vunpack.c.h.b16 %v124
  %v693 = vunpack.c.l.b16 %v125
  %v694 = vunpack.c.h.b16 %v125
  %v695 = vunpack.c.l.b16 %v126
  %v696 = vunpack.c.h.b16 %v126
  %v697 = vunpack.c.l.b16 %v127
  %v698 = vunpack.c.h.b16 %v127
  %v699 = vunpack.c.l.b16 %v128
  %v700 = vunpack.c.h.b16 %v128
  %v701 = vunpack.c.l.b16 %v129
  %v702 = vunpack.c.h.b16 %v129
  %v703 = vunpack.c.l.b16 %v130
  %v704 = vunpack.c.h.b16 %v130
  %v705 = vunpack.c.l.b16 %v131
  %v706 = vunpack.c.h.b16 %v131
  %v707 = vunpack.c.l.b16 %v132
  %v708 = vunpack.c.h.b16 %v132
  %v709 = vunpack.c.l.b16 %v133
  %v710 = vunpack.c.h.b16 %v133
  %v711 = vunpack.c.l.b16 %v134
  %v712 = vunpack.c.h.b16 %v134
  %v713 = vunpack.c.l.b16 %v135
  %v714 = vunpack.c.h.b16 %v135
  %v715 = vunpack.c.l.b16 %v136
  %v716 = vunpack.c.h.b16 %v136
  %v717 = vunpack.c.l.b16 %v137
  %v718 = vunpack.c.h.b16 %v137
  %v719 = vunpack.c.l.b16 %v138
  %v720 = vunpack.c.h.b16 %v138
  %v721 = vunpack.c.l.b16 %v139
  %v722 = vunpack.c.h.b16 %v139
  %v723 = vunpack.c.l.b16 %v140
  %v724 = vunpack.c.h.b16 %v140
  %v725 = vunpack.c.l.b16 %v141
  %v726 = vunpack.c.h.b16 %v141
  %v727 = vunpack.c.l.b16 %v142
  %v728 = vunpack.c.h.b16 %v142
  %v729 = vunpack.c.l.b16 %v143
  %v730 = vunpack.c.h.b16 %v143
  %v731 = vunpack.c.l.b16 %v144
  %v732 = vunpack.c.h.b16 %v144
  %v733 = vunpack.c.l.b16 %v145
  %v734 = vunpack.c.h.b16 %v145
  %v735 = vunpack.c.l.b16 %v146
  %v736 = vunpack.c.h.b16 %v146
  %v737 = vunpack.c.l.b16 %v147
  %v738 = vunpack.c.h.b16 %v147
  %v739 = vunpack.c.l.b16 %v148
  %v740 = vunpack.c.h.b16 %v148
  %v741 = vunpack.c.l.b16 %v149
  %v742 = vunpack.c.h.b16 %v149
  %v743 = vunpack.c.l.b16 %v150
  %v744 = vunpack.c.h.b16 %v150
  %v745 = vunpack.c.l.b16 %v151
  %v746 = vunpack.c.h.b16 %v151
  %v747 = vunpack.c.l.b16 %v152
  %v748 = vunpack.c.h.b16 %v152
  %v749 = vunpack.c.l.b16 %v153
  %v750 = vunpack.c.h.b16 %v153
  %v751 = vunpack.c.l.b16 %v154
  %v752 = vunpack.c.h.b16 %v154
  %v753 = vunpack.c.l.b16 %v155
  %v754 = vunpack.c.h.b16 %v155
  %v755 = vunpack.c.l.b16 %v156
  %v756 = vunpack.c.h.b16 %v156
  %v757 = vunpack.c.l.b16 %v157
  %v758 = vunpack.c.h.b16 %v157
  %v759 = vunpack.c.l.b16 %v158
  %v760 = vunpack.c.h.b16 %v158
  %v761 = vunpack.c.l.b16 %v159
  %v762 = vunpack.c.h.b16 %v159
  %v763 = vunpack.c.l.b16 %v160
  %v764 = vunpack.c.h.b16 %v160
  %v765 = vunpack.c.l.b16 %v161
  %v766 = vunpack.c.h.b16 %v161
  %v767 = vunpack.c.l.b16 %v162
  %v768 = vunpack.c.h.b16 %v162
  %v769 = vunpack.c.l.b16 %v163
  %v770 = vunpack.c.h.b16 %v163
  %v771 = vunpack.c.l.b16 %v164
  %v772 = vunpack.c.h.b16 %v164
  %v773 = vunpack.c.l.b16 %v165
  %v774 = vunpack.c.h.b16 %v165
  %v775 = vunpack.c.l.b16 %v166
  %v776 = vunpack.c.h.b16 %v166
  %v777 = vunpack.c.l.b16 %v167
  %v778 = vunpack.c.h.b16 %v167
  %v779 = vunpack.c.l.b16 %v168
  %v780 = vunpack.c.h.b16 %v168
  %v781 = vunpack.c.l.b16 %v169
  %v782 = vunpack.c.h.b16 %v169
  %v783 = vunpack.c.l.b16 %v170
  %v784 = vunpack.c.h.b16 %v170
  %v785 = vunpack.c.l.b16 %v171
  %v786 = vunpack.c.h.b16 %v171
  %v787 = vunpack.c.l.b16 %v172
  %v788 = vunpack.c.h.b16 %v172
  %v789 = vunpack.c.l.b16 %v173
  %v790 = vunpack.c.h.b16 %v173
  %v791 = vunpack.c.l.b16 %v174
  %v792 = vunpack.c.h.b16 %v174
  %v793 = vunpack.c.l.b16 %v175
  %v794 = vunpack.c.h.b16 %v175
  %v795 = vunpack.c.l.b16 %v176
  %v796 = vunpack.c.h.b16 %v176
  %v797 = vunpack.c.l.b16 %v177
  %v798 = vunpack.c.h.b16 %v177
  %v799 = vunpack.c.l.b16 %v178
  %v800 = vunpack.c.h.b16 %v178
  %v801 = vunpack.c.l.b16 %v179
  %v802 = vunpack.c.h.b16 %v179
  %v803 = vunpack.c.l.b16 %v180
  %v804 = vunpack.c.h.b16 %v180
  %v805 = vunpack.c.l.b16 %v181
  %v806 = vunpack.c.h.b16 %v181
  %v807 = vunpack.c.l.b16 %v182
  %v808 = vunpack.c.h.b16 %v182
  %v809 = vunpack.c.l.b16 %v183
  %v810 = vunpack.c.h.b16 %v183
  %v811 = vunpack.c.l.b16 %v184
  %v812 = vunpack.c.h.b16 %v184
  %v813 = vunpack.c.l.b16 %v185
  %v814 = vunpack.c.h.b16 %v185
  %v815 = vunpack.c.l.b16 %v186
  %v816 = vunpack.c.h.b16 %v186
  %v817 = vunpack.c.l.b16 %v187
  %v818 = vunpack.c.h.b16 %v187
  %v819 = vunpack.c.l.b16 %v188
  %v820 = vunpack.c.h.b16 %v188
  %v821 = vunpack.c.l.b16 %v189
  %v822 = vunpack.c.h.b16 %v189
  %v823 = vunpack.c.l.b16 %v190
  %v824 = vunpack.c.h.b16 %v190
  %v825 = vunpack.c.l.b16 %v191
  %v826 = vunpack.c.h.b16 %v191
  %v827 = vunpack.c.l.b16 %v192
  %v828 = vunpack.c.h.b16 %v192
  %v829 = vunpack.c.l.b16 %v193
  %v830 = vunpack.c.h.b16 %v193
  %v831 = vunpack.c.l.b16 %v194
  %v832 = vunpack.c.h.b16 %v194
  %v833 = vunpack.c.l.b16 %v195
  %v834 = vunpack.c.h.b16 %v195
  %v835 = vunpack.c.l.b16 %v196
  %v836 = vunpack.c.h.b16 %v196
  %v837 = vunpack.c.l.b16 %v197
  %v838 = vunpack.c.h.b16 %v197
  %v839 = vunpack.c.l.b16 %v198
  %v840 = vunpack.c.h.b16 %v198
  %v841 = vunpack.c.l.b16 %v199
  %v842 = vunpack.c.h.b16 %v199
  %v843 = vunpack.c.l.b16 %v200
  %v844 = vunpack.c.h.b16 %v200
  %v845 = vunpack.c.l.b16 %v201
  %v846 = vunpack.c.h.b16 %v201
  %v847 = vunpack.c.l.b16 %v202
  %v848 = vunpack.c.h.b16 %v202
  %v849 = vunpack.c.l.b16 %v203
  %v850 = vunpack.c.h.b16 %v203
  %v851 = vunpack.c.l.b16 %v204
  %v852 = vunpack.c.h.b16 %v204
  %v853 = vunpack.c.l.b16 %v205
  %v854 = vunpack.c.h.b16 %v205
  %v855 = vunpack.c.l.b16 %v206
  %v856 = vunpack.c.h.b16 %v206
  %v857 = vunpack.c.l.b16 %v207
  %v858 = vunpack.c.h.b16 %v207
  %v859 = vunpack.c.l.b16 %v208
  %v860 = vunpack.c.h.b16 %v208
  %v861 = vunpack.c.l.b16 %v209
  %v862 = vunpack.c.h.b16 %v209
  %v863 = vunpack.c.l.b16 %v210
  %v864 = vunpack.c.h.b16 %v210
  %v865 = vunpack.c.l.b16 %v211
  %v866 = vunpack.c.h.b16 %v211
  %v867 = vunpack.c.l.b16 %v212
  %v868 = vunpack.c.h.b16 %v212
  %v869 = vunpack.c.l.b16 %v213
  %v870 = vunpack.c.h.b16 %v213
  %v871 = vunpack.c.l.b16 %v214
  %v872 = vunpack.c.h.b16 %v214
  %v873 = vunpack.c.l.b16 %v215
  %v874 = vunpack.c.h.b16 %v215
  %v875 = vunpack.c.l.b16 %v216
  %v876 = vunpack.c.h.b16 %v216
  %v877 = vunpack.c.l.b16 %v217
  %v878 = vunpack.c.h.b16 %v217
  %v879 = vunpack.c.l.b16 %v218
  %v880 = vunpack.c.h.b16 %v218
  %v881 = vunpack.c.l.b16 %v219
  %v882 = vunpack.c.h.b16 %v219
  %v883 = vunpack.c.l.b16 %v220
  %v884 = vunpack.c.h.b16 %v220
  %v885 = vunpack.c.l.b16 %v221
  %v886 = vunpack.c.h.b16 %v221
  %v887 = vunpack.c.l.b16 %v222
  %v888 = vunpack.c.h.b16 %v222
  %v889 = vunpack.c.l.b16 %v223
  %v890 = vunpack.c.h.b16 %v223
  %v891 = vunpack.c.l.b16 %v224
  %v892 = vunpack.c.h.b16 %v224
  %v893 = vunpack.c.l.b16 %v225
  %v894 = vunpack.c.h.b16 %v225
  %v895 = vunpack.c.l.b16 %v226
  %v896 = vunpack.c.h.b16 %v226
  %v897 = vunpack.c.l.b16 %v227
  %v898 = vunpack.c.h.b16 %v227
  %v899 = vunpack.c.l.b16 %v228
  %v900 = vunpack.c.h.b16 %v228
  %v901 = vunpack.c.l.b16 %v229
  %v902 = vunpack.c.h.b16 %v229
  %v903 = vunpack.c.l.b16 %v230
  %v904 = vunpack.c.h.b16 %v230
  %v905 = vunpack.c.l.b16 %v231
  %v906 = vunpack.c.h.b16 %v231
  %v907 = vunpack.c.l.b16 %v232
  %v908 = vunpack.c.h.b16 %v232
  %v909 = vunpack.c.l.b16 %v233
  %v910 = vunpack.c.h.b16 %v233
  %v911 = vunpack.c.l.b16 %v234
  %v912 = vunpack.c.h.b16 %v234
  %v913 = vpack.c.b16 %v485, %v481
  %v914 = vpack.c.b16 %v486, %v482
  %v915 = vpack.c.b16 %v487, %v483
  %v916 = vpack.c.b16 %v488, %v484
  %v917 = vpack.c.b16 %v493, %v489
  %v918 = vpack.c.b16 %v494, %v490
  %v919 = vpack.c.b16 %v495, %v491
  %v920 = vpack.c.b16 %v496, %v492
  %v921 = vpack.c.b16 %v501, %v497
  %v922 = vpack.c.b16 %v502, %v498
  %v923 = vpack.c.b16 %v503, %v499
  %v924 = vpack.c.b16 %v504, %v500
  %v925 = vpack.c.b16 %v509, %v505
  %v926 = vpack.c.b16 %v510, %v506
  %v927 = vpack.c.b16 %v511, %v507
  %v928 = vpack.c.b16 %v512, %v508
  %v929 = vpack.c.b16 %v517, %v513
  %v930 = vpack.c.b16 %v518, %v514
  %v931 = vpack.c.b16 %v519, %v515
  %v932 = vpack.c.b16 %v520, %v516
  %v933 = vpack.c.b16 %v525, %v521
  %v934 = vpack.c.b16 %v526, %v522
  %v935 = vpack.c.b16 %v527, %v523
  %v936 = vpack.c.b16 %v528, %v524
  %v937 = vpack.c.b16 %v533, %v529
  %v938 = vpack.c.b16 %v534, %v530
  %v939 = vpack.c.b16 %v535, %v531
  %v940 = vpack.c.b16 %v536, %v532
  %v941 = vpack.c.b16 %v541, %v537
  %v942 = vpack.c.b16 %v542, %v538
  %v943 = vpack.c.b16 %v543, %v539
  %v944 = vpack.c.b16 %v544, %v540
  %v945 = vpack.c.b16 %v549, %v545
  %v946 = vpack.c.b16 %v550, %v546
  %v947 = vpack.c.b16 %v551, %v547
  %v948 = vpack.c.b16 %v552, %v548
  %v949 = vpack.c.b16 %v557, %v553
  %v950 = vpack.c.b16 %v558, %v554
  %v951 = vpack.c.b16 %v559, %v555
  %v952 = vpack.c.b16 %v560, %v556
  %v953 = vpack.c.b16 %v565, %v561
  %v954 = vpack.c.b16 %v566, %v562
  %v955 = vpack.c.b16 %v567, %v563
  %v956 = vpack.c.b16 %v568, %v564
  %v957 = vpack.c.b16 %v573, %v569
  %v958 = vpack.c.b16 %v574, %v570
  %v959 = vpack.c.b16 %v575, %v571
  %v960 = vpack.c.b16 %v576, %v572
  %v961 = vpack.c.b16 %v581, %v577
  %v962 = vpack.c.b16 %v582, %v578
  %v963 = vpack.c.b16 %v583, %v579
  %v964 = vpack.c.b16 %v584, %v580
  %v965 = vpack.c.b16 %v589, %v585
  %v966 = vpack.c.b16 %v590, %v586
  %v967 = vpack.c.b16 %v591, %v587
  %v968 = vpack.c.b16 %v592, %v588
  %v969 = vpack.c.b16 %v597, %v593
  %v970 = vpack.c.b16 %v598, %v594
  %v971 = vpack.c.b16 %v599, %v595
  %v972 = vpack.c.b16 %v600, %v596
  %v973 = vpack.c.b16 %v605, %v601
  %v974 = vpack.c.b16 %v606, %v602
  %v975 = vpack.c.b16 %v607, %v603
  %v976 = vpack.c.b16 %v608, %v604
  %v977 = vpack.c.b16 %v613, %v609
  %v978 = vpack.c.b16 %v614, %v610
  %v979 = vpack.c.b16 %v615, %v611
  %v980 = vpack.c.b16 %v616, %v612
  %v981 = vpack.c.b16 %v621, %v617
  %v982 = vpack.c.b16 %v622, %v618
  %v983 = vpack.c.b16 %v623, %v619
  %v984 = vpack.c.b16 %v624, %v620
  %v985 = vpack.c.b16 %v629, %v625
  %v986 = vpack.c.b16 %v630, %v626
  %v987 = vpack.c.b16 %v631, %v627
  %v988 = vpack.c.b16 %v632, %v628
  %v989 = vpack.c.b16 %v637, %v633
  %v990 = vpack.c.b16 %v638, %v634
  %v991 = vpack.c.b16 %v639, %v635
  %v992 = vpack.c.b16 %v640, %v636
  %v993 = vpack.c.b16 %v645, %v641
  %v994 = vpack.c.b16 %v646, %v642
  %v995 = vpack.c.b16 %v647, %v643
  %v996 = vpack.c.b16 %v648, %v644
  %v997 = vpack.c.b16 %v653, %v649
  %v998 = vpack.c.b16 %v654, %v650
  %v999 = vpack.c.b16 %v655, %v651
  %v1000 = vpack.c.b16 %v656, %v652
  %v1001 = vpack.c.b16 %v661, %v657
  %v1002 = vpack.c.b16 %v662, %v658
  %v1003 = vpack.c.b16 %v663, %v659
  %v1004 = vpack.c.b16 %v664, %v660
  %v1005 = vpack.c.b16 %v669, %v665
  %v1006 = vpack.c.b16 %v670, %v666
  %v1007 = vpack.c.b16 %v671, %v667
  %v1008 = vpack.c.b16 %v672, %v668
  %v1009 = vpack.c.b16 %v677, %v673
  %v1010 = vpack.c.b16 %v678, %v674
  %v1011 = vpack.c.b16 %v679, %v675
  %v1012 = vpack.c.b16 %v680, %v676
  %v1013 = vpack.c.b16 %v685, %v681
  %v1014 = vpack.c.b16 %v686, %v682
  %v1015 = vpack.c.b16 %v687, %v683
  %v1016 = vpack.c.b16 %v688, %v684
  %v1017 = vpack.c.b16 %v693, %v689
  %v1018 = vpack.c.b16 %v694, %v690
  %v1019 = vpack.c.b16 %v695, %v691
  %v1020 = vpack.c.b16 %v696, %v692
  %v1021 = vpack.c.b16 %v701, %v697
  %v1022 = vpack.c.b16 %v702, %v698
  %v1023 = vpack.c.b16 %v703, %v699
  %v1024 = vpack.c.b16 %v704, %v700
  %v1025 = vpack.c.b16 %v709, %v705
  %v1026 = vpack.c.b16 %v710, %v706
  %v1027 = vpack.c.b16 %v711, %v707
  %v1028 = vpack.c.b16 %v712, %v708
  %v1029 = vpack.c.b16 %v717, %v713
  %v1030 = vpack.c.b16 %v718, %v714
  %v1031 = vpack.c.b16 %v719, %v715
  %v1032 = vpack.c.b16 %v720, %v716
  %v1033 = vpack.c.b16 %v725, %v721
  %v1034 = vpack.c.b16 %v726, %v722
  %v1035 = vpack.c.b16 %v727, %v723
  %v1036 = vpack.c.b16 %v728, %v724
  %v1037 = vpack.c.b16 %v733, %v729
  %v1038 = vpack.c.b16 %v734, %v730
  %v1039 = vpack.c.b16 %v735, %v731
  %v1040 = vpack.c.b16 %v736, %v732
  %v1041 = vpack.c.b16 %v741, %v737
  %v1042 = vpack.c.b16 %v742, %v738
  %v1043 = vpack.c.b16 %v743, %v739
  %v1044 = vpack.c.b16 %v744, %v740
  %v1045 = vpack.c.b16 %v749, %v745
  %v1046 = vpack.c.b16 %v750, %v746
  %v1047 = vpack.c.b16 %v751, %v747
  %v1048 = vpack.c.b16 %v752, %v748
  %v1049 = vpack.c.b16 %v757, %v753
  %v1050 = vpack.c.b16 %v758, %v754
  %v1051 = vpack.c.b16 %v759, %v755
  %v1052 = vpack.c.b16 %v760, %v756
  %v1053 = vpack.c.b16 %v765, %v761
  %v1054 = vpack.c.b16 %v766, %v762
  %v1055 = vpack.c.b16 %v767, %v763
  %v1056 = vpack.c.b16 %v768, %v764
  %v1057 = vpack.c.b16 %v773, %v769
  %v1058 = vpack.c.b16 %v774, %v770
  %v1059 = vpack.c.b16 %v775, %v771
  %v1060 = vpack.c.b16 %v776, %v772
  %v1061 = vpack.c.b16 %v781, %v777
  %v1062 = vpack.c.b16 %v782, %v778
  %v1063 = vpack.c.b16 %v783, %v779
  %v1064 = vpack.c.b16 %v784, %v780
  %v1065 = vpack.c.b16 %v789, %v785
  %v1066 = vpack.c.b16 %v790, %v786
  %v1067 = vpack.c.b16 %v791, %v787
  %v1068 = vpack.c.b16 %v792, %v788
  %v1069 = vpack.c.b16 %v797, %v793
  %v1070 = vpack.c.b16 %v798, %v794
  %v1071 = vpack.c.b16 %v799, %v795
  %v1072 = vpack.c.b16 %v800, %v796
  %v1073 = vpack.c.b16 %v805, %v801
  %v1074 = vpack.c.b16 %v806, %v802
  %v1075 = vpack.c.b16 %v807, %v803
  %v1076 = vpack.c.b16 %v808, %v804
  %v1077 = vpack.c.b16 %v813, %v809
  %v1078 = vpack.c.b16 %v814, %v810
  %v1079 = vpack.c.b16 %v815, %v811
  %v1080 = vpack.c.b16 %v816, %v812
  %v1081 = vpack.c.b16 %v821, %v817
  %v1082 = vpack.c.b16 %v822, %v818
  %v1083 = vpack.c.b16 %v823, %v819
  %v1084 = vpack.c.b16 %v824, %v820
  %v1085 = vpack.c.b16 %v829, %v825
  %v1086 = vpack.c.b16 %v830, %v826
  %v1087 = vpack.c.b16 %v831, %v827
  %v1088 = vpack.c.b16 %v832, %v828
  %v1089 = vpack.c.b16 %v837, %v833
  %v1090 = vpack.c.b16 %v838, %v834
  %v1091 = vpack.c.b16 %v839, %v835
  %v1092 = vpack.c.b16 %v840, %v836
  %v1093 = vpack.c.b16 %v845, %v841
  %v1094 = vpack.c.b16 %v846, %v842
  %v1095 = vpack.c.b16 %v847, %v843
  %v1096 = vpack.c.b16 %v848, %v844
  %v1097 = vpack.c.b16 %v853, %v849
  %v1098 = vpack.c.b16 %v854, %v850
  %v1099 = vpack.c.b16 %v855, %v851
  %v1100 = vpack.c.b16 %v856, %v852
  %v1101 = vpack.c.b16 %v861, %v857
  %v1102 = vpack.c.b16 %v862, %v858
  %v1103 = vpack.c.b16 %v863, %v859
  %v1104 = vpack.c.b16 %v864, %v860
  %v1105 = vpack.c.b16 %v869, %v865
  %v1106 = vpack.c.b16 %v870, %v866
  %v1107 = vpack.c.b16 %v871, %v867
  %v1108 = vpack.c.b16 %v872, %v868
  %v1109 = vpack.c.b16 %v877, %v873
  %v1110 = vpack.c.b16 %v878, %v874
  %v1111 = vpack.c.b16 %v879, %v875
  %v1112 = vpack.c.b16 %v880, %v876
  %v1113 = vpack.c.b16 %v885, %v881
  %v1114 = vpack.c.b16 %v886, %v882
  %v1115 = vpack.c.b16 %v887, %v883
  %v1116 = vpack.c.b16 %v888, %v884
  %v1117 = vpack.c.b16 %v893, %v889
  %v1118 = vpack.c.b16 %v894, %v890
  %v1119 = vpack.c.b16 %v895, %v891
  %v1120 = vpack.c.b16 %v896, %v892
  %v1121 = vpack.c.b16 %v901, %v897
  %v1122 = vpack.c.b16 %v902, %v898
  %v1123 = vpack.c.b16 %v903, %v899
  %v1124 = vpack.c.b16 %v904, %v900
  %v1125 = vpack.c.b16 %v909, %v905
  %v1126 = vpack.c.b16 %v910, %v906
  %v1127 = vpack.c.b16 %v911, %v907
  %v1128 = vpack.c.b16 %v912, %v908
  %vm1345 = vcmask 785408
  %v1347 = vsel %vm1345, %v258, 0
  %1349 = vmatpush.bf16.msra.mxu0 %v941
  %1350 = vmatpush.bf16.msra.mxu0 %v937
  %1351 = vmatpush.bf16.msra.mxu0 %v933
  %1352 = vmatpush.bf16.msra.mxu0 %v929
  %1353 = vmatpush.bf16.msra.mxu0 %v925
  %1354 = vmatpush.bf16.msra.mxu0 %v921
  %1355 = vmatpush.bf16.msra.mxu0 %v917
  %1356 = vmatpush.bf16.msra.mxu0 %v913
  %1357 = vmatmul.bf16.gmra.mxu0 %v252
  %v1358 = vpop.f32.mrf.mxu0
  %v1359 = vadd.f32 %v239, %v1358
  %v1360 = vpop.f32.mrf.mxu0
  %1361 = vdwg.mxu0
  %1362 = vmatpush.bf16.msra.mxu0 %v973
  %1363 = vmatpush.bf16.msra.mxu0 %v969
  %1364 = vmatpush.bf16.msra.mxu0 %v965
  %1365 = vmatpush.bf16.msra.mxu0 %v961
  %1366 = vmatpush.bf16.msra.mxu0 %v957
  %1367 = vmatpush.bf16.msra.mxu0 %v953
  %1368 = vmatpush.bf16.msra.mxu0 %v949
  %1369 = vmatpush.bf16.msra.mxu0 %v945
  %1370 = vmatmul.bf16.gmra.mxu0 %v253
  %v1371 = vpop.f32.mrf.mxu0
  %v1372 = vadd.f32 %v1359, %v1371
  %v1373 = vpop.f32.mrf.mxu0
  %1374 = vdwg.mxu0
  %1375 = vmatpush.bf16.msra.mxu0 %v1005
  %1376 = vmatpush.bf16.msra.mxu0 %v1001
  %1377 = vmatpush.bf16.msra.mxu0 %v997
  %1378 = vmatpush.bf16.msra.mxu0 %v993
  %1379 = vmatpush.bf16.msra.mxu0 %v989
  %1380 = vmatpush.bf16.msra.mxu0 %v985
  %1381 = vmatpush.bf16.msra.mxu0 %v981
  %1382 = vmatpush.bf16.msra.mxu0 %v977
  %1383 = vmatmul.bf16.gmra.mxu0 %v254
  %v1384 = vpop.f32.mrf.mxu0
  %v1385 = vadd.f32 %v1372, %v1384
  %v1386 = vpop.f32.mrf.mxu0
  %1387 = vdwg.mxu0
  %1388 = vmatpush.bf16.msra.mxu0 %v1037
  %1389 = vmatpush.bf16.msra.mxu0 %v1033
  %1390 = vmatpush.bf16.msra.mxu0 %v1029
  %1391 = vmatpush.bf16.msra.mxu0 %v1025
  %1392 = vmatpush.bf16.msra.mxu0 %v1021
  %1393 = vmatpush.bf16.msra.mxu0 %v1017
  %1394 = vmatpush.bf16.msra.mxu0 %v1013
  %1395 = vmatpush.bf16.msra.mxu0 %v1009
  %1396 = vmatmul.bf16.gmra.mxu0 %v255
  %v1397 = vpop.f32.mrf.mxu0
  %v1398 = vadd.f32 %v1385, %v1397
  %v1399 = vpop.f32.mrf.mxu0
  %1400 = vdwg.mxu0
  %1401 = vmatpush.bf16.msra.mxu0 %v1069
  %1402 = vmatpush.bf16.msra.mxu0 %v1065
  %1403 = vmatpush.bf16.msra.mxu0 %v1061
  %1404 = vmatpush.bf16.msra.mxu0 %v1057
  %1405 = vmatpush.bf16.msra.mxu0 %v1053
  %1406 = vmatpush.bf16.msra.mxu0 %v1049
  %1407 = vmatpush.bf16.msra.mxu0 %v1045
  %1408 = vmatpush.bf16.msra.mxu0 %v1041
  %1409 = vmatmul.bf16.gmra.mxu0 %v256
  %v1410 = vpop.f32.mrf.mxu0
  %v1411 = vadd.f32 %v1398, %v1410
  %v1412 = vpop.f32.mrf.mxu0
  %1413 = vdwg.mxu0
  %1414 = vmatpush.bf16.msra.mxu0 %v1101
  %1415 = vmatpush.bf16.msra.mxu0 %v1097
  %1416 = vmatpush.bf16.msra.mxu0 %v1093
  %1417 = vmatpush.bf16.msra.mxu0 %v1089
  %1418 = vmatpush.bf16.msra.mxu0 %v1085
  %1419 = vmatpush.bf16.msra.mxu0 %v1081
  %1420 = vmatpush.bf16.msra.mxu0 %v1077
  %1421 = vmatpush.bf16.msra.mxu0 %v1073
  %1422 = vmatmul.bf16.gmra.mxu0 %v257
  %v1423 = vpop.f32.mrf.mxu0
  %v1424 = vadd.f32 %v1411, %v1423
  %v1425 = vpop.f32.mrf.mxu0
  %1426 = vdwg.mxu0
  %1427 = vmatpush.bf16.msra.mxu0 0
  %1428 = vmatpush.bf16.msra.mxu0 0
  %1429 = vmatpush.bf16.msra.mxu0 %v1125
  %1430 = vmatpush.bf16.msra.mxu0 %v1121
  %1431 = vmatpush.bf16.msra.mxu0 %v1117
  %1432 = vmatpush.bf16.msra.mxu0 %v1113
  %1433 = vmatpush.bf16.msra.mxu0 %v1109
  %1434 = vmatpush.bf16.msra.mxu0 %v1105
  %1435 = vmatmul.bf16.gmra.mxu0 %v1347
  %v1436 = vpop.f32.mrf.mxu0
  %v1437 = vadd.f32 %v1424, %v1436
  %v1438 = vpop.f32.mrf.mxu0
  %1439 = vdwg.mxu0
  %1440 = vmatpush.bf16.msra.mxu0 %v942
  %1441 = vmatpush.bf16.msra.mxu0 %v938
  %1442 = vmatpush.bf16.msra.mxu0 %v934
  %1443 = vmatpush.bf16.msra.mxu0 %v930
  %1444 = vmatpush.bf16.msra.mxu0 %v926
  %1445 = vmatpush.bf16.msra.mxu0 %v922
  %1446 = vmatpush.bf16.msra.mxu0 %v918
  %1447 = vmatpush.bf16.msra.mxu0 %v914
  %1448 = vmatmul.bf16.gmra.mxu0 %v252
  %v1449 = vpop.f32.mrf.mxu0
  %v1450 = vadd.f32 %v239, %v1449
  %v1451 = vpop.f32.mrf.mxu0
  %1452 = vdwg.mxu0
  %1453 = vmatpush.bf16.msra.mxu0 %v974
  %1454 = vmatpush.bf16.msra.mxu0 %v970
  %1455 = vmatpush.bf16.msra.mxu0 %v966
  %1456 = vmatpush.bf16.msra.mxu0 %v962
  %1457 = vmatpush.bf16.msra.mxu0 %v958
  %1458 = vmatpush.bf16.msra.mxu0 %v954
  %1459 = vmatpush.bf16.msra.mxu0 %v950
  %1460 = vmatpush.bf16.msra.mxu0 %v946
  %1461 = vmatmul.bf16.gmra.mxu0 %v253
  %v1462 = vpop.f32.mrf.mxu0
  %v1463 = vadd.f32 %v1450, %v1462
  %v1464 = vpop.f32.mrf.mxu0
  %1465 = vdwg.mxu0
  %1466 = vmatpush.bf16.msra.mxu0 %v1006
  %1467 = vmatpush.bf16.msra.mxu0 %v1002
  %1468 = vmatpush.bf16.msra.mxu0 %v998
  %1469 = vmatpush.bf16.msra.mxu0 %v994
  %1470 = vmatpush.bf16.msra.mxu0 %v990
  %1471 = vmatpush.bf16.msra.mxu0 %v986
  %1472 = vmatpush.bf16.msra.mxu0 %v982
  %1473 = vmatpush.bf16.msra.mxu0 %v978
  %1474 = vmatmul.bf16.gmra.mxu0 %v254
  %v1475 = vpop.f32.mrf.mxu0
  %v1476 = vadd.f32 %v1463, %v1475
  %v1477 = vpop.f32.mrf.mxu0
  %1478 = vdwg.mxu0
  %1479 = vmatpush.bf16.msra.mxu0 %v1038
  %1480 = vmatpush.bf16.msra.mxu0 %v1034
  %1481 = vmatpush.bf16.msra.mxu0 %v1030
  %1482 = vmatpush.bf16.msra.mxu0 %v1026
  %1483 = vmatpush.bf16.msra.mxu0 %v1022
  %1484 = vmatpush.bf16.msra.mxu0 %v1018
  %1485 = vmatpush.bf16.msra.mxu0 %v1014
  %1486 = vmatpush.bf16.msra.mxu0 %v1010
  %1487 = vmatmul.bf16.gmra.mxu0 %v255
  %v1488 = vpop.f32.mrf.mxu0
  %v1489 = vadd.f32 %v1476, %v1488
  %v1490 = vpop.f32.mrf.mxu0
  %1491 = vdwg.mxu0
  %1492 = vmatpush.bf16.msra.mxu0 %v1070
  %1493 = vmatpush.bf16.msra.mxu0 %v1066
  %1494 = vmatpush.bf16.msra.mxu0 %v1062
  %1495 = vmatpush.bf16.msra.mxu0 %v1058
  %1496 = vmatpush.bf16.msra.mxu0 %v1054
  %1497 = vmatpush.bf16.msra.mxu0 %v1050
  %1498 = vmatpush.bf16.msra.mxu0 %v1046
  %1499 = vmatpush.bf16.msra.mxu0 %v1042
  %1500 = vmatmul.bf16.gmra.mxu0 %v256
  %v1501 = vpop.f32.mrf.mxu0
  %v1502 = vadd.f32 %v1489, %v1501
  %v1503 = vpop.f32.mrf.mxu0
  %1504 = vdwg.mxu0
  %1505 = vmatpush.bf16.msra.mxu0 %v1102
  %1506 = vmatpush.bf16.msra.mxu0 %v1098
  %1507 = vmatpush.bf16.msra.mxu0 %v1094
  %1508 = vmatpush.bf16.msra.mxu0 %v1090
  %1509 = vmatpush.bf16.msra.mxu0 %v1086
  %1510 = vmatpush.bf16.msra.mxu0 %v1082
  %1511 = vmatpush.bf16.msra.mxu0 %v1078
  %1512 = vmatpush.bf16.msra.mxu0 %v1074
  %1513 = vmatmul.bf16.gmra.mxu0 %v257
  %v1514 = vpop.f32.mrf.mxu0
  %v1515 = vadd.f32 %v1502, %v1514
  %v1516 = vpop.f32.mrf.mxu0
  %1517 = vdwg.mxu0
  %1518 = vmatpush.bf16.msra.mxu0 0
  %1519 = vmatpush.bf16.msra.mxu0 0
  %1520 = vmatpush.bf16.msra.mxu0 %v1126
  %1521 = vmatpush.bf16.msra.mxu0 %v1122
  %1522 = vmatpush.bf16.msra.mxu0 %v1118
  %1523 = vmatpush.bf16.msra.mxu0 %v1114
  %1524 = vmatpush.bf16.msra.mxu0 %v1110
  %1525 = vmatpush.bf16.msra.mxu0 %v1106
  %1526 = vmatmul.bf16.gmra.mxu0 %v1347
  %v1527 = vpop.f32.mrf.mxu0
  %v1528 = vadd.f32 %v1515, %v1527
  %v1529 = vpop.f32.mrf.mxu0
  %1530 = vdwg.mxu0
  %1531 = vmatpush.bf16.msra.mxu0 %v943
  %1532 = vmatpush.bf16.msra.mxu0 %v939
  %1533 = vmatpush.bf16.msra.mxu0 %v935
  %1534 = vmatpush.bf16.msra.mxu0 %v931
  %1535 = vmatpush.bf16.msra.mxu0 %v927
  %1536 = vmatpush.bf16.msra.mxu0 %v923
  %1537 = vmatpush.bf16.msra.mxu0 %v919
  %1538 = vmatpush.bf16.msra.mxu0 %v915
  %1539 = vmatmul.bf16.gmra.mxu0 %v252
  %v1540 = vpop.f32.mrf.mxu0
  %v1541 = vadd.f32 %v239, %v1540
  %v1542 = vpop.f32.mrf.mxu0
  %1543 = vdwg.mxu0
  %1544 = vmatpush.bf16.msra.mxu0 %v975
  %1545 = vmatpush.bf16.msra.mxu0 %v971
  %1546 = vmatpush.bf16.msra.mxu0 %v967
  %1547 = vmatpush.bf16.msra.mxu0 %v963
  %1548 = vmatpush.bf16.msra.mxu0 %v959
  %1549 = vmatpush.bf16.msra.mxu0 %v955
  %1550 = vmatpush.bf16.msra.mxu0 %v951
  %1551 = vmatpush.bf16.msra.mxu0 %v947
  %1552 = vmatmul.bf16.gmra.mxu0 %v253
  %v1553 = vpop.f32.mrf.mxu0
  %v1554 = vadd.f32 %v1541, %v1553
  %v1555 = vpop.f32.mrf.mxu0
  %1556 = vdwg.mxu0
  %1557 = vmatpush.bf16.msra.mxu0 %v1007
  %1558 = vmatpush.bf16.msra.mxu0 %v1003
  %1559 = vmatpush.bf16.msra.mxu0 %v999
  %1560 = vmatpush.bf16.msra.mxu0 %v995
  %1561 = vmatpush.bf16.msra.mxu0 %v991
  %1562 = vmatpush.bf16.msra.mxu0 %v987
  %1563 = vmatpush.bf16.msra.mxu0 %v983
  %1564 = vmatpush.bf16.msra.mxu0 %v979
  %1565 = vmatmul.bf16.gmra.mxu0 %v254
  %v1566 = vpop.f32.mrf.mxu0
  %v1567 = vadd.f32 %v1554, %v1566
  %v1568 = vpop.f32.mrf.mxu0
  %1569 = vdwg.mxu0
  %1570 = vmatpush.bf16.msra.mxu0 %v1039
  %1571 = vmatpush.bf16.msra.mxu0 %v1035
  %1572 = vmatpush.bf16.msra.mxu0 %v1031
  %1573 = vmatpush.bf16.msra.mxu0 %v1027
  %1574 = vmatpush.bf16.msra.mxu0 %v1023
  %1575 = vmatpush.bf16.msra.mxu0 %v1019
  %1576 = vmatpush.bf16.msra.mxu0 %v1015
  %1577 = vmatpush.bf16.msra.mxu0 %v1011
  %1578 = vmatmul.bf16.gmra.mxu0 %v255
  %v1579 = vpop.f32.mrf.mxu0
  %v1580 = vadd.f32 %v1567, %v1579
  %v1581 = vpop.f32.mrf.mxu0
  %1582 = vdwg.mxu0
  %1583 = vmatpush.bf16.msra.mxu0 %v1071
  %1584 = vmatpush.bf16.msra.mxu0 %v1067
  %1585 = vmatpush.bf16.msra.mxu0 %v1063
  %1586 = vmatpush.bf16.msra.mxu0 %v1059
  %1587 = vmatpush.bf16.msra.mxu0 %v1055
  %1588 = vmatpush.bf16.msra.mxu0 %v1051
  %1589 = vmatpush.bf16.msra.mxu0 %v1047
  %1590 = vmatpush.bf16.msra.mxu0 %v1043
  %1591 = vmatmul.bf16.gmra.mxu0 %v256
  %v1592 = vpop.f32.mrf.mxu0
  %v1593 = vadd.f32 %v1580, %v1592
  %v1594 = vpop.f32.mrf.mxu0
  %1595 = vdwg.mxu0
  %1596 = vmatpush.bf16.msra.mxu0 %v1103
  %1597 = vmatpush.bf16.msra.mxu0 %v1099
  %1598 = vmatpush.bf16.msra.mxu0 %v1095
  %1599 = vmatpush.bf16.msra.mxu0 %v1091
  %1600 = vmatpush.bf16.msra.mxu0 %v1087
  %1601 = vmatpush.bf16.msra.mxu0 %v1083
  %1602 = vmatpush.bf16.msra.mxu0 %v1079
  %1603 = vmatpush.bf16.msra.mxu0 %v1075
  %1604 = vmatmul.bf16.gmra.mxu0 %v257
  %v1605 = vpop.f32.mrf.mxu0
  %v1606 = vadd.f32 %v1593, %v1605
  %v1607 = vpop.f32.mrf.mxu0
  %1608 = vdwg.mxu0
  %1609 = vmatpush.bf16.msra.mxu0 0
  %1610 = vmatpush.bf16.msra.mxu0 0
  %1611 = vmatpush.bf16.msra.mxu0 %v1127
  %1612 = vmatpush.bf16.msra.mxu0 %v1123
  %1613 = vmatpush.bf16.msra.mxu0 %v1119
  %1614 = vmatpush.bf16.msra.mxu0 %v1115
  %1615 = vmatpush.bf16.msra.mxu0 %v1111
  %1616 = vmatpush.bf16.msra.mxu0 %v1107
  %1617 = vmatmul.bf16.gmra.mxu0 %v1347
  %v1618 = vpop.f32.mrf.mxu0
  %v1619 = vadd.f32 %v1606, %v1618
  %v1620 = vpop.f32.mrf.mxu0
  %1621 = vdwg.mxu0
  %1622 = vmatpush.bf16.msra.mxu0 %v944
  %1623 = vmatpush.bf16.msra.mxu0 %v940
  %1624 = vmatpush.bf16.msra.mxu0 %v936
  %1625 = vmatpush.bf16.msra.mxu0 %v932
  %1626 = vmatpush.bf16.msra.mxu0 %v928
  %1627 = vmatpush.bf16.msra.mxu0 %v924
  %1628 = vmatpush.bf16.msra.mxu0 %v920
  %1629 = vmatpush.bf16.msra.mxu0 %v916
  %1630 = vmatmul.bf16.gmra.mxu0 %v252
  %v1631 = vpop.f32.mrf.mxu0
  %v1632 = vadd.f32 %v239, %v1631
  %v1633 = vpop.f32.mrf.mxu0
  %1634 = vdwg.mxu0
  %1635 = vmatpush.bf16.msra.mxu0 %v976
  %1636 = vmatpush.bf16.msra.mxu0 %v972
  %1637 = vmatpush.bf16.msra.mxu0 %v968
  %1638 = vmatpush.bf16.msra.mxu0 %v964
  %1639 = vmatpush.bf16.msra.mxu0 %v960
  %1640 = vmatpush.bf16.msra.mxu0 %v956
  %1641 = vmatpush.bf16.msra.mxu0 %v952
  %1642 = vmatpush.bf16.msra.mxu0 %v948
  %1643 = vmatmul.bf16.gmra.mxu0 %v253
  %v1644 = vpop.f32.mrf.mxu0
  %v1645 = vadd.f32 %v1632, %v1644
  %v1646 = vpop.f32.mrf.mxu0
  %1647 = vdwg.mxu0
  %1648 = vmatpush.bf16.msra.mxu0 %v1008
  %1649 = vmatpush.bf16.msra.mxu0 %v1004
  %1650 = vmatpush.bf16.msra.mxu0 %v1000
  %1651 = vmatpush.bf16.msra.mxu0 %v996
  %1652 = vmatpush.bf16.msra.mxu0 %v992
  %1653 = vmatpush.bf16.msra.mxu0 %v988
  %1654 = vmatpush.bf16.msra.mxu0 %v984
  %1655 = vmatpush.bf16.msra.mxu0 %v980
  %1656 = vmatmul.bf16.gmra.mxu0 %v254
  %v1657 = vpop.f32.mrf.mxu0
  %v1658 = vadd.f32 %v1645, %v1657
  %v1659 = vpop.f32.mrf.mxu0
  %1660 = vdwg.mxu0
  %1661 = vmatpush.bf16.msra.mxu0 %v1040
  %1662 = vmatpush.bf16.msra.mxu0 %v1036
  %1663 = vmatpush.bf16.msra.mxu0 %v1032
  %1664 = vmatpush.bf16.msra.mxu0 %v1028
  %1665 = vmatpush.bf16.msra.mxu0 %v1024
  %1666 = vmatpush.bf16.msra.mxu0 %v1020
  %1667 = vmatpush.bf16.msra.mxu0 %v1016
  %1668 = vmatpush.bf16.msra.mxu0 %v1012
  %1669 = vmatmul.bf16.gmra.mxu0 %v255
  %v1670 = vpop.f32.mrf.mxu0
  %v1671 = vadd.f32 %v1658, %v1670
  %v1672 = vpop.f32.mrf.mxu0
  %1673 = vdwg.mxu0
  %1674 = vmatpush.bf16.msra.mxu0 %v1072
  %1675 = vmatpush.bf16.msra.mxu0 %v1068
  %1676 = vmatpush.bf16.msra.mxu0 %v1064
  %1677 = vmatpush.bf16.msra.mxu0 %v1060
  %1678 = vmatpush.bf16.msra.mxu0 %v1056
  %1679 = vmatpush.bf16.msra.mxu0 %v1052
  %1680 = vmatpush.bf16.msra.mxu0 %v1048
  %1681 = vmatpush.bf16.msra.mxu0 %v1044
  %1682 = vmatmul.bf16.gmra.mxu0 %v256
  %v1683 = vpop.f32.mrf.mxu0
  %v1684 = vadd.f32 %v1671, %v1683
  %v1685 = vpop.f32.mrf.mxu0
  %1686 = vdwg.mxu0
  %1687 = vmatpush.bf16.msra.mxu0 %v1104
  %1688 = vmatpush.bf16.msra.mxu0 %v1100
  %1689 = vmatpush.bf16.msra.mxu0 %v1096
  %1690 = vmatpush.bf16.msra.mxu0 %v1092
  %1691 = vmatpush.bf16.msra.mxu0 %v1088
  %1692 = vmatpush.bf16.msra.mxu0 %v1084
  %1693 = vmatpush.bf16.msra.mxu0 %v1080
  %1694 = vmatpush.bf16.msra.mxu0 %v1076
  %1695 = vmatmul.bf16.gmra.mxu0 %v257
  %v1696 = vpop.f32.mrf.mxu0
  %v1697 = vadd.f32 %v1684, %v1696
  %v1698 = vpop.f32.mrf.mxu0
  %1699 = vdwg.mxu0
  %1700 = vmatpush.bf16.msra.mxu0 0
  %1701 = vmatpush.bf16.msra.mxu0 0
  %1702 = vmatpush.bf16.msra.mxu0 %v1128
  %1703 = vmatpush.bf16.msra.mxu0 %v1124
  %1704 = vmatpush.bf16.msra.mxu0 %v1120
  %1705 = vmatpush.bf16.msra.mxu0 %v1116
  %1706 = vmatpush.bf16.msra.mxu0 %v1112
  %1707 = vmatpush.bf16.msra.mxu0 %v1108
  %1708 = vmatmul.bf16.gmra.mxu0 %v1347
  %v1709 = vpop.f32.mrf.mxu0
  %v1710 = vadd.f32 %v1697, %v1709
  %v1711 = vpop.f32.mrf.mxu0
  %1712 = vdwg.mxu0
  %vm1713 = vcmp.ge.f32.partialorder %v1437, 0.0
  %vm1714 = vcmp.ge.f32.partialorder %v1528, 0.0
  %vm1715 = vcmp.ge.f32.partialorder %v1619, 0.0
  %vm1716 = vcmp.ge.f32.partialorder %v1710, 0.0
  %v1717 = vmul.f32 %v1437, 0.01
  %v1718 = vmul.f32 %v1528, 0.01
  %v1719 = vmul.f32 %v1619, 0.01
  %v1720 = vmul.f32 %v1710, 0.01
  %v1721 = vsel %vm1713, %v1437, %v1717
  %v1722 = vsel %vm1714, %v1528, %v1718
  %v1723 = vsel %vm1715, %v1619, %v1719
  %v1724 = vsel %vm1716, %v1710, %v1720
  %1725 = vst [vmem:[%s3] sm:$0xff] %v1721
  %1726 = vst [vmem:[%s3 + $0x8] sm:$0xff] %v1722
  %1727 = vst [vmem:[%s3 + $0x10] sm:$0xff] %v1723
  %1728 = vst [vmem:[%s3 + $0x18] sm:$0xff] %v1724
  // Predicated region
  $region14: #{pyramid_scene_transformer_forward.3} parent=0 // pred_check
    _
  $region15: #{pyramid_scene_transformer_forward.3} parent=0 // pred_check_branch
    %1730 = sbr.rel (0) target = $region17
  $region16: #{pyramid_scene_transformer_forward.3} parent=0 // pred_region
    _
  $region17: #{pyramid_scene_transformer_forward.3} parent=0 // pred_fallthru
    _
  // Predicated region
  $region18: #{pyramid_scene_transformer_forward.3} parent=0 // pred_check
    _
  $region19: #{pyramid_scene_transformer_forward.3} parent=0 // pred_check_branch
    %1732 = sbr.rel (0) target = $region21
  $region20: #{pyramid_scene_transformer_forward.3} parent=0 // pred_region
    _
  $region21: #{pyramid_scene_transformer_forward.3} parent=0 // pred_fallthru
    _

</llo_original>
